<compile_context>
chip_gen: v7x
topology: tpu7x:2x2x1
jax: 0.10.0
libtpu: 0.0.40
codegen_flags: <defaults>
</compile_context>

<pallas_src>
import functools

import jax
import jax.numpy as jnp
from jax.experimental import pallas as pl
from jax.experimental.pallas import tpu as pltpu

# MLP layer sizes (input_feature is data-dependent in the original script via
# scio.loadmat; we pick a small deterministic value here).
INPUT_FEATURE = 16
DIMS = [INPUT_FEATURE, 64, 256, 1024, 256, 64, 3]  # 6 Linear layers
OUT_PAD = 128  # lane-dense padded width for the 3-wide output


def _round_up(n, m):
    return ((n + m - 1) // m) * m


def _num_tensorcores():
    """TensorCores that can share the Pallas grid on this chip: 1 on v5e/v6e,
    2 on v7x.  Robust to API differences; defaults to 1 (single-TC)."""
    try:
        info = pltpu.get_tpu_info()
        for attr in ("num_cores", "core_count", "num_tensorcores",
                     "tensorcore_count"):
            v = getattr(info, attr, None)
            if isinstance(v, int) and v > 0:
                return v
    except Exception:
        pass
    try:
        kind = jax.devices()[0].device_kind.lower()
        if "v7" in kind:
            return 2
    except Exception:
        pass
    return 1


_NUM_TC = _num_tensorcores()


def _mlp_kernel(x_ref,
                w1_ref, b1_ref,
                w2_ref, b2_ref,
                w3_ref, b3_ref,
                w4_ref, b4_ref,
                w5_ref, b5_ref,
                w6_ref, b6_ref,
                o_ref):
    """Fused 6-layer MLP forward for one tile of rows.

    MXU matmuls use bf16 operands (weights stored bf16; f32 activations cast
    at the dot) with f32 accumulation.  Elementwise work (bias add, ReLU,
    sigmoid) stays f32 so it is safe on v5e's f32-only VPU/EUP.
    """
    h = x_ref[...].astype(jnp.float32)

    def linear(h, w_ref, b_ref):
        y = jnp.dot(h.astype(jnp.bfloat16), w_ref[...],
                    preferred_element_type=jnp.float32)
        return y + b_ref[...]

    h = jnp.maximum(linear(h, w1_ref, b1_ref), 0.0)
    h = jnp.maximum(linear(h, w2_ref, b2_ref), 0.0)
    h = jnp.maximum(linear(h, w3_ref, b3_ref), 0.0)
    h = jnp.maximum(linear(h, w4_ref, b4_ref), 0.0)
    h = jnp.maximum(linear(h, w5_ref, b5_ref), 0.0)
    # Final layer is zero-padded to OUT_PAD lanes -> full-width unmasked store.
    h = linear(h, w6_ref, b6_ref)
    # Sigmoid via exp + approx reciprocal: both land on the EUP slot.
    o_ref[...] = pl.reciprocal(1.0 + jnp.exp(-h), approx=True).astype(o_ref.dtype)


def _choose_block_rows(batch, num_cores, requested):
    """Row-tile size.  Single-TC chips: one big serial tile (amortize ~0.35us
    per-step cost).  Multi-TC (v7x): >= 2*num_cores balanced steps, each tile
    still >= 128 rows so the MXU M dimension stays filled."""
    rows_cap = _round_up(batch, 8)
    if num_cores <= 1:
        rows = min(requested, rows_cap)
    else:
        rows = _round_up(pl.cdiv(batch, 2 * num_cores), 8)
        rows = max(128, rows)
        rows = min(rows, requested, rows_cap)
        if batch >= num_cores * 128:
            rows = min(rows, _round_up(pl.cdiv(batch, num_cores), 8))
    return max(8, _round_up(rows, 8))


def _resident_spec(shape, single_buffered):
    """BlockSpec for grid-invariant operands (weights/biases).  Single-buffer
    them when supported: they never change across grid steps, so the second
    pipeline buffer is pure VMEM waste."""
    idx_map = lambda i: (0, 0)
    if single_buffered and hasattr(pl, "Buffered"):
        try:
            return pl.BlockSpec(shape, idx_map, pipeline_mode=pl.Buffered(1))
        except TypeError:
            pass
    return pl.BlockSpec(shape, idx_map)


@functools.partial(jax.jit,
                   static_argnames=("block_rows", "single_buffered_weights"))
def _mnn_forward_impl(x, flat_params, *, block_rows, single_buffered_weights):
    B, F = x.shape
    assert F == DIMS[0]
    out_dim = DIMS[-1]

    eff_rows = _choose_block_rows(B, _NUM_TC, block_rows)
    grid = (pl.cdiv(B, eff_rows),)

    in_specs = [pl.BlockSpec((eff_rows, F), lambda i: (i, 0))]
    for arr in flat_params:
        in_specs.append(_resident_spec(arr.shape, single_buffered_weights))

    out_specs = pl.BlockSpec((eff_rows, OUT_PAD), lambda i: (i, 0))

    flops = 2 * B * sum(DIMS[i] * DIMS[i + 1] for i in range(len(DIMS) - 1))
    param_bytes = sum(a.size * a.dtype.itemsize for a in flat_params)
    cost = pl.CostEstimate(
        flops=flops,
        transcendentals=2 * B * OUT_PAD,  # exp + approx reciprocal
        bytes_accessed=(x.size * x.dtype.itemsize + param_bytes
                        + B * OUT_PAD * 4),
    )

    out_padded = pl.pallas_call(
        _mlp_kernel,
        out_shape=jax.ShapeDtypeStruct((B, OUT_PAD), jnp.float32),
        grid_spec=pltpu.PrefetchScalarGridSpec(
            num_scalar_prefetch=0,
            grid=grid,
            in_specs=in_specs,
            out_specs=out_specs,
        ),
        compiler_params=pltpu.CompilerParams(
            dimension_semantics=("parallel",),
            vmem_limit_bytes=32 * 1024 * 1024,
        ),
        cost_estimate=cost,
    )(x, *flat_params)

    # TODO(synk): if HBM output writes ever dominate at very large B (only
    # plausible after the bf16 MXU speedup), emit a transposed (OUT_PAD,
    # eff_rows) lane-dense output block and transpose/slice in the wrapper.
    return out_padded[:, :out_dim]


_SINGLE_BUFFERED_WEIGHTS = True


def mnn_forward(x, prepared_params, *, block_rows=512):
    """x: (B, INPUT_FEATURE) f32.  prepared_params: output of prepare_params()."""
    global _SINGLE_BUFFERED_WEIGHTS
    flat = tuple(prepared_params)
    if _SINGLE_BUFFERED_WEIGHTS:
        try:
            return _mnn_forward_impl(x, flat, block_rows=block_rows,
                                     single_buffered_weights=True)
        except Exception:
            # Pallas version without Buffered(1) support on pallas_call inputs:
            # fall back to default double-buffered weight specs.
            _SINGLE_BUFFERED_WEIGHTS = False
    return _mnn_forward_impl(x, flat, block_rows=block_rows,
                             single_buffered_weights=False)


def prepare_params(params):
    """One-time packing of (W^T, b) f32 params into the kernel layout:
      * weights cast to bf16 (MXU operands; halves weight DMA + VMEM),
      * biases kept f32 (bias add stays on the f32 VPU path),
      * final (64, 3) layer zero-padded to (64, OUT_PAD) for a lane-dense,
        unmasked output store.
    Done once, outside the per-call path."""
    flat = []
    n = len(params)
    for i, (w_t, b) in enumerate(params):
        if i == n - 1:
            od = w_t.shape[1]
            w_p = jnp.zeros((w_t.shape[0], OUT_PAD), w_t.dtype).at[:, :od].set(w_t)
            b_p = jnp.zeros((1, OUT_PAD), b.dtype).at[:, :od].set(b)
            w_t, b = w_p, b_p
        flat.append(w_t.astype(jnp.bfloat16))
        flat.append(b.astype(jnp.float32))
    return tuple(flat)


def init_params(key):
    """Deterministic synthetic parameters (PyTorch-Linear-like uniform init).
    Returns list of (w_t, b) with w_t = W.T, shape (in, out)."""
    params = []
    for i in range(len(DIMS) - 1):
        in_dim, out_dim = DIMS[i], DIMS[i + 1]
        key, kw, kb = jax.random.split(key, 3)
        bound = 1.0 / (in_dim ** 0.5)
        w_t = jax.random.uniform(kw, (in_dim, out_dim), jnp.float32, -bound, bound)
        b = jax.random.uniform(kb, (1, out_dim), jnp.float32, -bound, bound)
        params.append((w_t, b))
    return params


def reference_forward(x, params):
    h = x
    for i, (w_t, b) in enumerate(params):
        h = h @ w_t + b
        if i < len(params) - 1:
            h = jnp.maximum(h, 0.0)
    return jax.nn.sigmoid(h)


if __name__ == "__main__":
    key = jax.random.PRNGKey(0)
    key, kx = jax.random.split(key)

    batch = 256
    x = jax.random.normal(kx, (batch, INPUT_FEATURE), jnp.float32)
    params = init_params(key)
    prepared = prepare_params(params)

    out = jax.block_until_ready(mnn_forward(x, prepared))
    assert out.shape == (batch, 3), out.shape

    ref = reference_forward(x, params)
    err = float(jnp.max(jnp.abs(out - ref)))
    # bf16 MXU operands: expect ~1e-2 agreement with the f32 reference.
    assert err < 5e-2, f"max abs err {err}"

    # Exercise a multi-step grid (several row tiles) as well.
    out2 = jax.block_until_ready(mnn_forward(x, prepared, block_rows=64))
    err2 = float(jnp.max(jnp.abs(out2 - ref)))
    assert err2 < 5e-2, f"max abs err {err2}"

    print("KERNEL_OK")
</pallas_src>

<mosaic_0001>
module attributes {stable_mosaic.version = 11 : i64} {
  func.func @_mlp_kernel(%arg0: i32, %arg1: memref<256x16xf32, #tpu.memory_space<vmem>>, %arg2: memref<16x64xbf16, #tpu.memory_space<vmem>>, %arg3: memref<1x64xf32, #tpu.memory_space<vmem>>, %arg4: memref<64x256xbf16, #tpu.memory_space<vmem>>, %arg5: memref<1x256xf32, #tpu.memory_space<vmem>>, %arg6: memref<256x1024xbf16, #tpu.memory_space<vmem>>, %arg7: memref<1x1024xf32, #tpu.memory_space<vmem>>, %arg8: memref<1024x256xbf16, #tpu.memory_space<vmem>>, %arg9: memref<1x256xf32, #tpu.memory_space<vmem>>, %arg10: memref<256x64xbf16, #tpu.memory_space<vmem>>, %arg11: memref<1x64xf32, #tpu.memory_space<vmem>>, %arg12: memref<64x128xbf16, #tpu.memory_space<vmem>>, %arg13: memref<1x128xf32, #tpu.memory_space<vmem>>, %arg14: memref<256x128xf32, #tpu.memory_space<vmem>>) attributes {dimension_semantics = [#tpu.dimension_semantics<parallel>], iteration_bounds = array<i64: 1>, scalar_prefetch = 0 : i64, scratch_operands = 0 : i64, tpu.core_type = #tpu.core_type<tc>, window_params = [{transform_indices = @transform_0, window_bounds = array<i64: 256, 16>}, {pipeline_mode = #tpu.pipeline_mode<synchronous>, transform_indices = @transform_1, window_bounds = array<i64: 16, 64>}, {pipeline_mode = #tpu.pipeline_mode<synchronous>, transform_indices = @transform_2, window_bounds = array<i64: 1, 64>}, {pipeline_mode = #tpu.pipeline_mode<synchronous>, transform_indices = @transform_3, window_bounds = array<i64: 64, 256>}, {pipeline_mode = #tpu.pipeline_mode<synchronous>, transform_indices = @transform_4, window_bounds = array<i64: 1, 256>}, {pipeline_mode = #tpu.pipeline_mode<synchronous>, transform_indices = @transform_5, window_bounds = array<i64: 256, 1024>}, {pipeline_mode = #tpu.pipeline_mode<synchronous>, transform_indices = @transform_6, window_bounds = array<i64: 1, 1024>}, {pipeline_mode = #tpu.pipeline_mode<synchronous>, transform_indices = @transform_7, window_bounds = array<i64: 1024, 256>}, {pipeline_mode = #tpu.pipeline_mode<synchronous>, transform_indices = @transform_8, window_bounds = array<i64: 1, 256>}, {pipeline_mode = #tpu.pipeline_mode<synchronous>, transform_indices = @transform_9, window_bounds = array<i64: 256, 64>}, {pipeline_mode = #tpu.pipeline_mode<synchronous>, transform_indices = @transform_10, window_bounds = array<i64: 1, 64>}, {pipeline_mode = #tpu.pipeline_mode<synchronous>, transform_indices = @transform_11, window_bounds = array<i64: 64, 128>}, {pipeline_mode = #tpu.pipeline_mode<synchronous>, transform_indices = @transform_12, window_bounds = array<i64: 1, 128>}, {transform_indices = @transform_13, window_bounds = array<i64: 256, 128>}]} {
    %c0 = arith.constant 0 : index
    %c0_0 = arith.constant 0 : index
    %0 = vector.load %arg1[%c0, %c0_0] : memref<256x16xf32, #tpu.memory_space<vmem>>, vector<256x16xf32>
    %1 = arith.truncf %0 : vector<256x16xf32> to vector<256x16xbf16>
    %c0_1 = arith.constant 0 : index
    %c0_2 = arith.constant 0 : index
    %2 = vector.load %arg2[%c0_1, %c0_2] : memref<16x64xbf16, #tpu.memory_space<vmem>>, vector<16x64xbf16>
    %cst = arith.constant dense<0.000000e+00> : vector<256x64xf32>
    %3 = tpu.matmul %1, %2, %cst {dimension_numbers = #tpu.dot_dimension_numbers<[1], [0], [0], [1], [0, 0, 1, 1], [], []>} : vector<256x16xbf16>, vector<16x64xbf16>, vector<256x64xf32> -> vector<256x64xf32>
    %c0_3 = arith.constant 0 : index
    %c0_4 = arith.constant 0 : index
    %4 = vector.load %arg3[%c0_3, %c0_4] : memref<1x64xf32, #tpu.memory_space<vmem>>, vector<1x64xf32>
    %5 = vector.broadcast %4 : vector<1x64xf32> to vector<256x64xf32>
    %6 = arith.addf %3, %5 : vector<256x64xf32>
    %cst_5 = arith.constant 0.000000e+00 : f32
    %7 = vector.broadcast %cst_5 : f32 to vector<256x64xf32>
    %8 = arith.maximumf %6, %7 : vector<256x64xf32>
    %9 = arith.truncf %8 : vector<256x64xf32> to vector<256x64xbf16>
    %c0_6 = arith.constant 0 : index
    %c0_7 = arith.constant 0 : index
    %10 = vector.load %arg4[%c0_6, %c0_7] : memref<64x256xbf16, #tpu.memory_space<vmem>>, vector<64x256xbf16>
    %cst_8 = arith.constant dense<0.000000e+00> : vector<256x256xf32>
    %11 = tpu.matmul %9, %10, %cst_8 {dimension_numbers = #tpu.dot_dimension_numbers<[1], [0], [0], [1], [0, 0, 1, 1], [], []>} : vector<256x64xbf16>, vector<64x256xbf16>, vector<256x256xf32> -> vector<256x256xf32>
    %c0_9 = arith.constant 0 : index
    %c0_10 = arith.constant 0 : index
    %12 = vector.load %arg5[%c0_9, %c0_10] : memref<1x256xf32, #tpu.memory_space<vmem>>, vector<1x256xf32>
    %13 = vector.broadcast %12 : vector<1x256xf32> to vector<256x256xf32>
    %14 = arith.addf %11, %13 : vector<256x256xf32>
    %cst_11 = arith.constant 0.000000e+00 : f32
    %15 = vector.broadcast %cst_11 : f32 to vector<256x256xf32>
    %16 = arith.maximumf %14, %15 : vector<256x256xf32>
    %17 = arith.truncf %16 : vector<256x256xf32> to vector<256x256xbf16>
    %c0_12 = arith.constant 0 : index
    %c0_13 = arith.constant 0 : index
    %18 = vector.load %arg6[%c0_12, %c0_13] : memref<256x1024xbf16, #tpu.memory_space<vmem>>, vector<256x1024xbf16>
    %cst_14 = arith.constant dense<0.000000e+00> : vector<256x1024xf32>
    %19 = tpu.matmul %17, %18, %cst_14 {dimension_numbers = #tpu.dot_dimension_numbers<[1], [0], [0], [1], [0, 0, 1, 1], [], []>} : vector<256x256xbf16>, vector<256x1024xbf16>, vector<256x1024xf32> -> vector<256x1024xf32>
    %c0_15 = arith.constant 0 : index
    %c0_16 = arith.constant 0 : index
    %20 = vector.load %arg7[%c0_15, %c0_16] : memref<1x1024xf32, #tpu.memory_space<vmem>>, vector<1x1024xf32>
    %21 = vector.broadcast %20 : vector<1x1024xf32> to vector<256x1024xf32>
    %22 = arith.addf %19, %21 : vector<256x1024xf32>
    %cst_17 = arith.constant 0.000000e+00 : f32
    %23 = vector.broadcast %cst_17 : f32 to vector<256x1024xf32>
    %24 = arith.maximumf %22, %23 : vector<256x1024xf32>
    %25 = arith.truncf %24 : vector<256x1024xf32> to vector<256x1024xbf16>
    %c0_18 = arith.constant 0 : index
    %c0_19 = arith.constant 0 : index
    %26 = vector.load %arg8[%c0_18, %c0_19] : memref<1024x256xbf16, #tpu.memory_space<vmem>>, vector<1024x256xbf16>
    %cst_20 = arith.constant dense<0.000000e+00> : vector<256x256xf32>
    %27 = tpu.matmul %25, %26, %cst_20 {dimension_numbers = #tpu.dot_dimension_numbers<[1], [0], [0], [1], [0, 0, 1, 1], [], []>} : vector<256x1024xbf16>, vector<1024x256xbf16>, vector<256x256xf32> -> vector<256x256xf32>
    %c0_21 = arith.constant 0 : index
    %c0_22 = arith.constant 0 : index
    %28 = vector.load %arg9[%c0_21, %c0_22] : memref<1x256xf32, #tpu.memory_space<vmem>>, vector<1x256xf32>
    %29 = vector.broadcast %28 : vector<1x256xf32> to vector<256x256xf32>
    %30 = arith.addf %27, %29 : vector<256x256xf32>
    %cst_23 = arith.constant 0.000000e+00 : f32
    %31 = vector.broadcast %cst_23 : f32 to vector<256x256xf32>
    %32 = arith.maximumf %30, %31 : vector<256x256xf32>
    %33 = arith.truncf %32 : vector<256x256xf32> to vector<256x256xbf16>
    %c0_24 = arith.constant 0 : index
    %c0_25 = arith.constant 0 : index
    %34 = vector.load %arg10[%c0_24, %c0_25] : memref<256x64xbf16, #tpu.memory_space<vmem>>, vector<256x64xbf16>
    %cst_26 = arith.constant dense<0.000000e+00> : vector<256x64xf32>
    %35 = tpu.matmul %33, %34, %cst_26 {dimension_numbers = #tpu.dot_dimension_numbers<[1], [0], [0], [1], [0, 0, 1, 1], [], []>} : vector<256x256xbf16>, vector<256x64xbf16>, vector<256x64xf32> -> vector<256x64xf32>
    %c0_27 = arith.constant 0 : index
    %c0_28 = arith.constant 0 : index
    %36 = vector.load %arg11[%c0_27, %c0_28] : memref<1x64xf32, #tpu.memory_space<vmem>>, vector<1x64xf32>
    %37 = vector.broadcast %36 : vector<1x64xf32> to vector<256x64xf32>
    %38 = arith.addf %35, %37 : vector<256x64xf32>
    %cst_29 = arith.constant 0.000000e+00 : f32
    %39 = vector.broadcast %cst_29 : f32 to vector<256x64xf32>
    %40 = arith.maximumf %38, %39 : vector<256x64xf32>
    %41 = arith.truncf %40 : vector<256x64xf32> to vector<256x64xbf16>
    %c0_30 = arith.constant 0 : index
    %c0_31 = arith.constant 0 : index
    %42 = vector.load %arg12[%c0_30, %c0_31] : memref<64x128xbf16, #tpu.memory_space<vmem>>, vector<64x128xbf16>
    %cst_32 = arith.constant dense<0.000000e+00> : vector<256x128xf32>
    %43 = tpu.matmul %41, %42, %cst_32 {dimension_numbers = #tpu.dot_dimension_numbers<[1], [0], [0], [1], [0, 0, 1, 1], [], []>} : vector<256x64xbf16>, vector<64x128xbf16>, vector<256x128xf32> -> vector<256x128xf32>
    %c0_33 = arith.constant 0 : index
    %c0_34 = arith.constant 0 : index
    %44 = vector.load %arg13[%c0_33, %c0_34] : memref<1x128xf32, #tpu.memory_space<vmem>>, vector<1x128xf32>
    %45 = vector.broadcast %44 : vector<1x128xf32> to vector<256x128xf32>
    %46 = arith.addf %43, %45 : vector<256x128xf32>
    %cst_35 = arith.constant 0.000000e+00 : f32
    %47 = vector.broadcast %cst_35 : f32 to vector<256x128xf32>
    %48 = arith.subf %47, %46 : vector<256x128xf32>
    %49 = math.exp %48 : vector<256x128xf32>
    %cst_36 = arith.constant 1.000000e+00 : f32
    %50 = vector.broadcast %cst_36 : f32 to vector<256x128xf32>
    %51 = arith.addf %50, %49 : vector<256x128xf32>
    %52 = tpu.reciprocal %51 {approx = true} : vector<256x128xf32> -> vector<256x128xf32>
    %c0_37 = arith.constant 0 : index
    %c0_38 = arith.constant 0 : index
    %53 = vector.load %arg14[%c0_37, %c0_38] : memref<256x128xf32, #tpu.memory_space<vmem>>, vector<256x128xf32>
    tpu.vector_store %arg14[%c0_37, %c0_38], %52 {strides = array<i32>} : memref<256x128xf32, #tpu.memory_space<vmem>>, vector<256x128xf32>,
    return
  }
  func.func @transform_0(%arg0: i32) -> (i32, i32) {
    %c0_i32 = arith.constant 0 : i32
    %c0_i32_0 = arith.constant 0 : i32
    return %arg0, %c0_i32 : i32, i32
  }
  func.func @transform_1(%arg0: i32) -> (i32, i32) {
    %c0_i32 = arith.constant 0 : i32
    %c0_i32_0 = arith.constant 0 : i32
    %c0_i32_1 = arith.constant 0 : i32
    return %c0_i32, %c0_i32_0 : i32, i32
  }
  func.func @transform_2(%arg0: i32) -> (i32, i32) {
    %c0_i32 = arith.constant 0 : i32
    %c0_i32_0 = arith.constant 0 : i32
    %c0_i32_1 = arith.constant 0 : i32
    return %c0_i32, %c0_i32_0 : i32, i32
  }
  func.func @transform_3(%arg0: i32) -> (i32, i32) {
    %c0_i32 = arith.constant 0 : i32
    %c0_i32_0 = arith.constant 0 : i32
    %c0_i32_1 = arith.constant 0 : i32
    return %c0_i32, %c0_i32_0 : i32, i32
  }
  func.func @transform_4(%arg0: i32) -> (i32, i32) {
    %c0_i32 = arith.constant 0 : i32
    %c0_i32_0 = arith.constant 0 : i32
    %c0_i32_1 = arith.constant 0 : i32
    return %c0_i32, %c0_i32_0 : i32, i32
  }
  func.func @transform_5(%arg0: i32) -> (i32, i32) {
    %c0_i32 = arith.constant 0 : i32
    %c0_i32_0 = arith.constant 0 : i32
    %c0_i32_1 = arith.constant 0 : i32
    return %c0_i32, %c0_i32_0 : i32, i32
  }
  func.func @transform_6(%arg0: i32) -> (i32, i32) {
    %c0_i32 = arith.constant 0 : i32
    %c0_i32_0 = arith.constant 0 : i32
    %c0_i32_1 = arith.constant 0 : i32
    return %c0_i32, %c0_i32_0 : i32, i32
  }
  func.func @transform_7(%arg0: i32) -> (i32, i32) {
    %c0_i32 = arith.constant 0 : i32
    %c0_i32_0 = arith.constant 0 : i32
    %c0_i32_1 = arith.constant 0 : i32
    return %c0_i32, %c0_i32_0 : i32, i32
  }
  func.func @transform_8(%arg0: i32) -> (i32, i32) {
    %c0_i32 = arith.constant 0 : i32
    %c0_i32_0 = arith.constant 0 : i32
    %c0_i32_1 = arith.constant 0 : i32
    return %c0_i32, %c0_i32_0 : i32, i32
  }
  func.func @transform_9(%arg0: i32) -> (i32, i32) {
    %c0_i32 = arith.constant 0 : i32
    %c0_i32_0 = arith.constant 0 : i32
    %c0_i32_1 = arith.constant 0 : i32
    return %c0_i32, %c0_i32_0 : i32, i32
  }
  func.func @transform_10(%arg0: i32) -> (i32, i32) {
    %c0_i32 = arith.constant 0 : i32
    %c0_i32_0 = arith.constant 0 : i32
    %c0_i32_1 = arith.constant 0 : i32
    return %c0_i32, %c0_i32_0 : i32, i32
  }
  func.func @transform_11(%arg0: i32) -> (i32, i32) {
    %c0_i32 = arith.constant 0 : i32
    %c0_i32_0 = arith.constant 0 : i32
    %c0_i32_1 = arith.constant 0 : i32
    return %c0_i32, %c0_i32_0 : i32, i32
  }
  func.func @transform_12(%arg0: i32) -> (i32, i32) {
    %c0_i32 = arith.constant 0 : i32
    %c0_i32_0 = arith.constant 0 : i32
    %c0_i32_1 = arith.constant 0 : i32
    return %c0_i32, %c0_i32_0 : i32, i32
  }
  func.func @transform_13(%arg0: i32) -> (i32, i32) {
    %c0_i32 = arith.constant 0 : i32
    %c0_i32_0 = arith.constant 0 : i32
    return %arg0, %c0_i32 : i32, i32
  }
}

module attributes {stable_mosaic.version = 11 : i64} {
  func.func @_mlp_kernel(%arg0: i32, %arg1: memref<256x16xf32, #tpu.memory_space<vmem>>, %arg2: memref<16x64xbf16, #tpu.memory_space<vmem>>, %arg3: memref<1x64xf32, #tpu.memory_space<vmem>>, %arg4: memref<64x256xbf16, #tpu.memory_space<vmem>>, %arg5: memref<1x256xf32, #tpu.memory_space<vmem>>, %arg6: memref<256x1024xbf16, #tpu.memory_space<vmem>>, %arg7: memref<1x1024xf32, #tpu.memory_space<vmem>>, %arg8: memref<1024x256xbf16, #tpu.memory_space<vmem>>, %arg9: memref<1x256xf32, #tpu.memory_space<vmem>>, %arg10: memref<256x64xbf16, #tpu.memory_space<vmem>>, %arg11: memref<1x64xf32, #tpu.memory_space<vmem>>, %arg12: memref<64x128xbf16, #tpu.memory_space<vmem>>, %arg13: memref<1x128xf32, #tpu.memory_space<vmem>>, %arg14: memref<256x128xf32, #tpu.memory_space<vmem>>) attributes {dimension_semantics = [#tpu.dimension_semantics<parallel>], iteration_bounds = array<i64: 1>, scalar_prefetch = 0 : i64, scratch_operands = 0 : i64, tpu.core_type = #tpu.core_type<tc>, window_params = [{transform_indices = @transform_0, window_bounds = array<i64: 256, 16>}, {pipeline_mode = #tpu.pipeline_mode<synchronous>, transform_indices = @transform_1, window_bounds = array<i64: 16, 64>}, {pipeline_mode = #tpu.pipeline_mode<synchronous>, transform_indices = @transform_2, window_bounds = array<i64: 1, 64>}, {pipeline_mode = #tpu.pipeline_mode<synchronous>, transform_indices = @transform_3, window_bounds = array<i64: 64, 256>}, {pipeline_mode = #tpu.pipeline_mode<synchronous>, transform_indices = @transform_4, window_bounds = array<i64: 1, 256>}, {pipeline_mode = #tpu.pipeline_mode<synchronous>, transform_indices = @transform_5, window_bounds = array<i64: 256, 1024>}, {pipeline_mode = #tpu.pipeline_mode<synchronous>, transform_indices = @transform_6, window_bounds = array<i64: 1, 1024>}, {pipeline_mode = #tpu.pipeline_mode<synchronous>, transform_indices = @transform_7, window_bounds = array<i64: 1024, 256>}, {pipeline_mode = #tpu.pipeline_mode<synchronous>, transform_indices = @transform_8, window_bounds = array<i64: 1, 256>}, {pipeline_mode = #tpu.pipeline_mode<synchronous>, transform_indices = @transform_9, window_bounds = array<i64: 256, 64>}, {pipeline_mode = #tpu.pipeline_mode<synchronous>, transform_indices = @transform_10, window_bounds = array<i64: 1, 64>}, {pipeline_mode = #tpu.pipeline_mode<synchronous>, transform_indices = @transform_11, window_bounds = array<i64: 64, 128>}, {pipeline_mode = #tpu.pipeline_mode<synchronous>, transform_indices = @transform_12, window_bounds = array<i64: 1, 128>}, {transform_indices = @transform_13, window_bounds = array<i64: 256, 128>}]} {
    %c0 = arith.constant 0 : index
    %c0_0 = arith.constant 0 : index
    %0 = vector.load %arg1[%c0, %c0_0] : memref<256x16xf32, #tpu.memory_space<vmem>>, vector<256x16xf32>
    %1 = arith.truncf %0 : vector<256x16xf32> to vector<256x16xbf16>
    %c0_1 = arith.constant 0 : index
    %c0_2 = arith.constant 0 : index
    %2 = vector.load %arg2[%c0_1, %c0_2] : memref<16x64xbf16, #tpu.memory_space<vmem>>, vector<16x64xbf16>
    %cst = arith.constant dense<0.000000e+00> : vector<256x64xf32>
    %3 = tpu.matmul %1, %2, %cst {dimension_numbers = #tpu.dot_dimension_numbers<[1], [0], [0], [1], [0, 0, 1, 1], [], []>} : vector<256x16xbf16>, vector<16x64xbf16>, vector<256x64xf32> -> vector<256x64xf32>
    %c0_3 = arith.constant 0 : index
    %c0_4 = arith.constant 0 : index
    %4 = vector.load %arg3[%c0_3, %c0_4] : memref<1x64xf32, #tpu.memory_space<vmem>>, vector<1x64xf32>
    %5 = vector.broadcast %4 : vector<1x64xf32> to vector<256x64xf32>
    %6 = arith.addf %3, %5 : vector<256x64xf32>
    %cst_5 = arith.constant 0.000000e+00 : f32
    %7 = vector.broadcast %cst_5 : f32 to vector<256x64xf32>
    %8 = arith.maximumf %6, %7 : vector<256x64xf32>
    %9 = arith.truncf %8 : vector<256x64xf32> to vector<256x64xbf16>
    %c0_6 = arith.constant 0 : index
    %c0_7 = arith.constant 0 : index
    %10 = vector.load %arg4[%c0_6, %c0_7] : memref<64x256xbf16, #tpu.memory_space<vmem>>, vector<64x256xbf16>
    %cst_8 = arith.constant dense<0.000000e+00> : vector<256x256xf32>
    %11 = tpu.matmul %9, %10, %cst_8 {dimension_numbers = #tpu.dot_dimension_numbers<[1], [0], [0], [1], [0, 0, 1, 1], [], []>} : vector<256x64xbf16>, vector<64x256xbf16>, vector<256x256xf32> -> vector<256x256xf32>
    %c0_9 = arith.constant 0 : index
    %c0_10 = arith.constant 0 : index
    %12 = vector.load %arg5[%c0_9, %c0_10] : memref<1x256xf32, #tpu.memory_space<vmem>>, vector<1x256xf32>
    %13 = vector.broadcast %12 : vector<1x256xf32> to vector<256x256xf32>
    %14 = arith.addf %11, %13 : vector<256x256xf32>
    %cst_11 = arith.constant 0.000000e+00 : f32
    %15 = vector.broadcast %cst_11 : f32 to vector<256x256xf32>
    %16 = arith.maximumf %14, %15 : vector<256x256xf32>
    %17 = arith.truncf %16 : vector<256x256xf32> to vector<256x256xbf16>
    %c0_12 = arith.constant 0 : index
    %c0_13 = arith.constant 0 : index
    %18 = vector.load %arg6[%c0_12, %c0_13] : memref<256x1024xbf16, #tpu.memory_space<vmem>>, vector<256x1024xbf16>
    %cst_14 = arith.constant dense<0.000000e+00> : vector<256x1024xf32>
    %19 = tpu.matmul %17, %18, %cst_14 {dimension_numbers = #tpu.dot_dimension_numbers<[1], [0], [0], [1], [0, 0, 1, 1], [], []>} : vector<256x256xbf16>, vector<256x1024xbf16>, vector<256x1024xf32> -> vector<256x1024xf32>
    %c0_15 = arith.constant 0 : index
    %c0_16 = arith.constant 0 : index
    %20 = vector.load %arg7[%c0_15, %c0_16] : memref<1x1024xf32, #tpu.memory_space<vmem>>, vector<1x1024xf32>
    %21 = vector.broadcast %20 : vector<1x1024xf32> to vector<256x1024xf32>
    %22 = arith.addf %19, %21 : vector<256x1024xf32>
    %cst_17 = arith.constant 0.000000e+00 : f32
    %23 = vector.broadcast %cst_17 : f32 to vector<256x1024xf32>
    %24 = arith.maximumf %22, %23 : vector<256x1024xf32>
    %25 = arith.truncf %24 : vector<256x1024xf32> to vector<256x1024xbf16>
    %c0_18 = arith.constant 0 : index
    %c0_19 = arith.constant 0 : index
    %26 = vector.load %arg8[%c0_18, %c0_19] : memref<1024x256xbf16, #tpu.memory_space<vmem>>, vector<1024x256xbf16>
    %cst_20 = arith.constant dense<0.000000e+00> : vector<256x256xf32>
    %27 = tpu.matmul %25, %26, %cst_20 {dimension_numbers = #tpu.dot_dimension_numbers<[1], [0], [0], [1], [0, 0, 1, 1], [], []>} : vector<256x1024xbf16>, vector<1024x256xbf16>, vector<256x256xf32> -> vector<256x256xf32>
    %c0_21 = arith.constant 0 : index
    %c0_22 = arith.constant 0 : index
    %28 = vector.load %arg9[%c0_21, %c0_22] : memref<1x256xf32, #tpu.memory_space<vmem>>, vector<1x256xf32>
    %29 = vector.broadcast %28 : vector<1x256xf32> to vector<256x256xf32>
    %30 = arith.addf %27, %29 : vector<256x256xf32>
    %cst_23 = arith.constant 0.000000e+00 : f32
    %31 = vector.broadcast %cst_23 : f32 to vector<256x256xf32>
    %32 = arith.maximumf %30, %31 : vector<256x256xf32>
    %33 = arith.truncf %32 : vector<256x256xf32> to vector<256x256xbf16>
    %c0_24 = arith.constant 0 : index
    %c0_25 = arith.constant 0 : index
    %34 = vector.load %arg10[%c0_24, %c0_25] : memref<256x64xbf16, #tpu.memory_space<vmem>>, vector<256x64xbf16>
    %cst_26 = arith.constant dense<0.000000e+00> : vector<256x64xf32>
    %35 = tpu.matmul %33, %34, %cst_26 {dimension_numbers = #tpu.dot_dimension_numbers<[1], [0], [0], [1], [0, 0, 1, 1], [], []>} : vector<256x256xbf16>, vector<256x64xbf16>, vector<256x64xf32> -> vector<256x64xf32>
    %c0_27 = arith.constant 0 : index
    %c0_28 = arith.constant 0 : index
    %36 = vector.load %arg11[%c0_27, %c0_28] : memref<1x64xf32, #tpu.memory_space<vmem>>, vector<1x64xf32>
    %37 = vector.broadcast %36 : vector<1x64xf32> to vector<256x64xf32>
    %38 = arith.addf %35, %37 : vector<256x64xf32>
    %cst_29 = arith.constant 0.000000e+00 : f32
    %39 = vector.broadcast %cst_29 : f32 to vector<256x64xf32>
    %40 = arith.maximumf %38, %39 : vector<256x64xf32>
    %41 = arith.truncf %40 : vector<256x64xf32> to vector<256x64xbf16>
    %c0_30 = arith.constant 0 : index
    %c0_31 = arith.constant 0 : index
    %42 = vector.load %arg12[%c0_30, %c0_31] : memref<64x128xbf16, #tpu.memory_space<vmem>>, vector<64x128xbf16>
    %cst_32 = arith.constant dense<0.000000e+00> : vector<256x128xf32>
    %43 = tpu.matmul %41, %42, %cst_32 {dimension_numbers = #tpu.dot_dimension_numbers<[1], [0], [0], [1], [0, 0, 1, 1], [], []>} : vector<256x64xbf16>, vector<64x128xbf16>, vector<256x128xf32> -> vector<256x128xf32>
    %c0_33 = arith.constant 0 : index
    %c0_34 = arith.constant 0 : index
    %44 = vector.load %arg13[%c0_33, %c0_34] : memref<1x128xf32, #tpu.memory_space<vmem>>, vector<1x128xf32>
    %45 = vector.broadcast %44 : vector<1x128xf32> to vector<256x128xf32>
    %46 = arith.addf %43, %45 : vector<256x128xf32>
    %cst_35 = arith.constant 0.000000e+00 : f32
    %47 = vector.broadcast %cst_35 : f32 to vector<256x128xf32>
    %48 = arith.subf %47, %46 : vector<256x128xf32>
    %49 = math.exp %48 : vector<256x128xf32>
    %cst_36 = arith.constant 1.000000e+00 : f32
    %50 = vector.broadcast %cst_36 : f32 to vector<256x128xf32>
    %51 = arith.addf %50, %49 : vector<256x128xf32>
    %52 = tpu.reciprocal %51 {approx = true} : vector<256x128xf32> -> vector<256x128xf32>
    %c0_37 = arith.constant 0 : index
    %c0_38 = arith.constant 0 : index
    %53 = vector.load %arg14[%c0_37, %c0_38] : memref<256x128xf32, #tpu.memory_space<vmem>>, vector<256x128xf32>
    tpu.vector_store %arg14[%c0_37, %c0_38], %52 {strides = array<i32>} : memref<256x128xf32, #tpu.memory_space<vmem>>, vector<256x128xf32>,
    return
  }
  func.func @transform_0(%arg0: i32) -> (i32, i32) {
    %c0_i32 = arith.constant 0 : i32
    %c0_i32_0 = arith.constant 0 : i32
    return %arg0, %c0_i32 : i32, i32
  }
  func.func @transform_1(%arg0: i32) -> (i32, i32) {
    %c0_i32 = arith.constant 0 : i32
    %c0_i32_0 = arith.constant 0 : i32
    %c0_i32_1 = arith.constant 0 : i32
    return %c0_i32, %c0_i32_0 : i32, i32
  }
  func.func @transform_2(%arg0: i32) -> (i32, i32) {
    %c0_i32 = arith.constant 0 : i32
    %c0_i32_0 = arith.constant 0 : i32
    %c0_i32_1 = arith.constant 0 : i32
    return %c0_i32, %c0_i32_0 : i32, i32
  }
  func.func @transform_3(%arg0: i32) -> (i32, i32) {
    %c0_i32 = arith.constant 0 : i32
    %c0_i32_0 = arith.constant 0 : i32
    %c0_i32_1 = arith.constant 0 : i32
    return %c0_i32, %c0_i32_0 : i32, i32
  }
  func.func @transform_4(%arg0: i32) -> (i32, i32) {
    %c0_i32 = arith.constant 0 : i32
    %c0_i32_0 = arith.constant 0 : i32
    %c0_i32_1 = arith.constant 0 : i32
    return %c0_i32, %c0_i32_0 : i32, i32
  }
  func.func @transform_5(%arg0: i32) -> (i32, i32) {
    %c0_i32 = arith.constant 0 : i32
    %c0_i32_0 = arith.constant 0 : i32
    %c0_i32_1 = arith.constant 0 : i32
    return %c0_i32, %c0_i32_0 : i32, i32
  }
  func.func @transform_6(%arg0: i32) -> (i32, i32) {
    %c0_i32 = arith.constant 0 : i32
    %c0_i32_0 = arith.constant 0 : i32
    %c0_i32_1 = arith.constant 0 : i32
    return %c0_i32, %c0_i32_0 : i32, i32
  }
  func.func @transform_7(%arg0: i32) -> (i32, i32) {
    %c0_i32 = arith.constant 0 : i32
    %c0_i32_0 = arith.constant 0 : i32
    %c0_i32_1 = arith.constant 0 : i32
    return %c0_i32, %c0_i32_0 : i32, i32
  }
  func.func @transform_8(%arg0: i32) -> (i32, i32) {
    %c0_i32 = arith.constant 0 : i32
    %c0_i32_0 = arith.constant 0 : i32
    %c0_i32_1 = arith.constant 0 : i32
    return %c0_i32, %c0_i32_0 : i32, i32
  }
  func.func @transform_9(%arg0: i32) -> (i32, i32) {
    %c0_i32 = arith.constant 0 : i32
    %c0_i32_0 = arith.constant 0 : i32
    %c0_i32_1 = arith.constant 0 : i32
    return %c0_i32, %c0_i32_0 : i32, i32
  }
  func.func @transform_10(%arg0: i32) -> (i32, i32) {
    %c0_i32 = arith.constant 0 : i32
    %c0_i32_0 = arith.constant 0 : i32
    %c0_i32_1 = arith.constant 0 : i32
    return %c0_i32, %c0_i32_0 : i32, i32
  }
  func.func @transform_11(%arg0: i32) -> (i32, i32) {
    %c0_i32 = arith.constant 0 : i32
    %c0_i32_0 = arith.constant 0 : i32
    %c0_i32_1 = arith.constant 0 : i32
    return %c0_i32, %c0_i32_0 : i32, i32
  }
  func.func @transform_12(%arg0: i32) -> (i32, i32) {
    %c0_i32 = arith.constant 0 : i32
    %c0_i32_0 = arith.constant 0 : i32
    %c0_i32_1 = arith.constant 0 : i32
    return %c0_i32, %c0_i32_0 : i32, i32
  }
  func.func @transform_13(%arg0: i32) -> (i32, i32) {
    %c0_i32 = arith.constant 0 : i32
    %c0_i32_0 = arith.constant 0 : i32
    return %arg0, %c0_i32 : i32, i32
  }
}

</mosaic_0001>

<llo_original>
// kernel: _mnn_forward_impl.1
$region0: #{_mnn_forward_impl.1}
  #allocation0 [shape = 'u32[]', space=smem, size = 0x4, offset = 0x4, fixed_abs, tag = 'smem constant byte address 0x4 - core index']
  #allocation1 [shape = 'u32[144,128]{1,0:T(1,128)}', space=vmem, size = 0x12000, scoped, tag = 'internal scratch']
  %s0 = inlined_call_operand.vmem [shape: f32[256,16], index: 0, kind: input, shape index: {}]
  %s1 = inlined_call_operand.vmem [shape: bf16[16,64], index: 1, kind: input, shape index: {}]
  %s2 = inlined_call_operand.vmem [shape: f32[1,64], index: 2, kind: input, shape index: {}]
  %s3 = inlined_call_operand.vmem [shape: bf16[64,256], index: 3, kind: input, shape index: {}]
  %s4 = inlined_call_operand.vmem [shape: f32[1,256], index: 4, kind: input, shape index: {}]
  %s5 = inlined_call_operand.hbm [shape: bf16[256,1024], index: 5, kind: input, shape index: {}]
  %s6 = inlined_call_operand.vmem [shape: f32[1,1024], index: 6, kind: input, shape index: {}]
  %s7 = inlined_call_operand.hbm [shape: bf16[1024,256], index: 7, kind: input, shape index: {}]
  %s8 = inlined_call_operand.vmem [shape: f32[1,256], index: 8, kind: input, shape index: {}]
  %s9 = inlined_call_operand.vmem [shape: bf16[256,64], index: 9, kind: input, shape index: {}]
  %s10 = inlined_call_operand.vmem [shape: f32[1,64], index: 10, kind: input, shape index: {}]
  %s11 = inlined_call_operand.vmem [shape: bf16[64,128], index: 11, kind: input, shape index: {}]
  %s12 = inlined_call_operand.vmem [shape: f32[1,128], index: 12, kind: input, shape index: {}]
  %s13 = inlined_call_operand.vmem [shape: f32[256,128], index: 13, kind: output, shape index: {}]
  %s14 = sld [smem:[#allocation0]]
  $region70: #{_mnn_forward_impl.1} parent=0
    _
  %s16 = ssub.s32 1, %s14
  %s17 = scalar_select 0, %s16, %s14
  $region1: #{_mnn_forward_impl.1} parent=0
    #allocation2 [shape = 'u8[524288]{0}', space=vmem, size = 0x80000, scoped, tag = 'input window, operand 5, single buffered']
    #allocation3 [shape = 's32[1]{0}', space=sflag, size = 0x4, scoped, tag = 'scoped memory for _mnn_forward_impl.1']
    #allocation4 [shape = 'u8[524288]{0}', space=vmem, size = 0x80000, scoped, tag = 'input window, operand 7, single buffered']
    #allocation5 [shape = 's32[1]{0}', space=sflag, size = 0x4, scoped, tag = 'scoped memory for _mnn_forward_impl.1']
    %18 = vsyncpa [#allocation3], 0
    %19 = vsyncpa [#allocation5], 0
    // Predicated region
    $region2: #{_mnn_forward_impl.1} parent=1 // pred_check
      _
    $region3: #{_mnn_forward_impl.1} parent=1 // pred_check_branch
      %21 = sbr.rel (0) target = $region5
    $region4: #{_mnn_forward_impl.1} parent=1 // pred_region
      _
    $region5: #{_mnn_forward_impl.1} parent=1 // pred_fallthru
      _
    // Predicated region
    $region6: #{_mnn_forward_impl.1} parent=1 // pred_check
      _
    $region7: #{_mnn_forward_impl.1} parent=1 // pred_check_branch
      %23 = sbr.rel (0) target = $region9
    $region8: #{_mnn_forward_impl.1} parent=1 // pred_region
      _
    $region9: #{_mnn_forward_impl.1} parent=1 // pred_fallthru
      _
    // Predicated region
    $region10: #{_mnn_forward_impl.1} parent=1 // pred_check
      _
    $region11: #{_mnn_forward_impl.1} parent=1 // pred_check_branch
      %25 = sbr.rel (0) target = $region13
    $region12: #{_mnn_forward_impl.1} parent=1 // pred_region
      _
    $region13: #{_mnn_forward_impl.1} parent=1 // pred_fallthru
      _
    // Predicated region
    $region14: #{_mnn_forward_impl.1} parent=1 // pred_check
      _
    $region15: #{_mnn_forward_impl.1} parent=1 // pred_check_branch
      %27 = sbr.rel (0) target = $region17
    $region16: #{_mnn_forward_impl.1} parent=1 // pred_region
      _
    $region17: #{_mnn_forward_impl.1} parent=1 // pred_fallthru
      _
    // Predicated region
    $region18: #{_mnn_forward_impl.1} parent=1 // pred_check
      _
    $region19: #{_mnn_forward_impl.1} parent=1 // pred_check_branch
      %29 = sbr.rel (0) target = $region21
    $region20: #{_mnn_forward_impl.1} parent=1 // pred_region
      _
    $region21: #{_mnn_forward_impl.1} parent=1 // pred_fallthru
      _
    // Predicated region
    $region22: #{_mnn_forward_impl.1} parent=1 // pred_check
      _
    $region23: #{_mnn_forward_impl.1} parent=1 // pred_check_branch
      %31 = sbr.rel (0) target = $region25
    $region24: #{_mnn_forward_impl.1} parent=1 // pred_region
      %s33 = ssub.s32 16384, 16384
      %34 = vsyncadd [#allocation3], %s33
      %s35 = sshll.u32 [#allocation2], 4
      %s36 = int_to_ptr.vmem [resolvable:$true] %s35
      %41 = dma.hbm_to_vmem [thread:$0]  %s5, 16384, %s36, [#allocation3], 512, 512, 32
    $region25: #{_mnn_forward_impl.1} parent=1 // pred_fallthru
      _
    // Predicated region
    $region26: #{_mnn_forward_impl.1} parent=1 // pred_check
      _
    $region27: #{_mnn_forward_impl.1} parent=1 // pred_check_branch
      %43 = sbr.rel (0) target = $region29
    $region28: #{_mnn_forward_impl.1} parent=1 // pred_region
      _
    $region29: #{_mnn_forward_impl.1} parent=1 // pred_fallthru
      _
    // Predicated region
    $region30: #{_mnn_forward_impl.1} parent=1 // pred_check
      _
    $region31: #{_mnn_forward_impl.1} parent=1 // pred_check_branch
      %45 = sbr.rel (0) target = $region33
    $region32: #{_mnn_forward_impl.1} parent=1 // pred_region
      %s47 = ssub.s32 16384, 16384
      %48 = vsyncadd [#allocation5], %s47
      %s49 = sshll.u32 [#allocation4], 4
      %s50 = int_to_ptr.vmem [resolvable:$true] %s49
      %55 = dma.hbm_to_vmem [thread:$0]  %s7, 16384, %s50, [#allocation5], 128, 128, 8
    $region33: #{_mnn_forward_impl.1} parent=1 // pred_fallthru
      _
    // Predicated region
    $region34: #{_mnn_forward_impl.1} parent=1 // pred_check
      _
    $region35: #{_mnn_forward_impl.1} parent=1 // pred_check_branch
      %57 = sbr.rel (0) target = $region37
    $region36: #{_mnn_forward_impl.1} parent=1 // pred_region
      _
    $region37: #{_mnn_forward_impl.1} parent=1 // pred_fallthru
      _
    // Predicated region
    $region38: #{_mnn_forward_impl.1} parent=1 // pred_check
      _
    $region39: #{_mnn_forward_impl.1} parent=1 // pred_check_branch
      %59 = sbr.rel (0) target = $region41
    $region40: #{_mnn_forward_impl.1} parent=1 // pred_region
      _
    $region41: #{_mnn_forward_impl.1} parent=1 // pred_fallthru
      _
    // Predicated region
    $region42: #{_mnn_forward_impl.1} parent=1 // pred_check
      _
    $region43: #{_mnn_forward_impl.1} parent=1 // pred_check_branch
      %61 = sbr.rel (0) target = $region45
    $region44: #{_mnn_forward_impl.1} parent=1 // pred_region
      _
    $region45: #{_mnn_forward_impl.1} parent=1 // pred_fallthru
      _
    // Predicated region
    $region46: #{_mnn_forward_impl.1} parent=1 // pred_check
      _
    $region47: #{_mnn_forward_impl.1} parent=1 // pred_check_branch
      %63 = sbr.rel (0) target = $region49
    $region48: #{_mnn_forward_impl.1} parent=1 // pred_region
      _
    $region49: #{_mnn_forward_impl.1} parent=1 // pred_fallthru
      _
    // Predicated region
    $region50: #{_mnn_forward_impl.1} parent=1 // pred_check
      _
    $region51: #{_mnn_forward_impl.1} parent=1 // pred_check_branch
      %65 = sbr.rel (0) target = $region53
    $region52: #{_mnn_forward_impl.1} parent=1 // pred_region
      _
    $region53: #{_mnn_forward_impl.1} parent=1 // pred_fallthru
      _
    // Predicated region
    $region54: #{_mnn_forward_impl.1} parent=1 // pred_check
      _
    $region55: #{_mnn_forward_impl.1} parent=1 // pred_check_branch
      %67 = sbr.rel (0) target = $region57
    $region56: #{_mnn_forward_impl.1} parent=1 // pred_region
      %68 = dma.done [#allocation3], 16384
    $region57: #{_mnn_forward_impl.1} parent=1 // pred_fallthru
      _
    // Predicated region
    $region58: #{_mnn_forward_impl.1} parent=1 // pred_check
      _
    $region59: #{_mnn_forward_impl.1} parent=1 // pred_check_branch
      %70 = sbr.rel (0) target = $region61
    $region60: #{_mnn_forward_impl.1} parent=1 // pred_region
      %71 = dma.done [#allocation5], 16384
    $region61: #{_mnn_forward_impl.1} parent=1 // pred_fallthru
      _
    %v73 = vld [vmem:[%s0] sm:$0xff]
    %v74 = vld [vmem:[%s0 + $0x8] sm:$0xff]
    %v75 = vld [vmem:[%s0 + $0x10] sm:$0xff]
    %v76 = vld [vmem:[%s0 + $0x18] sm:$0xff]
    %v77 = vld [vmem:[%s0 + $0x20] sm:$0xff]
    %v78 = vld [vmem:[%s0 + $0x28] sm:$0xff]
    %v79 = vld [vmem:[%s0 + $0x30] sm:$0xff]
    %v80 = vld [vmem:[%s0 + $0x38] sm:$0xff]
    %v81 = vld [vmem:[%s0 + $0x40] sm:$0xff]
    %v82 = vld [vmem:[%s0 + $0x48] sm:$0xff]
    %v83 = vld [vmem:[%s0 + $0x50] sm:$0xff]
    %v84 = vld [vmem:[%s0 + $0x58] sm:$0xff]
    %v85 = vld [vmem:[%s0 + $0x60] sm:$0xff]
    %v86 = vld [vmem:[%s0 + $0x68] sm:$0xff]
    %v87 = vld [vmem:[%s0 + $0x70] sm:$0xff]
    %v88 = vld [vmem:[%s0 + $0x78] sm:$0xff]
    %v89 = vld [vmem:[%s0 + $0x80] sm:$0xff]
    %v90 = vld [vmem:[%s0 + $0x88] sm:$0xff]
    %v91 = vld [vmem:[%s0 + $0x90] sm:$0xff]
    %v92 = vld [vmem:[%s0 + $0x98] sm:$0xff]
    %v93 = vld [vmem:[%s0 + $0xa0] sm:$0xff]
    %v94 = vld [vmem:[%s0 + $0xa8] sm:$0xff]
    %v95 = vld [vmem:[%s0 + $0xb0] sm:$0xff]
    %v96 = vld [vmem:[%s0 + $0xb8] sm:$0xff]
    %v97 = vld [vmem:[%s0 + $0xc0] sm:$0xff]
    %v98 = vld [vmem:[%s0 + $0xc8] sm:$0xff]
    %v99 = vld [vmem:[%s0 + $0xd0] sm:$0xff]
    %v100 = vld [vmem:[%s0 + $0xd8] sm:$0xff]
    %v101 = vld [vmem:[%s0 + $0xe0] sm:$0xff]
    %v102 = vld [vmem:[%s0 + $0xe8] sm:$0xff]
    %v103 = vld [vmem:[%s0 + $0xf0] sm:$0xff]
    %v104 = vld [vmem:[%s0 + $0xf8] sm:$0xff]
    %v105 = vpack.c.bf16 %v74, %v73
    %v106 = vpack.c.bf16 %v76, %v75
    %v107 = vpack.c.bf16 %v78, %v77
    %v108 = vpack.c.bf16 %v80, %v79
    %v109 = vpack.c.bf16 %v82, %v81
    %v110 = vpack.c.bf16 %v84, %v83
    %v111 = vpack.c.bf16 %v86, %v85
    %v112 = vpack.c.bf16 %v88, %v87
    %v113 = vpack.c.bf16 %v90, %v89
    %v114 = vpack.c.bf16 %v92, %v91
    %v115 = vpack.c.bf16 %v94, %v93
    %v116 = vpack.c.bf16 %v96, %v95
    %v117 = vpack.c.bf16 %v98, %v97
    %v118 = vpack.c.bf16 %v100, %v99
    %v119 = vpack.c.bf16 %v102, %v101
    %v120 = vpack.c.bf16 %v104, %v103
    %v121 = vld [vmem:[%s1] sm:$0xf]
    %v122 = vld [vmem:[%s1 + $0x4] sm:$0xf]
    %v123 = vld [vmem:[%s2] sm:$0x1]
    %v125 = vlaneseq
    %v126 = vshrl.u32 %v125, 7
    %v127 = vsub.s32 0, %v126
    %v128 = vrot.slane %v123, %v127
    %v132 = vunpack.c.l.b16 %v121
    %v133 = vunpack.c.l.b16 %v122
    %v134 = vpack.c.b16 %v133, %v132
    %vm136 = vcmask 130048
    %v138 = vsel %vm136, %v105, 0
    %v141 = vsel %vm136, %v106, 0
    %v144 = vsel %vm136, %v107, 0
    %v147 = vsel %vm136, %v108, 0
    %v150 = vsel %vm136, %v109, 0
    %v153 = vsel %vm136, %v110, 0
    %v156 = vsel %vm136, %v111, 0
    %v159 = vsel %vm136, %v112, 0
    %v162 = vsel %vm136, %v113, 0
    %v165 = vsel %vm136, %v114, 0
    %v168 = vsel %vm136, %v115, 0
    %v171 = vsel %vm136, %v116, 0
    %v174 = vsel %vm136, %v117, 0
    %v177 = vsel %vm136, %v118, 0
    %v180 = vsel %vm136, %v119, 0
    %v183 = vsel %vm136, %v120, 0
    %185 = vmatprep.subr.bf16.mxu0 0
    %186 = vmatpush1.bf16.msra.mxu0 %v134
    %187 = vmatprep.subr.bf16.mxu0 0
    %188 = vmatpush1.bf16.msra.mxu0 0
    %189 = vmatprep.subr.bf16.mxu0 0
    %190 = vmatpush1.bf16.msra.mxu0 0
    %191 = vmatprep.subr.bf16.mxu0 0
    %192 = vmatpush1.bf16.msra.mxu0 0
    %193 = vmatprep.subr.bf16.mxu0 0
    %194 = vmatpush1.bf16.msra.mxu0 0
    %195 = vmatprep.subr.bf16.mxu0 0
    %196 = vmatpush1.bf16.msra.mxu0 0
    %197 = vmatprep.subr.bf16.mxu0 0
    %198 = vmatpush1.bf16.msra.mxu0 0
    %199 = vmatprep.subr.bf16.mxu0 0
    %200 = vmatpush1.bf16.msra.mxu0 0
    %201 = vmatprep.subr.bf16.mxu0 0
    %202 = vmatpush1.bf16.msra.mxu0 0
    %203 = vmatprep.subr.bf16.mxu0 0
    %204 = vmatpush1.bf16.msra.mxu0 0
    %205 = vmatprep.subr.bf16.mxu0 0
    %206 = vmatpush1.bf16.msra.mxu0 0
    %207 = vmatprep.subr.bf16.mxu0 0
    %208 = vmatpush1.bf16.msra.mxu0 0
    %209 = vmatprep.subr.bf16.mxu0 0
    %210 = vmatpush1.bf16.msra.mxu0 0
    %211 = vmatprep.subr.bf16.mxu0 0
    %212 = vmatpush1.bf16.msra.mxu0 0
    %213 = vmatprep.subr.bf16.mxu0 0
    %214 = vmatpush1.bf16.msra.mxu0 0
    %215 = vmatprep.subr.bf16.mxu0 0
    %216 = vmatpush1.bf16.msra.mxu0 0
    %217 = vmatprep.mubr.bf16.mxu0 0
    %218 = vmatmul.mubr.bf16.gmra.mrb[0].mxu0 %v138
    %v219 = vpop.f32.mrb[0].mxu0
    %v220 = vadd.f32 %v128, %v219
    %v221 = vpop.f32.mrb[0].mxu0
    %v222 = vpop.f32.mrb[0].mxu0
    %v223 = vadd.f32 %v128, %v222
    %v224 = vpop.f32.mrb[0].mxu0
    %225 = vmatprep.mubr.bf16.mxu0 0
    %226 = vmatmul.mubr.bf16.gmra.mrb[0].mxu0 %v141
    %v227 = vpop.f32.mrb[0].mxu0
    %v228 = vadd.f32 %v128, %v227
    %v229 = vpop.f32.mrb[0].mxu0
    %v230 = vpop.f32.mrb[0].mxu0
    %v231 = vadd.f32 %v128, %v230
    %v232 = vpop.f32.mrb[0].mxu0
    %233 = vmatprep.mubr.bf16.mxu0 0
    %234 = vmatmul.mubr.bf16.gmra.mrb[0].mxu0 %v144
    %v235 = vpop.f32.mrb[0].mxu0
    %v236 = vadd.f32 %v128, %v235
    %v237 = vpop.f32.mrb[0].mxu0
    %v238 = vpop.f32.mrb[0].mxu0
    %v239 = vadd.f32 %v128, %v238
    %v240 = vpop.f32.mrb[0].mxu0
    %241 = vmatprep.mubr.bf16.mxu0 0
    %242 = vmatmul.mubr.bf16.gmra.mrb[0].mxu0 %v147
    %v243 = vpop.f32.mrb[0].mxu0
    %v244 = vadd.f32 %v128, %v243
    %v245 = vpop.f32.mrb[0].mxu0
    %v246 = vpop.f32.mrb[0].mxu0
    %v247 = vadd.f32 %v128, %v246
    %v248 = vpop.f32.mrb[0].mxu0
    %249 = vmatprep.mubr.bf16.mxu0 0
    %250 = vmatmul.mubr.bf16.gmra.mrb[0].mxu0 %v150
    %v251 = vpop.f32.mrb[0].mxu0
    %v252 = vadd.f32 %v128, %v251
    %v253 = vpop.f32.mrb[0].mxu0
    %v254 = vpop.f32.mrb[0].mxu0
    %v255 = vadd.f32 %v128, %v254
    %v256 = vpop.f32.mrb[0].mxu0
    %257 = vmatprep.mubr.bf16.mxu0 0
    %258 = vmatmul.mubr.bf16.gmra.mrb[0].mxu0 %v153
    %v259 = vpop.f32.mrb[0].mxu0
    %v260 = vadd.f32 %v128, %v259
    %v261 = vpop.f32.mrb[0].mxu0
    %v262 = vpop.f32.mrb[0].mxu0
    %v263 = vadd.f32 %v128, %v262
    %v264 = vpop.f32.mrb[0].mxu0
    %265 = vmatprep.mubr.bf16.mxu0 0
    %266 = vmatmul.mubr.bf16.gmra.mrb[0].mxu0 %v156
    %v267 = vpop.f32.mrb[0].mxu0
    %v268 = vadd.f32 %v128, %v267
    %v269 = vpop.f32.mrb[0].mxu0
    %v270 = vpop.f32.mrb[0].mxu0
    %v271 = vadd.f32 %v128, %v270
    %v272 = vpop.f32.mrb[0].mxu0
    %273 = vmatprep.mubr.bf16.mxu0 0
    %274 = vmatmul.mubr.bf16.gmra.mrb[0].mxu0 %v159
    %v275 = vpop.f32.mrb[0].mxu0
    %v276 = vadd.f32 %v128, %v275
    %v277 = vpop.f32.mrb[0].mxu0
    %v278 = vpop.f32.mrb[0].mxu0
    %v279 = vadd.f32 %v128, %v278
    %v280 = vpop.f32.mrb[0].mxu0
    %281 = vmatprep.mubr.bf16.mxu0 0
    %282 = vmatmul.mubr.bf16.gmra.mrb[0].mxu0 %v162
    %v283 = vpop.f32.mrb[0].mxu0
    %v284 = vadd.f32 %v128, %v283
    %v285 = vpop.f32.mrb[0].mxu0
    %v286 = vpop.f32.mrb[0].mxu0
    %v287 = vadd.f32 %v128, %v286
    %v288 = vpop.f32.mrb[0].mxu0
    %289 = vmatprep.mubr.bf16.mxu0 0
    %290 = vmatmul.mubr.bf16.gmra.mrb[0].mxu0 %v165
    %v291 = vpop.f32.mrb[0].mxu0
    %v292 = vadd.f32 %v128, %v291
    %v293 = vpop.f32.mrb[0].mxu0
    %v294 = vpop.f32.mrb[0].mxu0
    %v295 = vadd.f32 %v128, %v294
    %v296 = vpop.f32.mrb[0].mxu0
    %297 = vmatprep.mubr.bf16.mxu0 0
    %298 = vmatmul.mubr.bf16.gmra.mrb[0].mxu0 %v168
    %v299 = vpop.f32.mrb[0].mxu0
    %v300 = vadd.f32 %v128, %v299
    %v301 = vpop.f32.mrb[0].mxu0
    %v302 = vpop.f32.mrb[0].mxu0
    %v303 = vadd.f32 %v128, %v302
    %v304 = vpop.f32.mrb[0].mxu0
    %305 = vmatprep.mubr.bf16.mxu0 0
    %306 = vmatmul.mubr.bf16.gmra.mrb[0].mxu0 %v171
    %v307 = vpop.f32.mrb[0].mxu0
    %v308 = vadd.f32 %v128, %v307
    %v309 = vpop.f32.mrb[0].mxu0
    %v310 = vpop.f32.mrb[0].mxu0
    %v311 = vadd.f32 %v128, %v310
    %v312 = vpop.f32.mrb[0].mxu0
    %313 = vmatprep.mubr.bf16.mxu0 0
    %314 = vmatmul.mubr.bf16.gmra.mrb[0].mxu0 %v174
    %v315 = vpop.f32.mrb[0].mxu0
    %v316 = vadd.f32 %v128, %v315
    %v317 = vpop.f32.mrb[0].mxu0
    %v318 = vpop.f32.mrb[0].mxu0
    %v319 = vadd.f32 %v128, %v318
    %v320 = vpop.f32.mrb[0].mxu0
    %321 = vmatprep.mubr.bf16.mxu0 0
    %322 = vmatmul.mubr.bf16.gmra.mrb[0].mxu0 %v177
    %v323 = vpop.f32.mrb[0].mxu0
    %v324 = vadd.f32 %v128, %v323
    %v325 = vpop.f32.mrb[0].mxu0
    %v326 = vpop.f32.mrb[0].mxu0
    %v327 = vadd.f32 %v128, %v326
    %v328 = vpop.f32.mrb[0].mxu0
    %329 = vmatprep.mubr.bf16.mxu0 0
    %330 = vmatmul.mubr.bf16.gmra.mrb[0].mxu0 %v180
    %v331 = vpop.f32.mrb[0].mxu0
    %v332 = vadd.f32 %v128, %v331
    %v333 = vpop.f32.mrb[0].mxu0
    %v334 = vpop.f32.mrb[0].mxu0
    %v335 = vadd.f32 %v128, %v334
    %v336 = vpop.f32.mrb[0].mxu0
    %337 = vmatprep.mubr.bf16.mxu0 0
    %338 = vmatmul.mubr.bf16.gmra.mrb[0].mxu0 %v183
    %v339 = vpop.f32.mrb[0].mxu0
    %v340 = vadd.f32 %v128, %v339
    %v341 = vpop.f32.mrb[0].mxu0
    %v342 = vpop.f32.mrb[0].mxu0
    %v343 = vadd.f32 %v128, %v342
    %v344 = vpop.f32.mrb[0].mxu0
    %345 = vdwg.mxu0
    %v346 = vmax.f32 %v220, 0.0
    %v347 = vmax.f32 %v223, 0.0
    %v348 = vmax.f32 %v228, 0.0
    %v349 = vmax.f32 %v231, 0.0
    %v350 = vmax.f32 %v236, 0.0
    %v351 = vmax.f32 %v239, 0.0
    %v352 = vmax.f32 %v244, 0.0
    %v353 = vmax.f32 %v247, 0.0
    %v354 = vmax.f32 %v252, 0.0
    %v355 = vmax.f32 %v255, 0.0
    %v356 = vmax.f32 %v260, 0.0
    %v357 = vmax.f32 %v263, 0.0
    %v358 = vmax.f32 %v268, 0.0
    %v359 = vmax.f32 %v271, 0.0
    %v360 = vmax.f32 %v276, 0.0
    %v361 = vmax.f32 %v279, 0.0
    %v362 = vmax.f32 %v284, 0.0
    %v363 = vmax.f32 %v287, 0.0
    %v364 = vmax.f32 %v292, 0.0
    %v365 = vmax.f32 %v295, 0.0
    %v366 = vmax.f32 %v300, 0.0
    %v367 = vmax.f32 %v303, 0.0
    %v368 = vmax.f32 %v308, 0.0
    %v369 = vmax.f32 %v311, 0.0
    %v370 = vmax.f32 %v316, 0.0
    %v371 = vmax.f32 %v319, 0.0
    %v372 = vmax.f32 %v324, 0.0
    %v373 = vmax.f32 %v327, 0.0
    %v374 = vmax.f32 %v332, 0.0
    %v375 = vmax.f32 %v335, 0.0
    %v376 = vmax.f32 %v340, 0.0
    %v377 = vmax.f32 %v343, 0.0
    %v378 = vpack.c.bf16 %v347, %v346
    %v379 = vpack.c.bf16 %v349, %v348
    %v380 = vpack.c.bf16 %v351, %v350
    %v381 = vpack.c.bf16 %v353, %v352
    %v382 = vpack.c.bf16 %v355, %v354
    %v383 = vpack.c.bf16 %v357, %v356
    %v384 = vpack.c.bf16 %v359, %v358
    %v385 = vpack.c.bf16 %v361, %v360
    %v386 = vpack.c.bf16 %v363, %v362
    %v387 = vpack.c.bf16 %v365, %v364
    %v388 = vpack.c.bf16 %v367, %v366
    %v389 = vpack.c.bf16 %v369, %v368
    %v390 = vpack.c.bf16 %v371, %v370
    %v391 = vpack.c.bf16 %v373, %v372
    %v392 = vpack.c.bf16 %v375, %v374
    %v393 = vpack.c.bf16 %v377, %v376
    %v394 = vld [vmem:[%s3] sm:$0xff]
    %v395 = vld [vmem:[%s3 + $0x8] sm:$0xff]
    %v396 = vld [vmem:[%s3 + $0x10] sm:$0xff]
    %v397 = vld [vmem:[%s3 + $0x18] sm:$0xff]
    %v398 = vld [vmem:[%s3 + $0x20] sm:$0xff]
    %v399 = vld [vmem:[%s3 + $0x28] sm:$0xff]
    %v400 = vld [vmem:[%s3 + $0x30] sm:$0xff]
    %v401 = vld [vmem:[%s3 + $0x38] sm:$0xff]
    %v402 = vld [vmem:[%s4] sm:$0x3]
    %v404 = vlaneseq
    %v405 = vshrl.u32 %v404, 7
    %v406 = vsub.s32 0, %v405
    %v407 = vrot.slane %v402, %v406
    %v408 = vlaneseq
    %v409 = vshrl.u32 %v408, 7
    %v410 = vsub.s32 1, %v409
    %v411 = vrot.slane %v402, %v410
    %v422 = vunpack.c.l.b16 %v394
    %v423 = vunpack.c.h.b16 %v394
    %v424 = vunpack.c.l.b16 %v395
    %v425 = vunpack.c.h.b16 %v395
    %v426 = vunpack.c.l.b16 %v396
    %v427 = vunpack.c.h.b16 %v396
    %v428 = vunpack.c.l.b16 %v397
    %v429 = vunpack.c.h.b16 %v397
    %v430 = vunpack.c.l.b16 %v398
    %v431 = vunpack.c.h.b16 %v398
    %v432 = vunpack.c.l.b16 %v399
    %v433 = vunpack.c.h.b16 %v399
    %v434 = vunpack.c.l.b16 %v400
    %v435 = vunpack.c.h.b16 %v400
    %v436 = vunpack.c.l.b16 %v401
    %v437 = vunpack.c.h.b16 %v401
    %v438 = vpack.c.b16 %v424, %v422
    %v439 = vpack.c.b16 %v425, %v423
    %v440 = vpack.c.b16 %v428, %v426
    %v441 = vpack.c.b16 %v429, %v427
    %v442 = vpack.c.b16 %v432, %v430
    %v443 = vpack.c.b16 %v433, %v431
    %v444 = vpack.c.b16 %v436, %v434
    %v445 = vpack.c.b16 %v437, %v435
    %vm454 = vcmask 523264
    %v456 = vsel %vm454, %v378, 0
    %v459 = vsel %vm454, %v379, 0
    %v462 = vsel %vm454, %v380, 0
    %v465 = vsel %vm454, %v381, 0
    %v468 = vsel %vm454, %v382, 0
    %v471 = vsel %vm454, %v383, 0
    %v474 = vsel %vm454, %v384, 0
    %v477 = vsel %vm454, %v385, 0
    %v480 = vsel %vm454, %v386, 0
    %v483 = vsel %vm454, %v387, 0
    %v486 = vsel %vm454, %v388, 0
    %v489 = vsel %vm454, %v389, 0
    %v492 = vsel %vm454, %v390, 0
    %v495 = vsel %vm454, %v391, 0
    %v498 = vsel %vm454, %v392, 0
    %v501 = vsel %vm454, %v393, 0
    %503 = vmatprep.subr.bf16.mxu0 %v439
    %504 = vmatpush1.bf16.msra.mxu0 %v438
    %505 = vmatprep.subr.bf16.mxu0 %v441
    %506 = vmatpush1.bf16.msra.mxu0 %v440
    %507 = vmatprep.subr.bf16.mxu0 %v443
    %508 = vmatpush1.bf16.msra.mxu0 %v442
    %509 = vmatprep.subr.bf16.mxu0 %v445
    %510 = vmatpush1.bf16.msra.mxu0 %v444
    %511 = vmatprep.subr.bf16.mxu0 0
    %512 = vmatpush1.bf16.msra.mxu0 0
    %513 = vmatprep.subr.bf16.mxu0 0
    %514 = vmatpush1.bf16.msra.mxu0 0
    %515 = vmatprep.subr.bf16.mxu0 0
    %516 = vmatpush1.bf16.msra.mxu0 0
    %517 = vmatprep.subr.bf16.mxu0 0
    %518 = vmatpush1.bf16.msra.mxu0 0
    %519 = vmatprep.subr.bf16.mxu0 0
    %520 = vmatpush1.bf16.msra.mxu0 0
    %521 = vmatprep.subr.bf16.mxu0 0
    %522 = vmatpush1.bf16.msra.mxu0 0
    %523 = vmatprep.subr.bf16.mxu0 0
    %524 = vmatpush1.bf16.msra.mxu0 0
    %525 = vmatprep.subr.bf16.mxu0 0
    %526 = vmatpush1.bf16.msra.mxu0 0
    %527 = vmatprep.subr.bf16.mxu0 0
    %528 = vmatpush1.bf16.msra.mxu0 0
    %529 = vmatprep.subr.bf16.mxu0 0
    %530 = vmatpush1.bf16.msra.mxu0 0
    %531 = vmatprep.subr.bf16.mxu0 0
    %532 = vmatpush1.bf16.msra.mxu0 0
    %533 = vmatprep.subr.bf16.mxu0 0
    %534 = vmatpush1.bf16.msra.mxu0 0
    %535 = vmatprep.mubr.bf16.mxu0 0
    %536 = vmatmul.mubr.bf16.gmra.mrb[0].mxu0 %v456
    %v537 = vpop.f32.mrb[0].mxu0
    %v538 = vadd.f32 %v407, %v537
    %v539 = vpop.f32.mrb[0].mxu0
    %v540 = vadd.f32 %v411, %v539
    %v541 = vpop.f32.mrb[0].mxu0
    %v542 = vadd.f32 %v407, %v541
    %v543 = vpop.f32.mrb[0].mxu0
    %v544 = vadd.f32 %v411, %v543
    %545 = vmatprep.mubr.bf16.mxu0 0
    %546 = vmatmul.mubr.bf16.gmra.mrb[0].mxu0 %v459
    %v547 = vpop.f32.mrb[0].mxu0
    %v548 = vadd.f32 %v407, %v547
    %v549 = vpop.f32.mrb[0].mxu0
    %v550 = vadd.f32 %v411, %v549
    %v551 = vpop.f32.mrb[0].mxu0
    %v552 = vadd.f32 %v407, %v551
    %v553 = vpop.f32.mrb[0].mxu0
    %v554 = vadd.f32 %v411, %v553
    %555 = vmatprep.mubr.bf16.mxu0 0
    %556 = vmatmul.mubr.bf16.gmra.mrb[0].mxu0 %v462
    %v557 = vpop.f32.mrb[0].mxu0
    %v558 = vadd.f32 %v407, %v557
    %v559 = vpop.f32.mrb[0].mxu0
    %v560 = vadd.f32 %v411, %v559
    %v561 = vpop.f32.mrb[0].mxu0
    %v562 = vadd.f32 %v407, %v561
    %v563 = vpop.f32.mrb[0].mxu0
    %v564 = vadd.f32 %v411, %v563
    %565 = vmatprep.mubr.bf16.mxu0 0
    %566 = vmatmul.mubr.bf16.gmra.mrb[0].mxu0 %v465
    %v567 = vpop.f32.mrb[0].mxu0
    %v568 = vadd.f32 %v407, %v567
    %v569 = vpop.f32.mrb[0].mxu0
    %v570 = vadd.f32 %v411, %v569
    %v571 = vpop.f32.mrb[0].mxu0
    %v572 = vadd.f32 %v407, %v571
    %v573 = vpop.f32.mrb[0].mxu0
    %v574 = vadd.f32 %v411, %v573
    %575 = vmatprep.mubr.bf16.mxu0 0
    %576 = vmatmul.mubr.bf16.gmra.mrb[0].mxu0 %v468
    %v577 = vpop.f32.mrb[0].mxu0
    %v578 = vadd.f32 %v407, %v577
    %v579 = vpop.f32.mrb[0].mxu0
    %v580 = vadd.f32 %v411, %v579
    %v581 = vpop.f32.mrb[0].mxu0
    %v582 = vadd.f32 %v407, %v581
    %v583 = vpop.f32.mrb[0].mxu0
    %v584 = vadd.f32 %v411, %v583
    %585 = vmatprep.mubr.bf16.mxu0 0
    %586 = vmatmul.mubr.bf16.gmra.mrb[0].mxu0 %v471
    %v587 = vpop.f32.mrb[0].mxu0
    %v588 = vadd.f32 %v407, %v587
    %v589 = vpop.f32.mrb[0].mxu0
    %v590 = vadd.f32 %v411, %v589
    %v591 = vpop.f32.mrb[0].mxu0
    %v592 = vadd.f32 %v407, %v591
    %v593 = vpop.f32.mrb[0].mxu0
    %v594 = vadd.f32 %v411, %v593
    %595 = vmatprep.mubr.bf16.mxu0 0
    %596 = vmatmul.mubr.bf16.gmra.mrb[0].mxu0 %v474
    %v597 = vpop.f32.mrb[0].mxu0
    %v598 = vadd.f32 %v407, %v597
    %v599 = vpop.f32.mrb[0].mxu0
    %v600 = vadd.f32 %v411, %v599
    %v601 = vpop.f32.mrb[0].mxu0
    %v602 = vadd.f32 %v407, %v601
    %v603 = vpop.f32.mrb[0].mxu0
    %v604 = vadd.f32 %v411, %v603
    %605 = vmatprep.mubr.bf16.mxu0 0
    %606 = vmatmul.mubr.bf16.gmra.mrb[0].mxu0 %v477
    %v607 = vpop.f32.mrb[0].mxu0
    %v608 = vadd.f32 %v407, %v607
    %v609 = vpop.f32.mrb[0].mxu0
    %v610 = vadd.f32 %v411, %v609
    %v611 = vpop.f32.mrb[0].mxu0
    %v612 = vadd.f32 %v407, %v611
    %v613 = vpop.f32.mrb[0].mxu0
    %v614 = vadd.f32 %v411, %v613
    %615 = vmatprep.mubr.bf16.mxu0 0
    %616 = vmatmul.mubr.bf16.gmra.mrb[0].mxu0 %v480
    %v617 = vpop.f32.mrb[0].mxu0
    %v618 = vadd.f32 %v407, %v617
    %v619 = vpop.f32.mrb[0].mxu0
    %v620 = vadd.f32 %v411, %v619
    %v621 = vpop.f32.mrb[0].mxu0
    %v622 = vadd.f32 %v407, %v621
    %v623 = vpop.f32.mrb[0].mxu0
    %v624 = vadd.f32 %v411, %v623
    %625 = vmatprep.mubr.bf16.mxu0 0
    %626 = vmatmul.mubr.bf16.gmra.mrb[0].mxu0 %v483
    %v627 = vpop.f32.mrb[0].mxu0
    %v628 = vadd.f32 %v407, %v627
    %v629 = vpop.f32.mrb[0].mxu0
    %v630 = vadd.f32 %v411, %v629
    %v631 = vpop.f32.mrb[0].mxu0
    %v632 = vadd.f32 %v407, %v631
    %v633 = vpop.f32.mrb[0].mxu0
    %v634 = vadd.f32 %v411, %v633
    %635 = vmatprep.mubr.bf16.mxu0 0
    %636 = vmatmul.mubr.bf16.gmra.mrb[0].mxu0 %v486
    %v637 = vpop.f32.mrb[0].mxu0
    %v638 = vadd.f32 %v407, %v637
    %v639 = vpop.f32.mrb[0].mxu0
    %v640 = vadd.f32 %v411, %v639
    %v641 = vpop.f32.mrb[0].mxu0
    %v642 = vadd.f32 %v407, %v641
    %v643 = vpop.f32.mrb[0].mxu0
    %v644 = vadd.f32 %v411, %v643
    %645 = vmatprep.mubr.bf16.mxu0 0
    %646 = vmatmul.mubr.bf16.gmra.mrb[0].mxu0 %v489
    %v647 = vpop.f32.mrb[0].mxu0
    %v648 = vadd.f32 %v407, %v647
    %v649 = vpop.f32.mrb[0].mxu0
    %v650 = vadd.f32 %v411, %v649
    %v651 = vpop.f32.mrb[0].mxu0
    %v652 = vadd.f32 %v407, %v651
    %v653 = vpop.f32.mrb[0].mxu0
    %v654 = vadd.f32 %v411, %v653
    %655 = vmatprep.mubr.bf16.mxu0 0
    %656 = vmatmul.mubr.bf16.gmra.mrb[0].mxu0 %v492
    %v657 = vpop.f32.mrb[0].mxu0
    %v658 = vadd.f32 %v407, %v657
    %v659 = vpop.f32.mrb[0].mxu0
    %v660 = vadd.f32 %v411, %v659
    %v661 = vpop.f32.mrb[0].mxu0
    %v662 = vadd.f32 %v407, %v661
    %v663 = vpop.f32.mrb[0].mxu0
    %v664 = vadd.f32 %v411, %v663
    %665 = vmatprep.mubr.bf16.mxu0 0
    %666 = vmatmul.mubr.bf16.gmra.mrb[0].mxu0 %v495
    %v667 = vpop.f32.mrb[0].mxu0
    %v668 = vadd.f32 %v407, %v667
    %v669 = vpop.f32.mrb[0].mxu0
    %v670 = vadd.f32 %v411, %v669
    %v671 = vpop.f32.mrb[0].mxu0
    %v672 = vadd.f32 %v407, %v671
    %v673 = vpop.f32.mrb[0].mxu0
    %v674 = vadd.f32 %v411, %v673
    %675 = vmatprep.mubr.bf16.mxu0 0
    %676 = vmatmul.mubr.bf16.gmra.mrb[0].mxu0 %v498
    %v677 = vpop.f32.mrb[0].mxu0
    %v678 = vadd.f32 %v407, %v677
    %v679 = vpop.f32.mrb[0].mxu0
    %v680 = vadd.f32 %v411, %v679
    %v681 = vpop.f32.mrb[0].mxu0
    %v682 = vadd.f32 %v407, %v681
    %v683 = vpop.f32.mrb[0].mxu0
    %v684 = vadd.f32 %v411, %v683
    %685 = vmatprep.mubr.bf16.mxu0 0
    %686 = vmatmul.mubr.bf16.gmra.mrb[0].mxu0 %v501
    %v687 = vpop.f32.mrb[0].mxu0
    %v688 = vadd.f32 %v407, %v687
    %v689 = vpop.f32.mrb[0].mxu0
    %v690 = vadd.f32 %v411, %v689
    %v691 = vpop.f32.mrb[0].mxu0
    %v692 = vadd.f32 %v407, %v691
    %v693 = vpop.f32.mrb[0].mxu0
    %v694 = vadd.f32 %v411, %v693
    %695 = vdwg.mxu0
    %v696 = vmax.f32 %v538, 0.0
    %v697 = vmax.f32 %v540, 0.0
    %v698 = vmax.f32 %v542, 0.0
    %v699 = vmax.f32 %v544, 0.0
    %v700 = vmax.f32 %v548, 0.0
    %v701 = vmax.f32 %v550, 0.0
    %v702 = vmax.f32 %v552, 0.0
    %v703 = vmax.f32 %v554, 0.0
    %v704 = vmax.f32 %v558, 0.0
    %v705 = vmax.f32 %v560, 0.0
    %v706 = vmax.f32 %v562, 0.0
    %v707 = vmax.f32 %v564, 0.0
    %v708 = vmax.f32 %v568, 0.0
    %v709 = vmax.f32 %v570, 0.0
    %v710 = vmax.f32 %v572, 0.0
    %v711 = vmax.f32 %v574, 0.0
    %v712 = vmax.f32 %v578, 0.0
    %v713 = vmax.f32 %v580, 0.0
    %v714 = vmax.f32 %v582, 0.0
    %v715 = vmax.f32 %v584, 0.0
    %v716 = vmax.f32 %v588, 0.0
    %v717 = vmax.f32 %v590, 0.0
    %v718 = vmax.f32 %v592, 0.0
    %v719 = vmax.f32 %v594, 0.0
    %v720 = vmax.f32 %v598, 0.0
    %v721 = vmax.f32 %v600, 0.0
    %v722 = vmax.f32 %v602, 0.0
    %v723 = vmax.f32 %v604, 0.0
    %v724 = vmax.f32 %v608, 0.0
    %v725 = vmax.f32 %v610, 0.0
    %v726 = vmax.f32 %v612, 0.0
    %v727 = vmax.f32 %v614, 0.0
    %v728 = vmax.f32 %v618, 0.0
    %v729 = vmax.f32 %v620, 0.0
    %v730 = vmax.f32 %v622, 0.0
    %v731 = vmax.f32 %v624, 0.0
    %v732 = vmax.f32 %v628, 0.0
    %v733 = vmax.f32 %v630, 0.0
    %v734 = vmax.f32 %v632, 0.0
    %v735 = vmax.f32 %v634, 0.0
    %v736 = vmax.f32 %v638, 0.0
    %v737 = vmax.f32 %v640, 0.0
    %v738 = vmax.f32 %v642, 0.0
    %v739 = vmax.f32 %v644, 0.0
    %v740 = vmax.f32 %v648, 0.0
    %v741 = vmax.f32 %v650, 0.0
    %v742 = vmax.f32 %v652, 0.0
    %v743 = vmax.f32 %v654, 0.0
    %v744 = vmax.f32 %v658, 0.0
    %v745 = vmax.f32 %v660, 0.0
    %v746 = vmax.f32 %v662, 0.0
    %v747 = vmax.f32 %v664, 0.0
    %v748 = vmax.f32 %v668, 0.0
    %v749 = vmax.f32 %v670, 0.0
    %v750 = vmax.f32 %v672, 0.0
    %v751 = vmax.f32 %v674, 0.0
    %v752 = vmax.f32 %v678, 0.0
    %v753 = vmax.f32 %v680, 0.0
    %v754 = vmax.f32 %v682, 0.0
    %v755 = vmax.f32 %v684, 0.0
    %v756 = vmax.f32 %v688, 0.0
    %v757 = vmax.f32 %v690, 0.0
    %v758 = vmax.f32 %v692, 0.0
    %v759 = vmax.f32 %v694, 0.0
    %v760 = vpack.c.bf16 %v698, %v696
    %v761 = vpack.c.bf16 %v699, %v697
    %v762 = vpack.c.bf16 %v702, %v700
    %v763 = vpack.c.bf16 %v703, %v701
    %v764 = vpack.c.bf16 %v706, %v704
    %v765 = vpack.c.bf16 %v707, %v705
    %v766 = vpack.c.bf16 %v710, %v708
    %v767 = vpack.c.bf16 %v711, %v709
    %v768 = vpack.c.bf16 %v714, %v712
    %v769 = vpack.c.bf16 %v715, %v713
    %v770 = vpack.c.bf16 %v718, %v716
    %v771 = vpack.c.bf16 %v719, %v717
    %v772 = vpack.c.bf16 %v722, %v720
    %v773 = vpack.c.bf16 %v723, %v721
    %v774 = vpack.c.bf16 %v726, %v724
    %v775 = vpack.c.bf16 %v727, %v725
    %v776 = vpack.c.bf16 %v730, %v728
    %v777 = vpack.c.bf16 %v731, %v729
    %v778 = vpack.c.bf16 %v734, %v732
    %v779 = vpack.c.bf16 %v735, %v733
    %v780 = vpack.c.bf16 %v738, %v736
    %v781 = vpack.c.bf16 %v739, %v737
    %v782 = vpack.c.bf16 %v742, %v740
    %v783 = vpack.c.bf16 %v743, %v741
    %v784 = vpack.c.bf16 %v746, %v744
    %v785 = vpack.c.bf16 %v747, %v745
    %v786 = vpack.c.bf16 %v750, %v748
    %v787 = vpack.c.bf16 %v751, %v749
    %v788 = vpack.c.bf16 %v754, %v752
    %v789 = vpack.c.bf16 %v755, %v753
    %v790 = vpack.c.bf16 %v758, %v756
    %v791 = vpack.c.bf16 %v759, %v757
    %v792 = vld [vmem:[#allocation2] sm:$0xff]
    %v793 = vld [vmem:[#allocation2 + $0x8] sm:$0xff]
    %v794 = vld [vmem:[#allocation2 + $0x10] sm:$0xff]
    %v795 = vld [vmem:[#allocation2 + $0x18] sm:$0xff]
    %v796 = vld [vmem:[#allocation2 + $0x20] sm:$0xff]
    %v797 = vld [vmem:[#allocation2 + $0x28] sm:$0xff]
    %v798 = vld [vmem:[#allocation2 + $0x30] sm:$0xff]
    %v799 = vld [vmem:[#allocation2 + $0x38] sm:$0xff]
    %v800 = vld [vmem:[#allocation2 + $0x40] sm:$0xff]
    %v801 = vld [vmem:[#allocation2 + $0x48] sm:$0xff]
    %v802 = vld [vmem:[#allocation2 + $0x50] sm:$0xff]
    %v803 = vld [vmem:[#allocation2 + $0x58] sm:$0xff]
    %v804 = vld [vmem:[#allocation2 + $0x60] sm:$0xff]
    %v805 = vld [vmem:[#allocation2 + $0x68] sm:$0xff]
    %v806 = vld [vmem:[#allocation2 + $0x70] sm:$0xff]
    %v807 = vld [vmem:[#allocation2 + $0x78] sm:$0xff]
    %v808 = vld [vmem:[#allocation2 + $0x80] sm:$0xff]
    %v809 = vld [vmem:[#allocation2 + $0x88] sm:$0xff]
    %v810 = vld [vmem:[#allocation2 + $0x90] sm:$0xff]
    %v811 = vld [vmem:[#allocation2 + $0x98] sm:$0xff]
    %v812 = vld [vmem:[#allocation2 + $0xa0] sm:$0xff]
    %v813 = vld [vmem:[#allocation2 + $0xa8] sm:$0xff]
    %v814 = vld [vmem:[#allocation2 + $0xb0] sm:$0xff]
    %v815 = vld [vmem:[#allocation2 + $0xb8] sm:$0xff]
    %v816 = vld [vmem:[#allocation2 + $0xc0] sm:$0xff]
    %v817 = vld [vmem:[#allocation2 + $0xc8] sm:$0xff]
    %v818 = vld [vmem:[#allocation2 + $0xd0] sm:$0xff]
    %v819 = vld [vmem:[#allocation2 + $0xd8] sm:$0xff]
    %v820 = vld [vmem:[#allocation2 + $0xe0] sm:$0xff]
    %v821 = vld [vmem:[#allocation2 + $0xe8] sm:$0xff]
    %v822 = vld [vmem:[#allocation2 + $0xf0] sm:$0xff]
    %v823 = vld [vmem:[#allocation2 + $0xf8] sm:$0xff]
    %v824 = vld [vmem:[#allocation2 + $0x100] sm:$0xff]
    %v825 = vld [vmem:[#allocation2 + $0x108] sm:$0xff]
    %v826 = vld [vmem:[#allocation2 + $0x110] sm:$0xff]
    %v827 = vld [vmem:[#allocation2 + $0x118] sm:$0xff]
    %v828 = vld [vmem:[#allocation2 + $0x120] sm:$0xff]
    %v829 = vld [vmem:[#allocation2 + $0x128] sm:$0xff]
    %v830 = vld [vmem:[#allocation2 + $0x130] sm:$0xff]
    %v831 = vld [vmem:[#allocation2 + $0x138] sm:$0xff]
    %v832 = vld [vmem:[#allocation2 + $0x140] sm:$0xff]
    %v833 = vld [vmem:[#allocation2 + $0x148] sm:$0xff]
    %v834 = vld [vmem:[#allocation2 + $0x150] sm:$0xff]
    %v835 = vld [vmem:[#allocation2 + $0x158] sm:$0xff]
    %v836 = vld [vmem:[#allocation2 + $0x160] sm:$0xff]
    %v837 = vld [vmem:[#allocation2 + $0x168] sm:$0xff]
    %v838 = vld [vmem:[#allocation2 + $0x170] sm:$0xff]
    %v839 = vld [vmem:[#allocation2 + $0x178] sm:$0xff]
    %v840 = vld [vmem:[#allocation2 + $0x180] sm:$0xff]
    %v841 = vld [vmem:[#allocation2 + $0x188] sm:$0xff]
    %v842 = vld [vmem:[#allocation2 + $0x190] sm:$0xff]
    %v843 = vld [vmem:[#allocation2 + $0x198] sm:$0xff]
    %v844 = vld [vmem:[#allocation2 + $0x1a0] sm:$0xff]
    %v845 = vld [vmem:[#allocation2 + $0x1a8] sm:$0xff]
    %v846 = vld [vmem:[#allocation2 + $0x1b0] sm:$0xff]
    %v847 = vld [vmem:[#allocation2 + $0x1b8] sm:$0xff]
    %v848 = vld [vmem:[#allocation2 + $0x1c0] sm:$0xff]
    %v849 = vld [vmem:[#allocation2 + $0x1c8] sm:$0xff]
    %v850 = vld [vmem:[#allocation2 + $0x1d0] sm:$0xff]
    %v851 = vld [vmem:[#allocation2 + $0x1d8] sm:$0xff]
    %v852 = vld [vmem:[#allocation2 + $0x1e0] sm:$0xff]
    %v853 = vld [vmem:[#allocation2 + $0x1e8] sm:$0xff]
    %v854 = vld [vmem:[#allocation2 + $0x1f0] sm:$0xff]
    %v855 = vld [vmem:[#allocation2 + $0x1f8] sm:$0xff]
    %v856 = vld [vmem:[#allocation2 + $0x200] sm:$0xff]
    %v857 = vld [vmem:[#allocation2 + $0x208] sm:$0xff]
    %v858 = vld [vmem:[#allocation2 + $0x210] sm:$0xff]
    %v859 = vld [vmem:[#allocation2 + $0x218] sm:$0xff]
    %v860 = vld [vmem:[#allocation2 + $0x220] sm:$0xff]
    %v861 = vld [vmem:[#allocation2 + $0x228] sm:$0xff]
    %v862 = vld [vmem:[#allocation2 + $0x230] sm:$0xff]
    %v863 = vld [vmem:[#allocation2 + $0x238] sm:$0xff]
    %v864 = vld [vmem:[#allocation2 + $0x240] sm:$0xff]
    %v865 = vld [vmem:[#allocation2 + $0x248] sm:$0xff]
    %v866 = vld [vmem:[#allocation2 + $0x250] sm:$0xff]
    %v867 = vld [vmem:[#allocation2 + $0x258] sm:$0xff]
    %v868 = vld [vmem:[#allocation2 + $0x260] sm:$0xff]
    %v869 = vld [vmem:[#allocation2 + $0x268] sm:$0xff]
    %v870 = vld [vmem:[#allocation2 + $0x270] sm:$0xff]
    %v871 = vld [vmem:[#allocation2 + $0x278] sm:$0xff]
    %v872 = vld [vmem:[#allocation2 + $0x280] sm:$0xff]
    %v873 = vld [vmem:[#allocation2 + $0x288] sm:$0xff]
    %v874 = vld [vmem:[#allocation2 + $0x290] sm:$0xff]
    %v875 = vld [vmem:[#allocation2 + $0x298] sm:$0xff]
    %v876 = vld [vmem:[#allocation2 + $0x2a0] sm:$0xff]
    %v877 = vld [vmem:[#allocation2 + $0x2a8] sm:$0xff]
    %v878 = vld [vmem:[#allocation2 + $0x2b0] sm:$0xff]
    %v879 = vld [vmem:[#allocation2 + $0x2b8] sm:$0xff]
    %v880 = vld [vmem:[#allocation2 + $0x2c0] sm:$0xff]
    %v881 = vld [vmem:[#allocation2 + $0x2c8] sm:$0xff]
    %v882 = vld [vmem:[#allocation2 + $0x2d0] sm:$0xff]
    %v883 = vld [vmem:[#allocation2 + $0x2d8] sm:$0xff]
    %v884 = vld [vmem:[#allocation2 + $0x2e0] sm:$0xff]
    %v885 = vld [vmem:[#allocation2 + $0x2e8] sm:$0xff]
    %v886 = vld [vmem:[#allocation2 + $0x2f0] sm:$0xff]
    %v887 = vld [vmem:[#allocation2 + $0x2f8] sm:$0xff]
    %v888 = vld [vmem:[#allocation2 + $0x300] sm:$0xff]
    %v889 = vld [vmem:[#allocation2 + $0x308] sm:$0xff]
    %v890 = vld [vmem:[#allocation2 + $0x310] sm:$0xff]
    %v891 = vld [vmem:[#allocation2 + $0x318] sm:$0xff]
    %v892 = vld [vmem:[#allocation2 + $0x320] sm:$0xff]
    %v893 = vld [vmem:[#allocation2 + $0x328] sm:$0xff]
    %v894 = vld [vmem:[#allocation2 + $0x330] sm:$0xff]
    %v895 = vld [vmem:[#allocation2 + $0x338] sm:$0xff]
    %v896 = vld [vmem:[#allocation2 + $0x340] sm:$0xff]
    %v897 = vld [vmem:[#allocation2 + $0x348] sm:$0xff]
    %v898 = vld [vmem:[#allocation2 + $0x350] sm:$0xff]
    %v899 = vld [vmem:[#allocation2 + $0x358] sm:$0xff]
    %v900 = vld [vmem:[#allocation2 + $0x360] sm:$0xff]
    %v901 = vld [vmem:[#allocation2 + $0x368] sm:$0xff]
    %v902 = vld [vmem:[#allocation2 + $0x370] sm:$0xff]
    %v903 = vld [vmem:[#allocation2 + $0x378] sm:$0xff]
    %v904 = vld [vmem:[#allocation2 + $0x380] sm:$0xff]
    %v905 = vld [vmem:[#allocation2 + $0x388] sm:$0xff]
    %v906 = vld [vmem:[#allocation2 + $0x390] sm:$0xff]
    %v907 = vld [vmem:[#allocation2 + $0x398] sm:$0xff]
    %v908 = vld [vmem:[#allocation2 + $0x3a0] sm:$0xff]
    %v909 = vld [vmem:[#allocation2 + $0x3a8] sm:$0xff]
    %v910 = vld [vmem:[#allocation2 + $0x3b0] sm:$0xff]
    %v911 = vld [vmem:[#allocation2 + $0x3b8] sm:$0xff]
    %v912 = vld [vmem:[#allocation2 + $0x3c0] sm:$0xff]
    %v913 = vld [vmem:[#allocation2 + $0x3c8] sm:$0xff]
    %v914 = vld [vmem:[#allocation2 + $0x3d0] sm:$0xff]
    %v915 = vld [vmem:[#allocation2 + $0x3d8] sm:$0xff]
    %v916 = vld [vmem:[#allocation2 + $0x3e0] sm:$0xff]
    %v917 = vld [vmem:[#allocation2 + $0x3e8] sm:$0xff]
    %v918 = vld [vmem:[#allocation2 + $0x3f0] sm:$0xff]
    %v919 = vld [vmem:[#allocation2 + $0x3f8] sm:$0xff]
    %v920 = vld [vmem:[%s6] sm:$0xff]
    %v922 = vlaneseq
    %v923 = vshrl.u32 %v922, 7
    %v924 = vsub.s32 0, %v923
    %v925 = vrot.slane %v920, %v924
    %v926 = vlaneseq
    %v927 = vshrl.u32 %v926, 7
    %v928 = vsub.s32 1, %v927
    %v929 = vrot.slane %v920, %v928
    %v930 = vlaneseq
    %v931 = vshrl.u32 %v930, 7
    %v932 = vsub.s32 2, %v931
    %v933 = vrot.slane %v920, %v932
    %v934 = vlaneseq
    %v935 = vshrl.u32 %v934, 7
    %v936 = vsub.s32 3, %v935
    %v937 = vrot.slane %v920, %v936
    %v938 = vlaneseq
    %v939 = vshrl.u32 %v938, 7
    %v940 = vsub.s32 4, %v939
    %v941 = vrot.slane %v920, %v940
    %v942 = vlaneseq
    %v943 = vshrl.u32 %v942, 7
    %v944 = vsub.s32 5, %v943
    %v945 = vrot.slane %v920, %v944
    %v946 = vlaneseq
    %v947 = vshrl.u32 %v946, 7
    %v948 = vsub.s32 6, %v947
    %v949 = vrot.slane %v920, %v948
    %v950 = vlaneseq
    %v951 = vshrl.u32 %v950, 7
    %v952 = vsub.s32 7, %v951
    %v953 = vrot.slane %v920, %v952
    %v1090 = vunpack.c.l.b16 %v792
    %v1091 = vunpack.c.h.b16 %v792
    %v1092 = vunpack.c.l.b16 %v793
    %v1093 = vunpack.c.h.b16 %v793
    %v1094 = vunpack.c.l.b16 %v794
    %v1095 = vunpack.c.h.b16 %v794
    %v1096 = vunpack.c.l.b16 %v795
    %v1097 = vunpack.c.h.b16 %v795
    %v1098 = vunpack.c.l.b16 %v796
    %v1099 = vunpack.c.h.b16 %v796
    %v1100 = vunpack.c.l.b16 %v797
    %v1101 = vunpack.c.h.b16 %v797
    %v1102 = vunpack.c.l.b16 %v798
    %v1103 = vunpack.c.h.b16 %v798
    %v1104 = vunpack.c.l.b16 %v799
    %v1105 = vunpack.c.h.b16 %v799
    %v1106 = vunpack.c.l.b16 %v800
    %v1107 = vunpack.c.h.b16 %v800
    %v1108 = vunpack.c.l.b16 %v801
    %v1109 = vunpack.c.h.b16 %v801
    %v1110 = vunpack.c.l.b16 %v802
    %v1111 = vunpack.c.h.b16 %v802
    %v1112 = vunpack.c.l.b16 %v803
    %v1113 = vunpack.c.h.b16 %v803
    %v1114 = vunpack.c.l.b16 %v804
    %v1115 = vunpack.c.h.b16 %v804
    %v1116 = vunpack.c.l.b16 %v805
    %v1117 = vunpack.c.h.b16 %v805
    %v1118 = vunpack.c.l.b16 %v806
    %v1119 = vunpack.c.h.b16 %v806
    %v1120 = vunpack.c.l.b16 %v807
    %v1121 = vunpack.c.h.b16 %v807
    %v1122 = vunpack.c.l.b16 %v808
    %v1123 = vunpack.c.h.b16 %v808
    %v1124 = vunpack.c.l.b16 %v809
    %v1125 = vunpack.c.h.b16 %v809
    %v1126 = vunpack.c.l.b16 %v810
    %v1127 = vunpack.c.h.b16 %v810
    %v1128 = vunpack.c.l.b16 %v811
    %v1129 = vunpack.c.h.b16 %v811
    %v1130 = vunpack.c.l.b16 %v812
    %v1131 = vunpack.c.h.b16 %v812
    %v1132 = vunpack.c.l.b16 %v813
    %v1133 = vunpack.c.h.b16 %v813
    %v1134 = vunpack.c.l.b16 %v814
    %v1135 = vunpack.c.h.b16 %v814
    %v1136 = vunpack.c.l.b16 %v815
    %v1137 = vunpack.c.h.b16 %v815
    %v1138 = vunpack.c.l.b16 %v816
    %v1139 = vunpack.c.h.b16 %v816
    %v1140 = vunpack.c.l.b16 %v817
    %v1141 = vunpack.c.h.b16 %v817
    %v1142 = vunpack.c.l.b16 %v818
    %v1143 = vunpack.c.h.b16 %v818
    %v1144 = vunpack.c.l.b16 %v819
    %v1145 = vunpack.c.h.b16 %v819
    %v1146 = vunpack.c.l.b16 %v820
    %v1147 = vunpack.c.h.b16 %v820
    %v1148 = vunpack.c.l.b16 %v821
    %v1149 = vunpack.c.h.b16 %v821
    %v1150 = vunpack.c.l.b16 %v822
    %v1151 = vunpack.c.h.b16 %v822
    %v1152 = vunpack.c.l.b16 %v823
    %v1153 = vunpack.c.h.b16 %v823
    %v1154 = vunpack.c.l.b16 %v824
    %v1155 = vunpack.c.h.b16 %v824
    %v1156 = vunpack.c.l.b16 %v825
    %v1157 = vunpack.c.h.b16 %v825
    %v1158 = vunpack.c.l.b16 %v826
    %v1159 = vunpack.c.h.b16 %v826
    %v1160 = vunpack.c.l.b16 %v827
    %v1161 = vunpack.c.h.b16 %v827
    %v1162 = vunpack.c.l.b16 %v828
    %v1163 = vunpack.c.h.b16 %v828
    %v1164 = vunpack.c.l.b16 %v829
    %v1165 = vunpack.c.h.b16 %v829
    %v1166 = vunpack.c.l.b16 %v830
    %v1167 = vunpack.c.h.b16 %v830
    %v1168 = vunpack.c.l.b16 %v831
    %v1169 = vunpack.c.h.b16 %v831
    %v1170 = vunpack.c.l.b16 %v832
    %v1171 = vunpack.c.h.b16 %v832
    %v1172 = vunpack.c.l.b16 %v833
    %v1173 = vunpack.c.h.b16 %v833
    %v1174 = vunpack.c.l.b16 %v834
    %v1175 = vunpack.c.h.b16 %v834
    %v1176 = vunpack.c.l.b16 %v835
    %v1177 = vunpack.c.h.b16 %v835
    %v1178 = vunpack.c.l.b16 %v836
    %v1179 = vunpack.c.h.b16 %v836
    %v1180 = vunpack.c.l.b16 %v837
    %v1181 = vunpack.c.h.b16 %v837
    %v1182 = vunpack.c.l.b16 %v838
    %v1183 = vunpack.c.h.b16 %v838
    %v1184 = vunpack.c.l.b16 %v839
    %v1185 = vunpack.c.h.b16 %v839
    %v1186 = vunpack.c.l.b16 %v840
    %v1187 = vunpack.c.h.b16 %v840
    %v1188 = vunpack.c.l.b16 %v841
    %v1189 = vunpack.c.h.b16 %v841
    %v1190 = vunpack.c.l.b16 %v842
    %v1191 = vunpack.c.h.b16 %v842
    %v1192 = vunpack.c.l.b16 %v843
    %v1193 = vunpack.c.h.b16 %v843
    %v1194 = vunpack.c.l.b16 %v844
    %v1195 = vunpack.c.h.b16 %v844
    %v1196 = vunpack.c.l.b16 %v845
    %v1197 = vunpack.c.h.b16 %v845
    %v1198 = vunpack.c.l.b16 %v846
    %v1199 = vunpack.c.h.b16 %v846
    %v1200 = vunpack.c.l.b16 %v847
    %v1201 = vunpack.c.h.b16 %v847
    %v1202 = vunpack.c.l.b16 %v848
    %v1203 = vunpack.c.h.b16 %v848
    %v1204 = vunpack.c.l.b16 %v849
    %v1205 = vunpack.c.h.b16 %v849
    %v1206 = vunpack.c.l.b16 %v850
    %v1207 = vunpack.c.h.b16 %v850
    %v1208 = vunpack.c.l.b16 %v851
    %v1209 = vunpack.c.h.b16 %v851
    %v1210 = vunpack.c.l.b16 %v852
    %v1211 = vunpack.c.h.b16 %v852
    %v1212 = vunpack.c.l.b16 %v853
    %v1213 = vunpack.c.h.b16 %v853
    %v1214 = vunpack.c.l.b16 %v854
    %v1215 = vunpack.c.h.b16 %v854
    %v1216 = vunpack.c.l.b16 %v855
    %v1217 = vunpack.c.h.b16 %v855
    %v1218 = vunpack.c.l.b16 %v856
    %v1219 = vunpack.c.h.b16 %v856
    %v1220 = vunpack.c.l.b16 %v857
    %v1221 = vunpack.c.h.b16 %v857
    %v1222 = vunpack.c.l.b16 %v858
    %v1223 = vunpack.c.h.b16 %v858
    %v1224 = vunpack.c.l.b16 %v859
    %v1225 = vunpack.c.h.b16 %v859
    %v1226 = vunpack.c.l.b16 %v860
    %v1227 = vunpack.c.h.b16 %v860
    %v1228 = vunpack.c.l.b16 %v861
    %v1229 = vunpack.c.h.b16 %v861
    %v1230 = vunpack.c.l.b16 %v862
    %v1231 = vunpack.c.h.b16 %v862
    %v1232 = vunpack.c.l.b16 %v863
    %v1233 = vunpack.c.h.b16 %v863
    %v1234 = vunpack.c.l.b16 %v864
    %v1235 = vunpack.c.h.b16 %v864
    %v1236 = vunpack.c.l.b16 %v865
    %v1237 = vunpack.c.h.b16 %v865
    %v1238 = vunpack.c.l.b16 %v866
    %v1239 = vunpack.c.h.b16 %v866
    %v1240 = vunpack.c.l.b16 %v867
    %v1241 = vunpack.c.h.b16 %v867
    %v1242 = vunpack.c.l.b16 %v868
    %v1243 = vunpack.c.h.b16 %v868
    %v1244 = vunpack.c.l.b16 %v869
    %v1245 = vunpack.c.h.b16 %v869
    %v1246 = vunpack.c.l.b16 %v870
    %v1247 = vunpack.c.h.b16 %v870
    %v1248 = vunpack.c.l.b16 %v871
    %v1249 = vunpack.c.h.b16 %v871
    %v1250 = vunpack.c.l.b16 %v872
    %v1251 = vunpack.c.h.b16 %v872
    %v1252 = vunpack.c.l.b16 %v873
    %v1253 = vunpack.c.h.b16 %v873
    %v1254 = vunpack.c.l.b16 %v874
    %v1255 = vunpack.c.h.b16 %v874
    %v1256 = vunpack.c.l.b16 %v875
    %v1257 = vunpack.c.h.b16 %v875
    %v1258 = vunpack.c.l.b16 %v876
    %v1259 = vunpack.c.h.b16 %v876
    %v1260 = vunpack.c.l.b16 %v877
    %v1261 = vunpack.c.h.b16 %v877
    %v1262 = vunpack.c.l.b16 %v878
    %v1263 = vunpack.c.h.b16 %v878
    %v1264 = vunpack.c.l.b16 %v879
    %v1265 = vunpack.c.h.b16 %v879
    %v1266 = vunpack.c.l.b16 %v880
    %v1267 = vunpack.c.h.b16 %v880
    %v1268 = vunpack.c.l.b16 %v881
    %v1269 = vunpack.c.h.b16 %v881
    %v1270 = vunpack.c.l.b16 %v882
    %v1271 = vunpack.c.h.b16 %v882
    %v1272 = vunpack.c.l.b16 %v883
    %v1273 = vunpack.c.h.b16 %v883
    %v1274 = vunpack.c.l.b16 %v884
    %v1275 = vunpack.c.h.b16 %v884
    %v1276 = vunpack.c.l.b16 %v885
    %v1277 = vunpack.c.h.b16 %v885
    %v1278 = vunpack.c.l.b16 %v886
    %v1279 = vunpack.c.h.b16 %v886
    %v1280 = vunpack.c.l.b16 %v887
    %v1281 = vunpack.c.h.b16 %v887
    %v1282 = vunpack.c.l.b16 %v888
    %v1283 = vunpack.c.h.b16 %v888
    %v1284 = vunpack.c.l.b16 %v889
    %v1285 = vunpack.c.h.b16 %v889
    %v1286 = vunpack.c.l.b16 %v890
    %v1287 = vunpack.c.h.b16 %v890
    %v1288 = vunpack.c.l.b16 %v891
    %v1289 = vunpack.c.h.b16 %v891
    %v1290 = vunpack.c.l.b16 %v892
    %v1291 = vunpack.c.h.b16 %v892
    %v1292 = vunpack.c.l.b16 %v893
    %v1293 = vunpack.c.h.b16 %v893
    %v1294 = vunpack.c.l.b16 %v894
    %v1295 = vunpack.c.h.b16 %v894
    %v1296 = vunpack.c.l.b16 %v895
    %v1297 = vunpack.c.h.b16 %v895
    %v1298 = vunpack.c.l.b16 %v896
    %v1299 = vunpack.c.h.b16 %v896
    %v1300 = vunpack.c.l.b16 %v897
    %v1301 = vunpack.c.h.b16 %v897
    %v1302 = vunpack.c.l.b16 %v898
    %v1303 = vunpack.c.h.b16 %v898
    %v1304 = vunpack.c.l.b16 %v899
    %v1305 = vunpack.c.h.b16 %v899
    %v1306 = vunpack.c.l.b16 %v900
    %v1307 = vunpack.c.h.b16 %v900
    %v1308 = vunpack.c.l.b16 %v901
    %v1309 = vunpack.c.h.b16 %v901
    %v1310 = vunpack.c.l.b16 %v902
    %v1311 = vunpack.c.h.b16 %v902
    %v1312 = vunpack.c.l.b16 %v903
    %v1313 = vunpack.c.h.b16 %v903
    %v1314 = vunpack.c.l.b16 %v904
    %v1315 = vunpack.c.h.b16 %v904
    %v1316 = vunpack.c.l.b16 %v905
    %v1317 = vunpack.c.h.b16 %v905
    %v1318 = vunpack.c.l.b16 %v906
    %v1319 = vunpack.c.h.b16 %v906
    %v1320 = vunpack.c.l.b16 %v907
    %v1321 = vunpack.c.h.b16 %v907
    %v1322 = vunpack.c.l.b16 %v908
    %v1323 = vunpack.c.h.b16 %v908
    %v1324 = vunpack.c.l.b16 %v909
    %v1325 = vunpack.c.h.b16 %v909
    %v1326 = vunpack.c.l.b16 %v910
    %v1327 = vunpack.c.h.b16 %v910
    %v1328 = vunpack.c.l.b16 %v911
    %v1329 = vunpack.c.h.b16 %v911
    %v1330 = vunpack.c.l.b16 %v912
    %v1331 = vunpack.c.h.b16 %v912
    %v1332 = vunpack.c.l.b16 %v913
    %v1333 = vunpack.c.h.b16 %v913
    %v1334 = vunpack.c.l.b16 %v914
    %v1335 = vunpack.c.h.b16 %v914
    %v1336 = vunpack.c.l.b16 %v915
    %v1337 = vunpack.c.h.b16 %v915
    %v1338 = vunpack.c.l.b16 %v916
    %v1339 = vunpack.c.h.b16 %v916
    %v1340 = vunpack.c.l.b16 %v917
    %v1341 = vunpack.c.h.b16 %v917
    %v1342 = vunpack.c.l.b16 %v918
    %v1343 = vunpack.c.h.b16 %v918
    %v1344 = vunpack.c.l.b16 %v919
    %v1345 = vunpack.c.h.b16 %v919
    %v1346 = vpack.c.b16 %v1098, %v1090
    %v1347 = vpack.c.b16 %v1099, %v1091
    %v1348 = vpack.c.b16 %v1100, %v1092
    %v1349 = vpack.c.b16 %v1101, %v1093
    %v1350 = vpack.c.b16 %v1102, %v1094
    %v1351 = vpack.c.b16 %v1103, %v1095
    %v1352 = vpack.c.b16 %v1104, %v1096
    %v1353 = vpack.c.b16 %v1105, %v1097
    %v1354 = vpack.c.b16 %v1114, %v1106
    %v1355 = vpack.c.b16 %v1115, %v1107
    %v1356 = vpack.c.b16 %v1116, %v1108
    %v1357 = vpack.c.b16 %v1117, %v1109
    %v1358 = vpack.c.b16 %v1118, %v1110
    %v1359 = vpack.c.b16 %v1119, %v1111
    %v1360 = vpack.c.b16 %v1120, %v1112
    %v1361 = vpack.c.b16 %v1121, %v1113
    %v1362 = vpack.c.b16 %v1130, %v1122
    %v1363 = vpack.c.b16 %v1131, %v1123
    %v1364 = vpack.c.b16 %v1132, %v1124
    %v1365 = vpack.c.b16 %v1133, %v1125
    %v1366 = vpack.c.b16 %v1134, %v1126
    %v1367 = vpack.c.b16 %v1135, %v1127
    %v1368 = vpack.c.b16 %v1136, %v1128
    %v1369 = vpack.c.b16 %v1137, %v1129
    %v1370 = vpack.c.b16 %v1146, %v1138
    %v1371 = vpack.c.b16 %v1147, %v1139
    %v1372 = vpack.c.b16 %v1148, %v1140
    %v1373 = vpack.c.b16 %v1149, %v1141
    %v1374 = vpack.c.b16 %v1150, %v1142
    %v1375 = vpack.c.b16 %v1151, %v1143
    %v1376 = vpack.c.b16 %v1152, %v1144
    %v1377 = vpack.c.b16 %v1153, %v1145
    %v1378 = vpack.c.b16 %v1162, %v1154
    %v1379 = vpack.c.b16 %v1163, %v1155
    %v1380 = vpack.c.b16 %v1164, %v1156
    %v1381 = vpack.c.b16 %v1165, %v1157
    %v1382 = vpack.c.b16 %v1166, %v1158
    %v1383 = vpack.c.b16 %v1167, %v1159
    %v1384 = vpack.c.b16 %v1168, %v1160
    %v1385 = vpack.c.b16 %v1169, %v1161
    %v1386 = vpack.c.b16 %v1178, %v1170
    %v1387 = vpack.c.b16 %v1179, %v1171
    %v1388 = vpack.c.b16 %v1180, %v1172
    %v1389 = vpack.c.b16 %v1181, %v1173
    %v1390 = vpack.c.b16 %v1182, %v1174
    %v1391 = vpack.c.b16 %v1183, %v1175
    %v1392 = vpack.c.b16 %v1184, %v1176
    %v1393 = vpack.c.b16 %v1185, %v1177
    %v1394 = vpack.c.b16 %v1194, %v1186
    %v1395 = vpack.c.b16 %v1195, %v1187
    %v1396 = vpack.c.b16 %v1196, %v1188
    %v1397 = vpack.c.b16 %v1197, %v1189
    %v1398 = vpack.c.b16 %v1198, %v1190
    %v1399 = vpack.c.b16 %v1199, %v1191
    %v1400 = vpack.c.b16 %v1200, %v1192
    %v1401 = vpack.c.b16 %v1201, %v1193
    %v1402 = vpack.c.b16 %v1210, %v1202
    %v1403 = vpack.c.b16 %v1211, %v1203
    %v1404 = vpack.c.b16 %v1212, %v1204
    %v1405 = vpack.c.b16 %v1213, %v1205
    %v1406 = vpack.c.b16 %v1214, %v1206
    %v1407 = vpack.c.b16 %v1215, %v1207
    %v1408 = vpack.c.b16 %v1216, %v1208
    %v1409 = vpack.c.b16 %v1217, %v1209
    %v1410 = vpack.c.b16 %v1226, %v1218
    %v1411 = vpack.c.b16 %v1227, %v1219
    %v1412 = vpack.c.b16 %v1228, %v1220
    %v1413 = vpack.c.b16 %v1229, %v1221
    %v1414 = vpack.c.b16 %v1230, %v1222
    %v1415 = vpack.c.b16 %v1231, %v1223
    %v1416 = vpack.c.b16 %v1232, %v1224
    %v1417 = vpack.c.b16 %v1233, %v1225
    %v1418 = vpack.c.b16 %v1242, %v1234
    %v1419 = vpack.c.b16 %v1243, %v1235
    %v1420 = vpack.c.b16 %v1244, %v1236
    %v1421 = vpack.c.b16 %v1245, %v1237
    %v1422 = vpack.c.b16 %v1246, %v1238
    %v1423 = vpack.c.b16 %v1247, %v1239
    %v1424 = vpack.c.b16 %v1248, %v1240
    %v1425 = vpack.c.b16 %v1249, %v1241
    %v1426 = vpack.c.b16 %v1258, %v1250
    %v1427 = vpack.c.b16 %v1259, %v1251
    %v1428 = vpack.c.b16 %v1260, %v1252
    %v1429 = vpack.c.b16 %v1261, %v1253
    %v1430 = vpack.c.b16 %v1262, %v1254
    %v1431 = vpack.c.b16 %v1263, %v1255
    %v1432 = vpack.c.b16 %v1264, %v1256
    %v1433 = vpack.c.b16 %v1265, %v1257
    %v1434 = vpack.c.b16 %v1274, %v1266
    %v1435 = vpack.c.b16 %v1275, %v1267
    %v1436 = vpack.c.b16 %v1276, %v1268
    %v1437 = vpack.c.b16 %v1277, %v1269
    %v1438 = vpack.c.b16 %v1278, %v1270
    %v1439 = vpack.c.b16 %v1279, %v1271
    %v1440 = vpack.c.b16 %v1280, %v1272
    %v1441 = vpack.c.b16 %v1281, %v1273
    %v1442 = vpack.c.b16 %v1290, %v1282
    %v1443 = vpack.c.b16 %v1291, %v1283
    %v1444 = vpack.c.b16 %v1292, %v1284
    %v1445 = vpack.c.b16 %v1293, %v1285
    %v1446 = vpack.c.b16 %v1294, %v1286
    %v1447 = vpack.c.b16 %v1295, %v1287
    %v1448 = vpack.c.b16 %v1296, %v1288
    %v1449 = vpack.c.b16 %v1297, %v1289
    %v1450 = vpack.c.b16 %v1306, %v1298
    %v1451 = vpack.c.b16 %v1307, %v1299
    %v1452 = vpack.c.b16 %v1308, %v1300
    %v1453 = vpack.c.b16 %v1309, %v1301
    %v1454 = vpack.c.b16 %v1310, %v1302
    %v1455 = vpack.c.b16 %v1311, %v1303
    %v1456 = vpack.c.b16 %v1312, %v1304
    %v1457 = vpack.c.b16 %v1313, %v1305
    %v1458 = vpack.c.b16 %v1322, %v1314
    %v1459 = vpack.c.b16 %v1323, %v1315
    %v1460 = vpack.c.b16 %v1324, %v1316
    %v1461 = vpack.c.b16 %v1325, %v1317
    %v1462 = vpack.c.b16 %v1326, %v1318
    %v1463 = vpack.c.b16 %v1327, %v1319
    %v1464 = vpack.c.b16 %v1328, %v1320
    %v1465 = vpack.c.b16 %v1329, %v1321
    %v1466 = vpack.c.b16 %v1338, %v1330
    %v1467 = vpack.c.b16 %v1339, %v1331
    %v1468 = vpack.c.b16 %v1340, %v1332
    %v1469 = vpack.c.b16 %v1341, %v1333
    %v1470 = vpack.c.b16 %v1342, %v1334
    %v1471 = vpack.c.b16 %v1343, %v1335
    %v1472 = vpack.c.b16 %v1344, %v1336
    %v1473 = vpack.c.b16 %v1345, %v1337
    %1602 = vmatprep.subr.bf16.mxu0 %v1347
    %1603 = vmatpush1.bf16.msra.mxu0 %v1346
    %1604 = vmatprep.subr.bf16.mxu0 %v1355
    %1605 = vmatpush1.bf16.msra.mxu0 %v1354
    %1606 = vmatprep.subr.bf16.mxu0 %v1363
    %1607 = vmatpush1.bf16.msra.mxu0 %v1362
    %1608 = vmatprep.subr.bf16.mxu0 %v1371
    %1609 = vmatpush1.bf16.msra.mxu0 %v1370
    %1610 = vmatprep.subr.bf16.mxu0 %v1379
    %1611 = vmatpush1.bf16.msra.mxu0 %v1378
    %1612 = vmatprep.subr.bf16.mxu0 %v1387
    %1613 = vmatpush1.bf16.msra.mxu0 %v1386
    %1614 = vmatprep.subr.bf16.mxu0 %v1395
    %1615 = vmatpush1.bf16.msra.mxu0 %v1394
    %1616 = vmatprep.subr.bf16.mxu0 %v1403
    %1617 = vmatpush1.bf16.msra.mxu0 %v1402
    %1618 = vmatprep.subr.bf16.mxu0 %v1411
    %1619 = vmatpush1.bf16.msra.mxu0 %v1410
    %1620 = vmatprep.subr.bf16.mxu0 %v1419
    %1621 = vmatpush1.bf16.msra.mxu0 %v1418
    %1622 = vmatprep.subr.bf16.mxu0 %v1427
    %1623 = vmatpush1.bf16.msra.mxu0 %v1426
    %1624 = vmatprep.subr.bf16.mxu0 %v1435
    %1625 = vmatpush1.bf16.msra.mxu0 %v1434
    %1626 = vmatprep.subr.bf16.mxu0 %v1443
    %1627 = vmatpush1.bf16.msra.mxu0 %v1442
    %1628 = vmatprep.subr.bf16.mxu0 %v1451
    %1629 = vmatpush1.bf16.msra.mxu0 %v1450
    %1630 = vmatprep.subr.bf16.mxu0 %v1459
    %1631 = vmatpush1.bf16.msra.mxu0 %v1458
    %1632 = vmatprep.subr.bf16.mxu0 %v1467
    %1633 = vmatpush1.bf16.msra.mxu0 %v1466
    %1634 = vmatprep.mubr.bf16.mxu0 %v761
    %1635 = vmatmul.mubr.bf16.gmra.mrb[0].mxu0 %v760
    %v1636 = vpop.f32.mrb[0].mxu0
    %v1637 = vadd.f32 %v925, %v1636
    %v1638 = vpop.f32.mrb[0].mxu0
    %v1639 = vadd.f32 %v929, %v1638
    %v1640 = vpop.f32.mrb[0].mxu0
    %v1641 = vadd.f32 %v925, %v1640
    %v1642 = vpop.f32.mrb[0].mxu0
    %v1643 = vadd.f32 %v929, %v1642
    %1644 = vmatprep.mubr.bf16.mxu0 %v763
    %1645 = vmatmul.mubr.bf16.gmra.mrb[0].mxu0 %v762
    %v1646 = vpop.f32.mrb[0].mxu0
    %v1647 = vadd.f32 %v925, %v1646
    %v1648 = vpop.f32.mrb[0].mxu0
    %v1649 = vadd.f32 %v929, %v1648
    %v1650 = vpop.f32.mrb[0].mxu0
    %v1651 = vadd.f32 %v925, %v1650
    %v1652 = vpop.f32.mrb[0].mxu0
    %v1653 = vadd.f32 %v929, %v1652
    %1654 = vmatprep.mubr.bf16.mxu0 %v765
    %1655 = vmatmul.mubr.bf16.gmra.mrb[0].mxu0 %v764
    %v1656 = vpop.f32.mrb[0].mxu0
    %v1657 = vadd.f32 %v925, %v1656
    %v1658 = vpop.f32.mrb[0].mxu0
    %v1659 = vadd.f32 %v929, %v1658
    %v1660 = vpop.f32.mrb[0].mxu0
    %v1661 = vadd.f32 %v925, %v1660
    %v1662 = vpop.f32.mrb[0].mxu0
    %v1663 = vadd.f32 %v929, %v1662
    %1664 = vmatprep.mubr.bf16.mxu0 %v767
    %1665 = vmatmul.mubr.bf16.gmra.mrb[0].mxu0 %v766
    %v1666 = vpop.f32.mrb[0].mxu0
    %v1667 = vadd.f32 %v925, %v1666
    %v1668 = vpop.f32.mrb[0].mxu0
    %v1669 = vadd.f32 %v929, %v1668
    %v1670 = vpop.f32.mrb[0].mxu0
    %v1671 = vadd.f32 %v925, %v1670
    %v1672 = vpop.f32.mrb[0].mxu0
    %v1673 = vadd.f32 %v929, %v1672
    %1674 = vmatprep.mubr.bf16.mxu0 %v769
    %1675 = vmatmul.mubr.bf16.gmra.mrb[0].mxu0 %v768
    %v1676 = vpop.f32.mrb[0].mxu0
    %v1677 = vadd.f32 %v925, %v1676
    %v1678 = vpop.f32.mrb[0].mxu0
    %v1679 = vadd.f32 %v929, %v1678
    %v1680 = vpop.f32.mrb[0].mxu0
    %v1681 = vadd.f32 %v925, %v1680
    %v1682 = vpop.f32.mrb[0].mxu0
    %v1683 = vadd.f32 %v929, %v1682
    %1684 = vmatprep.mubr.bf16.mxu0 %v771
    %1685 = vmatmul.mubr.bf16.gmra.mrb[0].mxu0 %v770
    %v1686 = vpop.f32.mrb[0].mxu0
    %v1687 = vadd.f32 %v925, %v1686
    %v1688 = vpop.f32.mrb[0].mxu0
    %v1689 = vadd.f32 %v929, %v1688
    %v1690 = vpop.f32.mrb[0].mxu0
    %v1691 = vadd.f32 %v925, %v1690
    %v1692 = vpop.f32.mrb[0].mxu0
    %v1693 = vadd.f32 %v929, %v1692
    %1694 = vmatprep.mubr.bf16.mxu0 %v773
    %1695 = vmatmul.mubr.bf16.gmra.mrb[0].mxu0 %v772
    %v1696 = vpop.f32.mrb[0].mxu0
    %v1697 = vadd.f32 %v925, %v1696
    %v1698 = vpop.f32.mrb[0].mxu0
    %v1699 = vadd.f32 %v929, %v1698
    %v1700 = vpop.f32.mrb[0].mxu0
    %v1701 = vadd.f32 %v925, %v1700
    %v1702 = vpop.f32.mrb[0].mxu0
    %v1703 = vadd.f32 %v929, %v1702
    %1704 = vmatprep.mubr.bf16.mxu0 %v775
    %1705 = vmatmul.mubr.bf16.gmra.mrb[0].mxu0 %v774
    %v1706 = vpop.f32.mrb[0].mxu0
    %v1707 = vadd.f32 %v925, %v1706
    %v1708 = vpop.f32.mrb[0].mxu0
    %v1709 = vadd.f32 %v929, %v1708
    %v1710 = vpop.f32.mrb[0].mxu0
    %v1711 = vadd.f32 %v925, %v1710
    %v1712 = vpop.f32.mrb[0].mxu0
    %v1713 = vadd.f32 %v929, %v1712
    %1714 = vmatprep.mubr.bf16.mxu0 %v777
    %1715 = vmatmul.mubr.bf16.gmra.mrb[0].mxu0 %v776
    %v1716 = vpop.f32.mrb[0].mxu0
    %v1717 = vadd.f32 %v925, %v1716
    %v1718 = vpop.f32.mrb[0].mxu0
    %v1719 = vadd.f32 %v929, %v1718
    %v1720 = vpop.f32.mrb[0].mxu0
    %v1721 = vadd.f32 %v925, %v1720
    %v1722 = vpop.f32.mrb[0].mxu0
    %v1723 = vadd.f32 %v929, %v1722
    %1724 = vmatprep.mubr.bf16.mxu0 %v779
    %1725 = vmatmul.mubr.bf16.gmra.mrb[0].mxu0 %v778
    %v1726 = vpop.f32.mrb[0].mxu0
    %v1727 = vadd.f32 %v925, %v1726
    %v1728 = vpop.f32.mrb[0].mxu0
    %v1729 = vadd.f32 %v929, %v1728
    %v1730 = vpop.f32.mrb[0].mxu0
    %v1731 = vadd.f32 %v925, %v1730
    %v1732 = vpop.f32.mrb[0].mxu0
    %v1733 = vadd.f32 %v929, %v1732
    %1734 = vmatprep.mubr.bf16.mxu0 %v781
    %1735 = vmatmul.mubr.bf16.gmra.mrb[0].mxu0 %v780
    %v1736 = vpop.f32.mrb[0].mxu0
    %v1737 = vadd.f32 %v925, %v1736
    %v1738 = vpop.f32.mrb[0].mxu0
    %v1739 = vadd.f32 %v929, %v1738
    %v1740 = vpop.f32.mrb[0].mxu0
    %v1741 = vadd.f32 %v925, %v1740
    %v1742 = vpop.f32.mrb[0].mxu0
    %v1743 = vadd.f32 %v929, %v1742
    %1744 = vmatprep.mubr.bf16.mxu0 %v783
    %1745 = vmatmul.mubr.bf16.gmra.mrb[0].mxu0 %v782
    %v1746 = vpop.f32.mrb[0].mxu0
    %v1747 = vadd.f32 %v925, %v1746
    %v1748 = vpop.f32.mrb[0].mxu0
    %v1749 = vadd.f32 %v929, %v1748
    %v1750 = vpop.f32.mrb[0].mxu0
    %v1751 = vadd.f32 %v925, %v1750
    %v1752 = vpop.f32.mrb[0].mxu0
    %v1753 = vadd.f32 %v929, %v1752
    %1754 = vmatprep.mubr.bf16.mxu0 %v785
    %1755 = vmatmul.mubr.bf16.gmra.mrb[0].mxu0 %v784
    %v1756 = vpop.f32.mrb[0].mxu0
    %v1757 = vadd.f32 %v925, %v1756
    %v1758 = vpop.f32.mrb[0].mxu0
    %v1759 = vadd.f32 %v929, %v1758
    %v1760 = vpop.f32.mrb[0].mxu0
    %v1761 = vadd.f32 %v925, %v1760
    %v1762 = vpop.f32.mrb[0].mxu0
    %v1763 = vadd.f32 %v929, %v1762
    %1764 = vmatprep.mubr.bf16.mxu0 %v787
    %1765 = vmatmul.mubr.bf16.gmra.mrb[0].mxu0 %v786
    %v1766 = vpop.f32.mrb[0].mxu0
    %v1767 = vadd.f32 %v925, %v1766
    %v1768 = vpop.f32.mrb[0].mxu0
    %v1769 = vadd.f32 %v929, %v1768
    %v1770 = vpop.f32.mrb[0].mxu0
    %v1771 = vadd.f32 %v925, %v1770
    %v1772 = vpop.f32.mrb[0].mxu0
    %v1773 = vadd.f32 %v929, %v1772
    %1774 = vmatprep.mubr.bf16.mxu0 %v789
    %1775 = vmatmul.mubr.bf16.gmra.mrb[0].mxu0 %v788
    %v1776 = vpop.f32.mrb[0].mxu0
    %v1777 = vadd.f32 %v925, %v1776
    %v1778 = vpop.f32.mrb[0].mxu0
    %v1779 = vadd.f32 %v929, %v1778
    %v1780 = vpop.f32.mrb[0].mxu0
    %v1781 = vadd.f32 %v925, %v1780
    %v1782 = vpop.f32.mrb[0].mxu0
    %v1783 = vadd.f32 %v929, %v1782
    %1784 = vmatprep.mubr.bf16.mxu0 %v791
    %1785 = vmatmul.mubr.bf16.gmra.mrb[0].mxu0 %v790
    %v1786 = vpop.f32.mrb[0].mxu0
    %v1787 = vadd.f32 %v925, %v1786
    %v1788 = vpop.f32.mrb[0].mxu0
    %v1789 = vadd.f32 %v929, %v1788
    %v1790 = vpop.f32.mrb[0].mxu0
    %v1791 = vadd.f32 %v925, %v1790
    %v1792 = vpop.f32.mrb[0].mxu0
    %v1793 = vadd.f32 %v929, %v1792
    %1794 = vdwg.mxu0
    %1795 = vmatprep.subr.bf16.mxu0 %v1349
    %1796 = vmatpush1.bf16.msra.mxu0 %v1348
    %1797 = vmatprep.subr.bf16.mxu0 %v1357
    %1798 = vmatpush1.bf16.msra.mxu0 %v1356
    %1799 = vmatprep.subr.bf16.mxu0 %v1365
    %1800 = vmatpush1.bf16.msra.mxu0 %v1364
    %1801 = vmatprep.subr.bf16.mxu0 %v1373
    %1802 = vmatpush1.bf16.msra.mxu0 %v1372
    %1803 = vmatprep.subr.bf16.mxu0 %v1381
    %1804 = vmatpush1.bf16.msra.mxu0 %v1380
    %1805 = vmatprep.subr.bf16.mxu0 %v1389
    %1806 = vmatpush1.bf16.msra.mxu0 %v1388
    %1807 = vmatprep.subr.bf16.mxu0 %v1397
    %1808 = vmatpush1.bf16.msra.mxu0 %v1396
    %1809 = vmatprep.subr.bf16.mxu0 %v1405
    %1810 = vmatpush1.bf16.msra.mxu0 %v1404
    %1811 = vmatprep.subr.bf16.mxu0 %v1413
    %1812 = vmatpush1.bf16.msra.mxu0 %v1412
    %1813 = vmatprep.subr.bf16.mxu0 %v1421
    %1814 = vmatpush1.bf16.msra.mxu0 %v1420
    %1815 = vmatprep.subr.bf16.mxu0 %v1429
    %1816 = vmatpush1.bf16.msra.mxu0 %v1428
    %1817 = vmatprep.subr.bf16.mxu0 %v1437
    %1818 = vmatpush1.bf16.msra.mxu0 %v1436
    %1819 = vmatprep.subr.bf16.mxu0 %v1445
    %1820 = vmatpush1.bf16.msra.mxu0 %v1444
    %1821 = vmatprep.subr.bf16.mxu0 %v1453
    %1822 = vmatpush1.bf16.msra.mxu0 %v1452
    %1823 = vmatprep.subr.bf16.mxu0 %v1461
    %1824 = vmatpush1.bf16.msra.mxu0 %v1460
    %1825 = vmatprep.subr.bf16.mxu0 %v1469
    %1826 = vmatpush1.bf16.msra.mxu0 %v1468
    %1827 = vmatprep.mubr.bf16.mxu0 %v761
    %1828 = vmatmul.mubr.bf16.gmra.mrb[0].mxu0 %v760
    %v1829 = vpop.f32.mrb[0].mxu0
    %v1830 = vadd.f32 %v933, %v1829
    %v1831 = vpop.f32.mrb[0].mxu0
    %v1832 = vadd.f32 %v937, %v1831
    %v1833 = vpop.f32.mrb[0].mxu0
    %v1834 = vadd.f32 %v933, %v1833
    %v1835 = vpop.f32.mrb[0].mxu0
    %v1836 = vadd.f32 %v937, %v1835
    %1837 = vmatprep.mubr.bf16.mxu0 %v763
    %1838 = vmatmul.mubr.bf16.gmra.mrb[0].mxu0 %v762
    %v1839 = vpop.f32.mrb[0].mxu0
    %v1840 = vadd.f32 %v933, %v1839
    %v1841 = vpop.f32.mrb[0].mxu0
    %v1842 = vadd.f32 %v937, %v1841
    %v1843 = vpop.f32.mrb[0].mxu0
    %v1844 = vadd.f32 %v933, %v1843
    %v1845 = vpop.f32.mrb[0].mxu0
    %v1846 = vadd.f32 %v937, %v1845
    %1847 = vmatprep.mubr.bf16.mxu0 %v765
    %1848 = vmatmul.mubr.bf16.gmra.mrb[0].mxu0 %v764
    %v1849 = vpop.f32.mrb[0].mxu0
    %v1850 = vadd.f32 %v933, %v1849
    %v1851 = vpop.f32.mrb[0].mxu0
    %v1852 = vadd.f32 %v937, %v1851
    %v1853 = vpop.f32.mrb[0].mxu0
    %v1854 = vadd.f32 %v933, %v1853
    %v1855 = vpop.f32.mrb[0].mxu0
    %v1856 = vadd.f32 %v937, %v1855
    %1857 = vmatprep.mubr.bf16.mxu0 %v767
    %1858 = vmatmul.mubr.bf16.gmra.mrb[0].mxu0 %v766
    %v1859 = vpop.f32.mrb[0].mxu0
    %v1860 = vadd.f32 %v933, %v1859
    %v1861 = vpop.f32.mrb[0].mxu0
    %v1862 = vadd.f32 %v937, %v1861
    %v1863 = vpop.f32.mrb[0].mxu0
    %v1864 = vadd.f32 %v933, %v1863
    %v1865 = vpop.f32.mrb[0].mxu0
    %v1866 = vadd.f32 %v937, %v1865
    %1867 = vmatprep.mubr.bf16.mxu0 %v769
    %1868 = vmatmul.mubr.bf16.gmra.mrb[0].mxu0 %v768
    %v1869 = vpop.f32.mrb[0].mxu0
    %v1870 = vadd.f32 %v933, %v1869
    %v1871 = vpop.f32.mrb[0].mxu0
    %v1872 = vadd.f32 %v937, %v1871
    %v1873 = vpop.f32.mrb[0].mxu0
    %v1874 = vadd.f32 %v933, %v1873
    %v1875 = vpop.f32.mrb[0].mxu0
    %v1876 = vadd.f32 %v937, %v1875
    %1877 = vmatprep.mubr.bf16.mxu0 %v771
    %1878 = vmatmul.mubr.bf16.gmra.mrb[0].mxu0 %v770
    %v1879 = vpop.f32.mrb[0].mxu0
    %v1880 = vadd.f32 %v933, %v1879
    %v1881 = vpop.f32.mrb[0].mxu0
    %v1882 = vadd.f32 %v937, %v1881
    %v1883 = vpop.f32.mrb[0].mxu0
    %v1884 = vadd.f32 %v933, %v1883
    %v1885 = vpop.f32.mrb[0].mxu0
    %v1886 = vadd.f32 %v937, %v1885
    %1887 = vmatprep.mubr.bf16.mxu0 %v773
    %1888 = vmatmul.mubr.bf16.gmra.mrb[0].mxu0 %v772
    %v1889 = vpop.f32.mrb[0].mxu0
    %v1890 = vadd.f32 %v933, %v1889
    %v1891 = vpop.f32.mrb[0].mxu0
    %v1892 = vadd.f32 %v937, %v1891
    %v1893 = vpop.f32.mrb[0].mxu0
    %v1894 = vadd.f32 %v933, %v1893
    %v1895 = vpop.f32.mrb[0].mxu0
    %v1896 = vadd.f32 %v937, %v1895
    %1897 = vmatprep.mubr.bf16.mxu0 %v775
    %1898 = vmatmul.mubr.bf16.gmra.mrb[0].mxu0 %v774
    %v1899 = vpop.f32.mrb[0].mxu0
    %v1900 = vadd.f32 %v933, %v1899
    %v1901 = vpop.f32.mrb[0].mxu0
    %v1902 = vadd.f32 %v937, %v1901
    %v1903 = vpop.f32.mrb[0].mxu0
    %v1904 = vadd.f32 %v933, %v1903
    %v1905 = vpop.f32.mrb[0].mxu0
    %v1906 = vadd.f32 %v937, %v1905
    %1907 = vmatprep.mubr.bf16.mxu0 %v777
    %1908 = vmatmul.mubr.bf16.gmra.mrb[0].mxu0 %v776
    %v1909 = vpop.f32.mrb[0].mxu0
    %v1910 = vadd.f32 %v933, %v1909
    %v1911 = vpop.f32.mrb[0].mxu0
    %v1912 = vadd.f32 %v937, %v1911
    %v1913 = vpop.f32.mrb[0].mxu0
    %v1914 = vadd.f32 %v933, %v1913
    %v1915 = vpop.f32.mrb[0].mxu0
    %v1916 = vadd.f32 %v937, %v1915
    %1917 = vmatprep.mubr.bf16.mxu0 %v779
    %1918 = vmatmul.mubr.bf16.gmra.mrb[0].mxu0 %v778
    %v1919 = vpop.f32.mrb[0].mxu0
    %v1920 = vadd.f32 %v933, %v1919
    %v1921 = vpop.f32.mrb[0].mxu0
    %v1922 = vadd.f32 %v937, %v1921
    %v1923 = vpop.f32.mrb[0].mxu0
    %v1924 = vadd.f32 %v933, %v1923
    %v1925 = vpop.f32.mrb[0].mxu0
    %v1926 = vadd.f32 %v937, %v1925
    %1927 = vmatprep.mubr.bf16.mxu0 %v781
    %1928 = vmatmul.mubr.bf16.gmra.mrb[0].mxu0 %v780
    %v1929 = vpop.f32.mrb[0].mxu0
    %v1930 = vadd.f32 %v933, %v1929
    %v1931 = vpop.f32.mrb[0].mxu0
    %v1932 = vadd.f32 %v937, %v1931
    %v1933 = vpop.f32.mrb[0].mxu0
    %v1934 = vadd.f32 %v933, %v1933
    %v1935 = vpop.f32.mrb[0].mxu0
    %v1936 = vadd.f32 %v937, %v1935
    %1937 = vmatprep.mubr.bf16.mxu0 %v783
    %1938 = vmatmul.mubr.bf16.gmra.mrb[0].mxu0 %v782
    %v1939 = vpop.f32.mrb[0].mxu0
    %v1940 = vadd.f32 %v933, %v1939
    %v1941 = vpop.f32.mrb[0].mxu0
    %v1942 = vadd.f32 %v937, %v1941
    %v1943 = vpop.f32.mrb[0].mxu0
    %v1944 = vadd.f32 %v933, %v1943
    %v1945 = vpop.f32.mrb[0].mxu0
    %v1946 = vadd.f32 %v937, %v1945
    %1947 = vmatprep.mubr.bf16.mxu0 %v785
    %1948 = vmatmul.mubr.bf16.gmra.mrb[0].mxu0 %v784
    %v1949 = vpop.f32.mrb[0].mxu0
    %v1950 = vadd.f32 %v933, %v1949
    %v1951 = vpop.f32.mrb[0].mxu0
    %v1952 = vadd.f32 %v937, %v1951
    %v1953 = vpop.f32.mrb[0].mxu0
    %v1954 = vadd.f32 %v933, %v1953
    %v1955 = vpop.f32.mrb[0].mxu0
    %v1956 = vadd.f32 %v937, %v1955
    %1957 = vmatprep.mubr.bf16.mxu0 %v787
    %1958 = vmatmul.mubr.bf16.gmra.mrb[0].mxu0 %v786
    %v1959 = vpop.f32.mrb[0].mxu0
    %v1960 = vadd.f32 %v933, %v1959
    %v1961 = vpop.f32.mrb[0].mxu0
    %v1962 = vadd.f32 %v937, %v1961
    %v1963 = vpop.f32.mrb[0].mxu0
    %v1964 = vadd.f32 %v933, %v1963
    %v1965 = vpop.f32.mrb[0].mxu0
    %v1966 = vadd.f32 %v937, %v1965
    %1967 = vmatprep.mubr.bf16.mxu0 %v789
    %1968 = vmatmul.mubr.bf16.gmra.mrb[0].mxu0 %v788
    %v1969 = vpop.f32.mrb[0].mxu0
    %v1970 = vadd.f32 %v933, %v1969
    %v1971 = vpop.f32.mrb[0].mxu0
    %v1972 = vadd.f32 %v937, %v1971
    %v1973 = vpop.f32.mrb[0].mxu0
    %v1974 = vadd.f32 %v933, %v1973
    %v1975 = vpop.f32.mrb[0].mxu0
    %v1976 = vadd.f32 %v937, %v1975
    %1977 = vmatprep.mubr.bf16.mxu0 %v791
    %1978 = vmatmul.mubr.bf16.gmra.mrb[0].mxu0 %v790
    %v1979 = vpop.f32.mrb[0].mxu0
    %v1980 = vadd.f32 %v933, %v1979
    %v1981 = vpop.f32.mrb[0].mxu0
    %v1982 = vadd.f32 %v937, %v1981
    %v1983 = vpop.f32.mrb[0].mxu0
    %v1984 = vadd.f32 %v933, %v1983
    %v1985 = vpop.f32.mrb[0].mxu0
    %v1986 = vadd.f32 %v937, %v1985
    %1987 = vdwg.mxu0
    %1988 = vmatprep.subr.bf16.mxu0 %v1351
    %1989 = vmatpush1.bf16.msra.mxu0 %v1350
    %1990 = vmatprep.subr.bf16.mxu0 %v1359
    %1991 = vmatpush1.bf16.msra.mxu0 %v1358
    %1992 = vmatprep.subr.bf16.mxu0 %v1367
    %1993 = vmatpush1.bf16.msra.mxu0 %v1366
    %1994 = vmatprep.subr.bf16.mxu0 %v1375
    %1995 = vmatpush1.bf16.msra.mxu0 %v1374
    %1996 = vmatprep.subr.bf16.mxu0 %v1383
    %1997 = vmatpush1.bf16.msra.mxu0 %v1382
    %1998 = vmatprep.subr.bf16.mxu0 %v1391
    %1999 = vmatpush1.bf16.msra.mxu0 %v1390
    %2000 = vmatprep.subr.bf16.mxu0 %v1399
    %2001 = vmatpush1.bf16.msra.mxu0 %v1398
    %2002 = vmatprep.subr.bf16.mxu0 %v1407
    %2003 = vmatpush1.bf16.msra.mxu0 %v1406
    %2004 = vmatprep.subr.bf16.mxu0 %v1415
    %2005 = vmatpush1.bf16.msra.mxu0 %v1414
    %2006 = vmatprep.subr.bf16.mxu0 %v1423
    %2007 = vmatpush1.bf16.msra.mxu0 %v1422
    %2008 = vmatprep.subr.bf16.mxu0 %v1431
    %2009 = vmatpush1.bf16.msra.mxu0 %v1430
    %2010 = vmatprep.subr.bf16.mxu0 %v1439
    %2011 = vmatpush1.bf16.msra.mxu0 %v1438
    %2012 = vmatprep.subr.bf16.mxu0 %v1447
    %2013 = vmatpush1.bf16.msra.mxu0 %v1446
    %2014 = vmatprep.subr.bf16.mxu0 %v1455
    %2015 = vmatpush1.bf16.msra.mxu0 %v1454
    %2016 = vmatprep.subr.bf16.mxu0 %v1463
    %2017 = vmatpush1.bf16.msra.mxu0 %v1462
    %2018 = vmatprep.subr.bf16.mxu0 %v1471
    %2019 = vmatpush1.bf16.msra.mxu0 %v1470
    %2020 = vmatprep.mubr.bf16.mxu0 %v761
    %2021 = vmatmul.mubr.bf16.gmra.mrb[0].mxu0 %v760
    %v2022 = vpop.f32.mrb[0].mxu0
    %v2023 = vadd.f32 %v941, %v2022
    %v2024 = vpop.f32.mrb[0].mxu0
    %v2025 = vadd.f32 %v945, %v2024
    %v2026 = vpop.f32.mrb[0].mxu0
    %v2027 = vadd.f32 %v941, %v2026
    %v2028 = vpop.f32.mrb[0].mxu0
    %v2029 = vadd.f32 %v945, %v2028
    %2030 = vmatprep.mubr.bf16.mxu0 %v763
    %2031 = vmatmul.mubr.bf16.gmra.mrb[0].mxu0 %v762
    %v2032 = vpop.f32.mrb[0].mxu0
    %v2033 = vadd.f32 %v941, %v2032
    %v2034 = vpop.f32.mrb[0].mxu0
    %v2035 = vadd.f32 %v945, %v2034
    %v2036 = vpop.f32.mrb[0].mxu0
    %v2037 = vadd.f32 %v941, %v2036
    %v2038 = vpop.f32.mrb[0].mxu0
    %v2039 = vadd.f32 %v945, %v2038
    %2040 = vmatprep.mubr.bf16.mxu0 %v765
    %2041 = vmatmul.mubr.bf16.gmra.mrb[0].mxu0 %v764
    %v2042 = vpop.f32.mrb[0].mxu0
    %v2043 = vadd.f32 %v941, %v2042
    %v2044 = vpop.f32.mrb[0].mxu0
    %v2045 = vadd.f32 %v945, %v2044
    %v2046 = vpop.f32.mrb[0].mxu0
    %v2047 = vadd.f32 %v941, %v2046
    %v2048 = vpop.f32.mrb[0].mxu0
    %v2049 = vadd.f32 %v945, %v2048
    %2050 = vmatprep.mubr.bf16.mxu0 %v767
    %2051 = vmatmul.mubr.bf16.gmra.mrb[0].mxu0 %v766
    %v2052 = vpop.f32.mrb[0].mxu0
    %v2053 = vadd.f32 %v941, %v2052
    %v2054 = vpop.f32.mrb[0].mxu0
    %v2055 = vadd.f32 %v945, %v2054
    %v2056 = vpop.f32.mrb[0].mxu0
    %v2057 = vadd.f32 %v941, %v2056
    %v2058 = vpop.f32.mrb[0].mxu0
    %v2059 = vadd.f32 %v945, %v2058
    %2060 = vmatprep.mubr.bf16.mxu0 %v769
    %2061 = vmatmul.mubr.bf16.gmra.mrb[0].mxu0 %v768
    %v2062 = vpop.f32.mrb[0].mxu0
    %v2063 = vadd.f32 %v941, %v2062
    %v2064 = vpop.f32.mrb[0].mxu0
    %v2065 = vadd.f32 %v945, %v2064
    %v2066 = vpop.f32.mrb[0].mxu0
    %v2067 = vadd.f32 %v941, %v2066
    %v2068 = vpop.f32.mrb[0].mxu0
    %v2069 = vadd.f32 %v945, %v2068
    %2070 = vmatprep.mubr.bf16.mxu0 %v771
    %2071 = vmatmul.mubr.bf16.gmra.mrb[0].mxu0 %v770
    %v2072 = vpop.f32.mrb[0].mxu0
    %v2073 = vadd.f32 %v941, %v2072
    %v2074 = vpop.f32.mrb[0].mxu0
    %v2075 = vadd.f32 %v945, %v2074
    %v2076 = vpop.f32.mrb[0].mxu0
    %v2077 = vadd.f32 %v941, %v2076
    %v2078 = vpop.f32.mrb[0].mxu0
    %v2079 = vadd.f32 %v945, %v2078
    %2080 = vmatprep.mubr.bf16.mxu0 %v773
    %2081 = vmatmul.mubr.bf16.gmra.mrb[0].mxu0 %v772
    %v2082 = vpop.f32.mrb[0].mxu0
    %v2083 = vadd.f32 %v941, %v2082
    %v2084 = vpop.f32.mrb[0].mxu0
    %v2085 = vadd.f32 %v945, %v2084
    %v2086 = vpop.f32.mrb[0].mxu0
    %v2087 = vadd.f32 %v941, %v2086
    %v2088 = vpop.f32.mrb[0].mxu0
    %v2089 = vadd.f32 %v945, %v2088
    %2090 = vmatprep.mubr.bf16.mxu0 %v775
    %2091 = vmatmul.mubr.bf16.gmra.mrb[0].mxu0 %v774
    %v2092 = vpop.f32.mrb[0].mxu0
    %v2093 = vadd.f32 %v941, %v2092
    %v2094 = vpop.f32.mrb[0].mxu0
    %v2095 = vadd.f32 %v945, %v2094
    %v2096 = vpop.f32.mrb[0].mxu0
    %v2097 = vadd.f32 %v941, %v2096
    %v2098 = vpop.f32.mrb[0].mxu0
    %v2099 = vadd.f32 %v945, %v2098
    %2100 = vmatprep.mubr.bf16.mxu0 %v777
    %2101 = vmatmul.mubr.bf16.gmra.mrb[0].mxu0 %v776
    %v2102 = vpop.f32.mrb[0].mxu0
    %v2103 = vadd.f32 %v941, %v2102
    %v2104 = vpop.f32.mrb[0].mxu0
    %v2105 = vadd.f32 %v945, %v2104
    %v2106 = vpop.f32.mrb[0].mxu0
    %v2107 = vadd.f32 %v941, %v2106
    %v2108 = vpop.f32.mrb[0].mxu0
    %v2109 = vadd.f32 %v945, %v2108
    %2110 = vmatprep.mubr.bf16.mxu0 %v779
    %2111 = vmatmul.mubr.bf16.gmra.mrb[0].mxu0 %v778
    %v2112 = vpop.f32.mrb[0].mxu0
    %v2113 = vadd.f32 %v941, %v2112
    %v2114 = vpop.f32.mrb[0].mxu0
    %v2115 = vadd.f32 %v945, %v2114
    %v2116 = vpop.f32.mrb[0].mxu0
    %v2117 = vadd.f32 %v941, %v2116
    %v2118 = vpop.f32.mrb[0].mxu0
    %v2119 = vadd.f32 %v945, %v2118
    %2120 = vmatprep.mubr.bf16.mxu0 %v781
    %2121 = vmatmul.mubr.bf16.gmra.mrb[0].mxu0 %v780
    %v2122 = vpop.f32.mrb[0].mxu0
    %v2123 = vadd.f32 %v941, %v2122
    %v2124 = vpop.f32.mrb[0].mxu0
    %v2125 = vadd.f32 %v945, %v2124
    %v2126 = vpop.f32.mrb[0].mxu0
    %v2127 = vadd.f32 %v941, %v2126
    %v2128 = vpop.f32.mrb[0].mxu0
    %v2129 = vadd.f32 %v945, %v2128
    %2130 = vmatprep.mubr.bf16.mxu0 %v783
    %2131 = vmatmul.mubr.bf16.gmra.mrb[0].mxu0 %v782
    %v2132 = vpop.f32.mrb[0].mxu0
    %v2133 = vadd.f32 %v941, %v2132
    %v2134 = vpop.f32.mrb[0].mxu0
    %v2135 = vadd.f32 %v945, %v2134
    %v2136 = vpop.f32.mrb[0].mxu0
    %v2137 = vadd.f32 %v941, %v2136
    %v2138 = vpop.f32.mrb[0].mxu0
    %v2139 = vadd.f32 %v945, %v2138
    %2140 = vmatprep.mubr.bf16.mxu0 %v785
    %2141 = vmatmul.mubr.bf16.gmra.mrb[0].mxu0 %v784
    %v2142 = vpop.f32.mrb[0].mxu0
    %v2143 = vadd.f32 %v941, %v2142
    %v2144 = vpop.f32.mrb[0].mxu0
    %v2145 = vadd.f32 %v945, %v2144
    %v2146 = vpop.f32.mrb[0].mxu0
    %v2147 = vadd.f32 %v941, %v2146
    %v2148 = vpop.f32.mrb[0].mxu0
    %v2149 = vadd.f32 %v945, %v2148
    %2150 = vmatprep.mubr.bf16.mxu0 %v787
    %2151 = vmatmul.mubr.bf16.gmra.mrb[0].mxu0 %v786
    %v2152 = vpop.f32.mrb[0].mxu0
    %v2153 = vadd.f32 %v941, %v2152
    %v2154 = vpop.f32.mrb[0].mxu0
    %v2155 = vadd.f32 %v945, %v2154
    %v2156 = vpop.f32.mrb[0].mxu0
    %v2157 = vadd.f32 %v941, %v2156
    %v2158 = vpop.f32.mrb[0].mxu0
    %v2159 = vadd.f32 %v945, %v2158
    %2160 = vmatprep.mubr.bf16.mxu0 %v789
    %2161 = vmatmul.mubr.bf16.gmra.mrb[0].mxu0 %v788
    %v2162 = vpop.f32.mrb[0].mxu0
    %v2163 = vadd.f32 %v941, %v2162
    %v2164 = vpop.f32.mrb[0].mxu0
    %v2165 = vadd.f32 %v945, %v2164
    %v2166 = vpop.f32.mrb[0].mxu0
    %v2167 = vadd.f32 %v941, %v2166
    %v2168 = vpop.f32.mrb[0].mxu0
    %v2169 = vadd.f32 %v945, %v2168
    %2170 = vmatprep.mubr.bf16.mxu0 %v791
    %2171 = vmatmul.mubr.bf16.gmra.mrb[0].mxu0 %v790
    %v2172 = vpop.f32.mrb[0].mxu0
    %v2173 = vadd.f32 %v941, %v2172
    %v2174 = vpop.f32.mrb[0].mxu0
    %v2175 = vadd.f32 %v945, %v2174
    %v2176 = vpop.f32.mrb[0].mxu0
    %v2177 = vadd.f32 %v941, %v2176
    %v2178 = vpop.f32.mrb[0].mxu0
    %v2179 = vadd.f32 %v945, %v2178
    %2180 = vdwg.mxu0
    %2181 = vmatprep.subr.bf16.mxu0 %v1353
    %2182 = vmatpush1.bf16.msra.mxu0 %v1352
    %2183 = vmatprep.subr.bf16.mxu0 %v1361
    %2184 = vmatpush1.bf16.msra.mxu0 %v1360
    %2185 = vmatprep.subr.bf16.mxu0 %v1369
    %2186 = vmatpush1.bf16.msra.mxu0 %v1368
    %2187 = vmatprep.subr.bf16.mxu0 %v1377
    %2188 = vmatpush1.bf16.msra.mxu0 %v1376
    %2189 = vmatprep.subr.bf16.mxu0 %v1385
    %2190 = vmatpush1.bf16.msra.mxu0 %v1384
    %2191 = vmatprep.subr.bf16.mxu0 %v1393
    %2192 = vmatpush1.bf16.msra.mxu0 %v1392
    %2193 = vmatprep.subr.bf16.mxu0 %v1401
    %2194 = vmatpush1.bf16.msra.mxu0 %v1400
    %2195 = vmatprep.subr.bf16.mxu0 %v1409
    %2196 = vmatpush1.bf16.msra.mxu0 %v1408
    %2197 = vmatprep.subr.bf16.mxu0 %v1417
    %2198 = vmatpush1.bf16.msra.mxu0 %v1416
    %2199 = vmatprep.subr.bf16.mxu0 %v1425
    %2200 = vmatpush1.bf16.msra.mxu0 %v1424
    %2201 = vmatprep.subr.bf16.mxu0 %v1433
    %2202 = vmatpush1.bf16.msra.mxu0 %v1432
    %2203 = vmatprep.subr.bf16.mxu0 %v1441
    %2204 = vmatpush1.bf16.msra.mxu0 %v1440
    %2205 = vmatprep.subr.bf16.mxu0 %v1449
    %2206 = vmatpush1.bf16.msra.mxu0 %v1448
    %2207 = vmatprep.subr.bf16.mxu0 %v1457
    %2208 = vmatpush1.bf16.msra.mxu0 %v1456
    %2209 = vmatprep.subr.bf16.mxu0 %v1465
    %2210 = vmatpush1.bf16.msra.mxu0 %v1464
    %2211 = vmatprep.subr.bf16.mxu0 %v1473
    %2212 = vmatpush1.bf16.msra.mxu0 %v1472
    %2213 = vmatprep.mubr.bf16.mxu0 %v761
    %2214 = vmatmul.mubr.bf16.gmra.mrb[0].mxu0 %v760
    %v2215 = vpop.f32.mrb[0].mxu0
    %v2216 = vadd.f32 %v949, %v2215
    %v2217 = vpop.f32.mrb[0].mxu0
    %v2218 = vadd.f32 %v953, %v2217
    %v2219 = vpop.f32.mrb[0].mxu0
    %v2220 = vadd.f32 %v949, %v2219
    %v2221 = vpop.f32.mrb[0].mxu0
    %v2222 = vadd.f32 %v953, %v2221
    %2223 = vmatprep.mubr.bf16.mxu0 %v763
    %2224 = vmatmul.mubr.bf16.gmra.mrb[0].mxu0 %v762
    %v2225 = vpop.f32.mrb[0].mxu0
    %v2226 = vadd.f32 %v949, %v2225
    %v2227 = vpop.f32.mrb[0].mxu0
    %v2228 = vadd.f32 %v953, %v2227
    %v2229 = vpop.f32.mrb[0].mxu0
    %v2230 = vadd.f32 %v949, %v2229
    %v2231 = vpop.f32.mrb[0].mxu0
    %v2232 = vadd.f32 %v953, %v2231
    %2233 = vmatprep.mubr.bf16.mxu0 %v765
    %2234 = vmatmul.mubr.bf16.gmra.mrb[0].mxu0 %v764
    %v2235 = vpop.f32.mrb[0].mxu0
    %v2236 = vadd.f32 %v949, %v2235
    %v2237 = vpop.f32.mrb[0].mxu0
    %v2238 = vadd.f32 %v953, %v2237
    %v2239 = vpop.f32.mrb[0].mxu0
    %v2240 = vadd.f32 %v949, %v2239
    %v2241 = vpop.f32.mrb[0].mxu0
    %v2242 = vadd.f32 %v953, %v2241
    %2243 = vmatprep.mubr.bf16.mxu0 %v767
    %2244 = vmatmul.mubr.bf16.gmra.mrb[0].mxu0 %v766
    %v2245 = vpop.f32.mrb[0].mxu0
    %v2246 = vadd.f32 %v949, %v2245
    %v2247 = vpop.f32.mrb[0].mxu0
    %v2248 = vadd.f32 %v953, %v2247
    %v2249 = vpop.f32.mrb[0].mxu0
    %v2250 = vadd.f32 %v949, %v2249
    %v2251 = vpop.f32.mrb[0].mxu0
    %v2252 = vadd.f32 %v953, %v2251
    %2253 = vmatprep.mubr.bf16.mxu0 %v769
    %2254 = vmatmul.mubr.bf16.gmra.mrb[0].mxu0 %v768
    %v2255 = vpop.f32.mrb[0].mxu0
    %v2256 = vadd.f32 %v949, %v2255
    %v2257 = vpop.f32.mrb[0].mxu0
    %v2258 = vadd.f32 %v953, %v2257
    %v2259 = vpop.f32.mrb[0].mxu0
    %v2260 = vadd.f32 %v949, %v2259
    %v2261 = vpop.f32.mrb[0].mxu0
    %v2262 = vadd.f32 %v953, %v2261
    %2263 = vmatprep.mubr.bf16.mxu0 %v771
    %2264 = vmatmul.mubr.bf16.gmra.mrb[0].mxu0 %v770
    %v2265 = vpop.f32.mrb[0].mxu0
    %v2266 = vadd.f32 %v949, %v2265
    %v2267 = vpop.f32.mrb[0].mxu0
    %v2268 = vadd.f32 %v953, %v2267
    %v2269 = vpop.f32.mrb[0].mxu0
    %v2270 = vadd.f32 %v949, %v2269
    %v2271 = vpop.f32.mrb[0].mxu0
    %v2272 = vadd.f32 %v953, %v2271
    %2273 = vmatprep.mubr.bf16.mxu0 %v773
    %2274 = vmatmul.mubr.bf16.gmra.mrb[0].mxu0 %v772
    %v2275 = vpop.f32.mrb[0].mxu0
    %v2276 = vadd.f32 %v949, %v2275
    %v2277 = vpop.f32.mrb[0].mxu0
    %v2278 = vadd.f32 %v953, %v2277
    %v2279 = vpop.f32.mrb[0].mxu0
    %v2280 = vadd.f32 %v949, %v2279
    %v2281 = vpop.f32.mrb[0].mxu0
    %v2282 = vadd.f32 %v953, %v2281
    %2283 = vmatprep.mubr.bf16.mxu0 %v775
    %2284 = vmatmul.mubr.bf16.gmra.mrb[0].mxu0 %v774
    %v2285 = vpop.f32.mrb[0].mxu0
    %v2286 = vadd.f32 %v949, %v2285
    %v2287 = vpop.f32.mrb[0].mxu0
    %v2288 = vadd.f32 %v953, %v2287
    %v2289 = vpop.f32.mrb[0].mxu0
    %v2290 = vadd.f32 %v949, %v2289
    %v2291 = vpop.f32.mrb[0].mxu0
    %v2292 = vadd.f32 %v953, %v2291
    %2293 = vmatprep.mubr.bf16.mxu0 %v777
    %2294 = vmatmul.mubr.bf16.gmra.mrb[0].mxu0 %v776
    %v2295 = vpop.f32.mrb[0].mxu0
    %v2296 = vadd.f32 %v949, %v2295
    %v2297 = vpop.f32.mrb[0].mxu0
    %v2298 = vadd.f32 %v953, %v2297
    %v2299 = vpop.f32.mrb[0].mxu0
    %v2300 = vadd.f32 %v949, %v2299
    %v2301 = vpop.f32.mrb[0].mxu0
    %v2302 = vadd.f32 %v953, %v2301
    %2303 = vmatprep.mubr.bf16.mxu0 %v779
    %2304 = vmatmul.mubr.bf16.gmra.mrb[0].mxu0 %v778
    %v2305 = vpop.f32.mrb[0].mxu0
    %v2306 = vadd.f32 %v949, %v2305
    %v2307 = vpop.f32.mrb[0].mxu0
    %v2308 = vadd.f32 %v953, %v2307
    %v2309 = vpop.f32.mrb[0].mxu0
    %v2310 = vadd.f32 %v949, %v2309
    %v2311 = vpop.f32.mrb[0].mxu0
    %v2312 = vadd.f32 %v953, %v2311
    %2313 = vmatprep.mubr.bf16.mxu0 %v781
    %2314 = vmatmul.mubr.bf16.gmra.mrb[0].mxu0 %v780
    %v2315 = vpop.f32.mrb[0].mxu0
    %v2316 = vadd.f32 %v949, %v2315
    %v2317 = vpop.f32.mrb[0].mxu0
    %v2318 = vadd.f32 %v953, %v2317
    %v2319 = vpop.f32.mrb[0].mxu0
    %v2320 = vadd.f32 %v949, %v2319
    %v2321 = vpop.f32.mrb[0].mxu0
    %v2322 = vadd.f32 %v953, %v2321
    %2323 = vmatprep.mubr.bf16.mxu0 %v783
    %2324 = vmatmul.mubr.bf16.gmra.mrb[0].mxu0 %v782
    %v2325 = vpop.f32.mrb[0].mxu0
    %v2326 = vadd.f32 %v949, %v2325
    %v2327 = vpop.f32.mrb[0].mxu0
    %v2328 = vadd.f32 %v953, %v2327
    %v2329 = vpop.f32.mrb[0].mxu0
    %v2330 = vadd.f32 %v949, %v2329
    %v2331 = vpop.f32.mrb[0].mxu0
    %v2332 = vadd.f32 %v953, %v2331
    %2333 = vmatprep.mubr.bf16.mxu0 %v785
    %2334 = vmatmul.mubr.bf16.gmra.mrb[0].mxu0 %v784
    %v2335 = vpop.f32.mrb[0].mxu0
    %v2336 = vadd.f32 %v949, %v2335
    %v2337 = vpop.f32.mrb[0].mxu0
    %v2338 = vadd.f32 %v953, %v2337
    %v2339 = vpop.f32.mrb[0].mxu0
    %v2340 = vadd.f32 %v949, %v2339
    %v2341 = vpop.f32.mrb[0].mxu0
    %v2342 = vadd.f32 %v953, %v2341
    %2343 = vmatprep.mubr.bf16.mxu0 %v787
    %2344 = vmatmul.mubr.bf16.gmra.mrb[0].mxu0 %v786
    %v2345 = vpop.f32.mrb[0].mxu0
    %v2346 = vadd.f32 %v949, %v2345
    %v2347 = vpop.f32.mrb[0].mxu0
    %v2348 = vadd.f32 %v953, %v2347
    %v2349 = vpop.f32.mrb[0].mxu0
    %v2350 = vadd.f32 %v949, %v2349
    %v2351 = vpop.f32.mrb[0].mxu0
    %v2352 = vadd.f32 %v953, %v2351
    %2353 = vmatprep.mubr.bf16.mxu0 %v789
    %2354 = vmatmul.mubr.bf16.gmra.mrb[0].mxu0 %v788
    %v2355 = vpop.f32.mrb[0].mxu0
    %v2356 = vadd.f32 %v949, %v2355
    %v2357 = vpop.f32.mrb[0].mxu0
    %v2358 = vadd.f32 %v953, %v2357
    %v2359 = vpop.f32.mrb[0].mxu0
    %v2360 = vadd.f32 %v949, %v2359
    %v2361 = vpop.f32.mrb[0].mxu0
    %v2362 = vadd.f32 %v953, %v2361
    %2363 = vmatprep.mubr.bf16.mxu0 %v791
    %2364 = vmatmul.mubr.bf16.gmra.mrb[0].mxu0 %v790
    %v2365 = vpop.f32.mrb[0].mxu0
    %v2366 = vadd.f32 %v949, %v2365
    %v2367 = vpop.f32.mrb[0].mxu0
    %v2368 = vadd.f32 %v953, %v2367
    %v2369 = vpop.f32.mrb[0].mxu0
    %v2370 = vadd.f32 %v949, %v2369
    %v2371 = vpop.f32.mrb[0].mxu0
    %v2372 = vadd.f32 %v953, %v2371
    %2373 = vdwg.mxu0
    %v2374 = vmax.f32 %v1637, 0.0
    %v2375 = vmax.f32 %v1639, 0.0
    %v2376 = vmax.f32 %v1830, 0.0
    %v2377 = vmax.f32 %v1832, 0.0
    %v2378 = vmax.f32 %v2023, 0.0
    %v2379 = vmax.f32 %v2025, 0.0
    %v2380 = vmax.f32 %v2216, 0.0
    %v2381 = vmax.f32 %v2218, 0.0
    %v2382 = vmax.f32 %v1641, 0.0
    %v2383 = vmax.f32 %v1643, 0.0
    %v2384 = vmax.f32 %v1834, 0.0
    %v2385 = vmax.f32 %v1836, 0.0
    %v2386 = vmax.f32 %v2027, 0.0
    %v2387 = vmax.f32 %v2029, 0.0
    %v2388 = vmax.f32 %v2220, 0.0
    %v2389 = vmax.f32 %v2222, 0.0
    %v2390 = vmax.f32 %v1647, 0.0
    %v2391 = vmax.f32 %v1649, 0.0
    %v2392 = vmax.f32 %v1840, 0.0
    %v2393 = vmax.f32 %v1842, 0.0
    %v2394 = vmax.f32 %v2033, 0.0
    %v2395 = vmax.f32 %v2035, 0.0
    %v2396 = vmax.f32 %v2226, 0.0
    %v2397 = vmax.f32 %v2228, 0.0
    %v2398 = vmax.f32 %v1651, 0.0
    %v2399 = vmax.f32 %v1653, 0.0
    %v2400 = vmax.f32 %v1844, 0.0
    %v2401 = vmax.f32 %v1846, 0.0
    %v2402 = vmax.f32 %v2037, 0.0
    %v2403 = vmax.f32 %v2039, 0.0
    %v2404 = vmax.f32 %v2230, 0.0
    %v2405 = vmax.f32 %v2232, 0.0
    %v2406 = vmax.f32 %v1657, 0.0
    %v2407 = vmax.f32 %v1659, 0.0
    %v2408 = vmax.f32 %v1850, 0.0
    %v2409 = vmax.f32 %v1852, 0.0
    %v2410 = vmax.f32 %v2043, 0.0
    %v2411 = vmax.f32 %v2045, 0.0
    %v2412 = vmax.f32 %v2236, 0.0
    %v2413 = vmax.f32 %v2238, 0.0
    %v2414 = vmax.f32 %v1661, 0.0
    %v2415 = vmax.f32 %v1663, 0.0
    %v2416 = vmax.f32 %v1854, 0.0
    %v2417 = vmax.f32 %v1856, 0.0
    %v2418 = vmax.f32 %v2047, 0.0
    %v2419 = vmax.f32 %v2049, 0.0
    %v2420 = vmax.f32 %v2240, 0.0
    %v2421 = vmax.f32 %v2242, 0.0
    %v2422 = vmax.f32 %v1667, 0.0
    %v2423 = vmax.f32 %v1669, 0.0
    %v2424 = vmax.f32 %v1860, 0.0
    %v2425 = vmax.f32 %v1862, 0.0
    %v2426 = vmax.f32 %v2053, 0.0
    %v2427 = vmax.f32 %v2055, 0.0
    %v2428 = vmax.f32 %v2246, 0.0
    %v2429 = vmax.f32 %v2248, 0.0
    %v2430 = vmax.f32 %v1671, 0.0
    %v2431 = vmax.f32 %v1673, 0.0
    %v2432 = vmax.f32 %v1864, 0.0
    %v2433 = vmax.f32 %v1866, 0.0
    %v2434 = vmax.f32 %v2057, 0.0
    %v2435 = vmax.f32 %v2059, 0.0
    %v2436 = vmax.f32 %v2250, 0.0
    %v2437 = vmax.f32 %v2252, 0.0
    %v2438 = vmax.f32 %v1677, 0.0
    %v2439 = vmax.f32 %v1679, 0.0
    %v2440 = vmax.f32 %v1870, 0.0
    %v2441 = vmax.f32 %v1872, 0.0
    %v2442 = vmax.f32 %v2063, 0.0
    %v2443 = vmax.f32 %v2065, 0.0
    %v2444 = vmax.f32 %v2256, 0.0
    %v2445 = vmax.f32 %v2258, 0.0
    %v2446 = vmax.f32 %v1681, 0.0
    %v2447 = vmax.f32 %v1683, 0.0
    %v2448 = vmax.f32 %v1874, 0.0
    %v2449 = vmax.f32 %v1876, 0.0
    %v2450 = vmax.f32 %v2067, 0.0
    %v2451 = vmax.f32 %v2069, 0.0
    %v2452 = vmax.f32 %v2260, 0.0
    %v2453 = vmax.f32 %v2262, 0.0
    %v2454 = vmax.f32 %v1687, 0.0
    %v2455 = vmax.f32 %v1689, 0.0
    %v2456 = vmax.f32 %v1880, 0.0
    %v2457 = vmax.f32 %v1882, 0.0
    %v2458 = vmax.f32 %v2073, 0.0
    %v2459 = vmax.f32 %v2075, 0.0
    %v2460 = vmax.f32 %v2266, 0.0
    %v2461 = vmax.f32 %v2268, 0.0
    %v2462 = vmax.f32 %v1691, 0.0
    %v2463 = vmax.f32 %v1693, 0.0
    %v2464 = vmax.f32 %v1884, 0.0
    %v2465 = vmax.f32 %v1886, 0.0
    %v2466 = vmax.f32 %v2077, 0.0
    %v2467 = vmax.f32 %v2079, 0.0
    %v2468 = vmax.f32 %v2270, 0.0
    %v2469 = vmax.f32 %v2272, 0.0
    %v2470 = vmax.f32 %v1697, 0.0
    %v2471 = vmax.f32 %v1699, 0.0
    %v2472 = vmax.f32 %v1890, 0.0
    %v2473 = vmax.f32 %v1892, 0.0
    %v2474 = vmax.f32 %v2083, 0.0
    %v2475 = vmax.f32 %v2085, 0.0
    %v2476 = vmax.f32 %v2276, 0.0
    %v2477 = vmax.f32 %v2278, 0.0
    %v2478 = vmax.f32 %v1701, 0.0
    %v2479 = vmax.f32 %v1703, 0.0
    %v2480 = vmax.f32 %v1894, 0.0
    %v2481 = vmax.f32 %v1896, 0.0
    %v2482 = vmax.f32 %v2087, 0.0
    %v2483 = vmax.f32 %v2089, 0.0
    %v2484 = vmax.f32 %v2280, 0.0
    %v2485 = vmax.f32 %v2282, 0.0
    %v2486 = vmax.f32 %v1707, 0.0
    %v2487 = vmax.f32 %v1709, 0.0
    %v2488 = vmax.f32 %v1900, 0.0
    %v2489 = vmax.f32 %v1902, 0.0
    %v2490 = vmax.f32 %v2093, 0.0
    %v2491 = vmax.f32 %v2095, 0.0
    %v2492 = vmax.f32 %v2286, 0.0
    %v2493 = vmax.f32 %v2288, 0.0
    %v2494 = vmax.f32 %v1711, 0.0
    %v2495 = vmax.f32 %v1713, 0.0
    %v2496 = vmax.f32 %v1904, 0.0
    %v2497 = vmax.f32 %v1906, 0.0
    %v2498 = vmax.f32 %v2097, 0.0
    %v2499 = vmax.f32 %v2099, 0.0
    %v2500 = vmax.f32 %v2290, 0.0
    %v2501 = vmax.f32 %v2292, 0.0
    %v2502 = vmax.f32 %v1717, 0.0
    %v2503 = vmax.f32 %v1719, 0.0
    %v2504 = vmax.f32 %v1910, 0.0
    %v2505 = vmax.f32 %v1912, 0.0
    %v2506 = vmax.f32 %v2103, 0.0
    %v2507 = vmax.f32 %v2105, 0.0
    %v2508 = vmax.f32 %v2296, 0.0
    %v2509 = vmax.f32 %v2298, 0.0
    %v2510 = vmax.f32 %v1721, 0.0
    %v2511 = vmax.f32 %v1723, 0.0
    %v2512 = vmax.f32 %v1914, 0.0
    %v2513 = vmax.f32 %v1916, 0.0
    %v2514 = vmax.f32 %v2107, 0.0
    %v2515 = vmax.f32 %v2109, 0.0
    %v2516 = vmax.f32 %v2300, 0.0
    %v2517 = vmax.f32 %v2302, 0.0
    %v2518 = vmax.f32 %v1727, 0.0
    %v2519 = vmax.f32 %v1729, 0.0
    %v2520 = vmax.f32 %v1920, 0.0
    %v2521 = vmax.f32 %v1922, 0.0
    %v2522 = vmax.f32 %v2113, 0.0
    %v2523 = vmax.f32 %v2115, 0.0
    %v2524 = vmax.f32 %v2306, 0.0
    %v2525 = vmax.f32 %v2308, 0.0
    %v2526 = vmax.f32 %v1731, 0.0
    %v2527 = vmax.f32 %v1733, 0.0
    %v2528 = vmax.f32 %v1924, 0.0
    %v2529 = vmax.f32 %v1926, 0.0
    %v2530 = vmax.f32 %v2117, 0.0
    %v2531 = vmax.f32 %v2119, 0.0
    %v2532 = vmax.f32 %v2310, 0.0
    %v2533 = vmax.f32 %v2312, 0.0
    %v2534 = vmax.f32 %v1737, 0.0
    %v2535 = vmax.f32 %v1739, 0.0
    %v2536 = vmax.f32 %v1930, 0.0
    %v2537 = vmax.f32 %v1932, 0.0
    %v2538 = vmax.f32 %v2123, 0.0
    %v2539 = vmax.f32 %v2125, 0.0
    %v2540 = vmax.f32 %v2316, 0.0
    %v2541 = vmax.f32 %v2318, 0.0
    %v2542 = vmax.f32 %v1741, 0.0
    %v2543 = vmax.f32 %v1743, 0.0
    %v2544 = vmax.f32 %v1934, 0.0
    %v2545 = vmax.f32 %v1936, 0.0
    %v2546 = vmax.f32 %v2127, 0.0
    %v2547 = vmax.f32 %v2129, 0.0
    %v2548 = vmax.f32 %v2320, 0.0
    %v2549 = vmax.f32 %v2322, 0.0
    %v2550 = vmax.f32 %v1747, 0.0
    %v2551 = vmax.f32 %v1749, 0.0
    %v2552 = vmax.f32 %v1940, 0.0
    %v2553 = vmax.f32 %v1942, 0.0
    %v2554 = vmax.f32 %v2133, 0.0
    %v2555 = vmax.f32 %v2135, 0.0
    %v2556 = vmax.f32 %v2326, 0.0
    %v2557 = vmax.f32 %v2328, 0.0
    %v2558 = vmax.f32 %v1751, 0.0
    %v2559 = vmax.f32 %v1753, 0.0
    %v2560 = vmax.f32 %v1944, 0.0
    %v2561 = vmax.f32 %v1946, 0.0
    %v2562 = vmax.f32 %v2137, 0.0
    %v2563 = vmax.f32 %v2139, 0.0
    %v2564 = vmax.f32 %v2330, 0.0
    %v2565 = vmax.f32 %v2332, 0.0
    %v2566 = vmax.f32 %v1757, 0.0
    %v2567 = vmax.f32 %v1759, 0.0
    %v2568 = vmax.f32 %v1950, 0.0
    %v2569 = vmax.f32 %v1952, 0.0
    %v2570 = vmax.f32 %v2143, 0.0
    %v2571 = vmax.f32 %v2145, 0.0
    %v2572 = vmax.f32 %v2336, 0.0
    %v2573 = vmax.f32 %v2338, 0.0
    %v2574 = vmax.f32 %v1761, 0.0
    %v2575 = vmax.f32 %v1763, 0.0
    %v2576 = vmax.f32 %v1954, 0.0
    %v2577 = vmax.f32 %v1956, 0.0
    %v2578 = vmax.f32 %v2147, 0.0
    %v2579 = vmax.f32 %v2149, 0.0
    %v2580 = vmax.f32 %v2340, 0.0
    %v2581 = vmax.f32 %v2342, 0.0
    %v2582 = vmax.f32 %v1767, 0.0
    %v2583 = vmax.f32 %v1769, 0.0
    %v2584 = vmax.f32 %v1960, 0.0
    %v2585 = vmax.f32 %v1962, 0.0
    %v2586 = vmax.f32 %v2153, 0.0
    %v2587 = vmax.f32 %v2155, 0.0
    %v2588 = vmax.f32 %v2346, 0.0
    %v2589 = vmax.f32 %v2348, 0.0
    %v2590 = vmax.f32 %v1771, 0.0
    %v2591 = vmax.f32 %v1773, 0.0
    %v2592 = vmax.f32 %v1964, 0.0
    %v2593 = vmax.f32 %v1966, 0.0
    %v2594 = vmax.f32 %v2157, 0.0
    %v2595 = vmax.f32 %v2159, 0.0
    %v2596 = vmax.f32 %v2350, 0.0
    %v2597 = vmax.f32 %v2352, 0.0
    %v2598 = vmax.f32 %v1777, 0.0
    %v2599 = vmax.f32 %v1779, 0.0
    %v2600 = vmax.f32 %v1970, 0.0
    %v2601 = vmax.f32 %v1972, 0.0
    %v2602 = vmax.f32 %v2163, 0.0
    %v2603 = vmax.f32 %v2165, 0.0
    %v2604 = vmax.f32 %v2356, 0.0
    %v2605 = vmax.f32 %v2358, 0.0
    %v2606 = vmax.f32 %v1781, 0.0
    %v2607 = vmax.f32 %v1783, 0.0
    %v2608 = vmax.f32 %v1974, 0.0
    %v2609 = vmax.f32 %v1976, 0.0
    %v2610 = vmax.f32 %v2167, 0.0
    %v2611 = vmax.f32 %v2169, 0.0
    %v2612 = vmax.f32 %v2360, 0.0
    %v2613 = vmax.f32 %v2362, 0.0
    %v2614 = vmax.f32 %v1787, 0.0
    %v2615 = vmax.f32 %v1789, 0.0
    %v2616 = vmax.f32 %v1980, 0.0
    %v2617 = vmax.f32 %v1982, 0.0
    %v2618 = vmax.f32 %v2173, 0.0
    %v2619 = vmax.f32 %v2175, 0.0
    %v2620 = vmax.f32 %v2366, 0.0
    %v2621 = vmax.f32 %v2368, 0.0
    %v2622 = vmax.f32 %v1791, 0.0
    %v2623 = vmax.f32 %v1793, 0.0
    %v2624 = vmax.f32 %v1984, 0.0
    %v2625 = vmax.f32 %v1986, 0.0
    %v2626 = vmax.f32 %v2177, 0.0
    %v2627 = vmax.f32 %v2179, 0.0
    %v2628 = vmax.f32 %v2370, 0.0
    %v2629 = vmax.f32 %v2372, 0.0
    %v2630 = vpack.c.bf16 %v2382, %v2374
    %v2631 = vpack.c.bf16 %v2383, %v2375
    %v2632 = vpack.c.bf16 %v2384, %v2376
    %v2633 = vpack.c.bf16 %v2385, %v2377
    %v2634 = vpack.c.bf16 %v2386, %v2378
    %v2635 = vpack.c.bf16 %v2387, %v2379
    %v2636 = vpack.c.bf16 %v2388, %v2380
    %v2637 = vpack.c.bf16 %v2389, %v2381
    %v2638 = vpack.c.bf16 %v2398, %v2390
    %v2639 = vpack.c.bf16 %v2399, %v2391
    %v2640 = vpack.c.bf16 %v2400, %v2392
    %v2641 = vpack.c.bf16 %v2401, %v2393
    %v2642 = vpack.c.bf16 %v2402, %v2394
    %v2643 = vpack.c.bf16 %v2403, %v2395
    %v2644 = vpack.c.bf16 %v2404, %v2396
    %v2645 = vpack.c.bf16 %v2405, %v2397
    %v2646 = vpack.c.bf16 %v2414, %v2406
    %v2647 = vpack.c.bf16 %v2415, %v2407
    %v2648 = vpack.c.bf16 %v2416, %v2408
    %v2649 = vpack.c.bf16 %v2417, %v2409
    %v2650 = vpack.c.bf16 %v2418, %v2410
    %v2651 = vpack.c.bf16 %v2419, %v2411
    %v2652 = vpack.c.bf16 %v2420, %v2412
    %v2653 = vpack.c.bf16 %v2421, %v2413
    %v2654 = vpack.c.bf16 %v2430, %v2422
    %v2655 = vpack.c.bf16 %v2431, %v2423
    %v2656 = vpack.c.bf16 %v2432, %v2424
    %v2657 = vpack.c.bf16 %v2433, %v2425
    %v2658 = vpack.c.bf16 %v2434, %v2426
    %v2659 = vpack.c.bf16 %v2435, %v2427
    %v2660 = vpack.c.bf16 %v2436, %v2428
    %v2661 = vpack.c.bf16 %v2437, %v2429
    %v2662 = vpack.c.bf16 %v2446, %v2438
    %v2663 = vpack.c.bf16 %v2447, %v2439
    %v2664 = vpack.c.bf16 %v2448, %v2440
    %v2665 = vpack.c.bf16 %v2449, %v2441
    %v2666 = vpack.c.bf16 %v2450, %v2442
    %v2667 = vpack.c.bf16 %v2451, %v2443
    %v2668 = vpack.c.bf16 %v2452, %v2444
    %v2669 = vpack.c.bf16 %v2453, %v2445
    %v2670 = vpack.c.bf16 %v2462, %v2454
    %v2671 = vpack.c.bf16 %v2463, %v2455
    %v2672 = vpack.c.bf16 %v2464, %v2456
    %v2673 = vpack.c.bf16 %v2465, %v2457
    %v2674 = vpack.c.bf16 %v2466, %v2458
    %v2675 = vpack.c.bf16 %v2467, %v2459
    %v2676 = vpack.c.bf16 %v2468, %v2460
    %v2677 = vpack.c.bf16 %v2469, %v2461
    %v2678 = vpack.c.bf16 %v2478, %v2470
    %v2679 = vpack.c.bf16 %v2479, %v2471
    %v2680 = vpack.c.bf16 %v2480, %v2472
    %v2681 = vpack.c.bf16 %v2481, %v2473
    %v2682 = vpack.c.bf16 %v2482, %v2474
    %v2683 = vpack.c.bf16 %v2483, %v2475
    %v2684 = vpack.c.bf16 %v2484, %v2476
    %v2685 = vpack.c.bf16 %v2485, %v2477
    %v2686 = vpack.c.bf16 %v2494, %v2486
    %v2687 = vpack.c.bf16 %v2495, %v2487
    %v2688 = vpack.c.bf16 %v2496, %v2488
    %v2689 = vpack.c.bf16 %v2497, %v2489
    %v2690 = vpack.c.bf16 %v2498, %v2490
    %v2691 = vpack.c.bf16 %v2499, %v2491
    %v2692 = vpack.c.bf16 %v2500, %v2492
    %v2693 = vpack.c.bf16 %v2501, %v2493
    %v2694 = vpack.c.bf16 %v2510, %v2502
    %v2695 = vpack.c.bf16 %v2511, %v2503
    %v2696 = vpack.c.bf16 %v2512, %v2504
    %v2697 = vpack.c.bf16 %v2513, %v2505
    %v2698 = vpack.c.bf16 %v2514, %v2506
    %v2699 = vpack.c.bf16 %v2515, %v2507
    %v2700 = vpack.c.bf16 %v2516, %v2508
    %v2701 = vpack.c.bf16 %v2517, %v2509
    %v2702 = vpack.c.bf16 %v2526, %v2518
    %v2703 = vpack.c.bf16 %v2527, %v2519
    %v2704 = vpack.c.bf16 %v2528, %v2520
    %v2705 = vpack.c.bf16 %v2529, %v2521
    %v2706 = vpack.c.bf16 %v2530, %v2522
    %v2707 = vpack.c.bf16 %v2531, %v2523
    %v2708 = vpack.c.bf16 %v2532, %v2524
    %v2709 = vpack.c.bf16 %v2533, %v2525
    %v2710 = vpack.c.bf16 %v2542, %v2534
    %v2711 = vpack.c.bf16 %v2543, %v2535
    %v2712 = vpack.c.bf16 %v2544, %v2536
    %v2713 = vpack.c.bf16 %v2545, %v2537
    %v2714 = vpack.c.bf16 %v2546, %v2538
    %v2715 = vpack.c.bf16 %v2547, %v2539
    %v2716 = vpack.c.bf16 %v2548, %v2540
    %v2717 = vpack.c.bf16 %v2549, %v2541
    %v2718 = vpack.c.bf16 %v2558, %v2550
    %v2719 = vpack.c.bf16 %v2559, %v2551
    %v2720 = vpack.c.bf16 %v2560, %v2552
    %v2721 = vpack.c.bf16 %v2561, %v2553
    %v2722 = vpack.c.bf16 %v2562, %v2554
    %v2723 = vpack.c.bf16 %v2563, %v2555
    %v2724 = vpack.c.bf16 %v2564, %v2556
    %v2725 = vpack.c.bf16 %v2565, %v2557
    %v2726 = vpack.c.bf16 %v2574, %v2566
    %v2727 = vpack.c.bf16 %v2575, %v2567
    %v2728 = vpack.c.bf16 %v2576, %v2568
    %v2729 = vpack.c.bf16 %v2577, %v2569
    %v2730 = vpack.c.bf16 %v2578, %v2570
    %v2731 = vpack.c.bf16 %v2579, %v2571
    %v2732 = vpack.c.bf16 %v2580, %v2572
    %v2733 = vpack.c.bf16 %v2581, %v2573
    %v2734 = vpack.c.bf16 %v2590, %v2582
    %v2735 = vpack.c.bf16 %v2591, %v2583
    %v2736 = vpack.c.bf16 %v2592, %v2584
    %v2737 = vpack.c.bf16 %v2593, %v2585
    %v2738 = vpack.c.bf16 %v2594, %v2586
    %v2739 = vpack.c.bf16 %v2595, %v2587
    %v2740 = vpack.c.bf16 %v2596, %v2588
    %v2741 = vpack.c.bf16 %v2597, %v2589
    %v2742 = vpack.c.bf16 %v2606, %v2598
    %v2743 = vpack.c.bf16 %v2607, %v2599
    %v2744 = vpack.c.bf16 %v2608, %v2600
    %v2745 = vpack.c.bf16 %v2609, %v2601
    %v2746 = vpack.c.bf16 %v2610, %v2602
    %v2747 = vpack.c.bf16 %v2611, %v2603
    %v2748 = vpack.c.bf16 %v2612, %v2604
    %v2749 = vpack.c.bf16 %v2613, %v2605
    %v2750 = vpack.c.bf16 %v2622, %v2614
    %v2751 = vpack.c.bf16 %v2623, %v2615
    %v2752 = vpack.c.bf16 %v2624, %v2616
    %v2753 = vpack.c.bf16 %v2625, %v2617
    %v2754 = vpack.c.bf16 %v2626, %v2618
    %v2755 = vpack.c.bf16 %v2627, %v2619
    %v2756 = vpack.c.bf16 %v2628, %v2620
    %v2757 = vpack.c.bf16 %v2629, %v2621
    %v2758 = vld [vmem:[#allocation4] sm:$0xff]
    %v2759 = vld [vmem:[#allocation4 + $0x8] sm:$0xff]
    %v2760 = vld [vmem:[#allocation4 + $0x10] sm:$0xff]
    %v2761 = vld [vmem:[#allocation4 + $0x18] sm:$0xff]
    %v2762 = vld [vmem:[#allocation4 + $0x20] sm:$0xff]
    %v2763 = vld [vmem:[#allocation4 + $0x28] sm:$0xff]
    %v2764 = vld [vmem:[#allocation4 + $0x30] sm:$0xff]
    %v2765 = vld [vmem:[#allocation4 + $0x38] sm:$0xff]
    %v2766 = vld [vmem:[#allocation4 + $0x40] sm:$0xff]
    %v2767 = vld [vmem:[#allocation4 + $0x48] sm:$0xff]
    %v2768 = vld [vmem:[#allocation4 + $0x50] sm:$0xff]
    %v2769 = vld [vmem:[#allocation4 + $0x58] sm:$0xff]
    %v2770 = vld [vmem:[#allocation4 + $0x60] sm:$0xff]
    %v2771 = vld [vmem:[#allocation4 + $0x68] sm:$0xff]
    %v2772 = vld [vmem:[#allocation4 + $0x70] sm:$0xff]
    %v2773 = vld [vmem:[#allocation4 + $0x78] sm:$0xff]
    %v2774 = vld [vmem:[#allocation4 + $0x80] sm:$0xff]
    %v2775 = vld [vmem:[#allocation4 + $0x88] sm:$0xff]
    %v2776 = vld [vmem:[#allocation4 + $0x90] sm:$0xff]
    %v2777 = vld [vmem:[#allocation4 + $0x98] sm:$0xff]
    %v2778 = vld [vmem:[#allocation4 + $0xa0] sm:$0xff]
    %v2779 = vld [vmem:[#allocation4 + $0xa8] sm:$0xff]
    %v2780 = vld [vmem:[#allocation4 + $0xb0] sm:$0xff]
    %v2781 = vld [vmem:[#allocation4 + $0xb8] sm:$0xff]
    %v2782 = vld [vmem:[#allocation4 + $0xc0] sm:$0xff]
    %v2783 = vld [vmem:[#allocation4 + $0xc8] sm:$0xff]
    %v2784 = vld [vmem:[#allocation4 + $0xd0] sm:$0xff]
    %v2785 = vld [vmem:[#allocation4 + $0xd8] sm:$0xff]
    %v2786 = vld [vmem:[#allocation4 + $0xe0] sm:$0xff]
    %v2787 = vld [vmem:[#allocation4 + $0xe8] sm:$0xff]
    %v2788 = vld [vmem:[#allocation4 + $0xf0] sm:$0xff]
    %v2789 = vld [vmem:[#allocation4 + $0xf8] sm:$0xff]
    %v2790 = vld [vmem:[#allocation4 + $0x100] sm:$0xff]
    %v2791 = vld [vmem:[#allocation4 + $0x108] sm:$0xff]
    %v2792 = vld [vmem:[#allocation4 + $0x110] sm:$0xff]
    %v2793 = vld [vmem:[#allocation4 + $0x118] sm:$0xff]
    %v2794 = vld [vmem:[#allocation4 + $0x120] sm:$0xff]
    %v2795 = vld [vmem:[#allocation4 + $0x128] sm:$0xff]
    %v2796 = vld [vmem:[#allocation4 + $0x130] sm:$0xff]
    %v2797 = vld [vmem:[#allocation4 + $0x138] sm:$0xff]
    %v2798 = vld [vmem:[#allocation4 + $0x140] sm:$0xff]
    %v2799 = vld [vmem:[#allocation4 + $0x148] sm:$0xff]
    %v2800 = vld [vmem:[#allocation4 + $0x150] sm:$0xff]
    %v2801 = vld [vmem:[#allocation4 + $0x158] sm:$0xff]
    %v2802 = vld [vmem:[#allocation4 + $0x160] sm:$0xff]
    %v2803 = vld [vmem:[#allocation4 + $0x168] sm:$0xff]
    %v2804 = vld [vmem:[#allocation4 + $0x170] sm:$0xff]
    %v2805 = vld [vmem:[#allocation4 + $0x178] sm:$0xff]
    %v2806 = vld [vmem:[#allocation4 + $0x180] sm:$0xff]
    %v2807 = vld [vmem:[#allocation4 + $0x188] sm:$0xff]
    %v2808 = vld [vmem:[#allocation4 + $0x190] sm:$0xff]
    %v2809 = vld [vmem:[#allocation4 + $0x198] sm:$0xff]
    %v2810 = vld [vmem:[#allocation4 + $0x1a0] sm:$0xff]
    %v2811 = vld [vmem:[#allocation4 + $0x1a8] sm:$0xff]
    %v2812 = vld [vmem:[#allocation4 + $0x1b0] sm:$0xff]
    %v2813 = vld [vmem:[#allocation4 + $0x1b8] sm:$0xff]
    %v2814 = vld [vmem:[#allocation4 + $0x1c0] sm:$0xff]
    %v2815 = vld [vmem:[#allocation4 + $0x1c8] sm:$0xff]
    %v2816 = vld [vmem:[#allocation4 + $0x1d0] sm:$0xff]
    %v2817 = vld [vmem:[#allocation4 + $0x1d8] sm:$0xff]
    %v2818 = vld [vmem:[#allocation4 + $0x1e0] sm:$0xff]
    %v2819 = vld [vmem:[#allocation4 + $0x1e8] sm:$0xff]
    %v2820 = vld [vmem:[#allocation4 + $0x1f0] sm:$0xff]
    %v2821 = vld [vmem:[#allocation4 + $0x1f8] sm:$0xff]
    %v2822 = vld [vmem:[#allocation4 + $0x200] sm:$0xff]
    %v2823 = vld [vmem:[#allocation4 + $0x208] sm:$0xff]
    %v2824 = vld [vmem:[#allocation4 + $0x210] sm:$0xff]
    %v2825 = vld [vmem:[#allocation4 + $0x218] sm:$0xff]
    %v2826 = vld [vmem:[#allocation4 + $0x220] sm:$0xff]
    %v2827 = vld [vmem:[#allocation4 + $0x228] sm:$0xff]
    %v2828 = vld [vmem:[#allocation4 + $0x230] sm:$0xff]
    %v2829 = vld [vmem:[#allocation4 + $0x238] sm:$0xff]
    %v2830 = vld [vmem:[#allocation4 + $0x240] sm:$0xff]
    %v2831 = vld [vmem:[#allocation4 + $0x248] sm:$0xff]
    %v2832 = vld [vmem:[#allocation4 + $0x250] sm:$0xff]
    %v2833 = vld [vmem:[#allocation4 + $0x258] sm:$0xff]
    %v2834 = vld [vmem:[#allocation4 + $0x260] sm:$0xff]
    %v2835 = vld [vmem:[#allocation4 + $0x268] sm:$0xff]
    %v2836 = vld [vmem:[#allocation4 + $0x270] sm:$0xff]
    %v2837 = vld [vmem:[#allocation4 + $0x278] sm:$0xff]
    %v2838 = vld [vmem:[#allocation4 + $0x280] sm:$0xff]
    %v2839 = vld [vmem:[#allocation4 + $0x288] sm:$0xff]
    %v2840 = vld [vmem:[#allocation4 + $0x290] sm:$0xff]
    %v2841 = vld [vmem:[#allocation4 + $0x298] sm:$0xff]
    %v2842 = vld [vmem:[#allocation4 + $0x2a0] sm:$0xff]
    %v2843 = vld [vmem:[#allocation4 + $0x2a8] sm:$0xff]
    %v2844 = vld [vmem:[#allocation4 + $0x2b0] sm:$0xff]
    %v2845 = vld [vmem:[#allocation4 + $0x2b8] sm:$0xff]
    %v2846 = vld [vmem:[#allocation4 + $0x2c0] sm:$0xff]
    %v2847 = vld [vmem:[#allocation4 + $0x2c8] sm:$0xff]
    %v2848 = vld [vmem:[#allocation4 + $0x2d0] sm:$0xff]
    %v2849 = vld [vmem:[#allocation4 + $0x2d8] sm:$0xff]
    %v2850 = vld [vmem:[#allocation4 + $0x2e0] sm:$0xff]
    %v2851 = vld [vmem:[#allocation4 + $0x2e8] sm:$0xff]
    %v2852 = vld [vmem:[#allocation4 + $0x2f0] sm:$0xff]
    %v2853 = vld [vmem:[#allocation4 + $0x2f8] sm:$0xff]
    %v2854 = vld [vmem:[#allocation4 + $0x300] sm:$0xff]
    %v2855 = vld [vmem:[#allocation4 + $0x308] sm:$0xff]
    %v2856 = vld [vmem:[#allocation4 + $0x310] sm:$0xff]
    %v2857 = vld [vmem:[#allocation4 + $0x318] sm:$0xff]
    %v2858 = vld [vmem:[#allocation4 + $0x320] sm:$0xff]
    %v2859 = vld [vmem:[#allocation4 + $0x328] sm:$0xff]
    %v2860 = vld [vmem:[#allocation4 + $0x330] sm:$0xff]
    %v2861 = vld [vmem:[#allocation4 + $0x338] sm:$0xff]
    %v2862 = vld [vmem:[#allocation4 + $0x340] sm:$0xff]
    %v2863 = vld [vmem:[#allocation4 + $0x348] sm:$0xff]
    %v2864 = vld [vmem:[#allocation4 + $0x350] sm:$0xff]
    %v2865 = vld [vmem:[#allocation4 + $0x358] sm:$0xff]
    %v2866 = vld [vmem:[#allocation4 + $0x360] sm:$0xff]
    %v2867 = vld [vmem:[#allocation4 + $0x368] sm:$0xff]
    %v2868 = vld [vmem:[#allocation4 + $0x370] sm:$0xff]
    %v2869 = vld [vmem:[#allocation4 + $0x378] sm:$0xff]
    %v2870 = vld [vmem:[#allocation4 + $0x380] sm:$0xff]
    %v2871 = vld [vmem:[#allocation4 + $0x388] sm:$0xff]
    %v2872 = vld [vmem:[#allocation4 + $0x390] sm:$0xff]
    %v2873 = vld [vmem:[#allocation4 + $0x398] sm:$0xff]
    %v2874 = vld [vmem:[#allocation4 + $0x3a0] sm:$0xff]
    %v2875 = vld [vmem:[#allocation4 + $0x3a8] sm:$0xff]
    %v2876 = vld [vmem:[#allocation4 + $0x3b0] sm:$0xff]
    %v2877 = vld [vmem:[#allocation4 + $0x3b8] sm:$0xff]
    %v2878 = vld [vmem:[#allocation4 + $0x3c0] sm:$0xff]
    %v2879 = vld [vmem:[#allocation4 + $0x3c8] sm:$0xff]
    %v2880 = vld [vmem:[#allocation4 + $0x3d0] sm:$0xff]
    %v2881 = vld [vmem:[#allocation4 + $0x3d8] sm:$0xff]
    %v2882 = vld [vmem:[#allocation4 + $0x3e0] sm:$0xff]
    %v2883 = vld [vmem:[#allocation4 + $0x3e8] sm:$0xff]
    %v2884 = vld [vmem:[#allocation4 + $0x3f0] sm:$0xff]
    %v2885 = vld [vmem:[#allocation4 + $0x3f8] sm:$0xff]
    %v2886 = vld [vmem:[%s8] sm:$0x3]
    %v2888 = vlaneseq
    %v2889 = vshrl.u32 %v2888, 7
    %v2890 = vsub.s32 0, %v2889
    %v2891 = vrot.slane %v2886, %v2890
    %v2892 = vlaneseq
    %v2893 = vshrl.u32 %v2892, 7
    %v2894 = vsub.s32 1, %v2893
    %v2895 = vrot.slane %v2886, %v2894
    %v3026 = vunpack.c.l.b16 %v2758
    %v3027 = vunpack.c.h.b16 %v2758
    %v3028 = vunpack.c.l.b16 %v2759
    %v3029 = vunpack.c.h.b16 %v2759
    %v3030 = vunpack.c.l.b16 %v2760
    %v3031 = vunpack.c.h.b16 %v2760
    %v3032 = vunpack.c.l.b16 %v2761
    %v3033 = vunpack.c.h.b16 %v2761
    %v3034 = vunpack.c.l.b16 %v2762
    %v3035 = vunpack.c.h.b16 %v2762
    %v3036 = vunpack.c.l.b16 %v2763
    %v3037 = vunpack.c.h.b16 %v2763
    %v3038 = vunpack.c.l.b16 %v2764
    %v3039 = vunpack.c.h.b16 %v2764
    %v3040 = vunpack.c.l.b16 %v2765
    %v3041 = vunpack.c.h.b16 %v2765
    %v3042 = vunpack.c.l.b16 %v2766
    %v3043 = vunpack.c.h.b16 %v2766
    %v3044 = vunpack.c.l.b16 %v2767
    %v3045 = vunpack.c.h.b16 %v2767
    %v3046 = vunpack.c.l.b16 %v2768
    %v3047 = vunpack.c.h.b16 %v2768
    %v3048 = vunpack.c.l.b16 %v2769
    %v3049 = vunpack.c.h.b16 %v2769
    %v3050 = vunpack.c.l.b16 %v2770
    %v3051 = vunpack.c.h.b16 %v2770
    %v3052 = vunpack.c.l.b16 %v2771
    %v3053 = vunpack.c.h.b16 %v2771
    %v3054 = vunpack.c.l.b16 %v2772
    %v3055 = vunpack.c.h.b16 %v2772
    %v3056 = vunpack.c.l.b16 %v2773
    %v3057 = vunpack.c.h.b16 %v2773
    %v3058 = vunpack.c.l.b16 %v2774
    %v3059 = vunpack.c.h.b16 %v2774
    %v3060 = vunpack.c.l.b16 %v2775
    %v3061 = vunpack.c.h.b16 %v2775
    %v3062 = vunpack.c.l.b16 %v2776
    %v3063 = vunpack.c.h.b16 %v2776
    %v3064 = vunpack.c.l.b16 %v2777
    %v3065 = vunpack.c.h.b16 %v2777
    %v3066 = vunpack.c.l.b16 %v2778
    %v3067 = vunpack.c.h.b16 %v2778
    %v3068 = vunpack.c.l.b16 %v2779
    %v3069 = vunpack.c.h.b16 %v2779
    %v3070 = vunpack.c.l.b16 %v2780
    %v3071 = vunpack.c.h.b16 %v2780
    %v3072 = vunpack.c.l.b16 %v2781
    %v3073 = vunpack.c.h.b16 %v2781
    %v3074 = vunpack.c.l.b16 %v2782
    %v3075 = vunpack.c.h.b16 %v2782
    %v3076 = vunpack.c.l.b16 %v2783
    %v3077 = vunpack.c.h.b16 %v2783
    %v3078 = vunpack.c.l.b16 %v2784
    %v3079 = vunpack.c.h.b16 %v2784
    %v3080 = vunpack.c.l.b16 %v2785
    %v3081 = vunpack.c.h.b16 %v2785
    %v3082 = vunpack.c.l.b16 %v2786
    %v3083 = vunpack.c.h.b16 %v2786
    %v3084 = vunpack.c.l.b16 %v2787
    %v3085 = vunpack.c.h.b16 %v2787
    %v3086 = vunpack.c.l.b16 %v2788
    %v3087 = vunpack.c.h.b16 %v2788
    %v3088 = vunpack.c.l.b16 %v2789
    %v3089 = vunpack.c.h.b16 %v2789
    %v3090 = vunpack.c.l.b16 %v2790
    %v3091 = vunpack.c.h.b16 %v2790
    %v3092 = vunpack.c.l.b16 %v2791
    %v3093 = vunpack.c.h.b16 %v2791
    %v3094 = vunpack.c.l.b16 %v2792
    %v3095 = vunpack.c.h.b16 %v2792
    %v3096 = vunpack.c.l.b16 %v2793
    %v3097 = vunpack.c.h.b16 %v2793
    %v3098 = vunpack.c.l.b16 %v2794
    %v3099 = vunpack.c.h.b16 %v2794
    %v3100 = vunpack.c.l.b16 %v2795
    %v3101 = vunpack.c.h.b16 %v2795
    %v3102 = vunpack.c.l.b16 %v2796
    %v3103 = vunpack.c.h.b16 %v2796
    %v3104 = vunpack.c.l.b16 %v2797
    %v3105 = vunpack.c.h.b16 %v2797
    %v3106 = vunpack.c.l.b16 %v2798
    %v3107 = vunpack.c.h.b16 %v2798
    %v3108 = vunpack.c.l.b16 %v2799
    %v3109 = vunpack.c.h.b16 %v2799
    %v3110 = vunpack.c.l.b16 %v2800
    %v3111 = vunpack.c.h.b16 %v2800
    %v3112 = vunpack.c.l.b16 %v2801
    %v3113 = vunpack.c.h.b16 %v2801
    %v3114 = vunpack.c.l.b16 %v2802
    %v3115 = vunpack.c.h.b16 %v2802
    %v3116 = vunpack.c.l.b16 %v2803
    %v3117 = vunpack.c.h.b16 %v2803
    %v3118 = vunpack.c.l.b16 %v2804
    %v3119 = vunpack.c.h.b16 %v2804
    %v3120 = vunpack.c.l.b16 %v2805
    %v3121 = vunpack.c.h.b16 %v2805
    %v3122 = vunpack.c.l.b16 %v2806
    %v3123 = vunpack.c.h.b16 %v2806
    %v3124 = vunpack.c.l.b16 %v2807
    %v3125 = vunpack.c.h.b16 %v2807
    %v3126 = vunpack.c.l.b16 %v2808
    %v3127 = vunpack.c.h.b16 %v2808
    %v3128 = vunpack.c.l.b16 %v2809
    %v3129 = vunpack.c.h.b16 %v2809
    %v3130 = vunpack.c.l.b16 %v2810
    %v3131 = vunpack.c.h.b16 %v2810
    %v3132 = vunpack.c.l.b16 %v2811
    %v3133 = vunpack.c.h.b16 %v2811
    %v3134 = vunpack.c.l.b16 %v2812
    %v3135 = vunpack.c.h.b16 %v2812
    %v3136 = vunpack.c.l.b16 %v2813
    %v3137 = vunpack.c.h.b16 %v2813
    %v3138 = vunpack.c.l.b16 %v2814
    %v3139 = vunpack.c.h.b16 %v2814
    %v3140 = vunpack.c.l.b16 %v2815
    %v3141 = vunpack.c.h.b16 %v2815
    %v3142 = vunpack.c.l.b16 %v2816
    %v3143 = vunpack.c.h.b16 %v2816
    %v3144 = vunpack.c.l.b16 %v2817
    %v3145 = vunpack.c.h.b16 %v2817
    %v3146 = vunpack.c.l.b16 %v2818
    %v3147 = vunpack.c.h.b16 %v2818
    %v3148 = vunpack.c.l.b16 %v2819
    %v3149 = vunpack.c.h.b16 %v2819
    %v3150 = vunpack.c.l.b16 %v2820
    %v3151 = vunpack.c.h.b16 %v2820
    %v3152 = vunpack.c.l.b16 %v2821
    %v3153 = vunpack.c.h.b16 %v2821
    %v3154 = vunpack.c.l.b16 %v2822
    %v3155 = vunpack.c.h.b16 %v2822
    %v3156 = vunpack.c.l.b16 %v2823
    %v3157 = vunpack.c.h.b16 %v2823
    %v3158 = vunpack.c.l.b16 %v2824
    %v3159 = vunpack.c.h.b16 %v2824
    %v3160 = vunpack.c.l.b16 %v2825
    %v3161 = vunpack.c.h.b16 %v2825
    %v3162 = vunpack.c.l.b16 %v2826
    %v3163 = vunpack.c.h.b16 %v2826
    %v3164 = vunpack.c.l.b16 %v2827
    %v3165 = vunpack.c.h.b16 %v2827
    %v3166 = vunpack.c.l.b16 %v2828
    %v3167 = vunpack.c.h.b16 %v2828
    %v3168 = vunpack.c.l.b16 %v2829
    %v3169 = vunpack.c.h.b16 %v2829
    %v3170 = vunpack.c.l.b16 %v2830
    %v3171 = vunpack.c.h.b16 %v2830
    %v3172 = vunpack.c.l.b16 %v2831
    %v3173 = vunpack.c.h.b16 %v2831
    %v3174 = vunpack.c.l.b16 %v2832
    %v3175 = vunpack.c.h.b16 %v2832
    %v3176 = vunpack.c.l.b16 %v2833
    %v3177 = vunpack.c.h.b16 %v2833
    %v3178 = vunpack.c.l.b16 %v2834
    %v3179 = vunpack.c.h.b16 %v2834
    %v3180 = vunpack.c.l.b16 %v2835
    %v3181 = vunpack.c.h.b16 %v2835
    %v3182 = vunpack.c.l.b16 %v2836
    %v3183 = vunpack.c.h.b16 %v2836
    %v3184 = vunpack.c.l.b16 %v2837
    %v3185 = vunpack.c.h.b16 %v2837
    %v3186 = vunpack.c.l.b16 %v2838
    %v3187 = vunpack.c.h.b16 %v2838
    %v3188 = vunpack.c.l.b16 %v2839
    %v3189 = vunpack.c.h.b16 %v2839
    %v3190 = vunpack.c.l.b16 %v2840
    %v3191 = vunpack.c.h.b16 %v2840
    %v3192 = vunpack.c.l.b16 %v2841
    %v3193 = vunpack.c.h.b16 %v2841
    %v3194 = vunpack.c.l.b16 %v2842
    %v3195 = vunpack.c.h.b16 %v2842
    %v3196 = vunpack.c.l.b16 %v2843
    %v3197 = vunpack.c.h.b16 %v2843
    %v3198 = vunpack.c.l.b16 %v2844
    %v3199 = vunpack.c.h.b16 %v2844
    %v3200 = vunpack.c.l.b16 %v2845
    %v3201 = vunpack.c.h.b16 %v2845
    %v3202 = vunpack.c.l.b16 %v2846
    %v3203 = vunpack.c.h.b16 %v2846
    %v3204 = vunpack.c.l.b16 %v2847
    %v3205 = vunpack.c.h.b16 %v2847
    %v3206 = vunpack.c.l.b16 %v2848
    %v3207 = vunpack.c.h.b16 %v2848
    %v3208 = vunpack.c.l.b16 %v2849
    %v3209 = vunpack.c.h.b16 %v2849
    %v3210 = vunpack.c.l.b16 %v2850
    %v3211 = vunpack.c.h.b16 %v2850
    %v3212 = vunpack.c.l.b16 %v2851
    %v3213 = vunpack.c.h.b16 %v2851
    %v3214 = vunpack.c.l.b16 %v2852
    %v3215 = vunpack.c.h.b16 %v2852
    %v3216 = vunpack.c.l.b16 %v2853
    %v3217 = vunpack.c.h.b16 %v2853
    %v3218 = vunpack.c.l.b16 %v2854
    %v3219 = vunpack.c.h.b16 %v2854
    %v3220 = vunpack.c.l.b16 %v2855
    %v3221 = vunpack.c.h.b16 %v2855
    %v3222 = vunpack.c.l.b16 %v2856
    %v3223 = vunpack.c.h.b16 %v2856
    %v3224 = vunpack.c.l.b16 %v2857
    %v3225 = vunpack.c.h.b16 %v2857
    %v3226 = vunpack.c.l.b16 %v2858
    %v3227 = vunpack.c.h.b16 %v2858
    %v3228 = vunpack.c.l.b16 %v2859
    %v3229 = vunpack.c.h.b16 %v2859
    %v3230 = vunpack.c.l.b16 %v2860
    %v3231 = vunpack.c.h.b16 %v2860
    %v3232 = vunpack.c.l.b16 %v2861
    %v3233 = vunpack.c.h.b16 %v2861
    %v3234 = vunpack.c.l.b16 %v2862
    %v3235 = vunpack.c.h.b16 %v2862
    %v3236 = vunpack.c.l.b16 %v2863
    %v3237 = vunpack.c.h.b16 %v2863
    %v3238 = vunpack.c.l.b16 %v2864
    %v3239 = vunpack.c.h.b16 %v2864
    %v3240 = vunpack.c.l.b16 %v2865
    %v3241 = vunpack.c.h.b16 %v2865
    %v3242 = vunpack.c.l.b16 %v2866
    %v3243 = vunpack.c.h.b16 %v2866
    %v3244 = vunpack.c.l.b16 %v2867
    %v3245 = vunpack.c.h.b16 %v2867
    %v3246 = vunpack.c.l.b16 %v2868
    %v3247 = vunpack.c.h.b16 %v2868
    %v3248 = vunpack.c.l.b16 %v2869
    %v3249 = vunpack.c.h.b16 %v2869
    %v3250 = vunpack.c.l.b16 %v2870
    %v3251 = vunpack.c.h.b16 %v2870
    %v3252 = vunpack.c.l.b16 %v2871
    %v3253 = vunpack.c.h.b16 %v2871
    %v3254 = vunpack.c.l.b16 %v2872
    %v3255 = vunpack.c.h.b16 %v2872
    %v3256 = vunpack.c.l.b16 %v2873
    %v3257 = vunpack.c.h.b16 %v2873
    %v3258 = vunpack.c.l.b16 %v2874
    %v3259 = vunpack.c.h.b16 %v2874
    %v3260 = vunpack.c.l.b16 %v2875
    %v3261 = vunpack.c.h.b16 %v2875
    %v3262 = vunpack.c.l.b16 %v2876
    %v3263 = vunpack.c.h.b16 %v2876
    %v3264 = vunpack.c.l.b16 %v2877
    %v3265 = vunpack.c.h.b16 %v2877
    %v3266 = vunpack.c.l.b16 %v2878
    %v3267 = vunpack.c.h.b16 %v2878
    %v3268 = vunpack.c.l.b16 %v2879
    %v3269 = vunpack.c.h.b16 %v2879
    %v3270 = vunpack.c.l.b16 %v2880
    %v3271 = vunpack.c.h.b16 %v2880
    %v3272 = vunpack.c.l.b16 %v2881
    %v3273 = vunpack.c.h.b16 %v2881
    %v3274 = vunpack.c.l.b16 %v2882
    %v3275 = vunpack.c.h.b16 %v2882
    %v3276 = vunpack.c.l.b16 %v2883
    %v3277 = vunpack.c.h.b16 %v2883
    %v3278 = vunpack.c.l.b16 %v2884
    %v3279 = vunpack.c.h.b16 %v2884
    %v3280 = vunpack.c.l.b16 %v2885
    %v3281 = vunpack.c.h.b16 %v2885
    %v3282 = vpack.c.b16 %v3028, %v3026
    %v3283 = vpack.c.b16 %v3029, %v3027
    %v3284 = vpack.c.b16 %v3032, %v3030
    %v3285 = vpack.c.b16 %v3033, %v3031
    %v3286 = vpack.c.b16 %v3036, %v3034
    %v3287 = vpack.c.b16 %v3037, %v3035
    %v3288 = vpack.c.b16 %v3040, %v3038
    %v3289 = vpack.c.b16 %v3041, %v3039
    %v3290 = vpack.c.b16 %v3044, %v3042
    %v3291 = vpack.c.b16 %v3045, %v3043
    %v3292 = vpack.c.b16 %v3048, %v3046
    %v3293 = vpack.c.b16 %v3049, %v3047
    %v3294 = vpack.c.b16 %v3052, %v3050
    %v3295 = vpack.c.b16 %v3053, %v3051
    %v3296 = vpack.c.b16 %v3056, %v3054
    %v3297 = vpack.c.b16 %v3057, %v3055
    %v3298 = vpack.c.b16 %v3060, %v3058
    %v3299 = vpack.c.b16 %v3061, %v3059
    %v3300 = vpack.c.b16 %v3064, %v3062
    %v3301 = vpack.c.b16 %v3065, %v3063
    %v3302 = vpack.c.b16 %v3068, %v3066
    %v3303 = vpack.c.b16 %v3069, %v3067
    %v3304 = vpack.c.b16 %v3072, %v3070
    %v3305 = vpack.c.b16 %v3073, %v3071
    %v3306 = vpack.c.b16 %v3076, %v3074
    %v3307 = vpack.c.b16 %v3077, %v3075
    %v3308 = vpack.c.b16 %v3080, %v3078
    %v3309 = vpack.c.b16 %v3081, %v3079
    %v3310 = vpack.c.b16 %v3084, %v3082
    %v3311 = vpack.c.b16 %v3085, %v3083
    %v3312 = vpack.c.b16 %v3088, %v3086
    %v3313 = vpack.c.b16 %v3089, %v3087
    %v3314 = vpack.c.b16 %v3092, %v3090
    %v3315 = vpack.c.b16 %v3093, %v3091
    %v3316 = vpack.c.b16 %v3096, %v3094
    %v3317 = vpack.c.b16 %v3097, %v3095
    %v3318 = vpack.c.b16 %v3100, %v3098
    %v3319 = vpack.c.b16 %v3101, %v3099
    %v3320 = vpack.c.b16 %v3104, %v3102
    %v3321 = vpack.c.b16 %v3105, %v3103
    %v3322 = vpack.c.b16 %v3108, %v3106
    %v3323 = vpack.c.b16 %v3109, %v3107
    %v3324 = vpack.c.b16 %v3112, %v3110
    %v3325 = vpack.c.b16 %v3113, %v3111
    %v3326 = vpack.c.b16 %v3116, %v3114
    %v3327 = vpack.c.b16 %v3117, %v3115
    %v3328 = vpack.c.b16 %v3120, %v3118
    %v3329 = vpack.c.b16 %v3121, %v3119
    %v3330 = vpack.c.b16 %v3124, %v3122
    %v3331 = vpack.c.b16 %v3125, %v3123
    %v3332 = vpack.c.b16 %v3128, %v3126
    %v3333 = vpack.c.b16 %v3129, %v3127
    %v3334 = vpack.c.b16 %v3132, %v3130
    %v3335 = vpack.c.b16 %v3133, %v3131
    %v3336 = vpack.c.b16 %v3136, %v3134
    %v3337 = vpack.c.b16 %v3137, %v3135
    %v3338 = vpack.c.b16 %v3140, %v3138
    %v3339 = vpack.c.b16 %v3141, %v3139
    %v3340 = vpack.c.b16 %v3144, %v3142
    %v3341 = vpack.c.b16 %v3145, %v3143
    %v3342 = vpack.c.b16 %v3148, %v3146
    %v3343 = vpack.c.b16 %v3149, %v3147
    %v3344 = vpack.c.b16 %v3152, %v3150
    %v3345 = vpack.c.b16 %v3153, %v3151
    %v3346 = vpack.c.b16 %v3156, %v3154
    %v3347 = vpack.c.b16 %v3157, %v3155
    %v3348 = vpack.c.b16 %v3160, %v3158
    %v3349 = vpack.c.b16 %v3161, %v3159
    %v3350 = vpack.c.b16 %v3164, %v3162
    %v3351 = vpack.c.b16 %v3165, %v3163
    %v3352 = vpack.c.b16 %v3168, %v3166
    %v3353 = vpack.c.b16 %v3169, %v3167
    %v3354 = vpack.c.b16 %v3172, %v3170
    %v3355 = vpack.c.b16 %v3173, %v3171
    %v3356 = vpack.c.b16 %v3176, %v3174
    %v3357 = vpack.c.b16 %v3177, %v3175
    %v3358 = vpack.c.b16 %v3180, %v3178
    %v3359 = vpack.c.b16 %v3181, %v3179
    %v3360 = vpack.c.b16 %v3184, %v3182
    %v3361 = vpack.c.b16 %v3185, %v3183
    %v3362 = vpack.c.b16 %v3188, %v3186
    %v3363 = vpack.c.b16 %v3189, %v3187
    %v3364 = vpack.c.b16 %v3192, %v3190
    %v3365 = vpack.c.b16 %v3193, %v3191
    %v3366 = vpack.c.b16 %v3196, %v3194
    %v3367 = vpack.c.b16 %v3197, %v3195
    %v3368 = vpack.c.b16 %v3200, %v3198
    %v3369 = vpack.c.b16 %v3201, %v3199
    %v3370 = vpack.c.b16 %v3204, %v3202
    %v3371 = vpack.c.b16 %v3205, %v3203
    %v3372 = vpack.c.b16 %v3208, %v3206
    %v3373 = vpack.c.b16 %v3209, %v3207
    %v3374 = vpack.c.b16 %v3212, %v3210
    %v3375 = vpack.c.b16 %v3213, %v3211
    %v3376 = vpack.c.b16 %v3216, %v3214
    %v3377 = vpack.c.b16 %v3217, %v3215
    %v3378 = vpack.c.b16 %v3220, %v3218
    %v3379 = vpack.c.b16 %v3221, %v3219
    %v3380 = vpack.c.b16 %v3224, %v3222
    %v3381 = vpack.c.b16 %v3225, %v3223
    %v3382 = vpack.c.b16 %v3228, %v3226
    %v3383 = vpack.c.b16 %v3229, %v3227
    %v3384 = vpack.c.b16 %v3232, %v3230
    %v3385 = vpack.c.b16 %v3233, %v3231
    %v3386 = vpack.c.b16 %v3236, %v3234
    %v3387 = vpack.c.b16 %v3237, %v3235
    %v3388 = vpack.c.b16 %v3240, %v3238
    %v3389 = vpack.c.b16 %v3241, %v3239
    %v3390 = vpack.c.b16 %v3244, %v3242
    %v3391 = vpack.c.b16 %v3245, %v3243
    %v3392 = vpack.c.b16 %v3248, %v3246
    %v3393 = vpack.c.b16 %v3249, %v3247
    %v3394 = vpack.c.b16 %v3252, %v3250
    %v3395 = vpack.c.b16 %v3253, %v3251
    %v3396 = vpack.c.b16 %v3256, %v3254
    %v3397 = vpack.c.b16 %v3257, %v3255
    %v3398 = vpack.c.b16 %v3260, %v3258
    %v3399 = vpack.c.b16 %v3261, %v3259
    %v3400 = vpack.c.b16 %v3264, %v3262
    %v3401 = vpack.c.b16 %v3265, %v3263
    %v3402 = vpack.c.b16 %v3268, %v3266
    %v3403 = vpack.c.b16 %v3269, %v3267
    %v3404 = vpack.c.b16 %v3272, %v3270
    %v3405 = vpack.c.b16 %v3273, %v3271
    %v3406 = vpack.c.b16 %v3276, %v3274
    %v3407 = vpack.c.b16 %v3277, %v3275
    %v3408 = vpack.c.b16 %v3280, %v3278
    %v3409 = vpack.c.b16 %v3281, %v3279
    %3538 = vmatprep.subr.bf16.mxu0 %v3283
    %3539 = vmatpush1.bf16.msra.mxu0 %v3282
    %3540 = vmatprep.subr.bf16.mxu0 %v3285
    %3541 = vmatpush1.bf16.msra.mxu0 %v3284
    %3542 = vmatprep.subr.bf16.mxu0 %v3287
    %3543 = vmatpush1.bf16.msra.mxu0 %v3286
    %3544 = vmatprep.subr.bf16.mxu0 %v3289
    %3545 = vmatpush1.bf16.msra.mxu0 %v3288
    %3546 = vmatprep.subr.bf16.mxu0 %v3291
    %3547 = vmatpush1.bf16.msra.mxu0 %v3290
    %3548 = vmatprep.subr.bf16.mxu0 %v3293
    %3549 = vmatpush1.bf16.msra.mxu0 %v3292
    %3550 = vmatprep.subr.bf16.mxu0 %v3295
    %3551 = vmatpush1.bf16.msra.mxu0 %v3294
    %3552 = vmatprep.subr.bf16.mxu0 %v3297
    %3553 = vmatpush1.bf16.msra.mxu0 %v3296
    %3554 = vmatprep.subr.bf16.mxu0 %v3299
    %3555 = vmatpush1.bf16.msra.mxu0 %v3298
    %3556 = vmatprep.subr.bf16.mxu0 %v3301
    %3557 = vmatpush1.bf16.msra.mxu0 %v3300
    %3558 = vmatprep.subr.bf16.mxu0 %v3303
    %3559 = vmatpush1.bf16.msra.mxu0 %v3302
    %3560 = vmatprep.subr.bf16.mxu0 %v3305
    %3561 = vmatpush1.bf16.msra.mxu0 %v3304
    %3562 = vmatprep.subr.bf16.mxu0 %v3307
    %3563 = vmatpush1.bf16.msra.mxu0 %v3306
    %3564 = vmatprep.subr.bf16.mxu0 %v3309
    %3565 = vmatpush1.bf16.msra.mxu0 %v3308
    %3566 = vmatprep.subr.bf16.mxu0 %v3311
    %3567 = vmatpush1.bf16.msra.mxu0 %v3310
    %3568 = vmatprep.subr.bf16.mxu0 %v3313
    %3569 = vmatpush1.bf16.msra.mxu0 %v3312
    %3570 = vmatprep.mubr.bf16.mxu0 %v2631
    %3571 = vmatmul.mubr.bf16.gmra.mrb[0].mxu0 %v2630
    %v3572 = vpop.f32.mrb[0].mxu0
    %v3573 = vadd.f32 %v2891, %v3572
    %v3574 = vpop.f32.mrb[0].mxu0
    %v3575 = vadd.f32 %v2895, %v3574
    %v3576 = vpop.f32.mrb[0].mxu0
    %v3577 = vadd.f32 %v2891, %v3576
    %v3578 = vpop.f32.mrb[0].mxu0
    %v3579 = vadd.f32 %v2895, %v3578
    %3580 = vmatprep.mubr.bf16.mxu0 %v2639
    %3581 = vmatmul.mubr.bf16.gmra.mrb[0].mxu0 %v2638
    %v3582 = vpop.f32.mrb[0].mxu0
    %v3583 = vadd.f32 %v2891, %v3582
    %v3584 = vpop.f32.mrb[0].mxu0
    %v3585 = vadd.f32 %v2895, %v3584
    %v3586 = vpop.f32.mrb[0].mxu0
    %v3587 = vadd.f32 %v2891, %v3586
    %v3588 = vpop.f32.mrb[0].mxu0
    %v3589 = vadd.f32 %v2895, %v3588
    %3590 = vmatprep.mubr.bf16.mxu0 %v2647
    %3591 = vmatmul.mubr.bf16.gmra.mrb[0].mxu0 %v2646
    %v3592 = vpop.f32.mrb[0].mxu0
    %v3593 = vadd.f32 %v2891, %v3592
    %v3594 = vpop.f32.mrb[0].mxu0
    %v3595 = vadd.f32 %v2895, %v3594
    %v3596 = vpop.f32.mrb[0].mxu0
    %v3597 = vadd.f32 %v2891, %v3596
    %v3598 = vpop.f32.mrb[0].mxu0
    %v3599 = vadd.f32 %v2895, %v3598
    %3600 = vmatprep.mubr.bf16.mxu0 %v2655
    %3601 = vmatmul.mubr.bf16.gmra.mrb[0].mxu0 %v2654
    %v3602 = vpop.f32.mrb[0].mxu0
    %v3603 = vadd.f32 %v2891, %v3602
    %v3604 = vpop.f32.mrb[0].mxu0
    %v3605 = vadd.f32 %v2895, %v3604
    %v3606 = vpop.f32.mrb[0].mxu0
    %v3607 = vadd.f32 %v2891, %v3606
    %v3608 = vpop.f32.mrb[0].mxu0
    %v3609 = vadd.f32 %v2895, %v3608
    %3610 = vmatprep.mubr.bf16.mxu0 %v2663
    %3611 = vmatmul.mubr.bf16.gmra.mrb[0].mxu0 %v2662
    %v3612 = vpop.f32.mrb[0].mxu0
    %v3613 = vadd.f32 %v2891, %v3612
    %v3614 = vpop.f32.mrb[0].mxu0
    %v3615 = vadd.f32 %v2895, %v3614
    %v3616 = vpop.f32.mrb[0].mxu0
    %v3617 = vadd.f32 %v2891, %v3616
    %v3618 = vpop.f32.mrb[0].mxu0
    %v3619 = vadd.f32 %v2895, %v3618
    %3620 = vmatprep.mubr.bf16.mxu0 %v2671
    %3621 = vmatmul.mubr.bf16.gmra.mrb[0].mxu0 %v2670
    %v3622 = vpop.f32.mrb[0].mxu0
    %v3623 = vadd.f32 %v2891, %v3622
    %v3624 = vpop.f32.mrb[0].mxu0
    %v3625 = vadd.f32 %v2895, %v3624
    %v3626 = vpop.f32.mrb[0].mxu0
    %v3627 = vadd.f32 %v2891, %v3626
    %v3628 = vpop.f32.mrb[0].mxu0
    %v3629 = vadd.f32 %v2895, %v3628
    %3630 = vmatprep.mubr.bf16.mxu0 %v2679
    %3631 = vmatmul.mubr.bf16.gmra.mrb[0].mxu0 %v2678
    %v3632 = vpop.f32.mrb[0].mxu0
    %v3633 = vadd.f32 %v2891, %v3632
    %v3634 = vpop.f32.mrb[0].mxu0
    %v3635 = vadd.f32 %v2895, %v3634
    %v3636 = vpop.f32.mrb[0].mxu0
    %v3637 = vadd.f32 %v2891, %v3636
    %v3638 = vpop.f32.mrb[0].mxu0
    %v3639 = vadd.f32 %v2895, %v3638
    %3640 = vmatprep.mubr.bf16.mxu0 %v2687
    %3641 = vmatmul.mubr.bf16.gmra.mrb[0].mxu0 %v2686
    %v3642 = vpop.f32.mrb[0].mxu0
    %v3643 = vadd.f32 %v2891, %v3642
    %v3644 = vpop.f32.mrb[0].mxu0
    %v3645 = vadd.f32 %v2895, %v3644
    %v3646 = vpop.f32.mrb[0].mxu0
    %v3647 = vadd.f32 %v2891, %v3646
    %v3648 = vpop.f32.mrb[0].mxu0
    %v3649 = vadd.f32 %v2895, %v3648
    %3650 = vmatprep.mubr.bf16.mxu0 %v2695
    %3651 = vmatmul.mubr.bf16.gmra.mrb[0].mxu0 %v2694
    %v3652 = vpop.f32.mrb[0].mxu0
    %v3653 = vadd.f32 %v2891, %v3652
    %v3654 = vpop.f32.mrb[0].mxu0
    %v3655 = vadd.f32 %v2895, %v3654
    %v3656 = vpop.f32.mrb[0].mxu0
    %v3657 = vadd.f32 %v2891, %v3656
    %v3658 = vpop.f32.mrb[0].mxu0
    %v3659 = vadd.f32 %v2895, %v3658
    %3660 = vmatprep.mubr.bf16.mxu0 %v2703
    %3661 = vmatmul.mubr.bf16.gmra.mrb[0].mxu0 %v2702
    %v3662 = vpop.f32.mrb[0].mxu0
    %v3663 = vadd.f32 %v2891, %v3662
    %v3664 = vpop.f32.mrb[0].mxu0
    %v3665 = vadd.f32 %v2895, %v3664
    %v3666 = vpop.f32.mrb[0].mxu0
    %v3667 = vadd.f32 %v2891, %v3666
    %v3668 = vpop.f32.mrb[0].mxu0
    %v3669 = vadd.f32 %v2895, %v3668
    %3670 = vmatprep.mubr.bf16.mxu0 %v2711
    %3671 = vmatmul.mubr.bf16.gmra.mrb[0].mxu0 %v2710
    %v3672 = vpop.f32.mrb[0].mxu0
    %v3673 = vadd.f32 %v2891, %v3672
    %v3674 = vpop.f32.mrb[0].mxu0
    %v3675 = vadd.f32 %v2895, %v3674
    %v3676 = vpop.f32.mrb[0].mxu0
    %v3677 = vadd.f32 %v2891, %v3676
    %v3678 = vpop.f32.mrb[0].mxu0
    %v3679 = vadd.f32 %v2895, %v3678
    %3680 = vmatprep.mubr.bf16.mxu0 %v2719
    %3681 = vmatmul.mubr.bf16.gmra.mrb[0].mxu0 %v2718
    %v3682 = vpop.f32.mrb[0].mxu0
    %v3683 = vadd.f32 %v2891, %v3682
    %v3684 = vpop.f32.mrb[0].mxu0
    %v3685 = vadd.f32 %v2895, %v3684
    %v3686 = vpop.f32.mrb[0].mxu0
    %v3687 = vadd.f32 %v2891, %v3686
    %v3688 = vpop.f32.mrb[0].mxu0
    %v3689 = vadd.f32 %v2895, %v3688
    %3690 = vmatprep.mubr.bf16.mxu0 %v2727
    %3691 = vmatmul.mubr.bf16.gmra.mrb[0].mxu0 %v2726
    %v3692 = vpop.f32.mrb[0].mxu0
    %v3693 = vadd.f32 %v2891, %v3692
    %v3694 = vpop.f32.mrb[0].mxu0
    %v3695 = vadd.f32 %v2895, %v3694
    %v3696 = vpop.f32.mrb[0].mxu0
    %v3697 = vadd.f32 %v2891, %v3696
    %v3698 = vpop.f32.mrb[0].mxu0
    %v3699 = vadd.f32 %v2895, %v3698
    %3700 = vmatprep.mubr.bf16.mxu0 %v2735
    %3701 = vmatmul.mubr.bf16.gmra.mrb[0].mxu0 %v2734
    %v3702 = vpop.f32.mrb[0].mxu0
    %v3703 = vadd.f32 %v2891, %v3702
    %v3704 = vpop.f32.mrb[0].mxu0
    %v3705 = vadd.f32 %v2895, %v3704
    %v3706 = vpop.f32.mrb[0].mxu0
    %v3707 = vadd.f32 %v2891, %v3706
    %v3708 = vpop.f32.mrb[0].mxu0
    %v3709 = vadd.f32 %v2895, %v3708
    %3710 = vmatprep.mubr.bf16.mxu0 %v2743
    %3711 = vmatmul.mubr.bf16.gmra.mrb[0].mxu0 %v2742
    %v3712 = vpop.f32.mrb[0].mxu0
    %v3713 = vadd.f32 %v2891, %v3712
    %v3714 = vpop.f32.mrb[0].mxu0
    %v3715 = vadd.f32 %v2895, %v3714
    %v3716 = vpop.f32.mrb[0].mxu0
    %v3717 = vadd.f32 %v2891, %v3716
    %v3718 = vpop.f32.mrb[0].mxu0
    %v3719 = vadd.f32 %v2895, %v3718
    %3720 = vmatprep.mubr.bf16.mxu0 %v2751
    %3721 = vmatmul.mubr.bf16.gmra.mrb[0].mxu0 %v2750
    %v3722 = vpop.f32.mrb[0].mxu0
    %v3723 = vadd.f32 %v2891, %v3722
    %v3724 = vpop.f32.mrb[0].mxu0
    %v3725 = vadd.f32 %v2895, %v3724
    %v3726 = vpop.f32.mrb[0].mxu0
    %v3727 = vadd.f32 %v2891, %v3726
    %v3728 = vpop.f32.mrb[0].mxu0
    %v3729 = vadd.f32 %v2895, %v3728
    %3730 = vdwg.mxu0
    %3731 = vmatprep.subr.bf16.mxu0 %v3315
    %3732 = vmatpush1.bf16.msra.mxu0 %v3314
    %3733 = vmatprep.subr.bf16.mxu0 %v3317
    %3734 = vmatpush1.bf16.msra.mxu0 %v3316
    %3735 = vmatprep.subr.bf16.mxu0 %v3319
    %3736 = vmatpush1.bf16.msra.mxu0 %v3318
    %3737 = vmatprep.subr.bf16.mxu0 %v3321
    %3738 = vmatpush1.bf16.msra.mxu0 %v3320
    %3739 = vmatprep.subr.bf16.mxu0 %v3323
    %3740 = vmatpush1.bf16.msra.mxu0 %v3322
    %3741 = vmatprep.subr.bf16.mxu0 %v3325
    %3742 = vmatpush1.bf16.msra.mxu0 %v3324
    %3743 = vmatprep.subr.bf16.mxu0 %v3327
    %3744 = vmatpush1.bf16.msra.mxu0 %v3326
    %3745 = vmatprep.subr.bf16.mxu0 %v3329
    %3746 = vmatpush1.bf16.msra.mxu0 %v3328
    %3747 = vmatprep.subr.bf16.mxu0 %v3331
    %3748 = vmatpush1.bf16.msra.mxu0 %v3330
    %3749 = vmatprep.subr.bf16.mxu0 %v3333
    %3750 = vmatpush1.bf16.msra.mxu0 %v3332
    %3751 = vmatprep.subr.bf16.mxu0 %v3335
    %3752 = vmatpush1.bf16.msra.mxu0 %v3334
    %3753 = vmatprep.subr.bf16.mxu0 %v3337
    %3754 = vmatpush1.bf16.msra.mxu0 %v3336
    %3755 = vmatprep.subr.bf16.mxu0 %v3339
    %3756 = vmatpush1.bf16.msra.mxu0 %v3338
    %3757 = vmatprep.subr.bf16.mxu0 %v3341
    %3758 = vmatpush1.bf16.msra.mxu0 %v3340
    %3759 = vmatprep.subr.bf16.mxu0 %v3343
    %3760 = vmatpush1.bf16.msra.mxu0 %v3342
    %3761 = vmatprep.subr.bf16.mxu0 %v3345
    %3762 = vmatpush1.bf16.msra.mxu0 %v3344
    %3763 = vmatprep.mubr.bf16.mxu0 %v2633
    %3764 = vmatmul.mubr.bf16.gmra.mrb[0].mxu0 %v2632
    %v3765 = vpop.f32.mrb[0].mxu0
    %v3766 = vadd.f32 %v3573, %v3765
    %v3767 = vpop.f32.mrb[0].mxu0
    %v3768 = vadd.f32 %v3575, %v3767
    %v3769 = vpop.f32.mrb[0].mxu0
    %v3770 = vadd.f32 %v3577, %v3769
    %v3771 = vpop.f32.mrb[0].mxu0
    %v3772 = vadd.f32 %v3579, %v3771
    %3773 = vmatprep.mubr.bf16.mxu0 %v2641
    %3774 = vmatmul.mubr.bf16.gmra.mrb[0].mxu0 %v2640
    %v3775 = vpop.f32.mrb[0].mxu0
    %v3776 = vadd.f32 %v3583, %v3775
    %v3777 = vpop.f32.mrb[0].mxu0
    %v3778 = vadd.f32 %v3585, %v3777
    %v3779 = vpop.f32.mrb[0].mxu0
    %v3780 = vadd.f32 %v3587, %v3779
    %v3781 = vpop.f32.mrb[0].mxu0
    %v3782 = vadd.f32 %v3589, %v3781
    %3783 = vmatprep.mubr.bf16.mxu0 %v2649
    %3784 = vmatmul.mubr.bf16.gmra.mrb[0].mxu0 %v2648
    %v3785 = vpop.f32.mrb[0].mxu0
    %v3786 = vadd.f32 %v3593, %v3785
    %v3787 = vpop.f32.mrb[0].mxu0
    %v3788 = vadd.f32 %v3595, %v3787
    %v3789 = vpop.f32.mrb[0].mxu0
    %v3790 = vadd.f32 %v3597, %v3789
    %v3791 = vpop.f32.mrb[0].mxu0
    %v3792 = vadd.f32 %v3599, %v3791
    %3793 = vmatprep.mubr.bf16.mxu0 %v2657
    %3794 = vmatmul.mubr.bf16.gmra.mrb[0].mxu0 %v2656
    %v3795 = vpop.f32.mrb[0].mxu0
    %v3796 = vadd.f32 %v3603, %v3795
    %v3797 = vpop.f32.mrb[0].mxu0
    %v3798 = vadd.f32 %v3605, %v3797
    %v3799 = vpop.f32.mrb[0].mxu0
    %v3800 = vadd.f32 %v3607, %v3799
    %v3801 = vpop.f32.mrb[0].mxu0
    %v3802 = vadd.f32 %v3609, %v3801
    %3803 = vmatprep.mubr.bf16.mxu0 %v2665
    %3804 = vmatmul.mubr.bf16.gmra.mrb[0].mxu0 %v2664
    %v3805 = vpop.f32.mrb[0].mxu0
    %v3806 = vadd.f32 %v3613, %v3805
    %v3807 = vpop.f32.mrb[0].mxu0
    %v3808 = vadd.f32 %v3615, %v3807
    %v3809 = vpop.f32.mrb[0].mxu0
    %v3810 = vadd.f32 %v3617, %v3809
    %v3811 = vpop.f32.mrb[0].mxu0
    %v3812 = vadd.f32 %v3619, %v3811
    %3813 = vmatprep.mubr.bf16.mxu0 %v2673
    %3814 = vmatmul.mubr.bf16.gmra.mrb[0].mxu0 %v2672
    %v3815 = vpop.f32.mrb[0].mxu0
    %v3816 = vadd.f32 %v3623, %v3815
    %v3817 = vpop.f32.mrb[0].mxu0
    %v3818 = vadd.f32 %v3625, %v3817
    %v3819 = vpop.f32.mrb[0].mxu0
    %v3820 = vadd.f32 %v3627, %v3819
    %v3821 = vpop.f32.mrb[0].mxu0
    %v3822 = vadd.f32 %v3629, %v3821
    %3823 = vmatprep.mubr.bf16.mxu0 %v2681
    %3824 = vmatmul.mubr.bf16.gmra.mrb[0].mxu0 %v2680
    %v3825 = vpop.f32.mrb[0].mxu0
    %v3826 = vadd.f32 %v3633, %v3825
    %v3827 = vpop.f32.mrb[0].mxu0
    %v3828 = vadd.f32 %v3635, %v3827
    %v3829 = vpop.f32.mrb[0].mxu0
    %v3830 = vadd.f32 %v3637, %v3829
    %v3831 = vpop.f32.mrb[0].mxu0
    %v3832 = vadd.f32 %v3639, %v3831
    %3833 = vmatprep.mubr.bf16.mxu0 %v2689
    %3834 = vmatmul.mubr.bf16.gmra.mrb[0].mxu0 %v2688
    %v3835 = vpop.f32.mrb[0].mxu0
    %v3836 = vadd.f32 %v3643, %v3835
    %v3837 = vpop.f32.mrb[0].mxu0
    %v3838 = vadd.f32 %v3645, %v3837
    %v3839 = vpop.f32.mrb[0].mxu0
    %v3840 = vadd.f32 %v3647, %v3839
    %v3841 = vpop.f32.mrb[0].mxu0
    %v3842 = vadd.f32 %v3649, %v3841
    %3843 = vmatprep.mubr.bf16.mxu0 %v2697
    %3844 = vmatmul.mubr.bf16.gmra.mrb[0].mxu0 %v2696
    %v3845 = vpop.f32.mrb[0].mxu0
    %v3846 = vadd.f32 %v3653, %v3845
    %v3847 = vpop.f32.mrb[0].mxu0
    %v3848 = vadd.f32 %v3655, %v3847
    %v3849 = vpop.f32.mrb[0].mxu0
    %v3850 = vadd.f32 %v3657, %v3849
    %v3851 = vpop.f32.mrb[0].mxu0
    %v3852 = vadd.f32 %v3659, %v3851
    %3853 = vmatprep.mubr.bf16.mxu0 %v2705
    %3854 = vmatmul.mubr.bf16.gmra.mrb[0].mxu0 %v2704
    %v3855 = vpop.f32.mrb[0].mxu0
    %v3856 = vadd.f32 %v3663, %v3855
    %v3857 = vpop.f32.mrb[0].mxu0
    %v3858 = vadd.f32 %v3665, %v3857
    %v3859 = vpop.f32.mrb[0].mxu0
    %v3860 = vadd.f32 %v3667, %v3859
    %v3861 = vpop.f32.mrb[0].mxu0
    %v3862 = vadd.f32 %v3669, %v3861
    %3863 = vmatprep.mubr.bf16.mxu0 %v2713
    %3864 = vmatmul.mubr.bf16.gmra.mrb[0].mxu0 %v2712
    %v3865 = vpop.f32.mrb[0].mxu0
    %v3866 = vadd.f32 %v3673, %v3865
    %v3867 = vpop.f32.mrb[0].mxu0
    %v3868 = vadd.f32 %v3675, %v3867
    %v3869 = vpop.f32.mrb[0].mxu0
    %v3870 = vadd.f32 %v3677, %v3869
    %v3871 = vpop.f32.mrb[0].mxu0
    %v3872 = vadd.f32 %v3679, %v3871
    %3873 = vmatprep.mubr.bf16.mxu0 %v2721
    %3874 = vmatmul.mubr.bf16.gmra.mrb[0].mxu0 %v2720
    %v3875 = vpop.f32.mrb[0].mxu0
    %v3876 = vadd.f32 %v3683, %v3875
    %v3877 = vpop.f32.mrb[0].mxu0
    %v3878 = vadd.f32 %v3685, %v3877
    %v3879 = vpop.f32.mrb[0].mxu0
    %v3880 = vadd.f32 %v3687, %v3879
    %v3881 = vpop.f32.mrb[0].mxu0
    %v3882 = vadd.f32 %v3689, %v3881
    %3883 = vmatprep.mubr.bf16.mxu0 %v2729
    %3884 = vmatmul.mubr.bf16.gmra.mrb[0].mxu0 %v2728
    %v3885 = vpop.f32.mrb[0].mxu0
    %v3886 = vadd.f32 %v3693, %v3885
    %v3887 = vpop.f32.mrb[0].mxu0
    %v3888 = vadd.f32 %v3695, %v3887
    %v3889 = vpop.f32.mrb[0].mxu0
    %v3890 = vadd.f32 %v3697, %v3889
    %v3891 = vpop.f32.mrb[0].mxu0
    %v3892 = vadd.f32 %v3699, %v3891
    %3893 = vmatprep.mubr.bf16.mxu0 %v2737
    %3894 = vmatmul.mubr.bf16.gmra.mrb[0].mxu0 %v2736
    %v3895 = vpop.f32.mrb[0].mxu0
    %v3896 = vadd.f32 %v3703, %v3895
    %v3897 = vpop.f32.mrb[0].mxu0
    %v3898 = vadd.f32 %v3705, %v3897
    %v3899 = vpop.f32.mrb[0].mxu0
    %v3900 = vadd.f32 %v3707, %v3899
    %v3901 = vpop.f32.mrb[0].mxu0
    %v3902 = vadd.f32 %v3709, %v3901
    %3903 = vmatprep.mubr.bf16.mxu0 %v2745
    %3904 = vmatmul.mubr.bf16.gmra.mrb[0].mxu0 %v2744
    %v3905 = vpop.f32.mrb[0].mxu0
    %v3906 = vadd.f32 %v3713, %v3905
    %v3907 = vpop.f32.mrb[0].mxu0
    %v3908 = vadd.f32 %v3715, %v3907
    %v3909 = vpop.f32.mrb[0].mxu0
    %v3910 = vadd.f32 %v3717, %v3909
    %v3911 = vpop.f32.mrb[0].mxu0
    %v3912 = vadd.f32 %v3719, %v3911
    %3913 = vmatprep.mubr.bf16.mxu0 %v2753
    %3914 = vmatmul.mubr.bf16.gmra.mrb[0].mxu0 %v2752
    %v3915 = vpop.f32.mrb[0].mxu0
    %v3916 = vadd.f32 %v3723, %v3915
    %v3917 = vpop.f32.mrb[0].mxu0
    %v3918 = vadd.f32 %v3725, %v3917
    %v3919 = vpop.f32.mrb[0].mxu0
    %v3920 = vadd.f32 %v3727, %v3919
    %v3921 = vpop.f32.mrb[0].mxu0
    %v3922 = vadd.f32 %v3729, %v3921
    %3923 = vdwg.mxu0
    %3924 = vmatprep.subr.bf16.mxu0 %v3347
    %3925 = vmatpush1.bf16.msra.mxu0 %v3346
    %3926 = vmatprep.subr.bf16.mxu0 %v3349
    %3927 = vmatpush1.bf16.msra.mxu0 %v3348
    %3928 = vmatprep.subr.bf16.mxu0 %v3351
    %3929 = vmatpush1.bf16.msra.mxu0 %v3350
    %3930 = vmatprep.subr.bf16.mxu0 %v3353
    %3931 = vmatpush1.bf16.msra.mxu0 %v3352
    %3932 = vmatprep.subr.bf16.mxu0 %v3355
    %3933 = vmatpush1.bf16.msra.mxu0 %v3354
    %3934 = vmatprep.subr.bf16.mxu0 %v3357
    %3935 = vmatpush1.bf16.msra.mxu0 %v3356
    %3936 = vmatprep.subr.bf16.mxu0 %v3359
    %3937 = vmatpush1.bf16.msra.mxu0 %v3358
    %3938 = vmatprep.subr.bf16.mxu0 %v3361
    %3939 = vmatpush1.bf16.msra.mxu0 %v3360
    %3940 = vmatprep.subr.bf16.mxu0 %v3363
    %3941 = vmatpush1.bf16.msra.mxu0 %v3362
    %3942 = vmatprep.subr.bf16.mxu0 %v3365
    %3943 = vmatpush1.bf16.msra.mxu0 %v3364
    %3944 = vmatprep.subr.bf16.mxu0 %v3367
    %3945 = vmatpush1.bf16.msra.mxu0 %v3366
    %3946 = vmatprep.subr.bf16.mxu0 %v3369
    %3947 = vmatpush1.bf16.msra.mxu0 %v3368
    %3948 = vmatprep.subr.bf16.mxu0 %v3371
    %3949 = vmatpush1.bf16.msra.mxu0 %v3370
    %3950 = vmatprep.subr.bf16.mxu0 %v3373
    %3951 = vmatpush1.bf16.msra.mxu0 %v3372
    %3952 = vmatprep.subr.bf16.mxu0 %v3375
    %3953 = vmatpush1.bf16.msra.mxu0 %v3374
    %3954 = vmatprep.subr.bf16.mxu0 %v3377
    %3955 = vmatpush1.bf16.msra.mxu0 %v3376
    %3956 = vmatprep.mubr.bf16.mxu0 %v2635
    %3957 = vmatmul.mubr.bf16.gmra.mrb[0].mxu0 %v2634
    %v3958 = vpop.f32.mrb[0].mxu0
    %v3959 = vadd.f32 %v3766, %v3958
    %v3960 = vpop.f32.mrb[0].mxu0
    %v3961 = vadd.f32 %v3768, %v3960
    %v3962 = vpop.f32.mrb[0].mxu0
    %v3963 = vadd.f32 %v3770, %v3962
    %v3964 = vpop.f32.mrb[0].mxu0
    %v3965 = vadd.f32 %v3772, %v3964
    %3966 = vmatprep.mubr.bf16.mxu0 %v2643
    %3967 = vmatmul.mubr.bf16.gmra.mrb[0].mxu0 %v2642
    %v3968 = vpop.f32.mrb[0].mxu0
    %v3969 = vadd.f32 %v3776, %v3968
    %v3970 = vpop.f32.mrb[0].mxu0
    %v3971 = vadd.f32 %v3778, %v3970
    %v3972 = vpop.f32.mrb[0].mxu0
    %v3973 = vadd.f32 %v3780, %v3972
    %v3974 = vpop.f32.mrb[0].mxu0
    %v3975 = vadd.f32 %v3782, %v3974
    %3976 = vmatprep.mubr.bf16.mxu0 %v2651
    %3977 = vmatmul.mubr.bf16.gmra.mrb[0].mxu0 %v2650
    %v3978 = vpop.f32.mrb[0].mxu0
    %v3979 = vadd.f32 %v3786, %v3978
    %v3980 = vpop.f32.mrb[0].mxu0
    %v3981 = vadd.f32 %v3788, %v3980
    %v3982 = vpop.f32.mrb[0].mxu0
    %v3983 = vadd.f32 %v3790, %v3982
    %v3984 = vpop.f32.mrb[0].mxu0
    %v3985 = vadd.f32 %v3792, %v3984
    %3986 = vmatprep.mubr.bf16.mxu0 %v2659
    %3987 = vmatmul.mubr.bf16.gmra.mrb[0].mxu0 %v2658
    %v3988 = vpop.f32.mrb[0].mxu0
    %v3989 = vadd.f32 %v3796, %v3988
    %v3990 = vpop.f32.mrb[0].mxu0
    %v3991 = vadd.f32 %v3798, %v3990
    %v3992 = vpop.f32.mrb[0].mxu0
    %v3993 = vadd.f32 %v3800, %v3992
    %v3994 = vpop.f32.mrb[0].mxu0
    %v3995 = vadd.f32 %v3802, %v3994
    %3996 = vmatprep.mubr.bf16.mxu0 %v2667
    %3997 = vmatmul.mubr.bf16.gmra.mrb[0].mxu0 %v2666
    %v3998 = vpop.f32.mrb[0].mxu0
    %v3999 = vadd.f32 %v3806, %v3998
    %v4000 = vpop.f32.mrb[0].mxu0
    %v4001 = vadd.f32 %v3808, %v4000
    %v4002 = vpop.f32.mrb[0].mxu0
    %v4003 = vadd.f32 %v3810, %v4002
    %v4004 = vpop.f32.mrb[0].mxu0
    %v4005 = vadd.f32 %v3812, %v4004
    %4006 = vmatprep.mubr.bf16.mxu0 %v2675
    %4007 = vmatmul.mubr.bf16.gmra.mrb[0].mxu0 %v2674
    %v4008 = vpop.f32.mrb[0].mxu0
    %v4009 = vadd.f32 %v3816, %v4008
    %v4010 = vpop.f32.mrb[0].mxu0
    %v4011 = vadd.f32 %v3818, %v4010
    %v4012 = vpop.f32.mrb[0].mxu0
    %v4013 = vadd.f32 %v3820, %v4012
    %v4014 = vpop.f32.mrb[0].mxu0
    %v4015 = vadd.f32 %v3822, %v4014
    %4016 = vmatprep.mubr.bf16.mxu0 %v2683
    %4017 = vmatmul.mubr.bf16.gmra.mrb[0].mxu0 %v2682
    %v4018 = vpop.f32.mrb[0].mxu0
    %v4019 = vadd.f32 %v3826, %v4018
    %v4020 = vpop.f32.mrb[0].mxu0
    %v4021 = vadd.f32 %v3828, %v4020
    %v4022 = vpop.f32.mrb[0].mxu0
    %v4023 = vadd.f32 %v3830, %v4022
    %v4024 = vpop.f32.mrb[0].mxu0
    %v4025 = vadd.f32 %v3832, %v4024
    %4026 = vmatprep.mubr.bf16.mxu0 %v2691
    %4027 = vmatmul.mubr.bf16.gmra.mrb[0].mxu0 %v2690
    %v4028 = vpop.f32.mrb[0].mxu0
    %v4029 = vadd.f32 %v3836, %v4028
    %v4030 = vpop.f32.mrb[0].mxu0
    %v4031 = vadd.f32 %v3838, %v4030
    %v4032 = vpop.f32.mrb[0].mxu0
    %v4033 = vadd.f32 %v3840, %v4032
    %v4034 = vpop.f32.mrb[0].mxu0
    %v4035 = vadd.f32 %v3842, %v4034
    %4036 = vmatprep.mubr.bf16.mxu0 %v2699
    %4037 = vmatmul.mubr.bf16.gmra.mrb[0].mxu0 %v2698
    %v4038 = vpop.f32.mrb[0].mxu0
    %v4039 = vadd.f32 %v3846, %v4038
    %v4040 = vpop.f32.mrb[0].mxu0
    %v4041 = vadd.f32 %v3848, %v4040
    %v4042 = vpop.f32.mrb[0].mxu0
    %v4043 = vadd.f32 %v3850, %v4042
    %v4044 = vpop.f32.mrb[0].mxu0
    %v4045 = vadd.f32 %v3852, %v4044
    %4046 = vmatprep.mubr.bf16.mxu0 %v2707
    %4047 = vmatmul.mubr.bf16.gmra.mrb[0].mxu0 %v2706
    %v4048 = vpop.f32.mrb[0].mxu0
    %v4049 = vadd.f32 %v3856, %v4048
    %v4050 = vpop.f32.mrb[0].mxu0
    %v4051 = vadd.f32 %v3858, %v4050
    %v4052 = vpop.f32.mrb[0].mxu0
    %v4053 = vadd.f32 %v3860, %v4052
    %v4054 = vpop.f32.mrb[0].mxu0
    %v4055 = vadd.f32 %v3862, %v4054
    %4056 = vmatprep.mubr.bf16.mxu0 %v2715
    %4057 = vmatmul.mubr.bf16.gmra.mrb[0].mxu0 %v2714
    %v4058 = vpop.f32.mrb[0].mxu0
    %v4059 = vadd.f32 %v3866, %v4058
    %v4060 = vpop.f32.mrb[0].mxu0
    %v4061 = vadd.f32 %v3868, %v4060
    %v4062 = vpop.f32.mrb[0].mxu0
    %v4063 = vadd.f32 %v3870, %v4062
    %v4064 = vpop.f32.mrb[0].mxu0
    %v4065 = vadd.f32 %v3872, %v4064
    %4066 = vmatprep.mubr.bf16.mxu0 %v2723
    %4067 = vmatmul.mubr.bf16.gmra.mrb[0].mxu0 %v2722
    %v4068 = vpop.f32.mrb[0].mxu0
    %v4069 = vadd.f32 %v3876, %v4068
    %v4070 = vpop.f32.mrb[0].mxu0
    %v4071 = vadd.f32 %v3878, %v4070
    %v4072 = vpop.f32.mrb[0].mxu0
    %v4073 = vadd.f32 %v3880, %v4072
    %v4074 = vpop.f32.mrb[0].mxu0
    %v4075 = vadd.f32 %v3882, %v4074
    %4076 = vmatprep.mubr.bf16.mxu0 %v2731
    %4077 = vmatmul.mubr.bf16.gmra.mrb[0].mxu0 %v2730
    %v4078 = vpop.f32.mrb[0].mxu0
    %v4079 = vadd.f32 %v3886, %v4078
    %v4080 = vpop.f32.mrb[0].mxu0
    %v4081 = vadd.f32 %v3888, %v4080
    %v4082 = vpop.f32.mrb[0].mxu0
    %v4083 = vadd.f32 %v3890, %v4082
    %v4084 = vpop.f32.mrb[0].mxu0
    %v4085 = vadd.f32 %v3892, %v4084
    %4086 = vmatprep.mubr.bf16.mxu0 %v2739
    %4087 = vmatmul.mubr.bf16.gmra.mrb[0].mxu0 %v2738
    %v4088 = vpop.f32.mrb[0].mxu0
    %v4089 = vadd.f32 %v3896, %v4088
    %v4090 = vpop.f32.mrb[0].mxu0
    %v4091 = vadd.f32 %v3898, %v4090
    %v4092 = vpop.f32.mrb[0].mxu0
    %v4093 = vadd.f32 %v3900, %v4092
    %v4094 = vpop.f32.mrb[0].mxu0
    %v4095 = vadd.f32 %v3902, %v4094
    %4096 = vmatprep.mubr.bf16.mxu0 %v2747
    %4097 = vmatmul.mubr.bf16.gmra.mrb[0].mxu0 %v2746
    %v4098 = vpop.f32.mrb[0].mxu0
    %v4099 = vadd.f32 %v3906, %v4098
    %v4100 = vpop.f32.mrb[0].mxu0
    %v4101 = vadd.f32 %v3908, %v4100
    %v4102 = vpop.f32.mrb[0].mxu0
    %v4103 = vadd.f32 %v3910, %v4102
    %v4104 = vpop.f32.mrb[0].mxu0
    %v4105 = vadd.f32 %v3912, %v4104
    %4106 = vmatprep.mubr.bf16.mxu0 %v2755
    %4107 = vmatmul.mubr.bf16.gmra.mrb[0].mxu0 %v2754
    %v4108 = vpop.f32.mrb[0].mxu0
    %v4109 = vadd.f32 %v3916, %v4108
    %v4110 = vpop.f32.mrb[0].mxu0
    %v4111 = vadd.f32 %v3918, %v4110
    %v4112 = vpop.f32.mrb[0].mxu0
    %v4113 = vadd.f32 %v3920, %v4112
    %v4114 = vpop.f32.mrb[0].mxu0
    %v4115 = vadd.f32 %v3922, %v4114
    %4116 = vdwg.mxu0
    %4117 = vmatprep.subr.bf16.mxu0 %v3379
    %4118 = vmatpush1.bf16.msra.mxu0 %v3378
    %4119 = vmatprep.subr.bf16.mxu0 %v3381
    %4120 = vmatpush1.bf16.msra.mxu0 %v3380
    %4121 = vmatprep.subr.bf16.mxu0 %v3383
    %4122 = vmatpush1.bf16.msra.mxu0 %v3382
    %4123 = vmatprep.subr.bf16.mxu0 %v3385
    %4124 = vmatpush1.bf16.msra.mxu0 %v3384
    %4125 = vmatprep.subr.bf16.mxu0 %v3387
    %4126 = vmatpush1.bf16.msra.mxu0 %v3386
    %4127 = vmatprep.subr.bf16.mxu0 %v3389
    %4128 = vmatpush1.bf16.msra.mxu0 %v3388
    %4129 = vmatprep.subr.bf16.mxu0 %v3391
    %4130 = vmatpush1.bf16.msra.mxu0 %v3390
    %4131 = vmatprep.subr.bf16.mxu0 %v3393
    %4132 = vmatpush1.bf16.msra.mxu0 %v3392
    %4133 = vmatprep.subr.bf16.mxu0 %v3395
    %4134 = vmatpush1.bf16.msra.mxu0 %v3394
    %4135 = vmatprep.subr.bf16.mxu0 %v3397
    %4136 = vmatpush1.bf16.msra.mxu0 %v3396
    %4137 = vmatprep.subr.bf16.mxu0 %v3399
    %4138 = vmatpush1.bf16.msra.mxu0 %v3398
    %4139 = vmatprep.subr.bf16.mxu0 %v3401
    %4140 = vmatpush1.bf16.msra.mxu0 %v3400
    %4141 = vmatprep.subr.bf16.mxu0 %v3403
    %4142 = vmatpush1.bf16.msra.mxu0 %v3402
    %4143 = vmatprep.subr.bf16.mxu0 %v3405
    %4144 = vmatpush1.bf16.msra.mxu0 %v3404
    %4145 = vmatprep.subr.bf16.mxu0 %v3407
    %4146 = vmatpush1.bf16.msra.mxu0 %v3406
    %4147 = vmatprep.subr.bf16.mxu0 %v3409
    %4148 = vmatpush1.bf16.msra.mxu0 %v3408
    %4149 = vmatprep.mubr.bf16.mxu0 %v2637
    %4150 = vmatmul.mubr.bf16.gmra.mrb[0].mxu0 %v2636
    %v4151 = vpop.f32.mrb[0].mxu0
    %v4152 = vadd.f32 %v3959, %v4151
    %v4153 = vpop.f32.mrb[0].mxu0
    %v4154 = vadd.f32 %v3961, %v4153
    %v4155 = vpop.f32.mrb[0].mxu0
    %v4156 = vadd.f32 %v3963, %v4155
    %v4157 = vpop.f32.mrb[0].mxu0
    %v4158 = vadd.f32 %v3965, %v4157
    %4159 = vmatprep.mubr.bf16.mxu0 %v2645
    %4160 = vmatmul.mubr.bf16.gmra.mrb[0].mxu0 %v2644
    %v4161 = vpop.f32.mrb[0].mxu0
    %v4162 = vadd.f32 %v3969, %v4161
    %v4163 = vpop.f32.mrb[0].mxu0
    %v4164 = vadd.f32 %v3971, %v4163
    %v4165 = vpop.f32.mrb[0].mxu0
    %v4166 = vadd.f32 %v3973, %v4165
    %v4167 = vpop.f32.mrb[0].mxu0
    %v4168 = vadd.f32 %v3975, %v4167
    %4169 = vmatprep.mubr.bf16.mxu0 %v2653
    %4170 = vmatmul.mubr.bf16.gmra.mrb[0].mxu0 %v2652
    %v4171 = vpop.f32.mrb[0].mxu0
    %v4172 = vadd.f32 %v3979, %v4171
    %v4173 = vpop.f32.mrb[0].mxu0
    %v4174 = vadd.f32 %v3981, %v4173
    %v4175 = vpop.f32.mrb[0].mxu0
    %v4176 = vadd.f32 %v3983, %v4175
    %v4177 = vpop.f32.mrb[0].mxu0
    %v4178 = vadd.f32 %v3985, %v4177
    %4179 = vmatprep.mubr.bf16.mxu0 %v2661
    %4180 = vmatmul.mubr.bf16.gmra.mrb[0].mxu0 %v2660
    %v4181 = vpop.f32.mrb[0].mxu0
    %v4182 = vadd.f32 %v3989, %v4181
    %v4183 = vpop.f32.mrb[0].mxu0
    %v4184 = vadd.f32 %v3991, %v4183
    %v4185 = vpop.f32.mrb[0].mxu0
    %v4186 = vadd.f32 %v3993, %v4185
    %v4187 = vpop.f32.mrb[0].mxu0
    %v4188 = vadd.f32 %v3995, %v4187
    %4189 = vmatprep.mubr.bf16.mxu0 %v2669
    %4190 = vmatmul.mubr.bf16.gmra.mrb[0].mxu0 %v2668
    %v4191 = vpop.f32.mrb[0].mxu0
    %v4192 = vadd.f32 %v3999, %v4191
    %v4193 = vpop.f32.mrb[0].mxu0
    %v4194 = vadd.f32 %v4001, %v4193
    %v4195 = vpop.f32.mrb[0].mxu0
    %v4196 = vadd.f32 %v4003, %v4195
    %v4197 = vpop.f32.mrb[0].mxu0
    %v4198 = vadd.f32 %v4005, %v4197
    %4199 = vmatprep.mubr.bf16.mxu0 %v2677
    %4200 = vmatmul.mubr.bf16.gmra.mrb[0].mxu0 %v2676
    %v4201 = vpop.f32.mrb[0].mxu0
    %v4202 = vadd.f32 %v4009, %v4201
    %v4203 = vpop.f32.mrb[0].mxu0
    %v4204 = vadd.f32 %v4011, %v4203
    %v4205 = vpop.f32.mrb[0].mxu0
    %v4206 = vadd.f32 %v4013, %v4205
    %v4207 = vpop.f32.mrb[0].mxu0
    %v4208 = vadd.f32 %v4015, %v4207
    %4209 = vmatprep.mubr.bf16.mxu0 %v2685
    %4210 = vmatmul.mubr.bf16.gmra.mrb[0].mxu0 %v2684
    %v4211 = vpop.f32.mrb[0].mxu0
    %v4212 = vadd.f32 %v4019, %v4211
    %v4213 = vpop.f32.mrb[0].mxu0
    %v4214 = vadd.f32 %v4021, %v4213
    %v4215 = vpop.f32.mrb[0].mxu0
    %v4216 = vadd.f32 %v4023, %v4215
    %v4217 = vpop.f32.mrb[0].mxu0
    %v4218 = vadd.f32 %v4025, %v4217
    %4219 = vmatprep.mubr.bf16.mxu0 %v2693
    %4220 = vmatmul.mubr.bf16.gmra.mrb[0].mxu0 %v2692
    %v4221 = vpop.f32.mrb[0].mxu0
    %v4222 = vadd.f32 %v4029, %v4221
    %v4223 = vpop.f32.mrb[0].mxu0
    %v4224 = vadd.f32 %v4031, %v4223
    %v4225 = vpop.f32.mrb[0].mxu0
    %v4226 = vadd.f32 %v4033, %v4225
    %v4227 = vpop.f32.mrb[0].mxu0
    %v4228 = vadd.f32 %v4035, %v4227
    %4229 = vmatprep.mubr.bf16.mxu0 %v2701
    %4230 = vmatmul.mubr.bf16.gmra.mrb[0].mxu0 %v2700
    %v4231 = vpop.f32.mrb[0].mxu0
    %v4232 = vadd.f32 %v4039, %v4231
    %v4233 = vpop.f32.mrb[0].mxu0
    %v4234 = vadd.f32 %v4041, %v4233
    %v4235 = vpop.f32.mrb[0].mxu0
    %v4236 = vadd.f32 %v4043, %v4235
    %v4237 = vpop.f32.mrb[0].mxu0
    %v4238 = vadd.f32 %v4045, %v4237
    %4239 = vmatprep.mubr.bf16.mxu0 %v2709
    %4240 = vmatmul.mubr.bf16.gmra.mrb[0].mxu0 %v2708
    %v4241 = vpop.f32.mrb[0].mxu0
    %v4242 = vadd.f32 %v4049, %v4241
    %v4243 = vpop.f32.mrb[0].mxu0
    %v4244 = vadd.f32 %v4051, %v4243
    %v4245 = vpop.f32.mrb[0].mxu0
    %v4246 = vadd.f32 %v4053, %v4245
    %v4247 = vpop.f32.mrb[0].mxu0
    %v4248 = vadd.f32 %v4055, %v4247
    %4249 = vmatprep.mubr.bf16.mxu0 %v2717
    %4250 = vmatmul.mubr.bf16.gmra.mrb[0].mxu0 %v2716
    %v4251 = vpop.f32.mrb[0].mxu0
    %v4252 = vadd.f32 %v4059, %v4251
    %v4253 = vpop.f32.mrb[0].mxu0
    %v4254 = vadd.f32 %v4061, %v4253
    %v4255 = vpop.f32.mrb[0].mxu0
    %v4256 = vadd.f32 %v4063, %v4255
    %v4257 = vpop.f32.mrb[0].mxu0
    %v4258 = vadd.f32 %v4065, %v4257
    %4259 = vmatprep.mubr.bf16.mxu0 %v2725
    %4260 = vmatmul.mubr.bf16.gmra.mrb[0].mxu0 %v2724
    %v4261 = vpop.f32.mrb[0].mxu0
    %v4262 = vadd.f32 %v4069, %v4261
    %v4263 = vpop.f32.mrb[0].mxu0
    %v4264 = vadd.f32 %v4071, %v4263
    %v4265 = vpop.f32.mrb[0].mxu0
    %v4266 = vadd.f32 %v4073, %v4265
    %v4267 = vpop.f32.mrb[0].mxu0
    %v4268 = vadd.f32 %v4075, %v4267
    %4269 = vmatprep.mubr.bf16.mxu0 %v2733
    %4270 = vmatmul.mubr.bf16.gmra.mrb[0].mxu0 %v2732
    %v4271 = vpop.f32.mrb[0].mxu0
    %v4272 = vadd.f32 %v4079, %v4271
    %v4273 = vpop.f32.mrb[0].mxu0
    %v4274 = vadd.f32 %v4081, %v4273
    %v4275 = vpop.f32.mrb[0].mxu0
    %v4276 = vadd.f32 %v4083, %v4275
    %v4277 = vpop.f32.mrb[0].mxu0
    %v4278 = vadd.f32 %v4085, %v4277
    %4279 = vmatprep.mubr.bf16.mxu0 %v2741
    %4280 = vmatmul.mubr.bf16.gmra.mrb[0].mxu0 %v2740
    %v4281 = vpop.f32.mrb[0].mxu0
    %v4282 = vadd.f32 %v4089, %v4281
    %v4283 = vpop.f32.mrb[0].mxu0
    %v4284 = vadd.f32 %v4091, %v4283
    %v4285 = vpop.f32.mrb[0].mxu0
    %v4286 = vadd.f32 %v4093, %v4285
    %v4287 = vpop.f32.mrb[0].mxu0
    %v4288 = vadd.f32 %v4095, %v4287
    %4289 = vmatprep.mubr.bf16.mxu0 %v2749
    %4290 = vmatmul.mubr.bf16.gmra.mrb[0].mxu0 %v2748
    %v4291 = vpop.f32.mrb[0].mxu0
    %v4292 = vadd.f32 %v4099, %v4291
    %v4293 = vpop.f32.mrb[0].mxu0
    %v4294 = vadd.f32 %v4101, %v4293
    %v4295 = vpop.f32.mrb[0].mxu0
    %v4296 = vadd.f32 %v4103, %v4295
    %v4297 = vpop.f32.mrb[0].mxu0
    %v4298 = vadd.f32 %v4105, %v4297
    %4299 = vmatprep.mubr.bf16.mxu0 %v2757
    %4300 = vmatmul.mubr.bf16.gmra.mrb[0].mxu0 %v2756
    %v4301 = vpop.f32.mrb[0].mxu0
    %v4302 = vadd.f32 %v4109, %v4301
    %v4303 = vpop.f32.mrb[0].mxu0
    %v4304 = vadd.f32 %v4111, %v4303
    %v4305 = vpop.f32.mrb[0].mxu0
    %v4306 = vadd.f32 %v4113, %v4305
    %v4307 = vpop.f32.mrb[0].mxu0
    %v4308 = vadd.f32 %v4115, %v4307
    %4309 = vdwg.mxu0
    %v4310 = vmax.f32 %v4152, 0.0
    %v4311 = vmax.f32 %v4154, 0.0
    %v4312 = vmax.f32 %v4156, 0.0
    %v4313 = vmax.f32 %v4158, 0.0
    %v4314 = vmax.f32 %v4162, 0.0
    %v4315 = vmax.f32 %v4164, 0.0
    %v4316 = vmax.f32 %v4166, 0.0
    %v4317 = vmax.f32 %v4168, 0.0
    %v4318 = vmax.f32 %v4172, 0.0
    %v4319 = vmax.f32 %v4174, 0.0
    %v4320 = vmax.f32 %v4176, 0.0
    %v4321 = vmax.f32 %v4178, 0.0
    %v4322 = vmax.f32 %v4182, 0.0
    %v4323 = vmax.f32 %v4184, 0.0
    %v4324 = vmax.f32 %v4186, 0.0
    %v4325 = vmax.f32 %v4188, 0.0
    %v4326 = vmax.f32 %v4192, 0.0
    %v4327 = vmax.f32 %v4194, 0.0
    %v4328 = vmax.f32 %v4196, 0.0
    %v4329 = vmax.f32 %v4198, 0.0
    %v4330 = vmax.f32 %v4202, 0.0
    %v4331 = vmax.f32 %v4204, 0.0
    %v4332 = vmax.f32 %v4206, 0.0
    %v4333 = vmax.f32 %v4208, 0.0
    %v4334 = vmax.f32 %v4212, 0.0
    %v4335 = vmax.f32 %v4214, 0.0
    %v4336 = vmax.f32 %v4216, 0.0
    %v4337 = vmax.f32 %v4218, 0.0
    %v4338 = vmax.f32 %v4222, 0.0
    %v4339 = vmax.f32 %v4224, 0.0
    %v4340 = vmax.f32 %v4226, 0.0
    %v4341 = vmax.f32 %v4228, 0.0
    %v4342 = vmax.f32 %v4232, 0.0
    %v4343 = vmax.f32 %v4234, 0.0
    %v4344 = vmax.f32 %v4236, 0.0
    %v4345 = vmax.f32 %v4238, 0.0
    %v4346 = vmax.f32 %v4242, 0.0
    %v4347 = vmax.f32 %v4244, 0.0
    %v4348 = vmax.f32 %v4246, 0.0
    %v4349 = vmax.f32 %v4248, 0.0
    %v4350 = vmax.f32 %v4252, 0.0
    %v4351 = vmax.f32 %v4254, 0.0
    %v4352 = vmax.f32 %v4256, 0.0
    %v4353 = vmax.f32 %v4258, 0.0
    %v4354 = vmax.f32 %v4262, 0.0
    %v4355 = vmax.f32 %v4264, 0.0
    %v4356 = vmax.f32 %v4266, 0.0
    %v4357 = vmax.f32 %v4268, 0.0
    %v4358 = vmax.f32 %v4272, 0.0
    %v4359 = vmax.f32 %v4274, 0.0
    %v4360 = vmax.f32 %v4276, 0.0
    %v4361 = vmax.f32 %v4278, 0.0
    %v4362 = vmax.f32 %v4282, 0.0
    %v4363 = vmax.f32 %v4284, 0.0
    %v4364 = vmax.f32 %v4286, 0.0
    %v4365 = vmax.f32 %v4288, 0.0
    %v4366 = vmax.f32 %v4292, 0.0
    %v4367 = vmax.f32 %v4294, 0.0
    %v4368 = vmax.f32 %v4296, 0.0
    %v4369 = vmax.f32 %v4298, 0.0
    %v4370 = vmax.f32 %v4302, 0.0
    %v4371 = vmax.f32 %v4304, 0.0
    %v4372 = vmax.f32 %v4306, 0.0
    %v4373 = vmax.f32 %v4308, 0.0
    %v4374 = vpack.c.bf16 %v4312, %v4310
    %v4375 = vpack.c.bf16 %v4313, %v4311
    %v4376 = vpack.c.bf16 %v4316, %v4314
    %v4377 = vpack.c.bf16 %v4317, %v4315
    %v4378 = vpack.c.bf16 %v4320, %v4318
    %v4379 = vpack.c.bf16 %v4321, %v4319
    %v4380 = vpack.c.bf16 %v4324, %v4322
    %v4381 = vpack.c.bf16 %v4325, %v4323
    %v4382 = vpack.c.bf16 %v4328, %v4326
    %v4383 = vpack.c.bf16 %v4329, %v4327
    %v4384 = vpack.c.bf16 %v4332, %v4330
    %v4385 = vpack.c.bf16 %v4333, %v4331
    %v4386 = vpack.c.bf16 %v4336, %v4334
    %v4387 = vpack.c.bf16 %v4337, %v4335
    %v4388 = vpack.c.bf16 %v4340, %v4338
    %v4389 = vpack.c.bf16 %v4341, %v4339
    %v4390 = vpack.c.bf16 %v4344, %v4342
    %v4391 = vpack.c.bf16 %v4345, %v4343
    %v4392 = vpack.c.bf16 %v4348, %v4346
    %v4393 = vpack.c.bf16 %v4349, %v4347
    %v4394 = vpack.c.bf16 %v4352, %v4350
    %v4395 = vpack.c.bf16 %v4353, %v4351
    %v4396 = vpack.c.bf16 %v4356, %v4354
    %v4397 = vpack.c.bf16 %v4357, %v4355
    %v4398 = vpack.c.bf16 %v4360, %v4358
    %v4399 = vpack.c.bf16 %v4361, %v4359
    %v4400 = vpack.c.bf16 %v4364, %v4362
    %v4401 = vpack.c.bf16 %v4365, %v4363
    %v4402 = vpack.c.bf16 %v4368, %v4366
    %v4403 = vpack.c.bf16 %v4369, %v4367
    %v4404 = vpack.c.bf16 %v4372, %v4370
    %v4405 = vpack.c.bf16 %v4373, %v4371
    %v4406 = vld [vmem:[%s9] sm:$0xf]
    %v4407 = vld [vmem:[%s9 + $0x4] sm:$0xf]
    %v4408 = vld [vmem:[%s9 + $0x8] sm:$0xf]
    %v4409 = vld [vmem:[%s9 + $0xc] sm:$0xf]
    %v4410 = vld [vmem:[%s9 + $0x10] sm:$0xf]
    %v4411 = vld [vmem:[%s9 + $0x14] sm:$0xf]
    %v4412 = vld [vmem:[%s9 + $0x18] sm:$0xf]
    %v4413 = vld [vmem:[%s9 + $0x1c] sm:$0xf]
    %v4414 = vld [vmem:[%s9 + $0x20] sm:$0xf]
    %v4415 = vld [vmem:[%s9 + $0x24] sm:$0xf]
    %v4416 = vld [vmem:[%s9 + $0x28] sm:$0xf]
    %v4417 = vld [vmem:[%s9 + $0x2c] sm:$0xf]
    %v4418 = vld [vmem:[%s9 + $0x30] sm:$0xf]
    %v4419 = vld [vmem:[%s9 + $0x34] sm:$0xf]
    %v4420 = vld [vmem:[%s9 + $0x38] sm:$0xf]
    %v4421 = vld [vmem:[%s9 + $0x3c] sm:$0xf]
    %v4422 = vld [vmem:[%s9 + $0x40] sm:$0xf]
    %v4423 = vld [vmem:[%s9 + $0x44] sm:$0xf]
    %v4424 = vld [vmem:[%s9 + $0x48] sm:$0xf]
    %v4425 = vld [vmem:[%s9 + $0x4c] sm:$0xf]
    %v4426 = vld [vmem:[%s9 + $0x50] sm:$0xf]
    %v4427 = vld [vmem:[%s9 + $0x54] sm:$0xf]
    %v4428 = vld [vmem:[%s9 + $0x58] sm:$0xf]
    %v4429 = vld [vmem:[%s9 + $0x5c] sm:$0xf]
    %v4430 = vld [vmem:[%s9 + $0x60] sm:$0xf]
    %v4431 = vld [vmem:[%s9 + $0x64] sm:$0xf]
    %v4432 = vld [vmem:[%s9 + $0x68] sm:$0xf]
    %v4433 = vld [vmem:[%s9 + $0x6c] sm:$0xf]
    %v4434 = vld [vmem:[%s9 + $0x70] sm:$0xf]
    %v4435 = vld [vmem:[%s9 + $0x74] sm:$0xf]
    %v4436 = vld [vmem:[%s9 + $0x78] sm:$0xf]
    %v4437 = vld [vmem:[%s9 + $0x7c] sm:$0xf]
    %v4438 = vld [vmem:[%s10] sm:$0x1]
    %v4440 = vlaneseq
    %v4441 = vshrl.u32 %v4440, 7
    %v4442 = vsub.s32 0, %v4441
    %v4443 = vrot.slane %v4438, %v4442
    %v4477 = vunpack.c.l.b16 %v4406
    %v4478 = vunpack.c.l.b16 %v4407
    %v4479 = vunpack.c.l.b16 %v4408
    %v4480 = vunpack.c.l.b16 %v4409
    %v4481 = vunpack.c.l.b16 %v4410
    %v4482 = vunpack.c.l.b16 %v4411
    %v4483 = vunpack.c.l.b16 %v4412
    %v4484 = vunpack.c.l.b16 %v4413
    %v4485 = vunpack.c.l.b16 %v4414
    %v4486 = vunpack.c.l.b16 %v4415
    %v4487 = vunpack.c.l.b16 %v4416
    %v4488 = vunpack.c.l.b16 %v4417
    %v4489 = vunpack.c.l.b16 %v4418
    %v4490 = vunpack.c.l.b16 %v4419
    %v4491 = vunpack.c.l.b16 %v4420
    %v4492 = vunpack.c.l.b16 %v4421
    %v4493 = vunpack.c.l.b16 %v4422
    %v4494 = vunpack.c.l.b16 %v4423
    %v4495 = vunpack.c.l.b16 %v4424
    %v4496 = vunpack.c.l.b16 %v4425
    %v4497 = vunpack.c.l.b16 %v4426
    %v4498 = vunpack.c.l.b16 %v4427
    %v4499 = vunpack.c.l.b16 %v4428
    %v4500 = vunpack.c.l.b16 %v4429
    %v4501 = vunpack.c.l.b16 %v4430
    %v4502 = vunpack.c.l.b16 %v4431
    %v4503 = vunpack.c.l.b16 %v4432
    %v4504 = vunpack.c.l.b16 %v4433
    %v4505 = vunpack.c.l.b16 %v4434
    %v4506 = vunpack.c.l.b16 %v4435
    %v4507 = vunpack.c.l.b16 %v4436
    %v4508 = vunpack.c.l.b16 %v4437
    %v4509 = vpack.c.b16 %v4478, %v4477
    %v4510 = vpack.c.b16 %v4480, %v4479
    %v4511 = vpack.c.b16 %v4482, %v4481
    %v4512 = vpack.c.b16 %v4484, %v4483
    %v4513 = vpack.c.b16 %v4486, %v4485
    %v4514 = vpack.c.b16 %v4488, %v4487
    %v4515 = vpack.c.b16 %v4490, %v4489
    %v4516 = vpack.c.b16 %v4492, %v4491
    %v4517 = vpack.c.b16 %v4494, %v4493
    %v4518 = vpack.c.b16 %v4496, %v4495
    %v4519 = vpack.c.b16 %v4498, %v4497
    %v4520 = vpack.c.b16 %v4500, %v4499
    %v4521 = vpack.c.b16 %v4502, %v4501
    %v4522 = vpack.c.b16 %v4504, %v4503
    %v4523 = vpack.c.b16 %v4506, %v4505
    %v4524 = vpack.c.b16 %v4508, %v4507
    %4541 = vmatprep.subr.bf16.mxu0 0
    %4542 = vmatpush1.bf16.msra.mxu0 %v4509
    %4543 = vmatprep.subr.bf16.mxu0 0
    %4544 = vmatpush1.bf16.msra.mxu0 %v4510
    %4545 = vmatprep.subr.bf16.mxu0 0
    %4546 = vmatpush1.bf16.msra.mxu0 %v4511
    %4547 = vmatprep.subr.bf16.mxu0 0
    %4548 = vmatpush1.bf16.msra.mxu0 %v4512
    %4549 = vmatprep.subr.bf16.mxu0 0
    %4550 = vmatpush1.bf16.msra.mxu0 %v4513
    %4551 = vmatprep.subr.bf16.mxu0 0
    %4552 = vmatpush1.bf16.msra.mxu0 %v4514
    %4553 = vmatprep.subr.bf16.mxu0 0
    %4554 = vmatpush1.bf16.msra.mxu0 %v4515
    %4555 = vmatprep.subr.bf16.mxu0 0
    %4556 = vmatpush1.bf16.msra.mxu0 %v4516
    %4557 = vmatprep.subr.bf16.mxu0 0
    %4558 = vmatpush1.bf16.msra.mxu0 %v4517
    %4559 = vmatprep.subr.bf16.mxu0 0
    %4560 = vmatpush1.bf16.msra.mxu0 %v4518
    %4561 = vmatprep.subr.bf16.mxu0 0
    %4562 = vmatpush1.bf16.msra.mxu0 %v4519
    %4563 = vmatprep.subr.bf16.mxu0 0
    %4564 = vmatpush1.bf16.msra.mxu0 %v4520
    %4565 = vmatprep.subr.bf16.mxu0 0
    %4566 = vmatpush1.bf16.msra.mxu0 %v4521
    %4567 = vmatprep.subr.bf16.mxu0 0
    %4568 = vmatpush1.bf16.msra.mxu0 %v4522
    %4569 = vmatprep.subr.bf16.mxu0 0
    %4570 = vmatpush1.bf16.msra.mxu0 %v4523
    %4571 = vmatprep.subr.bf16.mxu0 0
    %4572 = vmatpush1.bf16.msra.mxu0 %v4524
    %4573 = vmatprep.mubr.bf16.mxu0 %v4375
    %4574 = vmatmul.mubr.bf16.gmra.mrb[0].mxu0 %v4374
    %v4575 = vpop.f32.mrb[0].mxu0
    %v4576 = vadd.f32 %v4443, %v4575
    %v4577 = vpop.f32.mrb[0].mxu0
    %v4578 = vpop.f32.mrb[0].mxu0
    %v4579 = vadd.f32 %v4443, %v4578
    %v4580 = vpop.f32.mrb[0].mxu0
    %4581 = vmatprep.mubr.bf16.mxu0 %v4377
    %4582 = vmatmul.mubr.bf16.gmra.mrb[0].mxu0 %v4376
    %v4583 = vpop.f32.mrb[0].mxu0
    %v4584 = vadd.f32 %v4443, %v4583
    %v4585 = vpop.f32.mrb[0].mxu0
    %v4586 = vpop.f32.mrb[0].mxu0
    %v4587 = vadd.f32 %v4443, %v4586
    %v4588 = vpop.f32.mrb[0].mxu0
    %4589 = vmatprep.mubr.bf16.mxu0 %v4379
    %4590 = vmatmul.mubr.bf16.gmra.mrb[0].mxu0 %v4378
    %v4591 = vpop.f32.mrb[0].mxu0
    %v4592 = vadd.f32 %v4443, %v4591
    %v4593 = vpop.f32.mrb[0].mxu0
    %v4594 = vpop.f32.mrb[0].mxu0
    %v4595 = vadd.f32 %v4443, %v4594
    %v4596 = vpop.f32.mrb[0].mxu0
    %4597 = vmatprep.mubr.bf16.mxu0 %v4381
    %4598 = vmatmul.mubr.bf16.gmra.mrb[0].mxu0 %v4380
    %v4599 = vpop.f32.mrb[0].mxu0
    %v4600 = vadd.f32 %v4443, %v4599
    %v4601 = vpop.f32.mrb[0].mxu0
    %v4602 = vpop.f32.mrb[0].mxu0
    %v4603 = vadd.f32 %v4443, %v4602
    %v4604 = vpop.f32.mrb[0].mxu0
    %4605 = vmatprep.mubr.bf16.mxu0 %v4383
    %4606 = vmatmul.mubr.bf16.gmra.mrb[0].mxu0 %v4382
    %v4607 = vpop.f32.mrb[0].mxu0
    %v4608 = vadd.f32 %v4443, %v4607
    %v4609 = vpop.f32.mrb[0].mxu0
    %v4610 = vpop.f32.mrb[0].mxu0
    %v4611 = vadd.f32 %v4443, %v4610
    %v4612 = vpop.f32.mrb[0].mxu0
    %4613 = vmatprep.mubr.bf16.mxu0 %v4385
    %4614 = vmatmul.mubr.bf16.gmra.mrb[0].mxu0 %v4384
    %v4615 = vpop.f32.mrb[0].mxu0
    %v4616 = vadd.f32 %v4443, %v4615
    %v4617 = vpop.f32.mrb[0].mxu0
    %v4618 = vpop.f32.mrb[0].mxu0
    %v4619 = vadd.f32 %v4443, %v4618
    %v4620 = vpop.f32.mrb[0].mxu0
    %4621 = vmatprep.mubr.bf16.mxu0 %v4387
    %4622 = vmatmul.mubr.bf16.gmra.mrb[0].mxu0 %v4386
    %v4623 = vpop.f32.mrb[0].mxu0
    %v4624 = vadd.f32 %v4443, %v4623
    %v4625 = vpop.f32.mrb[0].mxu0
    %v4626 = vpop.f32.mrb[0].mxu0
    %v4627 = vadd.f32 %v4443, %v4626
    %v4628 = vpop.f32.mrb[0].mxu0
    %4629 = vmatprep.mubr.bf16.mxu0 %v4389
    %4630 = vmatmul.mubr.bf16.gmra.mrb[0].mxu0 %v4388
    %v4631 = vpop.f32.mrb[0].mxu0
    %v4632 = vadd.f32 %v4443, %v4631
    %v4633 = vpop.f32.mrb[0].mxu0
    %v4634 = vpop.f32.mrb[0].mxu0
    %v4635 = vadd.f32 %v4443, %v4634
    %v4636 = vpop.f32.mrb[0].mxu0
    %4637 = vmatprep.mubr.bf16.mxu0 %v4391
    %4638 = vmatmul.mubr.bf16.gmra.mrb[0].mxu0 %v4390
    %v4639 = vpop.f32.mrb[0].mxu0
    %v4640 = vadd.f32 %v4443, %v4639
    %v4641 = vpop.f32.mrb[0].mxu0
    %v4642 = vpop.f32.mrb[0].mxu0
    %v4643 = vadd.f32 %v4443, %v4642
    %v4644 = vpop.f32.mrb[0].mxu0
    %4645 = vmatprep.mubr.bf16.mxu0 %v4393
    %4646 = vmatmul.mubr.bf16.gmra.mrb[0].mxu0 %v4392
    %v4647 = vpop.f32.mrb[0].mxu0
    %v4648 = vadd.f32 %v4443, %v4647
    %v4649 = vpop.f32.mrb[0].mxu0
    %v4650 = vpop.f32.mrb[0].mxu0
    %v4651 = vadd.f32 %v4443, %v4650
    %v4652 = vpop.f32.mrb[0].mxu0
    %4653 = vmatprep.mubr.bf16.mxu0 %v4395
    %4654 = vmatmul.mubr.bf16.gmra.mrb[0].mxu0 %v4394
    %v4655 = vpop.f32.mrb[0].mxu0
    %v4656 = vadd.f32 %v4443, %v4655
    %v4657 = vpop.f32.mrb[0].mxu0
    %v4658 = vpop.f32.mrb[0].mxu0
    %v4659 = vadd.f32 %v4443, %v4658
    %v4660 = vpop.f32.mrb[0].mxu0
    %4661 = vmatprep.mubr.bf16.mxu0 %v4397
    %4662 = vmatmul.mubr.bf16.gmra.mrb[0].mxu0 %v4396
    %v4663 = vpop.f32.mrb[0].mxu0
    %v4664 = vadd.f32 %v4443, %v4663
    %v4665 = vpop.f32.mrb[0].mxu0
    %v4666 = vpop.f32.mrb[0].mxu0
    %v4667 = vadd.f32 %v4443, %v4666
    %v4668 = vpop.f32.mrb[0].mxu0
    %4669 = vmatprep.mubr.bf16.mxu0 %v4399
    %4670 = vmatmul.mubr.bf16.gmra.mrb[0].mxu0 %v4398
    %v4671 = vpop.f32.mrb[0].mxu0
    %v4672 = vadd.f32 %v4443, %v4671
    %v4673 = vpop.f32.mrb[0].mxu0
    %v4674 = vpop.f32.mrb[0].mxu0
    %v4675 = vadd.f32 %v4443, %v4674
    %v4676 = vpop.f32.mrb[0].mxu0
    %4677 = vmatprep.mubr.bf16.mxu0 %v4401
    %4678 = vmatmul.mubr.bf16.gmra.mrb[0].mxu0 %v4400
    %v4679 = vpop.f32.mrb[0].mxu0
    %v4680 = vadd.f32 %v4443, %v4679
    %v4681 = vpop.f32.mrb[0].mxu0
    %v4682 = vpop.f32.mrb[0].mxu0
    %v4683 = vadd.f32 %v4443, %v4682
    %v4684 = vpop.f32.mrb[0].mxu0
    %4685 = vmatprep.mubr.bf16.mxu0 %v4403
    %4686 = vmatmul.mubr.bf16.gmra.mrb[0].mxu0 %v4402
    %v4687 = vpop.f32.mrb[0].mxu0
    %v4688 = vadd.f32 %v4443, %v4687
    %v4689 = vpop.f32.mrb[0].mxu0
    %v4690 = vpop.f32.mrb[0].mxu0
    %v4691 = vadd.f32 %v4443, %v4690
    %v4692 = vpop.f32.mrb[0].mxu0
    %4693 = vmatprep.mubr.bf16.mxu0 %v4405
    %4694 = vmatmul.mubr.bf16.gmra.mrb[0].mxu0 %v4404
    %v4695 = vpop.f32.mrb[0].mxu0
    %v4696 = vadd.f32 %v4443, %v4695
    %v4697 = vpop.f32.mrb[0].mxu0
    %v4698 = vpop.f32.mrb[0].mxu0
    %v4699 = vadd.f32 %v4443, %v4698
    %v4700 = vpop.f32.mrb[0].mxu0
    %4701 = vdwg.mxu0
    %v4702 = vmax.f32 %v4576, 0.0
    %v4703 = vmax.f32 %v4579, 0.0
    %v4704 = vmax.f32 %v4584, 0.0
    %v4705 = vmax.f32 %v4587, 0.0
    %v4706 = vmax.f32 %v4592, 0.0
    %v4707 = vmax.f32 %v4595, 0.0
    %v4708 = vmax.f32 %v4600, 0.0
    %v4709 = vmax.f32 %v4603, 0.0
    %v4710 = vmax.f32 %v4608, 0.0
    %v4711 = vmax.f32 %v4611, 0.0
    %v4712 = vmax.f32 %v4616, 0.0
    %v4713 = vmax.f32 %v4619, 0.0
    %v4714 = vmax.f32 %v4624, 0.0
    %v4715 = vmax.f32 %v4627, 0.0
    %v4716 = vmax.f32 %v4632, 0.0
    %v4717 = vmax.f32 %v4635, 0.0
    %v4718 = vmax.f32 %v4640, 0.0
    %v4719 = vmax.f32 %v4643, 0.0
    %v4720 = vmax.f32 %v4648, 0.0
    %v4721 = vmax.f32 %v4651, 0.0
    %v4722 = vmax.f32 %v4656, 0.0
    %v4723 = vmax.f32 %v4659, 0.0
    %v4724 = vmax.f32 %v4664, 0.0
    %v4725 = vmax.f32 %v4667, 0.0
    %v4726 = vmax.f32 %v4672, 0.0
    %v4727 = vmax.f32 %v4675, 0.0
    %v4728 = vmax.f32 %v4680, 0.0
    %v4729 = vmax.f32 %v4683, 0.0
    %v4730 = vmax.f32 %v4688, 0.0
    %v4731 = vmax.f32 %v4691, 0.0
    %v4732 = vmax.f32 %v4696, 0.0
    %v4733 = vmax.f32 %v4699, 0.0
    %v4734 = vpack.c.bf16 %v4703, %v4702
    %v4735 = vpack.c.bf16 %v4705, %v4704
    %v4736 = vpack.c.bf16 %v4707, %v4706
    %v4737 = vpack.c.bf16 %v4709, %v4708
    %v4738 = vpack.c.bf16 %v4711, %v4710
    %v4739 = vpack.c.bf16 %v4713, %v4712
    %v4740 = vpack.c.bf16 %v4715, %v4714
    %v4741 = vpack.c.bf16 %v4717, %v4716
    %v4742 = vpack.c.bf16 %v4719, %v4718
    %v4743 = vpack.c.bf16 %v4721, %v4720
    %v4744 = vpack.c.bf16 %v4723, %v4722
    %v4745 = vpack.c.bf16 %v4725, %v4724
    %v4746 = vpack.c.bf16 %v4727, %v4726
    %v4747 = vpack.c.bf16 %v4729, %v4728
    %v4748 = vpack.c.bf16 %v4731, %v4730
    %v4749 = vpack.c.bf16 %v4733, %v4732
    %v4750 = vld [vmem:[%s11] sm:$0xf]
    %v4751 = vld [vmem:[%s11 + $0x4] sm:$0xf]
    %v4752 = vld [vmem:[%s11 + $0x8] sm:$0xf]
    %v4753 = vld [vmem:[%s11 + $0xc] sm:$0xf]
    %v4754 = vld [vmem:[%s11 + $0x10] sm:$0xf]
    %v4755 = vld [vmem:[%s11 + $0x14] sm:$0xf]
    %v4756 = vld [vmem:[%s11 + $0x18] sm:$0xf]
    %v4757 = vld [vmem:[%s11 + $0x1c] sm:$0xf]
    %v4758 = vld [vmem:[%s12] sm:$0x1]
    %v4760 = vlaneseq
    %v4761 = vshrl.u32 %v4760, 7
    %v4762 = vsub.s32 0, %v4761
    %v4763 = vrot.slane %v4758, %v4762
    %v4773 = vunpack.c.l.b16 %v4750
    %v4774 = vunpack.c.l.b16 %v4751
    %v4775 = vunpack.c.l.b16 %v4752
    %v4776 = vunpack.c.l.b16 %v4753
    %v4777 = vunpack.c.l.b16 %v4754
    %v4778 = vunpack.c.l.b16 %v4755
    %v4779 = vunpack.c.l.b16 %v4756
    %v4780 = vunpack.c.l.b16 %v4757
    %v4781 = vpack.c.b16 %v4774, %v4773
    %v4782 = vpack.c.b16 %v4776, %v4775
    %v4783 = vpack.c.b16 %v4778, %v4777
    %v4784 = vpack.c.b16 %v4780, %v4779
    %v4790 = vsel %vm454, %v4734, 0
    %v4793 = vsel %vm454, %v4735, 0
    %v4796 = vsel %vm454, %v4736, 0
    %v4799 = vsel %vm454, %v4737, 0
    %v4802 = vsel %vm454, %v4738, 0
    %v4805 = vsel %vm454, %v4739, 0
    %v4808 = vsel %vm454, %v4740, 0
    %v4811 = vsel %vm454, %v4741, 0
    %v4814 = vsel %vm454, %v4742, 0
    %v4817 = vsel %vm454, %v4743, 0
    %v4820 = vsel %vm454, %v4744, 0
    %v4823 = vsel %vm454, %v4745, 0
    %v4826 = vsel %vm454, %v4746, 0
    %v4829 = vsel %vm454, %v4747, 0
    %v4832 = vsel %vm454, %v4748, 0
    %v4835 = vsel %vm454, %v4749, 0
    %4837 = vmatprep.subr.bf16.mxu0 0
    %4838 = vmatpush1.bf16.msra.mxu0 %v4781
    %4839 = vmatprep.subr.bf16.mxu0 0
    %4840 = vmatpush1.bf16.msra.mxu0 %v4782
    %4841 = vmatprep.subr.bf16.mxu0 0
    %4842 = vmatpush1.bf16.msra.mxu0 %v4783
    %4843 = vmatprep.subr.bf16.mxu0 0
    %4844 = vmatpush1.bf16.msra.mxu0 %v4784
    %4845 = vmatprep.subr.bf16.mxu0 0
    %4846 = vmatpush1.bf16.msra.mxu0 0
    %4847 = vmatprep.subr.bf16.mxu0 0
    %4848 = vmatpush1.bf16.msra.mxu0 0
    %4849 = vmatprep.subr.bf16.mxu0 0
    %4850 = vmatpush1.bf16.msra.mxu0 0
    %4851 = vmatprep.subr.bf16.mxu0 0
    %4852 = vmatpush1.bf16.msra.mxu0 0
    %4853 = vmatprep.subr.bf16.mxu0 0
    %4854 = vmatpush1.bf16.msra.mxu0 0
    %4855 = vmatprep.subr.bf16.mxu0 0
    %4856 = vmatpush1.bf16.msra.mxu0 0
    %4857 = vmatprep.subr.bf16.mxu0 0
    %4858 = vmatpush1.bf16.msra.mxu0 0
    %4859 = vmatprep.subr.bf16.mxu0 0
    %4860 = vmatpush1.bf16.msra.mxu0 0
    %4861 = vmatprep.subr.bf16.mxu0 0
    %4862 = vmatpush1.bf16.msra.mxu0 0
    %4863 = vmatprep.subr.bf16.mxu0 0
    %4864 = vmatpush1.bf16.msra.mxu0 0
    %4865 = vmatprep.subr.bf16.mxu0 0
    %4866 = vmatpush1.bf16.msra.mxu0 0
    %4867 = vmatprep.subr.bf16.mxu0 0
    %4868 = vmatpush1.bf16.msra.mxu0 0
    %4869 = vmatprep.mubr.bf16.mxu0 0
    %4870 = vmatmul.mubr.bf16.gmra.mrb[0].mxu0 %v4790
    %v4871 = vpop.f32.mrb[0].mxu0
    %v4872 = vadd.f32 %v4763, %v4871
    %v4873 = vpop.f32.mrb[0].mxu0
    %v4874 = vpop.f32.mrb[0].mxu0
    %v4875 = vadd.f32 %v4763, %v4874
    %v4876 = vpop.f32.mrb[0].mxu0
    %4877 = vmatprep.mubr.bf16.mxu0 0
    %4878 = vmatmul.mubr.bf16.gmra.mrb[0].mxu0 %v4793
    %v4879 = vpop.f32.mrb[0].mxu0
    %v4880 = vadd.f32 %v4763, %v4879
    %v4881 = vpop.f32.mrb[0].mxu0
    %v4882 = vpop.f32.mrb[0].mxu0
    %v4883 = vadd.f32 %v4763, %v4882
    %v4884 = vpop.f32.mrb[0].mxu0
    %4885 = vmatprep.mubr.bf16.mxu0 0
    %4886 = vmatmul.mubr.bf16.gmra.mrb[0].mxu0 %v4796
    %v4887 = vpop.f32.mrb[0].mxu0
    %v4888 = vadd.f32 %v4763, %v4887
    %v4889 = vpop.f32.mrb[0].mxu0
    %v4890 = vpop.f32.mrb[0].mxu0
    %v4891 = vadd.f32 %v4763, %v4890
    %v4892 = vpop.f32.mrb[0].mxu0
    %4893 = vmatprep.mubr.bf16.mxu0 0
    %4894 = vmatmul.mubr.bf16.gmra.mrb[0].mxu0 %v4799
    %v4895 = vpop.f32.mrb[0].mxu0
    %v4896 = vadd.f32 %v4763, %v4895
    %v4897 = vpop.f32.mrb[0].mxu0
    %v4898 = vpop.f32.mrb[0].mxu0
    %v4899 = vadd.f32 %v4763, %v4898
    %v4900 = vpop.f32.mrb[0].mxu0
    %4901 = vmatprep.mubr.bf16.mxu0 0
    %4902 = vmatmul.mubr.bf16.gmra.mrb[0].mxu0 %v4802
    %v4903 = vpop.f32.mrb[0].mxu0
    %v4904 = vadd.f32 %v4763, %v4903
    %v4905 = vpop.f32.mrb[0].mxu0
    %v4906 = vpop.f32.mrb[0].mxu0
    %v4907 = vadd.f32 %v4763, %v4906
    %v4908 = vpop.f32.mrb[0].mxu0
    %4909 = vmatprep.mubr.bf16.mxu0 0
    %4910 = vmatmul.mubr.bf16.gmra.mrb[0].mxu0 %v4805
    %v4911 = vpop.f32.mrb[0].mxu0
    %v4912 = vadd.f32 %v4763, %v4911
    %v4913 = vpop.f32.mrb[0].mxu0
    %v4914 = vpop.f32.mrb[0].mxu0
    %v4915 = vadd.f32 %v4763, %v4914
    %v4916 = vpop.f32.mrb[0].mxu0
    %4917 = vmatprep.mubr.bf16.mxu0 0
    %4918 = vmatmul.mubr.bf16.gmra.mrb[0].mxu0 %v4808
    %v4919 = vpop.f32.mrb[0].mxu0
    %v4920 = vadd.f32 %v4763, %v4919
    %v4921 = vpop.f32.mrb[0].mxu0
    %v4922 = vpop.f32.mrb[0].mxu0
    %v4923 = vadd.f32 %v4763, %v4922
    %v4924 = vpop.f32.mrb[0].mxu0
    %4925 = vmatprep.mubr.bf16.mxu0 0
    %4926 = vmatmul.mubr.bf16.gmra.mrb[0].mxu0 %v4811
    %v4927 = vpop.f32.mrb[0].mxu0
    %v4928 = vadd.f32 %v4763, %v4927
    %v4929 = vpop.f32.mrb[0].mxu0
    %v4930 = vpop.f32.mrb[0].mxu0
    %v4931 = vadd.f32 %v4763, %v4930
    %v4932 = vpop.f32.mrb[0].mxu0
    %4933 = vmatprep.mubr.bf16.mxu0 0
    %4934 = vmatmul.mubr.bf16.gmra.mrb[0].mxu0 %v4814
    %v4935 = vpop.f32.mrb[0].mxu0
    %v4936 = vadd.f32 %v4763, %v4935
    %v4937 = vpop.f32.mrb[0].mxu0
    %v4938 = vpop.f32.mrb[0].mxu0
    %v4939 = vadd.f32 %v4763, %v4938
    %v4940 = vpop.f32.mrb[0].mxu0
    %4941 = vmatprep.mubr.bf16.mxu0 0
    %4942 = vmatmul.mubr.bf16.gmra.mrb[0].mxu0 %v4817
    %v4943 = vpop.f32.mrb[0].mxu0
    %v4944 = vadd.f32 %v4763, %v4943
    %v4945 = vpop.f32.mrb[0].mxu0
    %v4946 = vpop.f32.mrb[0].mxu0
    %v4947 = vadd.f32 %v4763, %v4946
    %v4948 = vpop.f32.mrb[0].mxu0
    %4949 = vmatprep.mubr.bf16.mxu0 0
    %4950 = vmatmul.mubr.bf16.gmra.mrb[0].mxu0 %v4820
    %v4951 = vpop.f32.mrb[0].mxu0
    %v4952 = vadd.f32 %v4763, %v4951
    %v4953 = vpop.f32.mrb[0].mxu0
    %v4954 = vpop.f32.mrb[0].mxu0
    %v4955 = vadd.f32 %v4763, %v4954
    %v4956 = vpop.f32.mrb[0].mxu0
    %4957 = vmatprep.mubr.bf16.mxu0 0
    %4958 = vmatmul.mubr.bf16.gmra.mrb[0].mxu0 %v4823
    %v4959 = vpop.f32.mrb[0].mxu0
    %v4960 = vadd.f32 %v4763, %v4959
    %v4961 = vpop.f32.mrb[0].mxu0
    %v4962 = vpop.f32.mrb[0].mxu0
    %v4963 = vadd.f32 %v4763, %v4962
    %v4964 = vpop.f32.mrb[0].mxu0
    %4965 = vmatprep.mubr.bf16.mxu0 0
    %4966 = vmatmul.mubr.bf16.gmra.mrb[0].mxu0 %v4826
    %v4967 = vpop.f32.mrb[0].mxu0
    %v4968 = vadd.f32 %v4763, %v4967
    %v4969 = vpop.f32.mrb[0].mxu0
    %v4970 = vpop.f32.mrb[0].mxu0
    %v4971 = vadd.f32 %v4763, %v4970
    %v4972 = vpop.f32.mrb[0].mxu0
    %4973 = vmatprep.mubr.bf16.mxu0 0
    %4974 = vmatmul.mubr.bf16.gmra.mrb[0].mxu0 %v4829
    %v4975 = vpop.f32.mrb[0].mxu0
    %v4976 = vadd.f32 %v4763, %v4975
    %v4977 = vpop.f32.mrb[0].mxu0
    %v4978 = vpop.f32.mrb[0].mxu0
    %v4979 = vadd.f32 %v4763, %v4978
    %v4980 = vpop.f32.mrb[0].mxu0
    %4981 = vmatprep.mubr.bf16.mxu0 0
    %4982 = vmatmul.mubr.bf16.gmra.mrb[0].mxu0 %v4832
    %v4983 = vpop.f32.mrb[0].mxu0
    %v4984 = vadd.f32 %v4763, %v4983
    %v4985 = vpop.f32.mrb[0].mxu0
    %v4986 = vpop.f32.mrb[0].mxu0
    %v4987 = vadd.f32 %v4763, %v4986
    %v4988 = vpop.f32.mrb[0].mxu0
    %4989 = vmatprep.mubr.bf16.mxu0 0
    %4990 = vmatmul.mubr.bf16.gmra.mrb[0].mxu0 %v4835
    %v4991 = vpop.f32.mrb[0].mxu0
    %v4992 = vadd.f32 %v4763, %v4991
    %v4993 = vpop.f32.mrb[0].mxu0
    %v4994 = vpop.f32.mrb[0].mxu0
    %v4995 = vadd.f32 %v4763, %v4994
    %v4996 = vpop.f32.mrb[0].mxu0
    %4997 = vdwg.mxu0
    %v4998 = vsub.f32 0.0, %v4872
    %v4999 = vsub.f32 0.0, %v4875
    %v5000 = vsub.f32 0.0, %v4880
    %v5001 = vsub.f32 0.0, %v4883
    %v5002 = vsub.f32 0.0, %v4888
    %v5003 = vsub.f32 0.0, %v4891
    %v5004 = vsub.f32 0.0, %v4896
    %v5005 = vsub.f32 0.0, %v4899
    %v5006 = vsub.f32 0.0, %v4904
    %v5007 = vsub.f32 0.0, %v4907
    %v5008 = vsub.f32 0.0, %v4912
    %v5009 = vsub.f32 0.0, %v4915
    %v5010 = vsub.f32 0.0, %v4920
    %v5011 = vsub.f32 0.0, %v4923
    %v5012 = vsub.f32 0.0, %v4928
    %v5013 = vsub.f32 0.0, %v4931
    %v5014 = vsub.f32 0.0, %v4936
    %v5015 = vsub.f32 0.0, %v4939
    %v5016 = vsub.f32 0.0, %v4944
    %v5017 = vsub.f32 0.0, %v4947
    %v5018 = vsub.f32 0.0, %v4952
    %v5019 = vsub.f32 0.0, %v4955
    %v5020 = vsub.f32 0.0, %v4960
    %v5021 = vsub.f32 0.0, %v4963
    %v5022 = vsub.f32 0.0, %v4968
    %v5023 = vsub.f32 0.0, %v4971
    %v5024 = vsub.f32 0.0, %v4976
    %v5025 = vsub.f32 0.0, %v4979
    %v5026 = vsub.f32 0.0, %v4984
    %v5027 = vsub.f32 0.0, %v4987
    %v5028 = vsub.f32 0.0, %v4992
    %v5029 = vsub.f32 0.0, %v4995
    %v5030 = vmul.f32 %v4998, 1.442695
    %v5031 = vpow.pop %v5030
    %v5032 = vmul.f32 %v4999, 1.442695
    %v5033 = vpow.pop %v5032
    %v5034 = vmul.f32 %v5000, 1.442695
    %v5035 = vpow.pop %v5034
    %v5036 = vmul.f32 %v5001, 1.442695
    %v5037 = vpow.pop %v5036
    %v5038 = vmul.f32 %v5002, 1.442695
    %v5039 = vpow.pop %v5038
    %v5040 = vmul.f32 %v5003, 1.442695
    %v5041 = vpow.pop %v5040
    %v5042 = vmul.f32 %v5004, 1.442695
    %v5043 = vpow.pop %v5042
    %v5044 = vmul.f32 %v5005, 1.442695
    %v5045 = vpow.pop %v5044
    %v5046 = vmul.f32 %v5006, 1.442695
    %v5047 = vpow.pop %v5046
    %v5048 = vmul.f32 %v5007, 1.442695
    %v5049 = vpow.pop %v5048
    %v5050 = vmul.f32 %v5008, 1.442695
    %v5051 = vpow.pop %v5050
    %v5052 = vmul.f32 %v5009, 1.442695
    %v5053 = vpow.pop %v5052
    %v5054 = vmul.f32 %v5010, 1.442695
    %v5055 = vpow.pop %v5054
    %v5056 = vmul.f32 %v5011, 1.442695
    %v5057 = vpow.pop %v5056
    %v5058 = vmul.f32 %v5012, 1.442695
    %v5059 = vpow.pop %v5058
    %v5060 = vmul.f32 %v5013, 1.442695
    %v5061 = vpow.pop %v5060
    %v5062 = vmul.f32 %v5014, 1.442695
    %v5063 = vpow.pop %v5062
    %v5064 = vmul.f32 %v5015, 1.442695
    %v5065 = vpow.pop %v5064
    %v5066 = vmul.f32 %v5016, 1.442695
    %v5067 = vpow.pop %v5066
    %v5068 = vmul.f32 %v5017, 1.442695
    %v5069 = vpow.pop %v5068
    %v5070 = vmul.f32 %v5018, 1.442695
    %v5071 = vpow.pop %v5070
    %v5072 = vmul.f32 %v5019, 1.442695
    %v5073 = vpow.pop %v5072
    %v5074 = vmul.f32 %v5020, 1.442695
    %v5075 = vpow.pop %v5074
    %v5076 = vmul.f32 %v5021, 1.442695
    %v5077 = vpow.pop %v5076
    %v5078 = vmul.f32 %v5022, 1.442695
    %v5079 = vpow.pop %v5078
    %v5080 = vmul.f32 %v5023, 1.442695
    %v5081 = vpow.pop %v5080
    %v5082 = vmul.f32 %v5024, 1.442695
    %v5083 = vpow.pop %v5082
    %v5084 = vmul.f32 %v5025, 1.442695
    %v5085 = vpow.pop %v5084
    %v5086 = vmul.f32 %v5026, 1.442695
    %v5087 = vpow.pop %v5086
    %v5088 = vmul.f32 %v5027, 1.442695
    %v5089 = vpow.pop %v5088
    %v5090 = vmul.f32 %v5028, 1.442695
    %v5091 = vpow.pop %v5090
    %v5092 = vmul.f32 %v5029, 1.442695
    %v5093 = vpow.pop %v5092
    %v5094 = vadd.f32 %v5031, 1.0
    %v5095 = vadd.f32 %v5033, 1.0
    %v5096 = vadd.f32 %v5035, 1.0
    %v5097 = vadd.f32 %v5037, 1.0
    %v5098 = vadd.f32 %v5039, 1.0
    %v5099 = vadd.f32 %v5041, 1.0
    %v5100 = vadd.f32 %v5043, 1.0
    %v5101 = vadd.f32 %v5045, 1.0
    %v5102 = vadd.f32 %v5047, 1.0
    %v5103 = vadd.f32 %v5049, 1.0
    %v5104 = vadd.f32 %v5051, 1.0
    %v5105 = vadd.f32 %v5053, 1.0
    %v5106 = vadd.f32 %v5055, 1.0
    %v5107 = vadd.f32 %v5057, 1.0
    %v5108 = vadd.f32 %v5059, 1.0
    %v5109 = vadd.f32 %v5061, 1.0
    %v5110 = vadd.f32 %v5063, 1.0
    %v5111 = vadd.f32 %v5065, 1.0
    %v5112 = vadd.f32 %v5067, 1.0
    %v5113 = vadd.f32 %v5069, 1.0
    %v5114 = vadd.f32 %v5071, 1.0
    %v5115 = vadd.f32 %v5073, 1.0
    %v5116 = vadd.f32 %v5075, 1.0
    %v5117 = vadd.f32 %v5077, 1.0
    %v5118 = vadd.f32 %v5079, 1.0
    %v5119 = vadd.f32 %v5081, 1.0
    %v5120 = vadd.f32 %v5083, 1.0
    %v5121 = vadd.f32 %v5085, 1.0
    %v5122 = vadd.f32 %v5087, 1.0
    %v5123 = vadd.f32 %v5089, 1.0
    %v5124 = vadd.f32 %v5091, 1.0
    %v5125 = vadd.f32 %v5093, 1.0
    %v5126 = vrcp.pop %v5094
    %v5127 = vrcp.pop %v5095
    %v5128 = vrcp.pop %v5096
    %v5129 = vrcp.pop %v5097
    %v5130 = vrcp.pop %v5098
    %v5131 = vrcp.pop %v5099
    %v5132 = vrcp.pop %v5100
    %v5133 = vrcp.pop %v5101
    %v5134 = vrcp.pop %v5102
    %v5135 = vrcp.pop %v5103
    %v5136 = vrcp.pop %v5104
    %v5137 = vrcp.pop %v5105
    %v5138 = vrcp.pop %v5106
    %v5139 = vrcp.pop %v5107
    %v5140 = vrcp.pop %v5108
    %v5141 = vrcp.pop %v5109
    %v5142 = vrcp.pop %v5110
    %v5143 = vrcp.pop %v5111
    %v5144 = vrcp.pop %v5112
    %v5145 = vrcp.pop %v5113
    %v5146 = vrcp.pop %v5114
    %v5147 = vrcp.pop %v5115
    %v5148 = vrcp.pop %v5116
    %v5149 = vrcp.pop %v5117
    %v5150 = vrcp.pop %v5118
    %v5151 = vrcp.pop %v5119
    %v5152 = vrcp.pop %v5120
    %v5153 = vrcp.pop %v5121
    %v5154 = vrcp.pop %v5122
    %v5155 = vrcp.pop %v5123
    %v5156 = vrcp.pop %v5124
    %v5157 = vrcp.pop %v5125
    %5158 = vst [vmem:[%s13] sm:$0xff] %v5126
    %5159 = vst [vmem:[%s13 + $0x8] sm:$0xff] %v5127
    %5160 = vst [vmem:[%s13 + $0x10] sm:$0xff] %v5128
    %5161 = vst [vmem:[%s13 + $0x18] sm:$0xff] %v5129
    %5162 = vst [vmem:[%s13 + $0x20] sm:$0xff] %v5130
    %5163 = vst [vmem:[%s13 + $0x28] sm:$0xff] %v5131
    %5164 = vst [vmem:[%s13 + $0x30] sm:$0xff] %v5132
    %5165 = vst [vmem:[%s13 + $0x38] sm:$0xff] %v5133
    %5166 = vst [vmem:[%s13 + $0x40] sm:$0xff] %v5134
    %5167 = vst [vmem:[%s13 + $0x48] sm:$0xff] %v5135
    %5168 = vst [vmem:[%s13 + $0x50] sm:$0xff] %v5136
    %5169 = vst [vmem:[%s13 + $0x58] sm:$0xff] %v5137
    %5170 = vst [vmem:[%s13 + $0x60] sm:$0xff] %v5138
    %5171 = vst [vmem:[%s13 + $0x68] sm:$0xff] %v5139
    %5172 = vst [vmem:[%s13 + $0x70] sm:$0xff] %v5140
    %5173 = vst [vmem:[%s13 + $0x78] sm:$0xff] %v5141
    %5174 = vst [vmem:[%s13 + $0x80] sm:$0xff] %v5142
    %5175 = vst [vmem:[%s13 + $0x88] sm:$0xff] %v5143
    %5176 = vst [vmem:[%s13 + $0x90] sm:$0xff] %v5144
    %5177 = vst [vmem:[%s13 + $0x98] sm:$0xff] %v5145
    %5178 = vst [vmem:[%s13 + $0xa0] sm:$0xff] %v5146
    %5179 = vst [vmem:[%s13 + $0xa8] sm:$0xff] %v5147
    %5180 = vst [vmem:[%s13 + $0xb0] sm:$0xff] %v5148
    %5181 = vst [vmem:[%s13 + $0xb8] sm:$0xff] %v5149
    %5182 = vst [vmem:[%s13 + $0xc0] sm:$0xff] %v5150
    %5183 = vst [vmem:[%s13 + $0xc8] sm:$0xff] %v5151
    %5184 = vst [vmem:[%s13 + $0xd0] sm:$0xff] %v5152
    %5185 = vst [vmem:[%s13 + $0xd8] sm:$0xff] %v5153
    %5186 = vst [vmem:[%s13 + $0xe0] sm:$0xff] %v5154
    %5187 = vst [vmem:[%s13 + $0xe8] sm:$0xff] %v5155
    %5188 = vst [vmem:[%s13 + $0xf0] sm:$0xff] %v5156
    %5189 = vst [vmem:[%s13 + $0xf8] sm:$0xff] %v5157
    // Predicated region
    $region62: #{_mnn_forward_impl.1} parent=1 // pred_check
      _
    $region63: #{_mnn_forward_impl.1} parent=1 // pred_check_branch
      %5191 = sbr.rel (0) target = $region65
    $region64: #{_mnn_forward_impl.1} parent=1 // pred_region
      _
    $region65: #{_mnn_forward_impl.1} parent=1 // pred_fallthru
      _
    // Predicated region
    $region66: #{_mnn_forward_impl.1} parent=1 // pred_check
      _
    $region67: #{_mnn_forward_impl.1} parent=1 // pred_check_branch
      %5193 = sbr.rel (0) target = $region69
    $region68: #{_mnn_forward_impl.1} parent=1 // pred_region
      _
    $region69: #{_mnn_forward_impl.1} parent=1 // pred_fallthru
      _
    %5194 = vsyncpa [#allocation3], 1
    %5195 = vsyncpa [#allocation5], 1

// kernel: _mnn_forward_impl.1
$region0: #{_mnn_forward_impl.1}
  #allocation0 [shape = 'u32[]', space=smem, size = 0x4, offset = 0x4, fixed_abs, tag = 'smem constant byte address 0x4 - core index']
  #allocation1 [shape = 'u32[144,128]{1,0:T(1,128)}', space=vmem, size = 0x12000, scoped, tag = 'internal scratch']
  %s0 = inlined_call_operand.vmem [shape: f32[256,16], index: 0, kind: input, shape index: {}]
  %s1 = inlined_call_operand.vmem [shape: bf16[16,64], index: 1, kind: input, shape index: {}]
  %s2 = inlined_call_operand.vmem [shape: f32[1,64], index: 2, kind: input, shape index: {}]
  %s3 = inlined_call_operand.vmem [shape: bf16[64,256], index: 3, kind: input, shape index: {}]
  %s4 = inlined_call_operand.vmem [shape: f32[1,256], index: 4, kind: input, shape index: {}]
  %s5 = inlined_call_operand.hbm [shape: bf16[256,1024], index: 5, kind: input, shape index: {}]
  %s6 = inlined_call_operand.vmem [shape: f32[1,1024], index: 6, kind: input, shape index: {}]
  %s7 = inlined_call_operand.hbm [shape: bf16[1024,256], index: 7, kind: input, shape index: {}]
  %s8 = inlined_call_operand.vmem [shape: f32[1,256], index: 8, kind: input, shape index: {}]
  %s9 = inlined_call_operand.vmem [shape: bf16[256,64], index: 9, kind: input, shape index: {}]
  %s10 = inlined_call_operand.vmem [shape: f32[1,64], index: 10, kind: input, shape index: {}]
  %s11 = inlined_call_operand.vmem [shape: bf16[64,128], index: 11, kind: input, shape index: {}]
  %s12 = inlined_call_operand.vmem [shape: f32[1,128], index: 12, kind: input, shape index: {}]
  %s13 = inlined_call_operand.vmem [shape: f32[256,128], index: 13, kind: output, shape index: {}]
  %s14 = sld [smem:[#allocation0]]
  $region70: #{_mnn_forward_impl.1} parent=0
    _
  %s16 = ssub.s32 1, %s14
  %s17 = scalar_select 0, %s16, %s14
  $region1: #{_mnn_forward_impl.1} parent=0
    #allocation2 [shape = 'u8[524288]{0}', space=vmem, size = 0x80000, scoped, tag = 'input window, operand 5, single buffered']
    #allocation3 [shape = 's32[1]{0}', space=sflag, size = 0x4, scoped, tag = 'scoped memory for _mnn_forward_impl.1']
    #allocation4 [shape = 'u8[524288]{0}', space=vmem, size = 0x80000, scoped, tag = 'input window, operand 7, single buffered']
    #allocation5 [shape = 's32[1]{0}', space=sflag, size = 0x4, scoped, tag = 'scoped memory for _mnn_forward_impl.1']
    %18 = vsyncpa [#allocation3], 0
    %19 = vsyncpa [#allocation5], 0
    // Predicated region
    $region2: #{_mnn_forward_impl.1} parent=1 // pred_check
      _
    $region3: #{_mnn_forward_impl.1} parent=1 // pred_check_branch
      %21 = sbr.rel (0) target = $region5
    $region4: #{_mnn_forward_impl.1} parent=1 // pred_region
      _
    $region5: #{_mnn_forward_impl.1} parent=1 // pred_fallthru
      _
    // Predicated region
    $region6: #{_mnn_forward_impl.1} parent=1 // pred_check
      _
    $region7: #{_mnn_forward_impl.1} parent=1 // pred_check_branch
      %23 = sbr.rel (0) target = $region9
    $region8: #{_mnn_forward_impl.1} parent=1 // pred_region
      _
    $region9: #{_mnn_forward_impl.1} parent=1 // pred_fallthru
      _
    // Predicated region
    $region10: #{_mnn_forward_impl.1} parent=1 // pred_check
      _
    $region11: #{_mnn_forward_impl.1} parent=1 // pred_check_branch
      %25 = sbr.rel (0) target = $region13
    $region12: #{_mnn_forward_impl.1} parent=1 // pred_region
      _
    $region13: #{_mnn_forward_impl.1} parent=1 // pred_fallthru
      _
    // Predicated region
    $region14: #{_mnn_forward_impl.1} parent=1 // pred_check
      _
    $region15: #{_mnn_forward_impl.1} parent=1 // pred_check_branch
      %27 = sbr.rel (0) target = $region17
    $region16: #{_mnn_forward_impl.1} parent=1 // pred_region
      _
    $region17: #{_mnn_forward_impl.1} parent=1 // pred_fallthru
      _
    // Predicated region
    $region18: #{_mnn_forward_impl.1} parent=1 // pred_check
      _
    $region19: #{_mnn_forward_impl.1} parent=1 // pred_check_branch
      %29 = sbr.rel (0) target = $region21
    $region20: #{_mnn_forward_impl.1} parent=1 // pred_region
      _
    $region21: #{_mnn_forward_impl.1} parent=1 // pred_fallthru
      _
    // Predicated region
    $region22: #{_mnn_forward_impl.1} parent=1 // pred_check
      _
    $region23: #{_mnn_forward_impl.1} parent=1 // pred_check_branch
      %31 = sbr.rel (0) target = $region25
    $region24: #{_mnn_forward_impl.1} parent=1 // pred_region
      %s33 = ssub.s32 16384, 16384
      %34 = vsyncadd [#allocation3], %s33
      %s35 = sshll.u32 [#allocation2], 4
      %s36 = int_to_ptr.vmem [resolvable:$true] %s35
      %41 = dma.hbm_to_vmem [thread:$0]  %s5, 16384, %s36, [#allocation3], 512, 512, 32
    $region25: #{_mnn_forward_impl.1} parent=1 // pred_fallthru
      _
    // Predicated region
    $region26: #{_mnn_forward_impl.1} parent=1 // pred_check
      _
    $region27: #{_mnn_forward_impl.1} parent=1 // pred_check_branch
      %43 = sbr.rel (0) target = $region29
    $region28: #{_mnn_forward_impl.1} parent=1 // pred_region
      _
    $region29: #{_mnn_forward_impl.1} parent=1 // pred_fallthru
      _
    // Predicated region
    $region30: #{_mnn_forward_impl.1} parent=1 // pred_check
      _
    $region31: #{_mnn_forward_impl.1} parent=1 // pred_check_branch
      %45 = sbr.rel (0) target = $region33
    $region32: #{_mnn_forward_impl.1} parent=1 // pred_region
      %s47 = ssub.s32 16384, 16384
      %48 = vsyncadd [#allocation5], %s47
      %s49 = sshll.u32 [#allocation4], 4
      %s50 = int_to_ptr.vmem [resolvable:$true] %s49
      %55 = dma.hbm_to_vmem [thread:$0]  %s7, 16384, %s50, [#allocation5], 128, 128, 8
    $region33: #{_mnn_forward_impl.1} parent=1 // pred_fallthru
      _
    // Predicated region
    $region34: #{_mnn_forward_impl.1} parent=1 // pred_check
      _
    $region35: #{_mnn_forward_impl.1} parent=1 // pred_check_branch
      %57 = sbr.rel (0) target = $region37
    $region36: #{_mnn_forward_impl.1} parent=1 // pred_region
      _
    $region37: #{_mnn_forward_impl.1} parent=1 // pred_fallthru
      _
    // Predicated region
    $region38: #{_mnn_forward_impl.1} parent=1 // pred_check
      _
    $region39: #{_mnn_forward_impl.1} parent=1 // pred_check_branch
      %59 = sbr.rel (0) target = $region41
    $region40: #{_mnn_forward_impl.1} parent=1 // pred_region
      _
    $region41: #{_mnn_forward_impl.1} parent=1 // pred_fallthru
      _
    // Predicated region
    $region42: #{_mnn_forward_impl.1} parent=1 // pred_check
      _
    $region43: #{_mnn_forward_impl.1} parent=1 // pred_check_branch
      %61 = sbr.rel (0) target = $region45
    $region44: #{_mnn_forward_impl.1} parent=1 // pred_region
      _
    $region45: #{_mnn_forward_impl.1} parent=1 // pred_fallthru
      _
    // Predicated region
    $region46: #{_mnn_forward_impl.1} parent=1 // pred_check
      _
    $region47: #{_mnn_forward_impl.1} parent=1 // pred_check_branch
      %63 = sbr.rel (0) target = $region49
    $region48: #{_mnn_forward_impl.1} parent=1 // pred_region
      _
    $region49: #{_mnn_forward_impl.1} parent=1 // pred_fallthru
      _
    // Predicated region
    $region50: #{_mnn_forward_impl.1} parent=1 // pred_check
      _
    $region51: #{_mnn_forward_impl.1} parent=1 // pred_check_branch
      %65 = sbr.rel (0) target = $region53
    $region52: #{_mnn_forward_impl.1} parent=1 // pred_region
      _
    $region53: #{_mnn_forward_impl.1} parent=1 // pred_fallthru
      _
    // Predicated region
    $region54: #{_mnn_forward_impl.1} parent=1 // pred_check
      _
    $region55: #{_mnn_forward_impl.1} parent=1 // pred_check_branch
      %67 = sbr.rel (0) target = $region57
    $region56: #{_mnn_forward_impl.1} parent=1 // pred_region
      %68 = dma.done [#allocation3], 16384
    $region57: #{_mnn_forward_impl.1} parent=1 // pred_fallthru
      _
    // Predicated region
    $region58: #{_mnn_forward_impl.1} parent=1 // pred_check
      _
    $region59: #{_mnn_forward_impl.1} parent=1 // pred_check_branch
      %70 = sbr.rel (0) target = $region61
    $region60: #{_mnn_forward_impl.1} parent=1 // pred_region
      %71 = dma.done [#allocation5], 16384
    $region61: #{_mnn_forward_impl.1} parent=1 // pred_fallthru
      _
    %v73 = vld [vmem:[%s0] sm:$0xff]
    %v74 = vld [vmem:[%s0 + $0x8] sm:$0xff]
    %v75 = vld [vmem:[%s0 + $0x10] sm:$0xff]
    %v76 = vld [vmem:[%s0 + $0x18] sm:$0xff]
    %v77 = vld [vmem:[%s0 + $0x20] sm:$0xff]
    %v78 = vld [vmem:[%s0 + $0x28] sm:$0xff]
    %v79 = vld [vmem:[%s0 + $0x30] sm:$0xff]
    %v80 = vld [vmem:[%s0 + $0x38] sm:$0xff]
    %v81 = vld [vmem:[%s0 + $0x40] sm:$0xff]
    %v82 = vld [vmem:[%s0 + $0x48] sm:$0xff]
    %v83 = vld [vmem:[%s0 + $0x50] sm:$0xff]
    %v84 = vld [vmem:[%s0 + $0x58] sm:$0xff]
    %v85 = vld [vmem:[%s0 + $0x60] sm:$0xff]
    %v86 = vld [vmem:[%s0 + $0x68] sm:$0xff]
    %v87 = vld [vmem:[%s0 + $0x70] sm:$0xff]
    %v88 = vld [vmem:[%s0 + $0x78] sm:$0xff]
    %v89 = vld [vmem:[%s0 + $0x80] sm:$0xff]
    %v90 = vld [vmem:[%s0 + $0x88] sm:$0xff]
    %v91 = vld [vmem:[%s0 + $0x90] sm:$0xff]
    %v92 = vld [vmem:[%s0 + $0x98] sm:$0xff]
    %v93 = vld [vmem:[%s0 + $0xa0] sm:$0xff]
    %v94 = vld [vmem:[%s0 + $0xa8] sm:$0xff]
    %v95 = vld [vmem:[%s0 + $0xb0] sm:$0xff]
    %v96 = vld [vmem:[%s0 + $0xb8] sm:$0xff]
    %v97 = vld [vmem:[%s0 + $0xc0] sm:$0xff]
    %v98 = vld [vmem:[%s0 + $0xc8] sm:$0xff]
    %v99 = vld [vmem:[%s0 + $0xd0] sm:$0xff]
    %v100 = vld [vmem:[%s0 + $0xd8] sm:$0xff]
    %v101 = vld [vmem:[%s0 + $0xe0] sm:$0xff]
    %v102 = vld [vmem:[%s0 + $0xe8] sm:$0xff]
    %v103 = vld [vmem:[%s0 + $0xf0] sm:$0xff]
    %v104 = vld [vmem:[%s0 + $0xf8] sm:$0xff]
    %v105 = vpack.c.bf16 %v74, %v73
    %v106 = vpack.c.bf16 %v76, %v75
    %v107 = vpack.c.bf16 %v78, %v77
    %v108 = vpack.c.bf16 %v80, %v79
    %v109 = vpack.c.bf16 %v82, %v81
    %v110 = vpack.c.bf16 %v84, %v83
    %v111 = vpack.c.bf16 %v86, %v85
    %v112 = vpack.c.bf16 %v88, %v87
    %v113 = vpack.c.bf16 %v90, %v89
    %v114 = vpack.c.bf16 %v92, %v91
    %v115 = vpack.c.bf16 %v94, %v93
    %v116 = vpack.c.bf16 %v96, %v95
    %v117 = vpack.c.bf16 %v98, %v97
    %v118 = vpack.c.bf16 %v100, %v99
    %v119 = vpack.c.bf16 %v102, %v101
    %v120 = vpack.c.bf16 %v104, %v103
    %v121 = vld [vmem:[%s1] sm:$0xf]
    %v122 = vld [vmem:[%s1 + $0x4] sm:$0xf]
    %v123 = vld [vmem:[%s2] sm:$0x1]
    %v125 = vlaneseq
    %v126 = vshrl.u32 %v125, 7
    %v127 = vsub.s32 0, %v126
    %v128 = vrot.slane %v123, %v127
    %v132 = vunpack.c.l.b16 %v121
    %v133 = vunpack.c.l.b16 %v122
    %v134 = vpack.c.b16 %v133, %v132
    %vm136 = vcmask 130048
    %v138 = vsel %vm136, %v105, 0
    %v141 = vsel %vm136, %v106, 0
    %v144 = vsel %vm136, %v107, 0
    %v147 = vsel %vm136, %v108, 0
    %v150 = vsel %vm136, %v109, 0
    %v153 = vsel %vm136, %v110, 0
    %v156 = vsel %vm136, %v111, 0
    %v159 = vsel %vm136, %v112, 0
    %v162 = vsel %vm136, %v113, 0
    %v165 = vsel %vm136, %v114, 0
    %v168 = vsel %vm136, %v115, 0
    %v171 = vsel %vm136, %v116, 0
    %v174 = vsel %vm136, %v117, 0
    %v177 = vsel %vm136, %v118, 0
    %v180 = vsel %vm136, %v119, 0
    %v183 = vsel %vm136, %v120, 0
    %185 = vmatprep.subr.bf16.mxu0 0
    %186 = vmatpush1.bf16.msra.mxu0 %v134
    %187 = vmatprep.subr.bf16.mxu0 0
    %188 = vmatpush1.bf16.msra.mxu0 0
    %189 = vmatprep.subr.bf16.mxu0 0
    %190 = vmatpush1.bf16.msra.mxu0 0
    %191 = vmatprep.subr.bf16.mxu0 0
    %192 = vmatpush1.bf16.msra.mxu0 0
    %193 = vmatprep.subr.bf16.mxu0 0
    %194 = vmatpush1.bf16.msra.mxu0 0
    %195 = vmatprep.subr.bf16.mxu0 0
    %196 = vmatpush1.bf16.msra.mxu0 0
    %197 = vmatprep.subr.bf16.mxu0 0
    %198 = vmatpush1.bf16.msra.mxu0 0
    %199 = vmatprep.subr.bf16.mxu0 0
    %200 = vmatpush1.bf16.msra.mxu0 0
    %201 = vmatprep.subr.bf16.mxu0 0
    %202 = vmatpush1.bf16.msra.mxu0 0
    %203 = vmatprep.subr.bf16.mxu0 0
    %204 = vmatpush1.bf16.msra.mxu0 0
    %205 = vmatprep.subr.bf16.mxu0 0
    %206 = vmatpush1.bf16.msra.mxu0 0
    %207 = vmatprep.subr.bf16.mxu0 0
    %208 = vmatpush1.bf16.msra.mxu0 0
    %209 = vmatprep.subr.bf16.mxu0 0
    %210 = vmatpush1.bf16.msra.mxu0 0
    %211 = vmatprep.subr.bf16.mxu0 0
    %212 = vmatpush1.bf16.msra.mxu0 0
    %213 = vmatprep.subr.bf16.mxu0 0
    %214 = vmatpush1.bf16.msra.mxu0 0
    %215 = vmatprep.subr.bf16.mxu0 0
    %216 = vmatpush1.bf16.msra.mxu0 0
    %217 = vmatprep.mubr.bf16.mxu0 0
    %218 = vmatmul.mubr.bf16.gmra.mrb[0].mxu0 %v138
    %v219 = vpop.f32.mrb[0].mxu0
    %v220 = vadd.f32 %v128, %v219
    %v221 = vpop.f32.mrb[0].mxu0
    %v222 = vpop.f32.mrb[0].mxu0
    %v223 = vadd.f32 %v128, %v222
    %v224 = vpop.f32.mrb[0].mxu0
    %225 = vmatprep.mubr.bf16.mxu0 0
    %226 = vmatmul.mubr.bf16.gmra.mrb[0].mxu0 %v141
    %v227 = vpop.f32.mrb[0].mxu0
    %v228 = vadd.f32 %v128, %v227
    %v229 = vpop.f32.mrb[0].mxu0
    %v230 = vpop.f32.mrb[0].mxu0
    %v231 = vadd.f32 %v128, %v230
    %v232 = vpop.f32.mrb[0].mxu0
    %233 = vmatprep.mubr.bf16.mxu0 0
    %234 = vmatmul.mubr.bf16.gmra.mrb[0].mxu0 %v144
    %v235 = vpop.f32.mrb[0].mxu0
    %v236 = vadd.f32 %v128, %v235
    %v237 = vpop.f32.mrb[0].mxu0
    %v238 = vpop.f32.mrb[0].mxu0
    %v239 = vadd.f32 %v128, %v238
    %v240 = vpop.f32.mrb[0].mxu0
    %241 = vmatprep.mubr.bf16.mxu0 0
    %242 = vmatmul.mubr.bf16.gmra.mrb[0].mxu0 %v147
    %v243 = vpop.f32.mrb[0].mxu0
    %v244 = vadd.f32 %v128, %v243
    %v245 = vpop.f32.mrb[0].mxu0
    %v246 = vpop.f32.mrb[0].mxu0
    %v247 = vadd.f32 %v128, %v246
    %v248 = vpop.f32.mrb[0].mxu0
    %249 = vmatprep.mubr.bf16.mxu0 0
    %250 = vmatmul.mubr.bf16.gmra.mrb[0].mxu0 %v150
    %v251 = vpop.f32.mrb[0].mxu0
    %v252 = vadd.f32 %v128, %v251
    %v253 = vpop.f32.mrb[0].mxu0
    %v254 = vpop.f32.mrb[0].mxu0
    %v255 = vadd.f32 %v128, %v254
    %v256 = vpop.f32.mrb[0].mxu0
    %257 = vmatprep.mubr.bf16.mxu0 0
    %258 = vmatmul.mubr.bf16.gmra.mrb[0].mxu0 %v153
    %v259 = vpop.f32.mrb[0].mxu0
    %v260 = vadd.f32 %v128, %v259
    %v261 = vpop.f32.mrb[0].mxu0
    %v262 = vpop.f32.mrb[0].mxu0
    %v263 = vadd.f32 %v128, %v262
    %v264 = vpop.f32.mrb[0].mxu0
    %265 = vmatprep.mubr.bf16.mxu0 0
    %266 = vmatmul.mubr.bf16.gmra.mrb[0].mxu0 %v156
    %v267 = vpop.f32.mrb[0].mxu0
    %v268 = vadd.f32 %v128, %v267
    %v269 = vpop.f32.mrb[0].mxu0
    %v270 = vpop.f32.mrb[0].mxu0
    %v271 = vadd.f32 %v128, %v270
    %v272 = vpop.f32.mrb[0].mxu0
    %273 = vmatprep.mubr.bf16.mxu0 0
    %274 = vmatmul.mubr.bf16.gmra.mrb[0].mxu0 %v159
    %v275 = vpop.f32.mrb[0].mxu0
    %v276 = vadd.f32 %v128, %v275
    %v277 = vpop.f32.mrb[0].mxu0
    %v278 = vpop.f32.mrb[0].mxu0
    %v279 = vadd.f32 %v128, %v278
    %v280 = vpop.f32.mrb[0].mxu0
    %281 = vmatprep.mubr.bf16.mxu0 0
    %282 = vmatmul.mubr.bf16.gmra.mrb[0].mxu0 %v162
    %v283 = vpop.f32.mrb[0].mxu0
    %v284 = vadd.f32 %v128, %v283
    %v285 = vpop.f32.mrb[0].mxu0
    %v286 = vpop.f32.mrb[0].mxu0
    %v287 = vadd.f32 %v128, %v286
    %v288 = vpop.f32.mrb[0].mxu0
    %289 = vmatprep.mubr.bf16.mxu0 0
    %290 = vmatmul.mubr.bf16.gmra.mrb[0].mxu0 %v165
    %v291 = vpop.f32.mrb[0].mxu0
    %v292 = vadd.f32 %v128, %v291
    %v293 = vpop.f32.mrb[0].mxu0
    %v294 = vpop.f32.mrb[0].mxu0
    %v295 = vadd.f32 %v128, %v294
    %v296 = vpop.f32.mrb[0].mxu0
    %297 = vmatprep.mubr.bf16.mxu0 0
    %298 = vmatmul.mubr.bf16.gmra.mrb[0].mxu0 %v168
    %v299 = vpop.f32.mrb[0].mxu0
    %v300 = vadd.f32 %v128, %v299
    %v301 = vpop.f32.mrb[0].mxu0
    %v302 = vpop.f32.mrb[0].mxu0
    %v303 = vadd.f32 %v128, %v302
    %v304 = vpop.f32.mrb[0].mxu0
    %305 = vmatprep.mubr.bf16.mxu0 0
    %306 = vmatmul.mubr.bf16.gmra.mrb[0].mxu0 %v171
    %v307 = vpop.f32.mrb[0].mxu0
    %v308 = vadd.f32 %v128, %v307
    %v309 = vpop.f32.mrb[0].mxu0
    %v310 = vpop.f32.mrb[0].mxu0
    %v311 = vadd.f32 %v128, %v310
    %v312 = vpop.f32.mrb[0].mxu0
    %313 = vmatprep.mubr.bf16.mxu0 0
    %314 = vmatmul.mubr.bf16.gmra.mrb[0].mxu0 %v174
    %v315 = vpop.f32.mrb[0].mxu0
    %v316 = vadd.f32 %v128, %v315
    %v317 = vpop.f32.mrb[0].mxu0
    %v318 = vpop.f32.mrb[0].mxu0
    %v319 = vadd.f32 %v128, %v318
    %v320 = vpop.f32.mrb[0].mxu0
    %321 = vmatprep.mubr.bf16.mxu0 0
    %322 = vmatmul.mubr.bf16.gmra.mrb[0].mxu0 %v177
    %v323 = vpop.f32.mrb[0].mxu0
    %v324 = vadd.f32 %v128, %v323
    %v325 = vpop.f32.mrb[0].mxu0
    %v326 = vpop.f32.mrb[0].mxu0
    %v327 = vadd.f32 %v128, %v326
    %v328 = vpop.f32.mrb[0].mxu0
    %329 = vmatprep.mubr.bf16.mxu0 0
    %330 = vmatmul.mubr.bf16.gmra.mrb[0].mxu0 %v180
    %v331 = vpop.f32.mrb[0].mxu0
    %v332 = vadd.f32 %v128, %v331
    %v333 = vpop.f32.mrb[0].mxu0
    %v334 = vpop.f32.mrb[0].mxu0
    %v335 = vadd.f32 %v128, %v334
    %v336 = vpop.f32.mrb[0].mxu0
    %337 = vmatprep.mubr.bf16.mxu0 0
    %338 = vmatmul.mubr.bf16.gmra.mrb[0].mxu0 %v183
    %v339 = vpop.f32.mrb[0].mxu0
    %v340 = vadd.f32 %v128, %v339
    %v341 = vpop.f32.mrb[0].mxu0
    %v342 = vpop.f32.mrb[0].mxu0
    %v343 = vadd.f32 %v128, %v342
    %v344 = vpop.f32.mrb[0].mxu0
    %345 = vdwg.mxu0
    %v346 = vmax.f32 %v220, 0.0
    %v347 = vmax.f32 %v223, 0.0
    %v348 = vmax.f32 %v228, 0.0
    %v349 = vmax.f32 %v231, 0.0
    %v350 = vmax.f32 %v236, 0.0
    %v351 = vmax.f32 %v239, 0.0
    %v352 = vmax.f32 %v244, 0.0
    %v353 = vmax.f32 %v247, 0.0
    %v354 = vmax.f32 %v252, 0.0
    %v355 = vmax.f32 %v255, 0.0
    %v356 = vmax.f32 %v260, 0.0
    %v357 = vmax.f32 %v263, 0.0
    %v358 = vmax.f32 %v268, 0.0
    %v359 = vmax.f32 %v271, 0.0
    %v360 = vmax.f32 %v276, 0.0
    %v361 = vmax.f32 %v279, 0.0
    %v362 = vmax.f32 %v284, 0.0
    %v363 = vmax.f32 %v287, 0.0
    %v364 = vmax.f32 %v292, 0.0
    %v365 = vmax.f32 %v295, 0.0
    %v366 = vmax.f32 %v300, 0.0
    %v367 = vmax.f32 %v303, 0.0
    %v368 = vmax.f32 %v308, 0.0
    %v369 = vmax.f32 %v311, 0.0
    %v370 = vmax.f32 %v316, 0.0
    %v371 = vmax.f32 %v319, 0.0
    %v372 = vmax.f32 %v324, 0.0
    %v373 = vmax.f32 %v327, 0.0
    %v374 = vmax.f32 %v332, 0.0
    %v375 = vmax.f32 %v335, 0.0
    %v376 = vmax.f32 %v340, 0.0
    %v377 = vmax.f32 %v343, 0.0
    %v378 = vpack.c.bf16 %v347, %v346
    %v379 = vpack.c.bf16 %v349, %v348
    %v380 = vpack.c.bf16 %v351, %v350
    %v381 = vpack.c.bf16 %v353, %v352
    %v382 = vpack.c.bf16 %v355, %v354
    %v383 = vpack.c.bf16 %v357, %v356
    %v384 = vpack.c.bf16 %v359, %v358
    %v385 = vpack.c.bf16 %v361, %v360
    %v386 = vpack.c.bf16 %v363, %v362
    %v387 = vpack.c.bf16 %v365, %v364
    %v388 = vpack.c.bf16 %v367, %v366
    %v389 = vpack.c.bf16 %v369, %v368
    %v390 = vpack.c.bf16 %v371, %v370
    %v391 = vpack.c.bf16 %v373, %v372
    %v392 = vpack.c.bf16 %v375, %v374
    %v393 = vpack.c.bf16 %v377, %v376
    %v394 = vld [vmem:[%s3] sm:$0xff]
    %v395 = vld [vmem:[%s3 + $0x8] sm:$0xff]
    %v396 = vld [vmem:[%s3 + $0x10] sm:$0xff]
    %v397 = vld [vmem:[%s3 + $0x18] sm:$0xff]
    %v398 = vld [vmem:[%s3 + $0x20] sm:$0xff]
    %v399 = vld [vmem:[%s3 + $0x28] sm:$0xff]
    %v400 = vld [vmem:[%s3 + $0x30] sm:$0xff]
    %v401 = vld [vmem:[%s3 + $0x38] sm:$0xff]
    %v402 = vld [vmem:[%s4] sm:$0x3]
    %v404 = vlaneseq
    %v405 = vshrl.u32 %v404, 7
    %v406 = vsub.s32 0, %v405
    %v407 = vrot.slane %v402, %v406
    %v408 = vlaneseq
    %v409 = vshrl.u32 %v408, 7
    %v410 = vsub.s32 1, %v409
    %v411 = vrot.slane %v402, %v410
    %v422 = vunpack.c.l.b16 %v394
    %v423 = vunpack.c.h.b16 %v394
    %v424 = vunpack.c.l.b16 %v395
    %v425 = vunpack.c.h.b16 %v395
    %v426 = vunpack.c.l.b16 %v396
    %v427 = vunpack.c.h.b16 %v396
    %v428 = vunpack.c.l.b16 %v397
    %v429 = vunpack.c.h.b16 %v397
    %v430 = vunpack.c.l.b16 %v398
    %v431 = vunpack.c.h.b16 %v398
    %v432 = vunpack.c.l.b16 %v399
    %v433 = vunpack.c.h.b16 %v399
    %v434 = vunpack.c.l.b16 %v400
    %v435 = vunpack.c.h.b16 %v400
    %v436 = vunpack.c.l.b16 %v401
    %v437 = vunpack.c.h.b16 %v401
    %v438 = vpack.c.b16 %v424, %v422
    %v439 = vpack.c.b16 %v425, %v423
    %v440 = vpack.c.b16 %v428, %v426
    %v441 = vpack.c.b16 %v429, %v427
    %v442 = vpack.c.b16 %v432, %v430
    %v443 = vpack.c.b16 %v433, %v431
    %v444 = vpack.c.b16 %v436, %v434
    %v445 = vpack.c.b16 %v437, %v435
    %vm454 = vcmask 523264
    %v456 = vsel %vm454, %v378, 0
    %v459 = vsel %vm454, %v379, 0
    %v462 = vsel %vm454, %v380, 0
    %v465 = vsel %vm454, %v381, 0
    %v468 = vsel %vm454, %v382, 0
    %v471 = vsel %vm454, %v383, 0
    %v474 = vsel %vm454, %v384, 0
    %v477 = vsel %vm454, %v385, 0
    %v480 = vsel %vm454, %v386, 0
    %v483 = vsel %vm454, %v387, 0
    %v486 = vsel %vm454, %v388, 0
    %v489 = vsel %vm454, %v389, 0
    %v492 = vsel %vm454, %v390, 0
    %v495 = vsel %vm454, %v391, 0
    %v498 = vsel %vm454, %v392, 0
    %v501 = vsel %vm454, %v393, 0
    %503 = vmatprep.subr.bf16.mxu0 %v439
    %504 = vmatpush1.bf16.msra.mxu0 %v438
    %505 = vmatprep.subr.bf16.mxu0 %v441
    %506 = vmatpush1.bf16.msra.mxu0 %v440
    %507 = vmatprep.subr.bf16.mxu0 %v443
    %508 = vmatpush1.bf16.msra.mxu0 %v442
    %509 = vmatprep.subr.bf16.mxu0 %v445
    %510 = vmatpush1.bf16.msra.mxu0 %v444
    %511 = vmatprep.subr.bf16.mxu0 0
    %512 = vmatpush1.bf16.msra.mxu0 0
    %513 = vmatprep.subr.bf16.mxu0 0
    %514 = vmatpush1.bf16.msra.mxu0 0
    %515 = vmatprep.subr.bf16.mxu0 0
    %516 = vmatpush1.bf16.msra.mxu0 0
    %517 = vmatprep.subr.bf16.mxu0 0
    %518 = vmatpush1.bf16.msra.mxu0 0
    %519 = vmatprep.subr.bf16.mxu0 0
    %520 = vmatpush1.bf16.msra.mxu0 0
    %521 = vmatprep.subr.bf16.mxu0 0
    %522 = vmatpush1.bf16.msra.mxu0 0
    %523 = vmatprep.subr.bf16.mxu0 0
    %524 = vmatpush1.bf16.msra.mxu0 0
    %525 = vmatprep.subr.bf16.mxu0 0
    %526 = vmatpush1.bf16.msra.mxu0 0
    %527 = vmatprep.subr.bf16.mxu0 0
    %528 = vmatpush1.bf16.msra.mxu0 0
    %529 = vmatprep.subr.bf16.mxu0 0
    %530 = vmatpush1.bf16.msra.mxu0 0
    %531 = vmatprep.subr.bf16.mxu0 0
    %532 = vmatpush1.bf16.msra.mxu0 0
    %533 = vmatprep.subr.bf16.mxu0 0
    %534 = vmatpush1.bf16.msra.mxu0 0
    %535 = vmatprep.mubr.bf16.mxu0 0
    %536 = vmatmul.mubr.bf16.gmra.mrb[0].mxu0 %v456
    %v537 = vpop.f32.mrb[0].mxu0
    %v538 = vadd.f32 %v407, %v537
    %v539 = vpop.f32.mrb[0].mxu0
    %v540 = vadd.f32 %v411, %v539
    %v541 = vpop.f32.mrb[0].mxu0
    %v542 = vadd.f32 %v407, %v541
    %v543 = vpop.f32.mrb[0].mxu0
    %v544 = vadd.f32 %v411, %v543
    %545 = vmatprep.mubr.bf16.mxu0 0
    %546 = vmatmul.mubr.bf16.gmra.mrb[0].mxu0 %v459
    %v547 = vpop.f32.mrb[0].mxu0
    %v548 = vadd.f32 %v407, %v547
    %v549 = vpop.f32.mrb[0].mxu0
    %v550 = vadd.f32 %v411, %v549
    %v551 = vpop.f32.mrb[0].mxu0
    %v552 = vadd.f32 %v407, %v551
    %v553 = vpop.f32.mrb[0].mxu0
    %v554 = vadd.f32 %v411, %v553
    %555 = vmatprep.mubr.bf16.mxu0 0
    %556 = vmatmul.mubr.bf16.gmra.mrb[0].mxu0 %v462
    %v557 = vpop.f32.mrb[0].mxu0
    %v558 = vadd.f32 %v407, %v557
    %v559 = vpop.f32.mrb[0].mxu0
    %v560 = vadd.f32 %v411, %v559
    %v561 = vpop.f32.mrb[0].mxu0
    %v562 = vadd.f32 %v407, %v561
    %v563 = vpop.f32.mrb[0].mxu0
    %v564 = vadd.f32 %v411, %v563
    %565 = vmatprep.mubr.bf16.mxu0 0
    %566 = vmatmul.mubr.bf16.gmra.mrb[0].mxu0 %v465
    %v567 = vpop.f32.mrb[0].mxu0
    %v568 = vadd.f32 %v407, %v567
    %v569 = vpop.f32.mrb[0].mxu0
    %v570 = vadd.f32 %v411, %v569
    %v571 = vpop.f32.mrb[0].mxu0
    %v572 = vadd.f32 %v407, %v571
    %v573 = vpop.f32.mrb[0].mxu0
    %v574 = vadd.f32 %v411, %v573
    %575 = vmatprep.mubr.bf16.mxu0 0
    %576 = vmatmul.mubr.bf16.gmra.mrb[0].mxu0 %v468
    %v577 = vpop.f32.mrb[0].mxu0
    %v578 = vadd.f32 %v407, %v577
    %v579 = vpop.f32.mrb[0].mxu0
    %v580 = vadd.f32 %v411, %v579
    %v581 = vpop.f32.mrb[0].mxu0
    %v582 = vadd.f32 %v407, %v581
    %v583 = vpop.f32.mrb[0].mxu0
    %v584 = vadd.f32 %v411, %v583
    %585 = vmatprep.mubr.bf16.mxu0 0
    %586 = vmatmul.mubr.bf16.gmra.mrb[0].mxu0 %v471
    %v587 = vpop.f32.mrb[0].mxu0
    %v588 = vadd.f32 %v407, %v587
    %v589 = vpop.f32.mrb[0].mxu0
    %v590 = vadd.f32 %v411, %v589
    %v591 = vpop.f32.mrb[0].mxu0
    %v592 = vadd.f32 %v407, %v591
    %v593 = vpop.f32.mrb[0].mxu0
    %v594 = vadd.f32 %v411, %v593
    %595 = vmatprep.mubr.bf16.mxu0 0
    %596 = vmatmul.mubr.bf16.gmra.mrb[0].mxu0 %v474
    %v597 = vpop.f32.mrb[0].mxu0
    %v598 = vadd.f32 %v407, %v597
    %v599 = vpop.f32.mrb[0].mxu0
    %v600 = vadd.f32 %v411, %v599
    %v601 = vpop.f32.mrb[0].mxu0
    %v602 = vadd.f32 %v407, %v601
    %v603 = vpop.f32.mrb[0].mxu0
    %v604 = vadd.f32 %v411, %v603
    %605 = vmatprep.mubr.bf16.mxu0 0
    %606 = vmatmul.mubr.bf16.gmra.mrb[0].mxu0 %v477
    %v607 = vpop.f32.mrb[0].mxu0
    %v608 = vadd.f32 %v407, %v607
    %v609 = vpop.f32.mrb[0].mxu0
    %v610 = vadd.f32 %v411, %v609
    %v611 = vpop.f32.mrb[0].mxu0
    %v612 = vadd.f32 %v407, %v611
    %v613 = vpop.f32.mrb[0].mxu0
    %v614 = vadd.f32 %v411, %v613
    %615 = vmatprep.mubr.bf16.mxu0 0
    %616 = vmatmul.mubr.bf16.gmra.mrb[0].mxu0 %v480
    %v617 = vpop.f32.mrb[0].mxu0
    %v618 = vadd.f32 %v407, %v617
    %v619 = vpop.f32.mrb[0].mxu0
    %v620 = vadd.f32 %v411, %v619
    %v621 = vpop.f32.mrb[0].mxu0
    %v622 = vadd.f32 %v407, %v621
    %v623 = vpop.f32.mrb[0].mxu0
    %v624 = vadd.f32 %v411, %v623
    %625 = vmatprep.mubr.bf16.mxu0 0
    %626 = vmatmul.mubr.bf16.gmra.mrb[0].mxu0 %v483
    %v627 = vpop.f32.mrb[0].mxu0
    %v628 = vadd.f32 %v407, %v627
    %v629 = vpop.f32.mrb[0].mxu0
    %v630 = vadd.f32 %v411, %v629
    %v631 = vpop.f32.mrb[0].mxu0
    %v632 = vadd.f32 %v407, %v631
    %v633 = vpop.f32.mrb[0].mxu0
    %v634 = vadd.f32 %v411, %v633
    %635 = vmatprep.mubr.bf16.mxu0 0
    %636 = vmatmul.mubr.bf16.gmra.mrb[0].mxu0 %v486
    %v637 = vpop.f32.mrb[0].mxu0
    %v638 = vadd.f32 %v407, %v637
    %v639 = vpop.f32.mrb[0].mxu0
    %v640 = vadd.f32 %v411, %v639
    %v641 = vpop.f32.mrb[0].mxu0
    %v642 = vadd.f32 %v407, %v641
    %v643 = vpop.f32.mrb[0].mxu0
    %v644 = vadd.f32 %v411, %v643
    %645 = vmatprep.mubr.bf16.mxu0 0
    %646 = vmatmul.mubr.bf16.gmra.mrb[0].mxu0 %v489
    %v647 = vpop.f32.mrb[0].mxu0
    %v648 = vadd.f32 %v407, %v647
    %v649 = vpop.f32.mrb[0].mxu0
    %v650 = vadd.f32 %v411, %v649
    %v651 = vpop.f32.mrb[0].mxu0
    %v652 = vadd.f32 %v407, %v651
    %v653 = vpop.f32.mrb[0].mxu0
    %v654 = vadd.f32 %v411, %v653
    %655 = vmatprep.mubr.bf16.mxu0 0
    %656 = vmatmul.mubr.bf16.gmra.mrb[0].mxu0 %v492
    %v657 = vpop.f32.mrb[0].mxu0
    %v658 = vadd.f32 %v407, %v657
    %v659 = vpop.f32.mrb[0].mxu0
    %v660 = vadd.f32 %v411, %v659
    %v661 = vpop.f32.mrb[0].mxu0
    %v662 = vadd.f32 %v407, %v661
    %v663 = vpop.f32.mrb[0].mxu0
    %v664 = vadd.f32 %v411, %v663
    %665 = vmatprep.mubr.bf16.mxu0 0
    %666 = vmatmul.mubr.bf16.gmra.mrb[0].mxu0 %v495
    %v667 = vpop.f32.mrb[0].mxu0
    %v668 = vadd.f32 %v407, %v667
    %v669 = vpop.f32.mrb[0].mxu0
    %v670 = vadd.f32 %v411, %v669
    %v671 = vpop.f32.mrb[0].mxu0
    %v672 = vadd.f32 %v407, %v671
    %v673 = vpop.f32.mrb[0].mxu0
    %v674 = vadd.f32 %v411, %v673
    %675 = vmatprep.mubr.bf16.mxu0 0
    %676 = vmatmul.mubr.bf16.gmra.mrb[0].mxu0 %v498
    %v677 = vpop.f32.mrb[0].mxu0
    %v678 = vadd.f32 %v407, %v677
    %v679 = vpop.f32.mrb[0].mxu0
    %v680 = vadd.f32 %v411, %v679
    %v681 = vpop.f32.mrb[0].mxu0
    %v682 = vadd.f32 %v407, %v681
    %v683 = vpop.f32.mrb[0].mxu0
    %v684 = vadd.f32 %v411, %v683
    %685 = vmatprep.mubr.bf16.mxu0 0
    %686 = vmatmul.mubr.bf16.gmra.mrb[0].mxu0 %v501
    %v687 = vpop.f32.mrb[0].mxu0
    %v688 = vadd.f32 %v407, %v687
    %v689 = vpop.f32.mrb[0].mxu0
    %v690 = vadd.f32 %v411, %v689
    %v691 = vpop.f32.mrb[0].mxu0
    %v692 = vadd.f32 %v407, %v691
    %v693 = vpop.f32.mrb[0].mxu0
    %v694 = vadd.f32 %v411, %v693
    %695 = vdwg.mxu0
    %v696 = vmax.f32 %v538, 0.0
    %v697 = vmax.f32 %v540, 0.0
    %v698 = vmax.f32 %v542, 0.0
    %v699 = vmax.f32 %v544, 0.0
    %v700 = vmax.f32 %v548, 0.0
    %v701 = vmax.f32 %v550, 0.0
    %v702 = vmax.f32 %v552, 0.0
    %v703 = vmax.f32 %v554, 0.0
    %v704 = vmax.f32 %v558, 0.0
    %v705 = vmax.f32 %v560, 0.0
    %v706 = vmax.f32 %v562, 0.0
    %v707 = vmax.f32 %v564, 0.0
    %v708 = vmax.f32 %v568, 0.0
    %v709 = vmax.f32 %v570, 0.0
    %v710 = vmax.f32 %v572, 0.0
    %v711 = vmax.f32 %v574, 0.0
    %v712 = vmax.f32 %v578, 0.0
    %v713 = vmax.f32 %v580, 0.0
    %v714 = vmax.f32 %v582, 0.0
    %v715 = vmax.f32 %v584, 0.0
    %v716 = vmax.f32 %v588, 0.0
    %v717 = vmax.f32 %v590, 0.0
    %v718 = vmax.f32 %v592, 0.0
    %v719 = vmax.f32 %v594, 0.0
    %v720 = vmax.f32 %v598, 0.0
    %v721 = vmax.f32 %v600, 0.0
    %v722 = vmax.f32 %v602, 0.0
    %v723 = vmax.f32 %v604, 0.0
    %v724 = vmax.f32 %v608, 0.0
    %v725 = vmax.f32 %v610, 0.0
    %v726 = vmax.f32 %v612, 0.0
    %v727 = vmax.f32 %v614, 0.0
    %v728 = vmax.f32 %v618, 0.0
    %v729 = vmax.f32 %v620, 0.0
    %v730 = vmax.f32 %v622, 0.0
    %v731 = vmax.f32 %v624, 0.0
    %v732 = vmax.f32 %v628, 0.0
    %v733 = vmax.f32 %v630, 0.0
    %v734 = vmax.f32 %v632, 0.0
    %v735 = vmax.f32 %v634, 0.0
    %v736 = vmax.f32 %v638, 0.0
    %v737 = vmax.f32 %v640, 0.0
    %v738 = vmax.f32 %v642, 0.0
    %v739 = vmax.f32 %v644, 0.0
    %v740 = vmax.f32 %v648, 0.0
    %v741 = vmax.f32 %v650, 0.0
    %v742 = vmax.f32 %v652, 0.0
    %v743 = vmax.f32 %v654, 0.0
    %v744 = vmax.f32 %v658, 0.0
    %v745 = vmax.f32 %v660, 0.0
    %v746 = vmax.f32 %v662, 0.0
    %v747 = vmax.f32 %v664, 0.0
    %v748 = vmax.f32 %v668, 0.0
    %v749 = vmax.f32 %v670, 0.0
    %v750 = vmax.f32 %v672, 0.0
    %v751 = vmax.f32 %v674, 0.0
    %v752 = vmax.f32 %v678, 0.0
    %v753 = vmax.f32 %v680, 0.0
    %v754 = vmax.f32 %v682, 0.0
    %v755 = vmax.f32 %v684, 0.0
    %v756 = vmax.f32 %v688, 0.0
    %v757 = vmax.f32 %v690, 0.0
    %v758 = vmax.f32 %v692, 0.0
    %v759 = vmax.f32 %v694, 0.0
    %v760 = vpack.c.bf16 %v698, %v696
    %v761 = vpack.c.bf16 %v699, %v697
    %v762 = vpack.c.bf16 %v702, %v700
    %v763 = vpack.c.bf16 %v703, %v701
    %v764 = vpack.c.bf16 %v706, %v704
    %v765 = vpack.c.bf16 %v707, %v705
    %v766 = vpack.c.bf16 %v710, %v708
    %v767 = vpack.c.bf16 %v711, %v709
    %v768 = vpack.c.bf16 %v714, %v712
    %v769 = vpack.c.bf16 %v715, %v713
    %v770 = vpack.c.bf16 %v718, %v716
    %v771 = vpack.c.bf16 %v719, %v717
    %v772 = vpack.c.bf16 %v722, %v720
    %v773 = vpack.c.bf16 %v723, %v721
    %v774 = vpack.c.bf16 %v726, %v724
    %v775 = vpack.c.bf16 %v727, %v725
    %v776 = vpack.c.bf16 %v730, %v728
    %v777 = vpack.c.bf16 %v731, %v729
    %v778 = vpack.c.bf16 %v734, %v732
    %v779 = vpack.c.bf16 %v735, %v733
    %v780 = vpack.c.bf16 %v738, %v736
    %v781 = vpack.c.bf16 %v739, %v737
    %v782 = vpack.c.bf16 %v742, %v740
    %v783 = vpack.c.bf16 %v743, %v741
    %v784 = vpack.c.bf16 %v746, %v744
    %v785 = vpack.c.bf16 %v747, %v745
    %v786 = vpack.c.bf16 %v750, %v748
    %v787 = vpack.c.bf16 %v751, %v749
    %v788 = vpack.c.bf16 %v754, %v752
    %v789 = vpack.c.bf16 %v755, %v753
    %v790 = vpack.c.bf16 %v758, %v756
    %v791 = vpack.c.bf16 %v759, %v757
    %v792 = vld [vmem:[#allocation2] sm:$0xff]
    %v793 = vld [vmem:[#allocation2 + $0x8] sm:$0xff]
    %v794 = vld [vmem:[#allocation2 + $0x10] sm:$0xff]
    %v795 = vld [vmem:[#allocation2 + $0x18] sm:$0xff]
    %v796 = vld [vmem:[#allocation2 + $0x20] sm:$0xff]
    %v797 = vld [vmem:[#allocation2 + $0x28] sm:$0xff]
    %v798 = vld [vmem:[#allocation2 + $0x30] sm:$0xff]
    %v799 = vld [vmem:[#allocation2 + $0x38] sm:$0xff]
    %v800 = vld [vmem:[#allocation2 + $0x40] sm:$0xff]
    %v801 = vld [vmem:[#allocation2 + $0x48] sm:$0xff]
    %v802 = vld [vmem:[#allocation2 + $0x50] sm:$0xff]
    %v803 = vld [vmem:[#allocation2 + $0x58] sm:$0xff]
    %v804 = vld [vmem:[#allocation2 + $0x60] sm:$0xff]
    %v805 = vld [vmem:[#allocation2 + $0x68] sm:$0xff]
    %v806 = vld [vmem:[#allocation2 + $0x70] sm:$0xff]
    %v807 = vld [vmem:[#allocation2 + $0x78] sm:$0xff]
    %v808 = vld [vmem:[#allocation2 + $0x80] sm:$0xff]
    %v809 = vld [vmem:[#allocation2 + $0x88] sm:$0xff]
    %v810 = vld [vmem:[#allocation2 + $0x90] sm:$0xff]
    %v811 = vld [vmem:[#allocation2 + $0x98] sm:$0xff]
    %v812 = vld [vmem:[#allocation2 + $0xa0] sm:$0xff]
    %v813 = vld [vmem:[#allocation2 + $0xa8] sm:$0xff]
    %v814 = vld [vmem:[#allocation2 + $0xb0] sm:$0xff]
    %v815 = vld [vmem:[#allocation2 + $0xb8] sm:$0xff]
    %v816 = vld [vmem:[#allocation2 + $0xc0] sm:$0xff]
    %v817 = vld [vmem:[#allocation2 + $0xc8] sm:$0xff]
    %v818 = vld [vmem:[#allocation2 + $0xd0] sm:$0xff]
    %v819 = vld [vmem:[#allocation2 + $0xd8] sm:$0xff]
    %v820 = vld [vmem:[#allocation2 + $0xe0] sm:$0xff]
    %v821 = vld [vmem:[#allocation2 + $0xe8] sm:$0xff]
    %v822 = vld [vmem:[#allocation2 + $0xf0] sm:$0xff]
    %v823 = vld [vmem:[#allocation2 + $0xf8] sm:$0xff]
    %v824 = vld [vmem:[#allocation2 + $0x100] sm:$0xff]
    %v825 = vld [vmem:[#allocation2 + $0x108] sm:$0xff]
    %v826 = vld [vmem:[#allocation2 + $0x110] sm:$0xff]
    %v827 = vld [vmem:[#allocation2 + $0x118] sm:$0xff]
    %v828 = vld [vmem:[#allocation2 + $0x120] sm:$0xff]
    %v829 = vld [vmem:[#allocation2 + $0x128] sm:$0xff]
    %v830 = vld [vmem:[#allocation2 + $0x130] sm:$0xff]
    %v831 = vld [vmem:[#allocation2 + $0x138] sm:$0xff]
    %v832 = vld [vmem:[#allocation2 + $0x140] sm:$0xff]
    %v833 = vld [vmem:[#allocation2 + $0x148] sm:$0xff]
    %v834 = vld [vmem:[#allocation2 + $0x150] sm:$0xff]
    %v835 = vld [vmem:[#allocation2 + $0x158] sm:$0xff]
    %v836 = vld [vmem:[#allocation2 + $0x160] sm:$0xff]
    %v837 = vld [vmem:[#allocation2 + $0x168] sm:$0xff]
    %v838 = vld [vmem:[#allocation2 + $0x170] sm:$0xff]
    %v839 = vld [vmem:[#allocation2 + $0x178] sm:$0xff]
    %v840 = vld [vmem:[#allocation2 + $0x180] sm:$0xff]
    %v841 = vld [vmem:[#allocation2 + $0x188] sm:$0xff]
    %v842 = vld [vmem:[#allocation2 + $0x190] sm:$0xff]
    %v843 = vld [vmem:[#allocation2 + $0x198] sm:$0xff]
    %v844 = vld [vmem:[#allocation2 + $0x1a0] sm:$0xff]
    %v845 = vld [vmem:[#allocation2 + $0x1a8] sm:$0xff]
    %v846 = vld [vmem:[#allocation2 + $0x1b0] sm:$0xff]
    %v847 = vld [vmem:[#allocation2 + $0x1b8] sm:$0xff]
    %v848 = vld [vmem:[#allocation2 + $0x1c0] sm:$0xff]
    %v849 = vld [vmem:[#allocation2 + $0x1c8] sm:$0xff]
    %v850 = vld [vmem:[#allocation2 + $0x1d0] sm:$0xff]
    %v851 = vld [vmem:[#allocation2 + $0x1d8] sm:$0xff]
    %v852 = vld [vmem:[#allocation2 + $0x1e0] sm:$0xff]
    %v853 = vld [vmem:[#allocation2 + $0x1e8] sm:$0xff]
    %v854 = vld [vmem:[#allocation2 + $0x1f0] sm:$0xff]
    %v855 = vld [vmem:[#allocation2 + $0x1f8] sm:$0xff]
    %v856 = vld [vmem:[#allocation2 + $0x200] sm:$0xff]
    %v857 = vld [vmem:[#allocation2 + $0x208] sm:$0xff]
    %v858 = vld [vmem:[#allocation2 + $0x210] sm:$0xff]
    %v859 = vld [vmem:[#allocation2 + $0x218] sm:$0xff]
    %v860 = vld [vmem:[#allocation2 + $0x220] sm:$0xff]
    %v861 = vld [vmem:[#allocation2 + $0x228] sm:$0xff]
    %v862 = vld [vmem:[#allocation2 + $0x230] sm:$0xff]
    %v863 = vld [vmem:[#allocation2 + $0x238] sm:$0xff]
    %v864 = vld [vmem:[#allocation2 + $0x240] sm:$0xff]
    %v865 = vld [vmem:[#allocation2 + $0x248] sm:$0xff]
    %v866 = vld [vmem:[#allocation2 + $0x250] sm:$0xff]
    %v867 = vld [vmem:[#allocation2 + $0x258] sm:$0xff]
    %v868 = vld [vmem:[#allocation2 + $0x260] sm:$0xff]
    %v869 = vld [vmem:[#allocation2 + $0x268] sm:$0xff]
    %v870 = vld [vmem:[#allocation2 + $0x270] sm:$0xff]
    %v871 = vld [vmem:[#allocation2 + $0x278] sm:$0xff]
    %v872 = vld [vmem:[#allocation2 + $0x280] sm:$0xff]
    %v873 = vld [vmem:[#allocation2 + $0x288] sm:$0xff]
    %v874 = vld [vmem:[#allocation2 + $0x290] sm:$0xff]
    %v875 = vld [vmem:[#allocation2 + $0x298] sm:$0xff]
    %v876 = vld [vmem:[#allocation2 + $0x2a0] sm:$0xff]
    %v877 = vld [vmem:[#allocation2 + $0x2a8] sm:$0xff]
    %v878 = vld [vmem:[#allocation2 + $0x2b0] sm:$0xff]
    %v879 = vld [vmem:[#allocation2 + $0x2b8] sm:$0xff]
    %v880 = vld [vmem:[#allocation2 + $0x2c0] sm:$0xff]
    %v881 = vld [vmem:[#allocation2 + $0x2c8] sm:$0xff]
    %v882 = vld [vmem:[#allocation2 + $0x2d0] sm:$0xff]
    %v883 = vld [vmem:[#allocation2 + $0x2d8] sm:$0xff]
    %v884 = vld [vmem:[#allocation2 + $0x2e0] sm:$0xff]
    %v885 = vld [vmem:[#allocation2 + $0x2e8] sm:$0xff]
    %v886 = vld [vmem:[#allocation2 + $0x2f0] sm:$0xff]
    %v887 = vld [vmem:[#allocation2 + $0x2f8] sm:$0xff]
    %v888 = vld [vmem:[#allocation2 + $0x300] sm:$0xff]
    %v889 = vld [vmem:[#allocation2 + $0x308] sm:$0xff]
    %v890 = vld [vmem:[#allocation2 + $0x310] sm:$0xff]
    %v891 = vld [vmem:[#allocation2 + $0x318] sm:$0xff]
    %v892 = vld [vmem:[#allocation2 + $0x320] sm:$0xff]
    %v893 = vld [vmem:[#allocation2 + $0x328] sm:$0xff]
    %v894 = vld [vmem:[#allocation2 + $0x330] sm:$0xff]
    %v895 = vld [vmem:[#allocation2 + $0x338] sm:$0xff]
    %v896 = vld [vmem:[#allocation2 + $0x340] sm:$0xff]
    %v897 = vld [vmem:[#allocation2 + $0x348] sm:$0xff]
    %v898 = vld [vmem:[#allocation2 + $0x350] sm:$0xff]
    %v899 = vld [vmem:[#allocation2 + $0x358] sm:$0xff]
    %v900 = vld [vmem:[#allocation2 + $0x360] sm:$0xff]
    %v901 = vld [vmem:[#allocation2 + $0x368] sm:$0xff]
    %v902 = vld [vmem:[#allocation2 + $0x370] sm:$0xff]
    %v903 = vld [vmem:[#allocation2 + $0x378] sm:$0xff]
    %v904 = vld [vmem:[#allocation2 + $0x380] sm:$0xff]
    %v905 = vld [vmem:[#allocation2 + $0x388] sm:$0xff]
    %v906 = vld [vmem:[#allocation2 + $0x390] sm:$0xff]
    %v907 = vld [vmem:[#allocation2 + $0x398] sm:$0xff]
    %v908 = vld [vmem:[#allocation2 + $0x3a0] sm:$0xff]
    %v909 = vld [vmem:[#allocation2 + $0x3a8] sm:$0xff]
    %v910 = vld [vmem:[#allocation2 + $0x3b0] sm:$0xff]
    %v911 = vld [vmem:[#allocation2 + $0x3b8] sm:$0xff]
    %v912 = vld [vmem:[#allocation2 + $0x3c0] sm:$0xff]
    %v913 = vld [vmem:[#allocation2 + $0x3c8] sm:$0xff]
    %v914 = vld [vmem:[#allocation2 + $0x3d0] sm:$0xff]
    %v915 = vld [vmem:[#allocation2 + $0x3d8] sm:$0xff]
    %v916 = vld [vmem:[#allocation2 + $0x3e0] sm:$0xff]
    %v917 = vld [vmem:[#allocation2 + $0x3e8] sm:$0xff]
    %v918 = vld [vmem:[#allocation2 + $0x3f0] sm:$0xff]
    %v919 = vld [vmem:[#allocation2 + $0x3f8] sm:$0xff]
    %v920 = vld [vmem:[%s6] sm:$0xff]
    %v922 = vlaneseq
    %v923 = vshrl.u32 %v922, 7
    %v924 = vsub.s32 0, %v923
    %v925 = vrot.slane %v920, %v924
    %v926 = vlaneseq
    %v927 = vshrl.u32 %v926, 7
    %v928 = vsub.s32 1, %v927
    %v929 = vrot.slane %v920, %v928
    %v930 = vlaneseq
    %v931 = vshrl.u32 %v930, 7
    %v932 = vsub.s32 2, %v931
    %v933 = vrot.slane %v920, %v932
    %v934 = vlaneseq
    %v935 = vshrl.u32 %v934, 7
    %v936 = vsub.s32 3, %v935
    %v937 = vrot.slane %v920, %v936
    %v938 = vlaneseq
    %v939 = vshrl.u32 %v938, 7
    %v940 = vsub.s32 4, %v939
    %v941 = vrot.slane %v920, %v940
    %v942 = vlaneseq
    %v943 = vshrl.u32 %v942, 7
    %v944 = vsub.s32 5, %v943
    %v945 = vrot.slane %v920, %v944
    %v946 = vlaneseq
    %v947 = vshrl.u32 %v946, 7
    %v948 = vsub.s32 6, %v947
    %v949 = vrot.slane %v920, %v948
    %v950 = vlaneseq
    %v951 = vshrl.u32 %v950, 7
    %v952 = vsub.s32 7, %v951
    %v953 = vrot.slane %v920, %v952
    %v1090 = vunpack.c.l.b16 %v792
    %v1091 = vunpack.c.h.b16 %v792
    %v1092 = vunpack.c.l.b16 %v793
    %v1093 = vunpack.c.h.b16 %v793
    %v1094 = vunpack.c.l.b16 %v794
    %v1095 = vunpack.c.h.b16 %v794
    %v1096 = vunpack.c.l.b16 %v795
    %v1097 = vunpack.c.h.b16 %v795
    %v1098 = vunpack.c.l.b16 %v796
    %v1099 = vunpack.c.h.b16 %v796
    %v1100 = vunpack.c.l.b16 %v797
    %v1101 = vunpack.c.h.b16 %v797
    %v1102 = vunpack.c.l.b16 %v798
    %v1103 = vunpack.c.h.b16 %v798
    %v1104 = vunpack.c.l.b16 %v799
    %v1105 = vunpack.c.h.b16 %v799
    %v1106 = vunpack.c.l.b16 %v800
    %v1107 = vunpack.c.h.b16 %v800
    %v1108 = vunpack.c.l.b16 %v801
    %v1109 = vunpack.c.h.b16 %v801
    %v1110 = vunpack.c.l.b16 %v802
    %v1111 = vunpack.c.h.b16 %v802
    %v1112 = vunpack.c.l.b16 %v803
    %v1113 = vunpack.c.h.b16 %v803
    %v1114 = vunpack.c.l.b16 %v804
    %v1115 = vunpack.c.h.b16 %v804
    %v1116 = vunpack.c.l.b16 %v805
    %v1117 = vunpack.c.h.b16 %v805
    %v1118 = vunpack.c.l.b16 %v806
    %v1119 = vunpack.c.h.b16 %v806
    %v1120 = vunpack.c.l.b16 %v807
    %v1121 = vunpack.c.h.b16 %v807
    %v1122 = vunpack.c.l.b16 %v808
    %v1123 = vunpack.c.h.b16 %v808
    %v1124 = vunpack.c.l.b16 %v809
    %v1125 = vunpack.c.h.b16 %v809
    %v1126 = vunpack.c.l.b16 %v810
    %v1127 = vunpack.c.h.b16 %v810
    %v1128 = vunpack.c.l.b16 %v811
    %v1129 = vunpack.c.h.b16 %v811
    %v1130 = vunpack.c.l.b16 %v812
    %v1131 = vunpack.c.h.b16 %v812
    %v1132 = vunpack.c.l.b16 %v813
    %v1133 = vunpack.c.h.b16 %v813
    %v1134 = vunpack.c.l.b16 %v814
    %v1135 = vunpack.c.h.b16 %v814
    %v1136 = vunpack.c.l.b16 %v815
    %v1137 = vunpack.c.h.b16 %v815
    %v1138 = vunpack.c.l.b16 %v816
    %v1139 = vunpack.c.h.b16 %v816
    %v1140 = vunpack.c.l.b16 %v817
    %v1141 = vunpack.c.h.b16 %v817
    %v1142 = vunpack.c.l.b16 %v818
    %v1143 = vunpack.c.h.b16 %v818
    %v1144 = vunpack.c.l.b16 %v819
    %v1145 = vunpack.c.h.b16 %v819
    %v1146 = vunpack.c.l.b16 %v820
    %v1147 = vunpack.c.h.b16 %v820
    %v1148 = vunpack.c.l.b16 %v821
    %v1149 = vunpack.c.h.b16 %v821
    %v1150 = vunpack.c.l.b16 %v822
    %v1151 = vunpack.c.h.b16 %v822
    %v1152 = vunpack.c.l.b16 %v823
    %v1153 = vunpack.c.h.b16 %v823
    %v1154 = vunpack.c.l.b16 %v824
    %v1155 = vunpack.c.h.b16 %v824
    %v1156 = vunpack.c.l.b16 %v825
    %v1157 = vunpack.c.h.b16 %v825
    %v1158 = vunpack.c.l.b16 %v826
    %v1159 = vunpack.c.h.b16 %v826
    %v1160 = vunpack.c.l.b16 %v827
    %v1161 = vunpack.c.h.b16 %v827
    %v1162 = vunpack.c.l.b16 %v828
    %v1163 = vunpack.c.h.b16 %v828
    %v1164 = vunpack.c.l.b16 %v829
    %v1165 = vunpack.c.h.b16 %v829
    %v1166 = vunpack.c.l.b16 %v830
    %v1167 = vunpack.c.h.b16 %v830
    %v1168 = vunpack.c.l.b16 %v831
    %v1169 = vunpack.c.h.b16 %v831
    %v1170 = vunpack.c.l.b16 %v832
    %v1171 = vunpack.c.h.b16 %v832
    %v1172 = vunpack.c.l.b16 %v833
    %v1173 = vunpack.c.h.b16 %v833
    %v1174 = vunpack.c.l.b16 %v834
    %v1175 = vunpack.c.h.b16 %v834
    %v1176 = vunpack.c.l.b16 %v835
    %v1177 = vunpack.c.h.b16 %v835
    %v1178 = vunpack.c.l.b16 %v836
    %v1179 = vunpack.c.h.b16 %v836
    %v1180 = vunpack.c.l.b16 %v837
    %v1181 = vunpack.c.h.b16 %v837
    %v1182 = vunpack.c.l.b16 %v838
    %v1183 = vunpack.c.h.b16 %v838
    %v1184 = vunpack.c.l.b16 %v839
    %v1185 = vunpack.c.h.b16 %v839
    %v1186 = vunpack.c.l.b16 %v840
    %v1187 = vunpack.c.h.b16 %v840
    %v1188 = vunpack.c.l.b16 %v841
    %v1189 = vunpack.c.h.b16 %v841
    %v1190 = vunpack.c.l.b16 %v842
    %v1191 = vunpack.c.h.b16 %v842
    %v1192 = vunpack.c.l.b16 %v843
    %v1193 = vunpack.c.h.b16 %v843
    %v1194 = vunpack.c.l.b16 %v844
    %v1195 = vunpack.c.h.b16 %v844
    %v1196 = vunpack.c.l.b16 %v845
    %v1197 = vunpack.c.h.b16 %v845
    %v1198 = vunpack.c.l.b16 %v846
    %v1199 = vunpack.c.h.b16 %v846
    %v1200 = vunpack.c.l.b16 %v847
    %v1201 = vunpack.c.h.b16 %v847
    %v1202 = vunpack.c.l.b16 %v848
    %v1203 = vunpack.c.h.b16 %v848
    %v1204 = vunpack.c.l.b16 %v849
    %v1205 = vunpack.c.h.b16 %v849
    %v1206 = vunpack.c.l.b16 %v850
    %v1207 = vunpack.c.h.b16 %v850
    %v1208 = vunpack.c.l.b16 %v851
    %v1209 = vunpack.c.h.b16 %v851
    %v1210 = vunpack.c.l.b16 %v852
    %v1211 = vunpack.c.h.b16 %v852
    %v1212 = vunpack.c.l.b16 %v853
    %v1213 = vunpack.c.h.b16 %v853
    %v1214 = vunpack.c.l.b16 %v854
    %v1215 = vunpack.c.h.b16 %v854
    %v1216 = vunpack.c.l.b16 %v855
    %v1217 = vunpack.c.h.b16 %v855
    %v1218 = vunpack.c.l.b16 %v856
    %v1219 = vunpack.c.h.b16 %v856
    %v1220 = vunpack.c.l.b16 %v857
    %v1221 = vunpack.c.h.b16 %v857
    %v1222 = vunpack.c.l.b16 %v858
    %v1223 = vunpack.c.h.b16 %v858
    %v1224 = vunpack.c.l.b16 %v859
    %v1225 = vunpack.c.h.b16 %v859
    %v1226 = vunpack.c.l.b16 %v860
    %v1227 = vunpack.c.h.b16 %v860
    %v1228 = vunpack.c.l.b16 %v861
    %v1229 = vunpack.c.h.b16 %v861
    %v1230 = vunpack.c.l.b16 %v862
    %v1231 = vunpack.c.h.b16 %v862
    %v1232 = vunpack.c.l.b16 %v863
    %v1233 = vunpack.c.h.b16 %v863
    %v1234 = vunpack.c.l.b16 %v864
    %v1235 = vunpack.c.h.b16 %v864
    %v1236 = vunpack.c.l.b16 %v865
    %v1237 = vunpack.c.h.b16 %v865
    %v1238 = vunpack.c.l.b16 %v866
    %v1239 = vunpack.c.h.b16 %v866
    %v1240 = vunpack.c.l.b16 %v867
    %v1241 = vunpack.c.h.b16 %v867
    %v1242 = vunpack.c.l.b16 %v868
    %v1243 = vunpack.c.h.b16 %v868
    %v1244 = vunpack.c.l.b16 %v869
    %v1245 = vunpack.c.h.b16 %v869
    %v1246 = vunpack.c.l.b16 %v870
    %v1247 = vunpack.c.h.b16 %v870
    %v1248 = vunpack.c.l.b16 %v871
    %v1249 = vunpack.c.h.b16 %v871
    %v1250 = vunpack.c.l.b16 %v872
    %v1251 = vunpack.c.h.b16 %v872
    %v1252 = vunpack.c.l.b16 %v873
    %v1253 = vunpack.c.h.b16 %v873
    %v1254 = vunpack.c.l.b16 %v874
    %v1255 = vunpack.c.h.b16 %v874
    %v1256 = vunpack.c.l.b16 %v875
    %v1257 = vunpack.c.h.b16 %v875
    %v1258 = vunpack.c.l.b16 %v876
    %v1259 = vunpack.c.h.b16 %v876
    %v1260 = vunpack.c.l.b16 %v877
    %v1261 = vunpack.c.h.b16 %v877
    %v1262 = vunpack.c.l.b16 %v878
    %v1263 = vunpack.c.h.b16 %v878
    %v1264 = vunpack.c.l.b16 %v879
    %v1265 = vunpack.c.h.b16 %v879
    %v1266 = vunpack.c.l.b16 %v880
    %v1267 = vunpack.c.h.b16 %v880
    %v1268 = vunpack.c.l.b16 %v881
    %v1269 = vunpack.c.h.b16 %v881
    %v1270 = vunpack.c.l.b16 %v882
    %v1271 = vunpack.c.h.b16 %v882
    %v1272 = vunpack.c.l.b16 %v883
    %v1273 = vunpack.c.h.b16 %v883
    %v1274 = vunpack.c.l.b16 %v884
    %v1275 = vunpack.c.h.b16 %v884
    %v1276 = vunpack.c.l.b16 %v885
    %v1277 = vunpack.c.h.b16 %v885
    %v1278 = vunpack.c.l.b16 %v886
    %v1279 = vunpack.c.h.b16 %v886
    %v1280 = vunpack.c.l.b16 %v887
    %v1281 = vunpack.c.h.b16 %v887
    %v1282 = vunpack.c.l.b16 %v888
    %v1283 = vunpack.c.h.b16 %v888
    %v1284 = vunpack.c.l.b16 %v889
    %v1285 = vunpack.c.h.b16 %v889
    %v1286 = vunpack.c.l.b16 %v890
    %v1287 = vunpack.c.h.b16 %v890
    %v1288 = vunpack.c.l.b16 %v891
    %v1289 = vunpack.c.h.b16 %v891
    %v1290 = vunpack.c.l.b16 %v892
    %v1291 = vunpack.c.h.b16 %v892
    %v1292 = vunpack.c.l.b16 %v893
    %v1293 = vunpack.c.h.b16 %v893
    %v1294 = vunpack.c.l.b16 %v894
    %v1295 = vunpack.c.h.b16 %v894
    %v1296 = vunpack.c.l.b16 %v895
    %v1297 = vunpack.c.h.b16 %v895
    %v1298 = vunpack.c.l.b16 %v896
    %v1299 = vunpack.c.h.b16 %v896
    %v1300 = vunpack.c.l.b16 %v897
    %v1301 = vunpack.c.h.b16 %v897
    %v1302 = vunpack.c.l.b16 %v898
    %v1303 = vunpack.c.h.b16 %v898
    %v1304 = vunpack.c.l.b16 %v899
    %v1305 = vunpack.c.h.b16 %v899
    %v1306 = vunpack.c.l.b16 %v900
    %v1307 = vunpack.c.h.b16 %v900
    %v1308 = vunpack.c.l.b16 %v901
    %v1309 = vunpack.c.h.b16 %v901
    %v1310 = vunpack.c.l.b16 %v902
    %v1311 = vunpack.c.h.b16 %v902
    %v1312 = vunpack.c.l.b16 %v903
    %v1313 = vunpack.c.h.b16 %v903
    %v1314 = vunpack.c.l.b16 %v904
    %v1315 = vunpack.c.h.b16 %v904
    %v1316 = vunpack.c.l.b16 %v905
    %v1317 = vunpack.c.h.b16 %v905
    %v1318 = vunpack.c.l.b16 %v906
    %v1319 = vunpack.c.h.b16 %v906
    %v1320 = vunpack.c.l.b16 %v907
    %v1321 = vunpack.c.h.b16 %v907
    %v1322 = vunpack.c.l.b16 %v908
    %v1323 = vunpack.c.h.b16 %v908
    %v1324 = vunpack.c.l.b16 %v909
    %v1325 = vunpack.c.h.b16 %v909
    %v1326 = vunpack.c.l.b16 %v910
    %v1327 = vunpack.c.h.b16 %v910
    %v1328 = vunpack.c.l.b16 %v911
    %v1329 = vunpack.c.h.b16 %v911
    %v1330 = vunpack.c.l.b16 %v912
    %v1331 = vunpack.c.h.b16 %v912
    %v1332 = vunpack.c.l.b16 %v913
    %v1333 = vunpack.c.h.b16 %v913
    %v1334 = vunpack.c.l.b16 %v914
    %v1335 = vunpack.c.h.b16 %v914
    %v1336 = vunpack.c.l.b16 %v915
    %v1337 = vunpack.c.h.b16 %v915
    %v1338 = vunpack.c.l.b16 %v916
    %v1339 = vunpack.c.h.b16 %v916
    %v1340 = vunpack.c.l.b16 %v917
    %v1341 = vunpack.c.h.b16 %v917
    %v1342 = vunpack.c.l.b16 %v918
    %v1343 = vunpack.c.h.b16 %v918
    %v1344 = vunpack.c.l.b16 %v919
    %v1345 = vunpack.c.h.b16 %v919
    %v1346 = vpack.c.b16 %v1098, %v1090
    %v1347 = vpack.c.b16 %v1099, %v1091
    %v1348 = vpack.c.b16 %v1100, %v1092
    %v1349 = vpack.c.b16 %v1101, %v1093
    %v1350 = vpack.c.b16 %v1102, %v1094
    %v1351 = vpack.c.b16 %v1103, %v1095
    %v1352 = vpack.c.b16 %v1104, %v1096
    %v1353 = vpack.c.b16 %v1105, %v1097
    %v1354 = vpack.c.b16 %v1114, %v1106
    %v1355 = vpack.c.b16 %v1115, %v1107
    %v1356 = vpack.c.b16 %v1116, %v1108
    %v1357 = vpack.c.b16 %v1117, %v1109
    %v1358 = vpack.c.b16 %v1118, %v1110
    %v1359 = vpack.c.b16 %v1119, %v1111
    %v1360 = vpack.c.b16 %v1120, %v1112
    %v1361 = vpack.c.b16 %v1121, %v1113
    %v1362 = vpack.c.b16 %v1130, %v1122
    %v1363 = vpack.c.b16 %v1131, %v1123
    %v1364 = vpack.c.b16 %v1132, %v1124
    %v1365 = vpack.c.b16 %v1133, %v1125
    %v1366 = vpack.c.b16 %v1134, %v1126
    %v1367 = vpack.c.b16 %v1135, %v1127
    %v1368 = vpack.c.b16 %v1136, %v1128
    %v1369 = vpack.c.b16 %v1137, %v1129
    %v1370 = vpack.c.b16 %v1146, %v1138
    %v1371 = vpack.c.b16 %v1147, %v1139
    %v1372 = vpack.c.b16 %v1148, %v1140
    %v1373 = vpack.c.b16 %v1149, %v1141
    %v1374 = vpack.c.b16 %v1150, %v1142
    %v1375 = vpack.c.b16 %v1151, %v1143
    %v1376 = vpack.c.b16 %v1152, %v1144
    %v1377 = vpack.c.b16 %v1153, %v1145
    %v1378 = vpack.c.b16 %v1162, %v1154
    %v1379 = vpack.c.b16 %v1163, %v1155
    %v1380 = vpack.c.b16 %v1164, %v1156
    %v1381 = vpack.c.b16 %v1165, %v1157
    %v1382 = vpack.c.b16 %v1166, %v1158
    %v1383 = vpack.c.b16 %v1167, %v1159
    %v1384 = vpack.c.b16 %v1168, %v1160
    %v1385 = vpack.c.b16 %v1169, %v1161
    %v1386 = vpack.c.b16 %v1178, %v1170
    %v1387 = vpack.c.b16 %v1179, %v1171
    %v1388 = vpack.c.b16 %v1180, %v1172
    %v1389 = vpack.c.b16 %v1181, %v1173
    %v1390 = vpack.c.b16 %v1182, %v1174
    %v1391 = vpack.c.b16 %v1183, %v1175
    %v1392 = vpack.c.b16 %v1184, %v1176
    %v1393 = vpack.c.b16 %v1185, %v1177
    %v1394 = vpack.c.b16 %v1194, %v1186
    %v1395 = vpack.c.b16 %v1195, %v1187
    %v1396 = vpack.c.b16 %v1196, %v1188
    %v1397 = vpack.c.b16 %v1197, %v1189
    %v1398 = vpack.c.b16 %v1198, %v1190
    %v1399 = vpack.c.b16 %v1199, %v1191
    %v1400 = vpack.c.b16 %v1200, %v1192
    %v1401 = vpack.c.b16 %v1201, %v1193
    %v1402 = vpack.c.b16 %v1210, %v1202
    %v1403 = vpack.c.b16 %v1211, %v1203
    %v1404 = vpack.c.b16 %v1212, %v1204
    %v1405 = vpack.c.b16 %v1213, %v1205
    %v1406 = vpack.c.b16 %v1214, %v1206
    %v1407 = vpack.c.b16 %v1215, %v1207
    %v1408 = vpack.c.b16 %v1216, %v1208
    %v1409 = vpack.c.b16 %v1217, %v1209
    %v1410 = vpack.c.b16 %v1226, %v1218
    %v1411 = vpack.c.b16 %v1227, %v1219
    %v1412 = vpack.c.b16 %v1228, %v1220
    %v1413 = vpack.c.b16 %v1229, %v1221
    %v1414 = vpack.c.b16 %v1230, %v1222
    %v1415 = vpack.c.b16 %v1231, %v1223
    %v1416 = vpack.c.b16 %v1232, %v1224
    %v1417 = vpack.c.b16 %v1233, %v1225
    %v1418 = vpack.c.b16 %v1242, %v1234
    %v1419 = vpack.c.b16 %v1243, %v1235
    %v1420 = vpack.c.b16 %v1244, %v1236
    %v1421 = vpack.c.b16 %v1245, %v1237
    %v1422 = vpack.c.b16 %v1246, %v1238
    %v1423 = vpack.c.b16 %v1247, %v1239
    %v1424 = vpack.c.b16 %v1248, %v1240
    %v1425 = vpack.c.b16 %v1249, %v1241
    %v1426 = vpack.c.b16 %v1258, %v1250
    %v1427 = vpack.c.b16 %v1259, %v1251
    %v1428 = vpack.c.b16 %v1260, %v1252
    %v1429 = vpack.c.b16 %v1261, %v1253
    %v1430 = vpack.c.b16 %v1262, %v1254
    %v1431 = vpack.c.b16 %v1263, %v1255
    %v1432 = vpack.c.b16 %v1264, %v1256
    %v1433 = vpack.c.b16 %v1265, %v1257
    %v1434 = vpack.c.b16 %v1274, %v1266
    %v1435 = vpack.c.b16 %v1275, %v1267
    %v1436 = vpack.c.b16 %v1276, %v1268
    %v1437 = vpack.c.b16 %v1277, %v1269
    %v1438 = vpack.c.b16 %v1278, %v1270
    %v1439 = vpack.c.b16 %v1279, %v1271
    %v1440 = vpack.c.b16 %v1280, %v1272
    %v1441 = vpack.c.b16 %v1281, %v1273
    %v1442 = vpack.c.b16 %v1290, %v1282
    %v1443 = vpack.c.b16 %v1291, %v1283
    %v1444 = vpack.c.b16 %v1292, %v1284
    %v1445 = vpack.c.b16 %v1293, %v1285
    %v1446 = vpack.c.b16 %v1294, %v1286
    %v1447 = vpack.c.b16 %v1295, %v1287
    %v1448 = vpack.c.b16 %v1296, %v1288
    %v1449 = vpack.c.b16 %v1297, %v1289
    %v1450 = vpack.c.b16 %v1306, %v1298
    %v1451 = vpack.c.b16 %v1307, %v1299
    %v1452 = vpack.c.b16 %v1308, %v1300
    %v1453 = vpack.c.b16 %v1309, %v1301
    %v1454 = vpack.c.b16 %v1310, %v1302
    %v1455 = vpack.c.b16 %v1311, %v1303
    %v1456 = vpack.c.b16 %v1312, %v1304
    %v1457 = vpack.c.b16 %v1313, %v1305
    %v1458 = vpack.c.b16 %v1322, %v1314
    %v1459 = vpack.c.b16 %v1323, %v1315
    %v1460 = vpack.c.b16 %v1324, %v1316
    %v1461 = vpack.c.b16 %v1325, %v1317
    %v1462 = vpack.c.b16 %v1326, %v1318
    %v1463 = vpack.c.b16 %v1327, %v1319
    %v1464 = vpack.c.b16 %v1328, %v1320
    %v1465 = vpack.c.b16 %v1329, %v1321
    %v1466 = vpack.c.b16 %v1338, %v1330
    %v1467 = vpack.c.b16 %v1339, %v1331
    %v1468 = vpack.c.b16 %v1340, %v1332
    %v1469 = vpack.c.b16 %v1341, %v1333
    %v1470 = vpack.c.b16 %v1342, %v1334
    %v1471 = vpack.c.b16 %v1343, %v1335
    %v1472 = vpack.c.b16 %v1344, %v1336
    %v1473 = vpack.c.b16 %v1345, %v1337
    %1602 = vmatprep.subr.bf16.mxu0 %v1347
    %1603 = vmatpush1.bf16.msra.mxu0 %v1346
    %1604 = vmatprep.subr.bf16.mxu0 %v1355
    %1605 = vmatpush1.bf16.msra.mxu0 %v1354
    %1606 = vmatprep.subr.bf16.mxu0 %v1363
    %1607 = vmatpush1.bf16.msra.mxu0 %v1362
    %1608 = vmatprep.subr.bf16.mxu0 %v1371
    %1609 = vmatpush1.bf16.msra.mxu0 %v1370
    %1610 = vmatprep.subr.bf16.mxu0 %v1379
    %1611 = vmatpush1.bf16.msra.mxu0 %v1378
    %1612 = vmatprep.subr.bf16.mxu0 %v1387
    %1613 = vmatpush1.bf16.msra.mxu0 %v1386
    %1614 = vmatprep.subr.bf16.mxu0 %v1395
    %1615 = vmatpush1.bf16.msra.mxu0 %v1394
    %1616 = vmatprep.subr.bf16.mxu0 %v1403
    %1617 = vmatpush1.bf16.msra.mxu0 %v1402
    %1618 = vmatprep.subr.bf16.mxu0 %v1411
    %1619 = vmatpush1.bf16.msra.mxu0 %v1410
    %1620 = vmatprep.subr.bf16.mxu0 %v1419
    %1621 = vmatpush1.bf16.msra.mxu0 %v1418
    %1622 = vmatprep.subr.bf16.mxu0 %v1427
    %1623 = vmatpush1.bf16.msra.mxu0 %v1426
    %1624 = vmatprep.subr.bf16.mxu0 %v1435
    %1625 = vmatpush1.bf16.msra.mxu0 %v1434
    %1626 = vmatprep.subr.bf16.mxu0 %v1443
    %1627 = vmatpush1.bf16.msra.mxu0 %v1442
    %1628 = vmatprep.subr.bf16.mxu0 %v1451
    %1629 = vmatpush1.bf16.msra.mxu0 %v1450
    %1630 = vmatprep.subr.bf16.mxu0 %v1459
    %1631 = vmatpush1.bf16.msra.mxu0 %v1458
    %1632 = vmatprep.subr.bf16.mxu0 %v1467
    %1633 = vmatpush1.bf16.msra.mxu0 %v1466
    %1634 = vmatprep.mubr.bf16.mxu0 %v761
    %1635 = vmatmul.mubr.bf16.gmra.mrb[0].mxu0 %v760
    %v1636 = vpop.f32.mrb[0].mxu0
    %v1637 = vadd.f32 %v925, %v1636
    %v1638 = vpop.f32.mrb[0].mxu0
    %v1639 = vadd.f32 %v929, %v1638
    %v1640 = vpop.f32.mrb[0].mxu0
    %v1641 = vadd.f32 %v925, %v1640
    %v1642 = vpop.f32.mrb[0].mxu0
    %v1643 = vadd.f32 %v929, %v1642
    %1644 = vmatprep.mubr.bf16.mxu0 %v763
    %1645 = vmatmul.mubr.bf16.gmra.mrb[0].mxu0 %v762
    %v1646 = vpop.f32.mrb[0].mxu0
    %v1647 = vadd.f32 %v925, %v1646
    %v1648 = vpop.f32.mrb[0].mxu0
    %v1649 = vadd.f32 %v929, %v1648
    %v1650 = vpop.f32.mrb[0].mxu0
    %v1651 = vadd.f32 %v925, %v1650
    %v1652 = vpop.f32.mrb[0].mxu0
    %v1653 = vadd.f32 %v929, %v1652
    %1654 = vmatprep.mubr.bf16.mxu0 %v765
    %1655 = vmatmul.mubr.bf16.gmra.mrb[0].mxu0 %v764
    %v1656 = vpop.f32.mrb[0].mxu0
    %v1657 = vadd.f32 %v925, %v1656
    %v1658 = vpop.f32.mrb[0].mxu0
    %v1659 = vadd.f32 %v929, %v1658
    %v1660 = vpop.f32.mrb[0].mxu0
    %v1661 = vadd.f32 %v925, %v1660
    %v1662 = vpop.f32.mrb[0].mxu0
    %v1663 = vadd.f32 %v929, %v1662
    %1664 = vmatprep.mubr.bf16.mxu0 %v767
    %1665 = vmatmul.mubr.bf16.gmra.mrb[0].mxu0 %v766
    %v1666 = vpop.f32.mrb[0].mxu0
    %v1667 = vadd.f32 %v925, %v1666
    %v1668 = vpop.f32.mrb[0].mxu0
    %v1669 = vadd.f32 %v929, %v1668
    %v1670 = vpop.f32.mrb[0].mxu0
    %v1671 = vadd.f32 %v925, %v1670
    %v1672 = vpop.f32.mrb[0].mxu0
    %v1673 = vadd.f32 %v929, %v1672
    %1674 = vmatprep.mubr.bf16.mxu0 %v769
    %1675 = vmatmul.mubr.bf16.gmra.mrb[0].mxu0 %v768
    %v1676 = vpop.f32.mrb[0].mxu0
    %v1677 = vadd.f32 %v925, %v1676
    %v1678 = vpop.f32.mrb[0].mxu0
    %v1679 = vadd.f32 %v929, %v1678
    %v1680 = vpop.f32.mrb[0].mxu0
    %v1681 = vadd.f32 %v925, %v1680
    %v1682 = vpop.f32.mrb[0].mxu0
    %v1683 = vadd.f32 %v929, %v1682
    %1684 = vmatprep.mubr.bf16.mxu0 %v771
    %1685 = vmatmul.mubr.bf16.gmra.mrb[0].mxu0 %v770
    %v1686 = vpop.f32.mrb[0].mxu0
    %v1687 = vadd.f32 %v925, %v1686
    %v1688 = vpop.f32.mrb[0].mxu0
    %v1689 = vadd.f32 %v929, %v1688
    %v1690 = vpop.f32.mrb[0].mxu0
    %v1691 = vadd.f32 %v925, %v1690
    %v1692 = vpop.f32.mrb[0].mxu0
    %v1693 = vadd.f32 %v929, %v1692
    %1694 = vmatprep.mubr.bf16.mxu0 %v773
    %1695 = vmatmul.mubr.bf16.gmra.mrb[0].mxu0 %v772
    %v1696 = vpop.f32.mrb[0].mxu0
    %v1697 = vadd.f32 %v925, %v1696
    %v1698 = vpop.f32.mrb[0].mxu0
    %v1699 = vadd.f32 %v929, %v1698
    %v1700 = vpop.f32.mrb[0].mxu0
    %v1701 = vadd.f32 %v925, %v1700
    %v1702 = vpop.f32.mrb[0].mxu0
    %v1703 = vadd.f32 %v929, %v1702
    %1704 = vmatprep.mubr.bf16.mxu0 %v775
    %1705 = vmatmul.mubr.bf16.gmra.mrb[0].mxu0 %v774
    %v1706 = vpop.f32.mrb[0].mxu0
    %v1707 = vadd.f32 %v925, %v1706
    %v1708 = vpop.f32.mrb[0].mxu0
    %v1709 = vadd.f32 %v929, %v1708
    %v1710 = vpop.f32.mrb[0].mxu0
    %v1711 = vadd.f32 %v925, %v1710
    %v1712 = vpop.f32.mrb[0].mxu0
    %v1713 = vadd.f32 %v929, %v1712
    %1714 = vmatprep.mubr.bf16.mxu0 %v777
    %1715 = vmatmul.mubr.bf16.gmra.mrb[0].mxu0 %v776
    %v1716 = vpop.f32.mrb[0].mxu0
    %v1717 = vadd.f32 %v925, %v1716
    %v1718 = vpop.f32.mrb[0].mxu0
    %v1719 = vadd.f32 %v929, %v1718
    %v1720 = vpop.f32.mrb[0].mxu0
    %v1721 = vadd.f32 %v925, %v1720
    %v1722 = vpop.f32.mrb[0].mxu0
    %v1723 = vadd.f32 %v929, %v1722
    %1724 = vmatprep.mubr.bf16.mxu0 %v779
    %1725 = vmatmul.mubr.bf16.gmra.mrb[0].mxu0 %v778
    %v1726 = vpop.f32.mrb[0].mxu0
    %v1727 = vadd.f32 %v925, %v1726
    %v1728 = vpop.f32.mrb[0].mxu0
    %v1729 = vadd.f32 %v929, %v1728
    %v1730 = vpop.f32.mrb[0].mxu0
    %v1731 = vadd.f32 %v925, %v1730
    %v1732 = vpop.f32.mrb[0].mxu0
    %v1733 = vadd.f32 %v929, %v1732
    %1734 = vmatprep.mubr.bf16.mxu0 %v781
    %1735 = vmatmul.mubr.bf16.gmra.mrb[0].mxu0 %v780
    %v1736 = vpop.f32.mrb[0].mxu0
    %v1737 = vadd.f32 %v925, %v1736
    %v1738 = vpop.f32.mrb[0].mxu0
    %v1739 = vadd.f32 %v929, %v1738
    %v1740 = vpop.f32.mrb[0].mxu0
    %v1741 = vadd.f32 %v925, %v1740
    %v1742 = vpop.f32.mrb[0].mxu0
    %v1743 = vadd.f32 %v929, %v1742
    %1744 = vmatprep.mubr.bf16.mxu0 %v783
    %1745 = vmatmul.mubr.bf16.gmra.mrb[0].mxu0 %v782
    %v1746 = vpop.f32.mrb[0].mxu0
    %v1747 = vadd.f32 %v925, %v1746
    %v1748 = vpop.f32.mrb[0].mxu0
    %v1749 = vadd.f32 %v929, %v1748
    %v1750 = vpop.f32.mrb[0].mxu0
    %v1751 = vadd.f32 %v925, %v1750
    %v1752 = vpop.f32.mrb[0].mxu0
    %v1753 = vadd.f32 %v929, %v1752
    %1754 = vmatprep.mubr.bf16.mxu0 %v785
    %1755 = vmatmul.mubr.bf16.gmra.mrb[0].mxu0 %v784
    %v1756 = vpop.f32.mrb[0].mxu0
    %v1757 = vadd.f32 %v925, %v1756
    %v1758 = vpop.f32.mrb[0].mxu0
    %v1759 = vadd.f32 %v929, %v1758
    %v1760 = vpop.f32.mrb[0].mxu0
    %v1761 = vadd.f32 %v925, %v1760
    %v1762 = vpop.f32.mrb[0].mxu0
    %v1763 = vadd.f32 %v929, %v1762
    %1764 = vmatprep.mubr.bf16.mxu0 %v787
    %1765 = vmatmul.mubr.bf16.gmra.mrb[0].mxu0 %v786
    %v1766 = vpop.f32.mrb[0].mxu0
    %v1767 = vadd.f32 %v925, %v1766
    %v1768 = vpop.f32.mrb[0].mxu0
    %v1769 = vadd.f32 %v929, %v1768
    %v1770 = vpop.f32.mrb[0].mxu0
    %v1771 = vadd.f32 %v925, %v1770
    %v1772 = vpop.f32.mrb[0].mxu0
    %v1773 = vadd.f32 %v929, %v1772
    %1774 = vmatprep.mubr.bf16.mxu0 %v789
    %1775 = vmatmul.mubr.bf16.gmra.mrb[0].mxu0 %v788
    %v1776 = vpop.f32.mrb[0].mxu0
    %v1777 = vadd.f32 %v925, %v1776
    %v1778 = vpop.f32.mrb[0].mxu0
    %v1779 = vadd.f32 %v929, %v1778
    %v1780 = vpop.f32.mrb[0].mxu0
    %v1781 = vadd.f32 %v925, %v1780
    %v1782 = vpop.f32.mrb[0].mxu0
    %v1783 = vadd.f32 %v929, %v1782
    %1784 = vmatprep.mubr.bf16.mxu0 %v791
    %1785 = vmatmul.mubr.bf16.gmra.mrb[0].mxu0 %v790
    %v1786 = vpop.f32.mrb[0].mxu0
    %v1787 = vadd.f32 %v925, %v1786
    %v1788 = vpop.f32.mrb[0].mxu0
    %v1789 = vadd.f32 %v929, %v1788
    %v1790 = vpop.f32.mrb[0].mxu0
    %v1791 = vadd.f32 %v925, %v1790
    %v1792 = vpop.f32.mrb[0].mxu0
    %v1793 = vadd.f32 %v929, %v1792
    %1794 = vdwg.mxu0
    %1795 = vmatprep.subr.bf16.mxu0 %v1349
    %1796 = vmatpush1.bf16.msra.mxu0 %v1348
    %1797 = vmatprep.subr.bf16.mxu0 %v1357
    %1798 = vmatpush1.bf16.msra.mxu0 %v1356
    %1799 = vmatprep.subr.bf16.mxu0 %v1365
    %1800 = vmatpush1.bf16.msra.mxu0 %v1364
    %1801 = vmatprep.subr.bf16.mxu0 %v1373
    %1802 = vmatpush1.bf16.msra.mxu0 %v1372
    %1803 = vmatprep.subr.bf16.mxu0 %v1381
    %1804 = vmatpush1.bf16.msra.mxu0 %v1380
    %1805 = vmatprep.subr.bf16.mxu0 %v1389
    %1806 = vmatpush1.bf16.msra.mxu0 %v1388
    %1807 = vmatprep.subr.bf16.mxu0 %v1397
    %1808 = vmatpush1.bf16.msra.mxu0 %v1396
    %1809 = vmatprep.subr.bf16.mxu0 %v1405
    %1810 = vmatpush1.bf16.msra.mxu0 %v1404
    %1811 = vmatprep.subr.bf16.mxu0 %v1413
    %1812 = vmatpush1.bf16.msra.mxu0 %v1412
    %1813 = vmatprep.subr.bf16.mxu0 %v1421
    %1814 = vmatpush1.bf16.msra.mxu0 %v1420
    %1815 = vmatprep.subr.bf16.mxu0 %v1429
    %1816 = vmatpush1.bf16.msra.mxu0 %v1428
    %1817 = vmatprep.subr.bf16.mxu0 %v1437
    %1818 = vmatpush1.bf16.msra.mxu0 %v1436
    %1819 = vmatprep.subr.bf16.mxu0 %v1445
    %1820 = vmatpush1.bf16.msra.mxu0 %v1444
    %1821 = vmatprep.subr.bf16.mxu0 %v1453
    %1822 = vmatpush1.bf16.msra.mxu0 %v1452
    %1823 = vmatprep.subr.bf16.mxu0 %v1461
    %1824 = vmatpush1.bf16.msra.mxu0 %v1460
    %1825 = vmatprep.subr.bf16.mxu0 %v1469
    %1826 = vmatpush1.bf16.msra.mxu0 %v1468
    %1827 = vmatprep.mubr.bf16.mxu0 %v761
    %1828 = vmatmul.mubr.bf16.gmra.mrb[0].mxu0 %v760
    %v1829 = vpop.f32.mrb[0].mxu0
    %v1830 = vadd.f32 %v933, %v1829
    %v1831 = vpop.f32.mrb[0].mxu0
    %v1832 = vadd.f32 %v937, %v1831
    %v1833 = vpop.f32.mrb[0].mxu0
    %v1834 = vadd.f32 %v933, %v1833
    %v1835 = vpop.f32.mrb[0].mxu0
    %v1836 = vadd.f32 %v937, %v1835
    %1837 = vmatprep.mubr.bf16.mxu0 %v763
    %1838 = vmatmul.mubr.bf16.gmra.mrb[0].mxu0 %v762
    %v1839 = vpop.f32.mrb[0].mxu0
    %v1840 = vadd.f32 %v933, %v1839
    %v1841 = vpop.f32.mrb[0].mxu0
    %v1842 = vadd.f32 %v937, %v1841
    %v1843 = vpop.f32.mrb[0].mxu0
    %v1844 = vadd.f32 %v933, %v1843
    %v1845 = vpop.f32.mrb[0].mxu0
    %v1846 = vadd.f32 %v937, %v1845
    %1847 = vmatprep.mubr.bf16.mxu0 %v765
    %1848 = vmatmul.mubr.bf16.gmra.mrb[0].mxu0 %v764
    %v1849 = vpop.f32.mrb[0].mxu0
    %v1850 = vadd.f32 %v933, %v1849
    %v1851 = vpop.f32.mrb[0].mxu0
    %v1852 = vadd.f32 %v937, %v1851
    %v1853 = vpop.f32.mrb[0].mxu0
    %v1854 = vadd.f32 %v933, %v1853
    %v1855 = vpop.f32.mrb[0].mxu0
    %v1856 = vadd.f32 %v937, %v1855
    %1857 = vmatprep.mubr.bf16.mxu0 %v767
    %1858 = vmatmul.mubr.bf16.gmra.mrb[0].mxu0 %v766
    %v1859 = vpop.f32.mrb[0].mxu0
    %v1860 = vadd.f32 %v933, %v1859
    %v1861 = vpop.f32.mrb[0].mxu0
    %v1862 = vadd.f32 %v937, %v1861
    %v1863 = vpop.f32.mrb[0].mxu0
    %v1864 = vadd.f32 %v933, %v1863
    %v1865 = vpop.f32.mrb[0].mxu0
    %v1866 = vadd.f32 %v937, %v1865
    %1867 = vmatprep.mubr.bf16.mxu0 %v769
    %1868 = vmatmul.mubr.bf16.gmra.mrb[0].mxu0 %v768
    %v1869 = vpop.f32.mrb[0].mxu0
    %v1870 = vadd.f32 %v933, %v1869
    %v1871 = vpop.f32.mrb[0].mxu0
    %v1872 = vadd.f32 %v937, %v1871
    %v1873 = vpop.f32.mrb[0].mxu0
    %v1874 = vadd.f32 %v933, %v1873
    %v1875 = vpop.f32.mrb[0].mxu0
    %v1876 = vadd.f32 %v937, %v1875
    %1877 = vmatprep.mubr.bf16.mxu0 %v771
    %1878 = vmatmul.mubr.bf16.gmra.mrb[0].mxu0 %v770
    %v1879 = vpop.f32.mrb[0].mxu0
    %v1880 = vadd.f32 %v933, %v1879
    %v1881 = vpop.f32.mrb[0].mxu0
    %v1882 = vadd.f32 %v937, %v1881
    %v1883 = vpop.f32.mrb[0].mxu0
    %v1884 = vadd.f32 %v933, %v1883
    %v1885 = vpop.f32.mrb[0].mxu0
    %v1886 = vadd.f32 %v937, %v1885
    %1887 = vmatprep.mubr.bf16.mxu0 %v773
    %1888 = vmatmul.mubr.bf16.gmra.mrb[0].mxu0 %v772
    %v1889 = vpop.f32.mrb[0].mxu0
    %v1890 = vadd.f32 %v933, %v1889
    %v1891 = vpop.f32.mrb[0].mxu0
    %v1892 = vadd.f32 %v937, %v1891
    %v1893 = vpop.f32.mrb[0].mxu0
    %v1894 = vadd.f32 %v933, %v1893
    %v1895 = vpop.f32.mrb[0].mxu0
    %v1896 = vadd.f32 %v937, %v1895
    %1897 = vmatprep.mubr.bf16.mxu0 %v775
    %1898 = vmatmul.mubr.bf16.gmra.mrb[0].mxu0 %v774
    %v1899 = vpop.f32.mrb[0].mxu0
    %v1900 = vadd.f32 %v933, %v1899
    %v1901 = vpop.f32.mrb[0].mxu0
    %v1902 = vadd.f32 %v937, %v1901
    %v1903 = vpop.f32.mrb[0].mxu0
    %v1904 = vadd.f32 %v933, %v1903
    %v1905 = vpop.f32.mrb[0].mxu0
    %v1906 = vadd.f32 %v937, %v1905
    %1907 = vmatprep.mubr.bf16.mxu0 %v777
    %1908 = vmatmul.mubr.bf16.gmra.mrb[0].mxu0 %v776
    %v1909 = vpop.f32.mrb[0].mxu0
    %v1910 = vadd.f32 %v933, %v1909
    %v1911 = vpop.f32.mrb[0].mxu0
    %v1912 = vadd.f32 %v937, %v1911
    %v1913 = vpop.f32.mrb[0].mxu0
    %v1914 = vadd.f32 %v933, %v1913
    %v1915 = vpop.f32.mrb[0].mxu0
    %v1916 = vadd.f32 %v937, %v1915
    %1917 = vmatprep.mubr.bf16.mxu0 %v779
    %1918 = vmatmul.mubr.bf16.gmra.mrb[0].mxu0 %v778
    %v1919 = vpop.f32.mrb[0].mxu0
    %v1920 = vadd.f32 %v933, %v1919
    %v1921 = vpop.f32.mrb[0].mxu0
    %v1922 = vadd.f32 %v937, %v1921
    %v1923 = vpop.f32.mrb[0].mxu0
    %v1924 = vadd.f32 %v933, %v1923
    %v1925 = vpop.f32.mrb[0].mxu0
    %v1926 = vadd.f32 %v937, %v1925
    %1927 = vmatprep.mubr.bf16.mxu0 %v781
    %1928 = vmatmul.mubr.bf16.gmra.mrb[0].mxu0 %v780
    %v1929 = vpop.f32.mrb[0].mxu0
    %v1930 = vadd.f32 %v933, %v1929
    %v1931 = vpop.f32.mrb[0].mxu0
    %v1932 = vadd.f32 %v937, %v1931
    %v1933 = vpop.f32.mrb[0].mxu0
    %v1934 = vadd.f32 %v933, %v1933
    %v1935 = vpop.f32.mrb[0].mxu0
    %v1936 = vadd.f32 %v937, %v1935
    %1937 = vmatprep.mubr.bf16.mxu0 %v783
    %1938 = vmatmul.mubr.bf16.gmra.mrb[0].mxu0 %v782
    %v1939 = vpop.f32.mrb[0].mxu0
    %v1940 = vadd.f32 %v933, %v1939
    %v1941 = vpop.f32.mrb[0].mxu0
    %v1942 = vadd.f32 %v937, %v1941
    %v1943 = vpop.f32.mrb[0].mxu0
    %v1944 = vadd.f32 %v933, %v1943
    %v1945 = vpop.f32.mrb[0].mxu0
    %v1946 = vadd.f32 %v937, %v1945
    %1947 = vmatprep.mubr.bf16.mxu0 %v785
    %1948 = vmatmul.mubr.bf16.gmra.mrb[0].mxu0 %v784
    %v1949 = vpop.f32.mrb[0].mxu0
    %v1950 = vadd.f32 %v933, %v1949
    %v1951 = vpop.f32.mrb[0].mxu0
    %v1952 = vadd.f32 %v937, %v1951
    %v1953 = vpop.f32.mrb[0].mxu0
    %v1954 = vadd.f32 %v933, %v1953
    %v1955 = vpop.f32.mrb[0].mxu0
    %v1956 = vadd.f32 %v937, %v1955
    %1957 = vmatprep.mubr.bf16.mxu0 %v787
    %1958 = vmatmul.mubr.bf16.gmra.mrb[0].mxu0 %v786
    %v1959 = vpop.f32.mrb[0].mxu0
    %v1960 = vadd.f32 %v933, %v1959
    %v1961 = vpop.f32.mrb[0].mxu0
    %v1962 = vadd.f32 %v937, %v1961
    %v1963 = vpop.f32.mrb[0].mxu0
    %v1964 = vadd.f32 %v933, %v1963
    %v1965 = vpop.f32.mrb[0].mxu0
    %v1966 = vadd.f32 %v937, %v1965
    %1967 = vmatprep.mubr.bf16.mxu0 %v789
    %1968 = vmatmul.mubr.bf16.gmra.mrb[0].mxu0 %v788
    %v1969 = vpop.f32.mrb[0].mxu0
    %v1970 = vadd.f32 %v933, %v1969
    %v1971 = vpop.f32.mrb[0].mxu0
    %v1972 = vadd.f32 %v937, %v1971
    %v1973 = vpop.f32.mrb[0].mxu0
    %v1974 = vadd.f32 %v933, %v1973
    %v1975 = vpop.f32.mrb[0].mxu0
    %v1976 = vadd.f32 %v937, %v1975
    %1977 = vmatprep.mubr.bf16.mxu0 %v791
    %1978 = vmatmul.mubr.bf16.gmra.mrb[0].mxu0 %v790
    %v1979 = vpop.f32.mrb[0].mxu0
    %v1980 = vadd.f32 %v933, %v1979
    %v1981 = vpop.f32.mrb[0].mxu0
    %v1982 = vadd.f32 %v937, %v1981
    %v1983 = vpop.f32.mrb[0].mxu0
    %v1984 = vadd.f32 %v933, %v1983
    %v1985 = vpop.f32.mrb[0].mxu0
    %v1986 = vadd.f32 %v937, %v1985
    %1987 = vdwg.mxu0
    %1988 = vmatprep.subr.bf16.mxu0 %v1351
    %1989 = vmatpush1.bf16.msra.mxu0 %v1350
    %1990 = vmatprep.subr.bf16.mxu0 %v1359
    %1991 = vmatpush1.bf16.msra.mxu0 %v1358
    %1992 = vmatprep.subr.bf16.mxu0 %v1367
    %1993 = vmatpush1.bf16.msra.mxu0 %v1366
    %1994 = vmatprep.subr.bf16.mxu0 %v1375
    %1995 = vmatpush1.bf16.msra.mxu0 %v1374
    %1996 = vmatprep.subr.bf16.mxu0 %v1383
    %1997 = vmatpush1.bf16.msra.mxu0 %v1382
    %1998 = vmatprep.subr.bf16.mxu0 %v1391
    %1999 = vmatpush1.bf16.msra.mxu0 %v1390
    %2000 = vmatprep.subr.bf16.mxu0 %v1399
    %2001 = vmatpush1.bf16.msra.mxu0 %v1398
    %2002 = vmatprep.subr.bf16.mxu0 %v1407
    %2003 = vmatpush1.bf16.msra.mxu0 %v1406
    %2004 = vmatprep.subr.bf16.mxu0 %v1415
    %2005 = vmatpush1.bf16.msra.mxu0 %v1414
    %2006 = vmatprep.subr.bf16.mxu0 %v1423
    %2007 = vmatpush1.bf16.msra.mxu0 %v1422
    %2008 = vmatprep.subr.bf16.mxu0 %v1431
    %2009 = vmatpush1.bf16.msra.mxu0 %v1430
    %2010 = vmatprep.subr.bf16.mxu0 %v1439
    %2011 = vmatpush1.bf16.msra.mxu0 %v1438
    %2012 = vmatprep.subr.bf16.mxu0 %v1447
    %2013 = vmatpush1.bf16.msra.mxu0 %v1446
    %2014 = vmatprep.subr.bf16.mxu0 %v1455
    %2015 = vmatpush1.bf16.msra.mxu0 %v1454
    %2016 = vmatprep.subr.bf16.mxu0 %v1463
    %2017 = vmatpush1.bf16.msra.mxu0 %v1462
    %2018 = vmatprep.subr.bf16.mxu0 %v1471
    %2019 = vmatpush1.bf16.msra.mxu0 %v1470
    %2020 = vmatprep.mubr.bf16.mxu0 %v761
    %2021 = vmatmul.mubr.bf16.gmra.mrb[0].mxu0 %v760
    %v2022 = vpop.f32.mrb[0].mxu0
    %v2023 = vadd.f32 %v941, %v2022
    %v2024 = vpop.f32.mrb[0].mxu0
    %v2025 = vadd.f32 %v945, %v2024
    %v2026 = vpop.f32.mrb[0].mxu0
    %v2027 = vadd.f32 %v941, %v2026
    %v2028 = vpop.f32.mrb[0].mxu0
    %v2029 = vadd.f32 %v945, %v2028
    %2030 = vmatprep.mubr.bf16.mxu0 %v763
    %2031 = vmatmul.mubr.bf16.gmra.mrb[0].mxu0 %v762
    %v2032 = vpop.f32.mrb[0].mxu0
    %v2033 = vadd.f32 %v941, %v2032
    %v2034 = vpop.f32.mrb[0].mxu0
    %v2035 = vadd.f32 %v945, %v2034
    %v2036 = vpop.f32.mrb[0].mxu0
    %v2037 = vadd.f32 %v941, %v2036
    %v2038 = vpop.f32.mrb[0].mxu0
    %v2039 = vadd.f32 %v945, %v2038
    %2040 = vmatprep.mubr.bf16.mxu0 %v765
    %2041 = vmatmul.mubr.bf16.gmra.mrb[0].mxu0 %v764
    %v2042 = vpop.f32.mrb[0].mxu0
    %v2043 = vadd.f32 %v941, %v2042
    %v2044 = vpop.f32.mrb[0].mxu0
    %v2045 = vadd.f32 %v945, %v2044
    %v2046 = vpop.f32.mrb[0].mxu0
    %v2047 = vadd.f32 %v941, %v2046
    %v2048 = vpop.f32.mrb[0].mxu0
    %v2049 = vadd.f32 %v945, %v2048
    %2050 = vmatprep.mubr.bf16.mxu0 %v767
    %2051 = vmatmul.mubr.bf16.gmra.mrb[0].mxu0 %v766
    %v2052 = vpop.f32.mrb[0].mxu0
    %v2053 = vadd.f32 %v941, %v2052
    %v2054 = vpop.f32.mrb[0].mxu0
    %v2055 = vadd.f32 %v945, %v2054
    %v2056 = vpop.f32.mrb[0].mxu0
    %v2057 = vadd.f32 %v941, %v2056
    %v2058 = vpop.f32.mrb[0].mxu0
    %v2059 = vadd.f32 %v945, %v2058
    %2060 = vmatprep.mubr.bf16.mxu0 %v769
    %2061 = vmatmul.mubr.bf16.gmra.mrb[0].mxu0 %v768
    %v2062 = vpop.f32.mrb[0].mxu0
    %v2063 = vadd.f32 %v941, %v2062
    %v2064 = vpop.f32.mrb[0].mxu0
    %v2065 = vadd.f32 %v945, %v2064
    %v2066 = vpop.f32.mrb[0].mxu0
    %v2067 = vadd.f32 %v941, %v2066
    %v2068 = vpop.f32.mrb[0].mxu0
    %v2069 = vadd.f32 %v945, %v2068
    %2070 = vmatprep.mubr.bf16.mxu0 %v771
    %2071 = vmatmul.mubr.bf16.gmra.mrb[0].mxu0 %v770
    %v2072 = vpop.f32.mrb[0].mxu0
    %v2073 = vadd.f32 %v941, %v2072
    %v2074 = vpop.f32.mrb[0].mxu0
    %v2075 = vadd.f32 %v945, %v2074
    %v2076 = vpop.f32.mrb[0].mxu0
    %v2077 = vadd.f32 %v941, %v2076
    %v2078 = vpop.f32.mrb[0].mxu0
    %v2079 = vadd.f32 %v945, %v2078
    %2080 = vmatprep.mubr.bf16.mxu0 %v773
    %2081 = vmatmul.mubr.bf16.gmra.mrb[0].mxu0 %v772
    %v2082 = vpop.f32.mrb[0].mxu0
    %v2083 = vadd.f32 %v941, %v2082
    %v2084 = vpop.f32.mrb[0].mxu0
    %v2085 = vadd.f32 %v945, %v2084
    %v2086 = vpop.f32.mrb[0].mxu0
    %v2087 = vadd.f32 %v941, %v2086
    %v2088 = vpop.f32.mrb[0].mxu0
    %v2089 = vadd.f32 %v945, %v2088
    %2090 = vmatprep.mubr.bf16.mxu0 %v775
    %2091 = vmatmul.mubr.bf16.gmra.mrb[0].mxu0 %v774
    %v2092 = vpop.f32.mrb[0].mxu0
    %v2093 = vadd.f32 %v941, %v2092
    %v2094 = vpop.f32.mrb[0].mxu0
    %v2095 = vadd.f32 %v945, %v2094
    %v2096 = vpop.f32.mrb[0].mxu0
    %v2097 = vadd.f32 %v941, %v2096
    %v2098 = vpop.f32.mrb[0].mxu0
    %v2099 = vadd.f32 %v945, %v2098
    %2100 = vmatprep.mubr.bf16.mxu0 %v777
    %2101 = vmatmul.mubr.bf16.gmra.mrb[0].mxu0 %v776
    %v2102 = vpop.f32.mrb[0].mxu0
    %v2103 = vadd.f32 %v941, %v2102
    %v2104 = vpop.f32.mrb[0].mxu0
    %v2105 = vadd.f32 %v945, %v2104
    %v2106 = vpop.f32.mrb[0].mxu0
    %v2107 = vadd.f32 %v941, %v2106
    %v2108 = vpop.f32.mrb[0].mxu0
    %v2109 = vadd.f32 %v945, %v2108
    %2110 = vmatprep.mubr.bf16.mxu0 %v779
    %2111 = vmatmul.mubr.bf16.gmra.mrb[0].mxu0 %v778
    %v2112 = vpop.f32.mrb[0].mxu0
    %v2113 = vadd.f32 %v941, %v2112
    %v2114 = vpop.f32.mrb[0].mxu0
    %v2115 = vadd.f32 %v945, %v2114
    %v2116 = vpop.f32.mrb[0].mxu0
    %v2117 = vadd.f32 %v941, %v2116
    %v2118 = vpop.f32.mrb[0].mxu0
    %v2119 = vadd.f32 %v945, %v2118
    %2120 = vmatprep.mubr.bf16.mxu0 %v781
    %2121 = vmatmul.mubr.bf16.gmra.mrb[0].mxu0 %v780
    %v2122 = vpop.f32.mrb[0].mxu0
    %v2123 = vadd.f32 %v941, %v2122
    %v2124 = vpop.f32.mrb[0].mxu0
    %v2125 = vadd.f32 %v945, %v2124
    %v2126 = vpop.f32.mrb[0].mxu0
    %v2127 = vadd.f32 %v941, %v2126
    %v2128 = vpop.f32.mrb[0].mxu0
    %v2129 = vadd.f32 %v945, %v2128
    %2130 = vmatprep.mubr.bf16.mxu0 %v783
    %2131 = vmatmul.mubr.bf16.gmra.mrb[0].mxu0 %v782
    %v2132 = vpop.f32.mrb[0].mxu0
    %v2133 = vadd.f32 %v941, %v2132
    %v2134 = vpop.f32.mrb[0].mxu0
    %v2135 = vadd.f32 %v945, %v2134
    %v2136 = vpop.f32.mrb[0].mxu0
    %v2137 = vadd.f32 %v941, %v2136
    %v2138 = vpop.f32.mrb[0].mxu0
    %v2139 = vadd.f32 %v945, %v2138
    %2140 = vmatprep.mubr.bf16.mxu0 %v785
    %2141 = vmatmul.mubr.bf16.gmra.mrb[0].mxu0 %v784
    %v2142 = vpop.f32.mrb[0].mxu0
    %v2143 = vadd.f32 %v941, %v2142
    %v2144 = vpop.f32.mrb[0].mxu0
    %v2145 = vadd.f32 %v945, %v2144
    %v2146 = vpop.f32.mrb[0].mxu0
    %v2147 = vadd.f32 %v941, %v2146
    %v2148 = vpop.f32.mrb[0].mxu0
    %v2149 = vadd.f32 %v945, %v2148
    %2150 = vmatprep.mubr.bf16.mxu0 %v787
    %2151 = vmatmul.mubr.bf16.gmra.mrb[0].mxu0 %v786
    %v2152 = vpop.f32.mrb[0].mxu0
    %v2153 = vadd.f32 %v941, %v2152
    %v2154 = vpop.f32.mrb[0].mxu0
    %v2155 = vadd.f32 %v945, %v2154
    %v2156 = vpop.f32.mrb[0].mxu0
    %v2157 = vadd.f32 %v941, %v2156
    %v2158 = vpop.f32.mrb[0].mxu0
    %v2159 = vadd.f32 %v945, %v2158
    %2160 = vmatprep.mubr.bf16.mxu0 %v789
    %2161 = vmatmul.mubr.bf16.gmra.mrb[0].mxu0 %v788
    %v2162 = vpop.f32.mrb[0].mxu0
    %v2163 = vadd.f32 %v941, %v2162
    %v2164 = vpop.f32.mrb[0].mxu0
    %v2165 = vadd.f32 %v945, %v2164
    %v2166 = vpop.f32.mrb[0].mxu0
    %v2167 = vadd.f32 %v941, %v2166
    %v2168 = vpop.f32.mrb[0].mxu0
    %v2169 = vadd.f32 %v945, %v2168
    %2170 = vmatprep.mubr.bf16.mxu0 %v791
    %2171 = vmatmul.mubr.bf16.gmra.mrb[0].mxu0 %v790
    %v2172 = vpop.f32.mrb[0].mxu0
    %v2173 = vadd.f32 %v941, %v2172
    %v2174 = vpop.f32.mrb[0].mxu0
    %v2175 = vadd.f32 %v945, %v2174
    %v2176 = vpop.f32.mrb[0].mxu0
    %v2177 = vadd.f32 %v941, %v2176
    %v2178 = vpop.f32.mrb[0].mxu0
    %v2179 = vadd.f32 %v945, %v2178
    %2180 = vdwg.mxu0
    %2181 = vmatprep.subr.bf16.mxu0 %v1353
    %2182 = vmatpush1.bf16.msra.mxu0 %v1352
    %2183 = vmatprep.subr.bf16.mxu0 %v1361
    %2184 = vmatpush1.bf16.msra.mxu0 %v1360
    %2185 = vmatprep.subr.bf16.mxu0 %v1369
    %2186 = vmatpush1.bf16.msra.mxu0 %v1368
    %2187 = vmatprep.subr.bf16.mxu0 %v1377
    %2188 = vmatpush1.bf16.msra.mxu0 %v1376
    %2189 = vmatprep.subr.bf16.mxu0 %v1385
    %2190 = vmatpush1.bf16.msra.mxu0 %v1384
    %2191 = vmatprep.subr.bf16.mxu0 %v1393
    %2192 = vmatpush1.bf16.msra.mxu0 %v1392
    %2193 = vmatprep.subr.bf16.mxu0 %v1401
    %2194 = vmatpush1.bf16.msra.mxu0 %v1400
    %2195 = vmatprep.subr.bf16.mxu0 %v1409
    %2196 = vmatpush1.bf16.msra.mxu0 %v1408
    %2197 = vmatprep.subr.bf16.mxu0 %v1417
    %2198 = vmatpush1.bf16.msra.mxu0 %v1416
    %2199 = vmatprep.subr.bf16.mxu0 %v1425
    %2200 = vmatpush1.bf16.msra.mxu0 %v1424
    %2201 = vmatprep.subr.bf16.mxu0 %v1433
    %2202 = vmatpush1.bf16.msra.mxu0 %v1432
    %2203 = vmatprep.subr.bf16.mxu0 %v1441
    %2204 = vmatpush1.bf16.msra.mxu0 %v1440
    %2205 = vmatprep.subr.bf16.mxu0 %v1449
    %2206 = vmatpush1.bf16.msra.mxu0 %v1448
    %2207 = vmatprep.subr.bf16.mxu0 %v1457
    %2208 = vmatpush1.bf16.msra.mxu0 %v1456
    %2209 = vmatprep.subr.bf16.mxu0 %v1465
    %2210 = vmatpush1.bf16.msra.mxu0 %v1464
    %2211 = vmatprep.subr.bf16.mxu0 %v1473
    %2212 = vmatpush1.bf16.msra.mxu0 %v1472
    %2213 = vmatprep.mubr.bf16.mxu0 %v761
    %2214 = vmatmul.mubr.bf16.gmra.mrb[0].mxu0 %v760
    %v2215 = vpop.f32.mrb[0].mxu0
    %v2216 = vadd.f32 %v949, %v2215
    %v2217 = vpop.f32.mrb[0].mxu0
    %v2218 = vadd.f32 %v953, %v2217
    %v2219 = vpop.f32.mrb[0].mxu0
    %v2220 = vadd.f32 %v949, %v2219
    %v2221 = vpop.f32.mrb[0].mxu0
    %v2222 = vadd.f32 %v953, %v2221
    %2223 = vmatprep.mubr.bf16.mxu0 %v763
    %2224 = vmatmul.mubr.bf16.gmra.mrb[0].mxu0 %v762
    %v2225 = vpop.f32.mrb[0].mxu0
    %v2226 = vadd.f32 %v949, %v2225
    %v2227 = vpop.f32.mrb[0].mxu0
    %v2228 = vadd.f32 %v953, %v2227
    %v2229 = vpop.f32.mrb[0].mxu0
    %v2230 = vadd.f32 %v949, %v2229
    %v2231 = vpop.f32.mrb[0].mxu0
    %v2232 = vadd.f32 %v953, %v2231
    %2233 = vmatprep.mubr.bf16.mxu0 %v765
    %2234 = vmatmul.mubr.bf16.gmra.mrb[0].mxu0 %v764
    %v2235 = vpop.f32.mrb[0].mxu0
    %v2236 = vadd.f32 %v949, %v2235
    %v2237 = vpop.f32.mrb[0].mxu0
    %v2238 = vadd.f32 %v953, %v2237
    %v2239 = vpop.f32.mrb[0].mxu0
    %v2240 = vadd.f32 %v949, %v2239
    %v2241 = vpop.f32.mrb[0].mxu0
    %v2242 = vadd.f32 %v953, %v2241
    %2243 = vmatprep.mubr.bf16.mxu0 %v767
    %2244 = vmatmul.mubr.bf16.gmra.mrb[0].mxu0 %v766
    %v2245 = vpop.f32.mrb[0].mxu0
    %v2246 = vadd.f32 %v949, %v2245
    %v2247 = vpop.f32.mrb[0].mxu0
    %v2248 = vadd.f32 %v953, %v2247
    %v2249 = vpop.f32.mrb[0].mxu0
    %v2250 = vadd.f32 %v949, %v2249
    %v2251 = vpop.f32.mrb[0].mxu0
    %v2252 = vadd.f32 %v953, %v2251
    %2253 = vmatprep.mubr.bf16.mxu0 %v769
    %2254 = vmatmul.mubr.bf16.gmra.mrb[0].mxu0 %v768
    %v2255 = vpop.f32.mrb[0].mxu0
    %v2256 = vadd.f32 %v949, %v2255
    %v2257 = vpop.f32.mrb[0].mxu0
    %v2258 = vadd.f32 %v953, %v2257
    %v2259 = vpop.f32.mrb[0].mxu0
    %v2260 = vadd.f32 %v949, %v2259
    %v2261 = vpop.f32.mrb[0].mxu0
    %v2262 = vadd.f32 %v953, %v2261
    %2263 = vmatprep.mubr.bf16.mxu0 %v771
    %2264 = vmatmul.mubr.bf16.gmra.mrb[0].mxu0 %v770
    %v2265 = vpop.f32.mrb[0].mxu0
    %v2266 = vadd.f32 %v949, %v2265
    %v2267 = vpop.f32.mrb[0].mxu0
    %v2268 = vadd.f32 %v953, %v2267
    %v2269 = vpop.f32.mrb[0].mxu0
    %v2270 = vadd.f32 %v949, %v2269
    %v2271 = vpop.f32.mrb[0].mxu0
    %v2272 = vadd.f32 %v953, %v2271
    %2273 = vmatprep.mubr.bf16.mxu0 %v773
    %2274 = vmatmul.mubr.bf16.gmra.mrb[0].mxu0 %v772
    %v2275 = vpop.f32.mrb[0].mxu0
    %v2276 = vadd.f32 %v949, %v2275
    %v2277 = vpop.f32.mrb[0].mxu0
    %v2278 = vadd.f32 %v953, %v2277
    %v2279 = vpop.f32.mrb[0].mxu0
    %v2280 = vadd.f32 %v949, %v2279
    %v2281 = vpop.f32.mrb[0].mxu0
    %v2282 = vadd.f32 %v953, %v2281
    %2283 = vmatprep.mubr.bf16.mxu0 %v775
    %2284 = vmatmul.mubr.bf16.gmra.mrb[0].mxu0 %v774
    %v2285 = vpop.f32.mrb[0].mxu0
    %v2286 = vadd.f32 %v949, %v2285
    %v2287 = vpop.f32.mrb[0].mxu0
    %v2288 = vadd.f32 %v953, %v2287
    %v2289 = vpop.f32.mrb[0].mxu0
    %v2290 = vadd.f32 %v949, %v2289
    %v2291 = vpop.f32.mrb[0].mxu0
    %v2292 = vadd.f32 %v953, %v2291
    %2293 = vmatprep.mubr.bf16.mxu0 %v777
    %2294 = vmatmul.mubr.bf16.gmra.mrb[0].mxu0 %v776
    %v2295 = vpop.f32.mrb[0].mxu0
    %v2296 = vadd.f32 %v949, %v2295
    %v2297 = vpop.f32.mrb[0].mxu0
    %v2298 = vadd.f32 %v953, %v2297
    %v2299 = vpop.f32.mrb[0].mxu0
    %v2300 = vadd.f32 %v949, %v2299
    %v2301 = vpop.f32.mrb[0].mxu0
    %v2302 = vadd.f32 %v953, %v2301
    %2303 = vmatprep.mubr.bf16.mxu0 %v779
    %2304 = vmatmul.mubr.bf16.gmra.mrb[0].mxu0 %v778
    %v2305 = vpop.f32.mrb[0].mxu0
    %v2306 = vadd.f32 %v949, %v2305
    %v2307 = vpop.f32.mrb[0].mxu0
    %v2308 = vadd.f32 %v953, %v2307
    %v2309 = vpop.f32.mrb[0].mxu0
    %v2310 = vadd.f32 %v949, %v2309
    %v2311 = vpop.f32.mrb[0].mxu0
    %v2312 = vadd.f32 %v953, %v2311
    %2313 = vmatprep.mubr.bf16.mxu0 %v781
    %2314 = vmatmul.mubr.bf16.gmra.mrb[0].mxu0 %v780
    %v2315 = vpop.f32.mrb[0].mxu0
    %v2316 = vadd.f32 %v949, %v2315
    %v2317 = vpop.f32.mrb[0].mxu0
    %v2318 = vadd.f32 %v953, %v2317
    %v2319 = vpop.f32.mrb[0].mxu0
    %v2320 = vadd.f32 %v949, %v2319
    %v2321 = vpop.f32.mrb[0].mxu0
    %v2322 = vadd.f32 %v953, %v2321
    %2323 = vmatprep.mubr.bf16.mxu0 %v783
    %2324 = vmatmul.mubr.bf16.gmra.mrb[0].mxu0 %v782
    %v2325 = vpop.f32.mrb[0].mxu0
    %v2326 = vadd.f32 %v949, %v2325
    %v2327 = vpop.f32.mrb[0].mxu0
    %v2328 = vadd.f32 %v953, %v2327
    %v2329 = vpop.f32.mrb[0].mxu0
    %v2330 = vadd.f32 %v949, %v2329
    %v2331 = vpop.f32.mrb[0].mxu0
    %v2332 = vadd.f32 %v953, %v2331
    %2333 = vmatprep.mubr.bf16.mxu0 %v785
    %2334 = vmatmul.mubr.bf16.gmra.mrb[0].mxu0 %v784
    %v2335 = vpop.f32.mrb[0].mxu0
    %v2336 = vadd.f32 %v949, %v2335
    %v2337 = vpop.f32.mrb[0].mxu0
    %v2338 = vadd.f32 %v953, %v2337
    %v2339 = vpop.f32.mrb[0].mxu0
    %v2340 = vadd.f32 %v949, %v2339
    %v2341 = vpop.f32.mrb[0].mxu0
    %v2342 = vadd.f32 %v953, %v2341
    %2343 = vmatprep.mubr.bf16.mxu0 %v787
    %2344 = vmatmul.mubr.bf16.gmra.mrb[0].mxu0 %v786
    %v2345 = vpop.f32.mrb[0].mxu0
    %v2346 = vadd.f32 %v949, %v2345
    %v2347 = vpop.f32.mrb[0].mxu0
    %v2348 = vadd.f32 %v953, %v2347
    %v2349 = vpop.f32.mrb[0].mxu0
    %v2350 = vadd.f32 %v949, %v2349
    %v2351 = vpop.f32.mrb[0].mxu0
    %v2352 = vadd.f32 %v953, %v2351
    %2353 = vmatprep.mubr.bf16.mxu0 %v789
    %2354 = vmatmul.mubr.bf16.gmra.mrb[0].mxu0 %v788
    %v2355 = vpop.f32.mrb[0].mxu0
    %v2356 = vadd.f32 %v949, %v2355
    %v2357 = vpop.f32.mrb[0].mxu0
    %v2358 = vadd.f32 %v953, %v2357
    %v2359 = vpop.f32.mrb[0].mxu0
    %v2360 = vadd.f32 %v949, %v2359
    %v2361 = vpop.f32.mrb[0].mxu0
    %v2362 = vadd.f32 %v953, %v2361
    %2363 = vmatprep.mubr.bf16.mxu0 %v791
    %2364 = vmatmul.mubr.bf16.gmra.mrb[0].mxu0 %v790
    %v2365 = vpop.f32.mrb[0].mxu0
    %v2366 = vadd.f32 %v949, %v2365
    %v2367 = vpop.f32.mrb[0].mxu0
    %v2368 = vadd.f32 %v953, %v2367
    %v2369 = vpop.f32.mrb[0].mxu0
    %v2370 = vadd.f32 %v949, %v2369
    %v2371 = vpop.f32.mrb[0].mxu0
    %v2372 = vadd.f32 %v953, %v2371
    %2373 = vdwg.mxu0
    %v2374 = vmax.f32 %v1637, 0.0
    %v2375 = vmax.f32 %v1639, 0.0
    %v2376 = vmax.f32 %v1830, 0.0
    %v2377 = vmax.f32 %v1832, 0.0
    %v2378 = vmax.f32 %v2023, 0.0
    %v2379 = vmax.f32 %v2025, 0.0
    %v2380 = vmax.f32 %v2216, 0.0
    %v2381 = vmax.f32 %v2218, 0.0
    %v2382 = vmax.f32 %v1641, 0.0
    %v2383 = vmax.f32 %v1643, 0.0
    %v2384 = vmax.f32 %v1834, 0.0
    %v2385 = vmax.f32 %v1836, 0.0
    %v2386 = vmax.f32 %v2027, 0.0
    %v2387 = vmax.f32 %v2029, 0.0
    %v2388 = vmax.f32 %v2220, 0.0
    %v2389 = vmax.f32 %v2222, 0.0
    %v2390 = vmax.f32 %v1647, 0.0
    %v2391 = vmax.f32 %v1649, 0.0
    %v2392 = vmax.f32 %v1840, 0.0
    %v2393 = vmax.f32 %v1842, 0.0
    %v2394 = vmax.f32 %v2033, 0.0
    %v2395 = vmax.f32 %v2035, 0.0
    %v2396 = vmax.f32 %v2226, 0.0
    %v2397 = vmax.f32 %v2228, 0.0
    %v2398 = vmax.f32 %v1651, 0.0
    %v2399 = vmax.f32 %v1653, 0.0
    %v2400 = vmax.f32 %v1844, 0.0
    %v2401 = vmax.f32 %v1846, 0.0
    %v2402 = vmax.f32 %v2037, 0.0
    %v2403 = vmax.f32 %v2039, 0.0
    %v2404 = vmax.f32 %v2230, 0.0
    %v2405 = vmax.f32 %v2232, 0.0
    %v2406 = vmax.f32 %v1657, 0.0
    %v2407 = vmax.f32 %v1659, 0.0
    %v2408 = vmax.f32 %v1850, 0.0
    %v2409 = vmax.f32 %v1852, 0.0
    %v2410 = vmax.f32 %v2043, 0.0
    %v2411 = vmax.f32 %v2045, 0.0
    %v2412 = vmax.f32 %v2236, 0.0
    %v2413 = vmax.f32 %v2238, 0.0
    %v2414 = vmax.f32 %v1661, 0.0
    %v2415 = vmax.f32 %v1663, 0.0
    %v2416 = vmax.f32 %v1854, 0.0
    %v2417 = vmax.f32 %v1856, 0.0
    %v2418 = vmax.f32 %v2047, 0.0
    %v2419 = vmax.f32 %v2049, 0.0
    %v2420 = vmax.f32 %v2240, 0.0
    %v2421 = vmax.f32 %v2242, 0.0
    %v2422 = vmax.f32 %v1667, 0.0
    %v2423 = vmax.f32 %v1669, 0.0
    %v2424 = vmax.f32 %v1860, 0.0
    %v2425 = vmax.f32 %v1862, 0.0
    %v2426 = vmax.f32 %v2053, 0.0
    %v2427 = vmax.f32 %v2055, 0.0
    %v2428 = vmax.f32 %v2246, 0.0
    %v2429 = vmax.f32 %v2248, 0.0
    %v2430 = vmax.f32 %v1671, 0.0
    %v2431 = vmax.f32 %v1673, 0.0
    %v2432 = vmax.f32 %v1864, 0.0
    %v2433 = vmax.f32 %v1866, 0.0
    %v2434 = vmax.f32 %v2057, 0.0
    %v2435 = vmax.f32 %v2059, 0.0
    %v2436 = vmax.f32 %v2250, 0.0
    %v2437 = vmax.f32 %v2252, 0.0
    %v2438 = vmax.f32 %v1677, 0.0
    %v2439 = vmax.f32 %v1679, 0.0
    %v2440 = vmax.f32 %v1870, 0.0
    %v2441 = vmax.f32 %v1872, 0.0
    %v2442 = vmax.f32 %v2063, 0.0
    %v2443 = vmax.f32 %v2065, 0.0
    %v2444 = vmax.f32 %v2256, 0.0
    %v2445 = vmax.f32 %v2258, 0.0
    %v2446 = vmax.f32 %v1681, 0.0
    %v2447 = vmax.f32 %v1683, 0.0
    %v2448 = vmax.f32 %v1874, 0.0
    %v2449 = vmax.f32 %v1876, 0.0
    %v2450 = vmax.f32 %v2067, 0.0
    %v2451 = vmax.f32 %v2069, 0.0
    %v2452 = vmax.f32 %v2260, 0.0
    %v2453 = vmax.f32 %v2262, 0.0
    %v2454 = vmax.f32 %v1687, 0.0
    %v2455 = vmax.f32 %v1689, 0.0
    %v2456 = vmax.f32 %v1880, 0.0
    %v2457 = vmax.f32 %v1882, 0.0
    %v2458 = vmax.f32 %v2073, 0.0
    %v2459 = vmax.f32 %v2075, 0.0
    %v2460 = vmax.f32 %v2266, 0.0
    %v2461 = vmax.f32 %v2268, 0.0
    %v2462 = vmax.f32 %v1691, 0.0
    %v2463 = vmax.f32 %v1693, 0.0
    %v2464 = vmax.f32 %v1884, 0.0
    %v2465 = vmax.f32 %v1886, 0.0
    %v2466 = vmax.f32 %v2077, 0.0
    %v2467 = vmax.f32 %v2079, 0.0
    %v2468 = vmax.f32 %v2270, 0.0
    %v2469 = vmax.f32 %v2272, 0.0
    %v2470 = vmax.f32 %v1697, 0.0
    %v2471 = vmax.f32 %v1699, 0.0
    %v2472 = vmax.f32 %v1890, 0.0
    %v2473 = vmax.f32 %v1892, 0.0
    %v2474 = vmax.f32 %v2083, 0.0
    %v2475 = vmax.f32 %v2085, 0.0
    %v2476 = vmax.f32 %v2276, 0.0
    %v2477 = vmax.f32 %v2278, 0.0
    %v2478 = vmax.f32 %v1701, 0.0
    %v2479 = vmax.f32 %v1703, 0.0
    %v2480 = vmax.f32 %v1894, 0.0
    %v2481 = vmax.f32 %v1896, 0.0
    %v2482 = vmax.f32 %v2087, 0.0
    %v2483 = vmax.f32 %v2089, 0.0
    %v2484 = vmax.f32 %v2280, 0.0
    %v2485 = vmax.f32 %v2282, 0.0
    %v2486 = vmax.f32 %v1707, 0.0
    %v2487 = vmax.f32 %v1709, 0.0
    %v2488 = vmax.f32 %v1900, 0.0
    %v2489 = vmax.f32 %v1902, 0.0
    %v2490 = vmax.f32 %v2093, 0.0
    %v2491 = vmax.f32 %v2095, 0.0
    %v2492 = vmax.f32 %v2286, 0.0
    %v2493 = vmax.f32 %v2288, 0.0
    %v2494 = vmax.f32 %v1711, 0.0
    %v2495 = vmax.f32 %v1713, 0.0
    %v2496 = vmax.f32 %v1904, 0.0
    %v2497 = vmax.f32 %v1906, 0.0
    %v2498 = vmax.f32 %v2097, 0.0
    %v2499 = vmax.f32 %v2099, 0.0
    %v2500 = vmax.f32 %v2290, 0.0
    %v2501 = vmax.f32 %v2292, 0.0
    %v2502 = vmax.f32 %v1717, 0.0
    %v2503 = vmax.f32 %v1719, 0.0
    %v2504 = vmax.f32 %v1910, 0.0
    %v2505 = vmax.f32 %v1912, 0.0
    %v2506 = vmax.f32 %v2103, 0.0
    %v2507 = vmax.f32 %v2105, 0.0
    %v2508 = vmax.f32 %v2296, 0.0
    %v2509 = vmax.f32 %v2298, 0.0
    %v2510 = vmax.f32 %v1721, 0.0
    %v2511 = vmax.f32 %v1723, 0.0
    %v2512 = vmax.f32 %v1914, 0.0
    %v2513 = vmax.f32 %v1916, 0.0
    %v2514 = vmax.f32 %v2107, 0.0
    %v2515 = vmax.f32 %v2109, 0.0
    %v2516 = vmax.f32 %v2300, 0.0
    %v2517 = vmax.f32 %v2302, 0.0
    %v2518 = vmax.f32 %v1727, 0.0
    %v2519 = vmax.f32 %v1729, 0.0
    %v2520 = vmax.f32 %v1920, 0.0
    %v2521 = vmax.f32 %v1922, 0.0
    %v2522 = vmax.f32 %v2113, 0.0
    %v2523 = vmax.f32 %v2115, 0.0
    %v2524 = vmax.f32 %v2306, 0.0
    %v2525 = vmax.f32 %v2308, 0.0
    %v2526 = vmax.f32 %v1731, 0.0
    %v2527 = vmax.f32 %v1733, 0.0
    %v2528 = vmax.f32 %v1924, 0.0
    %v2529 = vmax.f32 %v1926, 0.0
    %v2530 = vmax.f32 %v2117, 0.0
    %v2531 = vmax.f32 %v2119, 0.0
    %v2532 = vmax.f32 %v2310, 0.0
    %v2533 = vmax.f32 %v2312, 0.0
    %v2534 = vmax.f32 %v1737, 0.0
    %v2535 = vmax.f32 %v1739, 0.0
    %v2536 = vmax.f32 %v1930, 0.0
    %v2537 = vmax.f32 %v1932, 0.0
    %v2538 = vmax.f32 %v2123, 0.0
    %v2539 = vmax.f32 %v2125, 0.0
    %v2540 = vmax.f32 %v2316, 0.0
    %v2541 = vmax.f32 %v2318, 0.0
    %v2542 = vmax.f32 %v1741, 0.0
    %v2543 = vmax.f32 %v1743, 0.0
    %v2544 = vmax.f32 %v1934, 0.0
    %v2545 = vmax.f32 %v1936, 0.0
    %v2546 = vmax.f32 %v2127, 0.0
    %v2547 = vmax.f32 %v2129, 0.0
    %v2548 = vmax.f32 %v2320, 0.0
    %v2549 = vmax.f32 %v2322, 0.0
    %v2550 = vmax.f32 %v1747, 0.0
    %v2551 = vmax.f32 %v1749, 0.0
    %v2552 = vmax.f32 %v1940, 0.0
    %v2553 = vmax.f32 %v1942, 0.0
    %v2554 = vmax.f32 %v2133, 0.0
    %v2555 = vmax.f32 %v2135, 0.0
    %v2556 = vmax.f32 %v2326, 0.0
    %v2557 = vmax.f32 %v2328, 0.0
    %v2558 = vmax.f32 %v1751, 0.0
    %v2559 = vmax.f32 %v1753, 0.0
    %v2560 = vmax.f32 %v1944, 0.0
    %v2561 = vmax.f32 %v1946, 0.0
    %v2562 = vmax.f32 %v2137, 0.0
    %v2563 = vmax.f32 %v2139, 0.0
    %v2564 = vmax.f32 %v2330, 0.0
    %v2565 = vmax.f32 %v2332, 0.0
    %v2566 = vmax.f32 %v1757, 0.0
    %v2567 = vmax.f32 %v1759, 0.0
    %v2568 = vmax.f32 %v1950, 0.0
    %v2569 = vmax.f32 %v1952, 0.0
    %v2570 = vmax.f32 %v2143, 0.0
    %v2571 = vmax.f32 %v2145, 0.0
    %v2572 = vmax.f32 %v2336, 0.0
    %v2573 = vmax.f32 %v2338, 0.0
    %v2574 = vmax.f32 %v1761, 0.0
    %v2575 = vmax.f32 %v1763, 0.0
    %v2576 = vmax.f32 %v1954, 0.0
    %v2577 = vmax.f32 %v1956, 0.0
    %v2578 = vmax.f32 %v2147, 0.0
    %v2579 = vmax.f32 %v2149, 0.0
    %v2580 = vmax.f32 %v2340, 0.0
    %v2581 = vmax.f32 %v2342, 0.0
    %v2582 = vmax.f32 %v1767, 0.0
    %v2583 = vmax.f32 %v1769, 0.0
    %v2584 = vmax.f32 %v1960, 0.0
    %v2585 = vmax.f32 %v1962, 0.0
    %v2586 = vmax.f32 %v2153, 0.0
    %v2587 = vmax.f32 %v2155, 0.0
    %v2588 = vmax.f32 %v2346, 0.0
    %v2589 = vmax.f32 %v2348, 0.0
    %v2590 = vmax.f32 %v1771, 0.0
    %v2591 = vmax.f32 %v1773, 0.0
    %v2592 = vmax.f32 %v1964, 0.0
    %v2593 = vmax.f32 %v1966, 0.0
    %v2594 = vmax.f32 %v2157, 0.0
    %v2595 = vmax.f32 %v2159, 0.0
    %v2596 = vmax.f32 %v2350, 0.0
    %v2597 = vmax.f32 %v2352, 0.0
    %v2598 = vmax.f32 %v1777, 0.0
    %v2599 = vmax.f32 %v1779, 0.0
    %v2600 = vmax.f32 %v1970, 0.0
    %v2601 = vmax.f32 %v1972, 0.0
    %v2602 = vmax.f32 %v2163, 0.0
    %v2603 = vmax.f32 %v2165, 0.0
    %v2604 = vmax.f32 %v2356, 0.0
    %v2605 = vmax.f32 %v2358, 0.0
    %v2606 = vmax.f32 %v1781, 0.0
    %v2607 = vmax.f32 %v1783, 0.0
    %v2608 = vmax.f32 %v1974, 0.0
    %v2609 = vmax.f32 %v1976, 0.0
    %v2610 = vmax.f32 %v2167, 0.0
    %v2611 = vmax.f32 %v2169, 0.0
    %v2612 = vmax.f32 %v2360, 0.0
    %v2613 = vmax.f32 %v2362, 0.0
    %v2614 = vmax.f32 %v1787, 0.0
    %v2615 = vmax.f32 %v1789, 0.0
    %v2616 = vmax.f32 %v1980, 0.0
    %v2617 = vmax.f32 %v1982, 0.0
    %v2618 = vmax.f32 %v2173, 0.0
    %v2619 = vmax.f32 %v2175, 0.0
    %v2620 = vmax.f32 %v2366, 0.0
    %v2621 = vmax.f32 %v2368, 0.0
    %v2622 = vmax.f32 %v1791, 0.0
    %v2623 = vmax.f32 %v1793, 0.0
    %v2624 = vmax.f32 %v1984, 0.0
    %v2625 = vmax.f32 %v1986, 0.0
    %v2626 = vmax.f32 %v2177, 0.0
    %v2627 = vmax.f32 %v2179, 0.0
    %v2628 = vmax.f32 %v2370, 0.0
    %v2629 = vmax.f32 %v2372, 0.0
    %v2630 = vpack.c.bf16 %v2382, %v2374
    %v2631 = vpack.c.bf16 %v2383, %v2375
    %v2632 = vpack.c.bf16 %v2384, %v2376
    %v2633 = vpack.c.bf16 %v2385, %v2377
    %v2634 = vpack.c.bf16 %v2386, %v2378
    %v2635 = vpack.c.bf16 %v2387, %v2379
    %v2636 = vpack.c.bf16 %v2388, %v2380
    %v2637 = vpack.c.bf16 %v2389, %v2381
    %v2638 = vpack.c.bf16 %v2398, %v2390
    %v2639 = vpack.c.bf16 %v2399, %v2391
    %v2640 = vpack.c.bf16 %v2400, %v2392
    %v2641 = vpack.c.bf16 %v2401, %v2393
    %v2642 = vpack.c.bf16 %v2402, %v2394
    %v2643 = vpack.c.bf16 %v2403, %v2395
    %v2644 = vpack.c.bf16 %v2404, %v2396
    %v2645 = vpack.c.bf16 %v2405, %v2397
    %v2646 = vpack.c.bf16 %v2414, %v2406
    %v2647 = vpack.c.bf16 %v2415, %v2407
    %v2648 = vpack.c.bf16 %v2416, %v2408
    %v2649 = vpack.c.bf16 %v2417, %v2409
    %v2650 = vpack.c.bf16 %v2418, %v2410
    %v2651 = vpack.c.bf16 %v2419, %v2411
    %v2652 = vpack.c.bf16 %v2420, %v2412
    %v2653 = vpack.c.bf16 %v2421, %v2413
    %v2654 = vpack.c.bf16 %v2430, %v2422
    %v2655 = vpack.c.bf16 %v2431, %v2423
    %v2656 = vpack.c.bf16 %v2432, %v2424
    %v2657 = vpack.c.bf16 %v2433, %v2425
    %v2658 = vpack.c.bf16 %v2434, %v2426
    %v2659 = vpack.c.bf16 %v2435, %v2427
    %v2660 = vpack.c.bf16 %v2436, %v2428
    %v2661 = vpack.c.bf16 %v2437, %v2429
    %v2662 = vpack.c.bf16 %v2446, %v2438
    %v2663 = vpack.c.bf16 %v2447, %v2439
    %v2664 = vpack.c.bf16 %v2448, %v2440
    %v2665 = vpack.c.bf16 %v2449, %v2441
    %v2666 = vpack.c.bf16 %v2450, %v2442
    %v2667 = vpack.c.bf16 %v2451, %v2443
    %v2668 = vpack.c.bf16 %v2452, %v2444
    %v2669 = vpack.c.bf16 %v2453, %v2445
    %v2670 = vpack.c.bf16 %v2462, %v2454
    %v2671 = vpack.c.bf16 %v2463, %v2455
    %v2672 = vpack.c.bf16 %v2464, %v2456
    %v2673 = vpack.c.bf16 %v2465, %v2457
    %v2674 = vpack.c.bf16 %v2466, %v2458
    %v2675 = vpack.c.bf16 %v2467, %v2459
    %v2676 = vpack.c.bf16 %v2468, %v2460
    %v2677 = vpack.c.bf16 %v2469, %v2461
    %v2678 = vpack.c.bf16 %v2478, %v2470
    %v2679 = vpack.c.bf16 %v2479, %v2471
    %v2680 = vpack.c.bf16 %v2480, %v2472
    %v2681 = vpack.c.bf16 %v2481, %v2473
    %v2682 = vpack.c.bf16 %v2482, %v2474
    %v2683 = vpack.c.bf16 %v2483, %v2475
    %v2684 = vpack.c.bf16 %v2484, %v2476
    %v2685 = vpack.c.bf16 %v2485, %v2477
    %v2686 = vpack.c.bf16 %v2494, %v2486
    %v2687 = vpack.c.bf16 %v2495, %v2487
    %v2688 = vpack.c.bf16 %v2496, %v2488
    %v2689 = vpack.c.bf16 %v2497, %v2489
    %v2690 = vpack.c.bf16 %v2498, %v2490
    %v2691 = vpack.c.bf16 %v2499, %v2491
    %v2692 = vpack.c.bf16 %v2500, %v2492
    %v2693 = vpack.c.bf16 %v2501, %v2493
    %v2694 = vpack.c.bf16 %v2510, %v2502
    %v2695 = vpack.c.bf16 %v2511, %v2503
    %v2696 = vpack.c.bf16 %v2512, %v2504
    %v2697 = vpack.c.bf16 %v2513, %v2505
    %v2698 = vpack.c.bf16 %v2514, %v2506
    %v2699 = vpack.c.bf16 %v2515, %v2507
    %v2700 = vpack.c.bf16 %v2516, %v2508
    %v2701 = vpack.c.bf16 %v2517, %v2509
    %v2702 = vpack.c.bf16 %v2526, %v2518
    %v2703 = vpack.c.bf16 %v2527, %v2519
    %v2704 = vpack.c.bf16 %v2528, %v2520
    %v2705 = vpack.c.bf16 %v2529, %v2521
    %v2706 = vpack.c.bf16 %v2530, %v2522
    %v2707 = vpack.c.bf16 %v2531, %v2523
    %v2708 = vpack.c.bf16 %v2532, %v2524
    %v2709 = vpack.c.bf16 %v2533, %v2525
    %v2710 = vpack.c.bf16 %v2542, %v2534
    %v2711 = vpack.c.bf16 %v2543, %v2535
    %v2712 = vpack.c.bf16 %v2544, %v2536
    %v2713 = vpack.c.bf16 %v2545, %v2537
    %v2714 = vpack.c.bf16 %v2546, %v2538
    %v2715 = vpack.c.bf16 %v2547, %v2539
    %v2716 = vpack.c.bf16 %v2548, %v2540
    %v2717 = vpack.c.bf16 %v2549, %v2541
    %v2718 = vpack.c.bf16 %v2558, %v2550
    %v2719 = vpack.c.bf16 %v2559, %v2551
    %v2720 = vpack.c.bf16 %v2560, %v2552
    %v2721 = vpack.c.bf16 %v2561, %v2553
    %v2722 = vpack.c.bf16 %v2562, %v2554
    %v2723 = vpack.c.bf16 %v2563, %v2555
    %v2724 = vpack.c.bf16 %v2564, %v2556
    %v2725 = vpack.c.bf16 %v2565, %v2557
    %v2726 = vpack.c.bf16 %v2574, %v2566
    %v2727 = vpack.c.bf16 %v2575, %v2567
    %v2728 = vpack.c.bf16 %v2576, %v2568
    %v2729 = vpack.c.bf16 %v2577, %v2569
    %v2730 = vpack.c.bf16 %v2578, %v2570
    %v2731 = vpack.c.bf16 %v2579, %v2571
    %v2732 = vpack.c.bf16 %v2580, %v2572
    %v2733 = vpack.c.bf16 %v2581, %v2573
    %v2734 = vpack.c.bf16 %v2590, %v2582
    %v2735 = vpack.c.bf16 %v2591, %v2583
    %v2736 = vpack.c.bf16 %v2592, %v2584
    %v2737 = vpack.c.bf16 %v2593, %v2585
    %v2738 = vpack.c.bf16 %v2594, %v2586
    %v2739 = vpack.c.bf16 %v2595, %v2587
    %v2740 = vpack.c.bf16 %v2596, %v2588
    %v2741 = vpack.c.bf16 %v2597, %v2589
    %v2742 = vpack.c.bf16 %v2606, %v2598
    %v2743 = vpack.c.bf16 %v2607, %v2599
    %v2744 = vpack.c.bf16 %v2608, %v2600
    %v2745 = vpack.c.bf16 %v2609, %v2601
    %v2746 = vpack.c.bf16 %v2610, %v2602
    %v2747 = vpack.c.bf16 %v2611, %v2603
    %v2748 = vpack.c.bf16 %v2612, %v2604
    %v2749 = vpack.c.bf16 %v2613, %v2605
    %v2750 = vpack.c.bf16 %v2622, %v2614
    %v2751 = vpack.c.bf16 %v2623, %v2615
    %v2752 = vpack.c.bf16 %v2624, %v2616
    %v2753 = vpack.c.bf16 %v2625, %v2617
    %v2754 = vpack.c.bf16 %v2626, %v2618
    %v2755 = vpack.c.bf16 %v2627, %v2619
    %v2756 = vpack.c.bf16 %v2628, %v2620
    %v2757 = vpack.c.bf16 %v2629, %v2621
    %v2758 = vld [vmem:[#allocation4] sm:$0xff]
    %v2759 = vld [vmem:[#allocation4 + $0x8] sm:$0xff]
    %v2760 = vld [vmem:[#allocation4 + $0x10] sm:$0xff]
    %v2761 = vld [vmem:[#allocation4 + $0x18] sm:$0xff]
    %v2762 = vld [vmem:[#allocation4 + $0x20] sm:$0xff]
    %v2763 = vld [vmem:[#allocation4 + $0x28] sm:$0xff]
    %v2764 = vld [vmem:[#allocation4 + $0x30] sm:$0xff]
    %v2765 = vld [vmem:[#allocation4 + $0x38] sm:$0xff]
    %v2766 = vld [vmem:[#allocation4 + $0x40] sm:$0xff]
    %v2767 = vld [vmem:[#allocation4 + $0x48] sm:$0xff]
    %v2768 = vld [vmem:[#allocation4 + $0x50] sm:$0xff]
    %v2769 = vld [vmem:[#allocation4 + $0x58] sm:$0xff]
    %v2770 = vld [vmem:[#allocation4 + $0x60] sm:$0xff]
    %v2771 = vld [vmem:[#allocation4 + $0x68] sm:$0xff]
    %v2772 = vld [vmem:[#allocation4 + $0x70] sm:$0xff]
    %v2773 = vld [vmem:[#allocation4 + $0x78] sm:$0xff]
    %v2774 = vld [vmem:[#allocation4 + $0x80] sm:$0xff]
    %v2775 = vld [vmem:[#allocation4 + $0x88] sm:$0xff]
    %v2776 = vld [vmem:[#allocation4 + $0x90] sm:$0xff]
    %v2777 = vld [vmem:[#allocation4 + $0x98] sm:$0xff]
    %v2778 = vld [vmem:[#allocation4 + $0xa0] sm:$0xff]
    %v2779 = vld [vmem:[#allocation4 + $0xa8] sm:$0xff]
    %v2780 = vld [vmem:[#allocation4 + $0xb0] sm:$0xff]
    %v2781 = vld [vmem:[#allocation4 + $0xb8] sm:$0xff]
    %v2782 = vld [vmem:[#allocation4 + $0xc0] sm:$0xff]
    %v2783 = vld [vmem:[#allocation4 + $0xc8] sm:$0xff]
    %v2784 = vld [vmem:[#allocation4 + $0xd0] sm:$0xff]
    %v2785 = vld [vmem:[#allocation4 + $0xd8] sm:$0xff]
    %v2786 = vld [vmem:[#allocation4 + $0xe0] sm:$0xff]
    %v2787 = vld [vmem:[#allocation4 + $0xe8] sm:$0xff]
    %v2788 = vld [vmem:[#allocation4 + $0xf0] sm:$0xff]
    %v2789 = vld [vmem:[#allocation4 + $0xf8] sm:$0xff]
    %v2790 = vld [vmem:[#allocation4 + $0x100] sm:$0xff]
    %v2791 = vld [vmem:[#allocation4 + $0x108] sm:$0xff]
    %v2792 = vld [vmem:[#allocation4 + $0x110] sm:$0xff]
    %v2793 = vld [vmem:[#allocation4 + $0x118] sm:$0xff]
    %v2794 = vld [vmem:[#allocation4 + $0x120] sm:$0xff]
    %v2795 = vld [vmem:[#allocation4 + $0x128] sm:$0xff]
    %v2796 = vld [vmem:[#allocation4 + $0x130] sm:$0xff]
    %v2797 = vld [vmem:[#allocation4 + $0x138] sm:$0xff]
    %v2798 = vld [vmem:[#allocation4 + $0x140] sm:$0xff]
    %v2799 = vld [vmem:[#allocation4 + $0x148] sm:$0xff]
    %v2800 = vld [vmem:[#allocation4 + $0x150] sm:$0xff]
    %v2801 = vld [vmem:[#allocation4 + $0x158] sm:$0xff]
    %v2802 = vld [vmem:[#allocation4 + $0x160] sm:$0xff]
    %v2803 = vld [vmem:[#allocation4 + $0x168] sm:$0xff]
    %v2804 = vld [vmem:[#allocation4 + $0x170] sm:$0xff]
    %v2805 = vld [vmem:[#allocation4 + $0x178] sm:$0xff]
    %v2806 = vld [vmem:[#allocation4 + $0x180] sm:$0xff]
    %v2807 = vld [vmem:[#allocation4 + $0x188] sm:$0xff]
    %v2808 = vld [vmem:[#allocation4 + $0x190] sm:$0xff]
    %v2809 = vld [vmem:[#allocation4 + $0x198] sm:$0xff]
    %v2810 = vld [vmem:[#allocation4 + $0x1a0] sm:$0xff]
    %v2811 = vld [vmem:[#allocation4 + $0x1a8] sm:$0xff]
    %v2812 = vld [vmem:[#allocation4 + $0x1b0] sm:$0xff]
    %v2813 = vld [vmem:[#allocation4 + $0x1b8] sm:$0xff]
    %v2814 = vld [vmem:[#allocation4 + $0x1c0] sm:$0xff]
    %v2815 = vld [vmem:[#allocation4 + $0x1c8] sm:$0xff]
    %v2816 = vld [vmem:[#allocation4 + $0x1d0] sm:$0xff]
    %v2817 = vld [vmem:[#allocation4 + $0x1d8] sm:$0xff]
    %v2818 = vld [vmem:[#allocation4 + $0x1e0] sm:$0xff]
    %v2819 = vld [vmem:[#allocation4 + $0x1e8] sm:$0xff]
    %v2820 = vld [vmem:[#allocation4 + $0x1f0] sm:$0xff]
    %v2821 = vld [vmem:[#allocation4 + $0x1f8] sm:$0xff]
    %v2822 = vld [vmem:[#allocation4 + $0x200] sm:$0xff]
    %v2823 = vld [vmem:[#allocation4 + $0x208] sm:$0xff]
    %v2824 = vld [vmem:[#allocation4 + $0x210] sm:$0xff]
    %v2825 = vld [vmem:[#allocation4 + $0x218] sm:$0xff]
    %v2826 = vld [vmem:[#allocation4 + $0x220] sm:$0xff]
    %v2827 = vld [vmem:[#allocation4 + $0x228] sm:$0xff]
    %v2828 = vld [vmem:[#allocation4 + $0x230] sm:$0xff]
    %v2829 = vld [vmem:[#allocation4 + $0x238] sm:$0xff]
    %v2830 = vld [vmem:[#allocation4 + $0x240] sm:$0xff]
    %v2831 = vld [vmem:[#allocation4 + $0x248] sm:$0xff]
    %v2832 = vld [vmem:[#allocation4 + $0x250] sm:$0xff]
    %v2833 = vld [vmem:[#allocation4 + $0x258] sm:$0xff]
    %v2834 = vld [vmem:[#allocation4 + $0x260] sm:$0xff]
    %v2835 = vld [vmem:[#allocation4 + $0x268] sm:$0xff]
    %v2836 = vld [vmem:[#allocation4 + $0x270] sm:$0xff]
    %v2837 = vld [vmem:[#allocation4 + $0x278] sm:$0xff]
    %v2838 = vld [vmem:[#allocation4 + $0x280] sm:$0xff]
    %v2839 = vld [vmem:[#allocation4 + $0x288] sm:$0xff]
    %v2840 = vld [vmem:[#allocation4 + $0x290] sm:$0xff]
    %v2841 = vld [vmem:[#allocation4 + $0x298] sm:$0xff]
    %v2842 = vld [vmem:[#allocation4 + $0x2a0] sm:$0xff]
    %v2843 = vld [vmem:[#allocation4 + $0x2a8] sm:$0xff]
    %v2844 = vld [vmem:[#allocation4 + $0x2b0] sm:$0xff]
    %v2845 = vld [vmem:[#allocation4 + $0x2b8] sm:$0xff]
    %v2846 = vld [vmem:[#allocation4 + $0x2c0] sm:$0xff]
    %v2847 = vld [vmem:[#allocation4 + $0x2c8] sm:$0xff]
    %v2848 = vld [vmem:[#allocation4 + $0x2d0] sm:$0xff]
    %v2849 = vld [vmem:[#allocation4 + $0x2d8] sm:$0xff]
    %v2850 = vld [vmem:[#allocation4 + $0x2e0] sm:$0xff]
    %v2851 = vld [vmem:[#allocation4 + $0x2e8] sm:$0xff]
    %v2852 = vld [vmem:[#allocation4 + $0x2f0] sm:$0xff]
    %v2853 = vld [vmem:[#allocation4 + $0x2f8] sm:$0xff]
    %v2854 = vld [vmem:[#allocation4 + $0x300] sm:$0xff]
    %v2855 = vld [vmem:[#allocation4 + $0x308] sm:$0xff]
    %v2856 = vld [vmem:[#allocation4 + $0x310] sm:$0xff]
    %v2857 = vld [vmem:[#allocation4 + $0x318] sm:$0xff]
    %v2858 = vld [vmem:[#allocation4 + $0x320] sm:$0xff]
    %v2859 = vld [vmem:[#allocation4 + $0x328] sm:$0xff]
    %v2860 = vld [vmem:[#allocation4 + $0x330] sm:$0xff]
    %v2861 = vld [vmem:[#allocation4 + $0x338] sm:$0xff]
    %v2862 = vld [vmem:[#allocation4 + $0x340] sm:$0xff]
    %v2863 = vld [vmem:[#allocation4 + $0x348] sm:$0xff]
    %v2864 = vld [vmem:[#allocation4 + $0x350] sm:$0xff]
    %v2865 = vld [vmem:[#allocation4 + $0x358] sm:$0xff]
    %v2866 = vld [vmem:[#allocation4 + $0x360] sm:$0xff]
    %v2867 = vld [vmem:[#allocation4 + $0x368] sm:$0xff]
    %v2868 = vld [vmem:[#allocation4 + $0x370] sm:$0xff]
    %v2869 = vld [vmem:[#allocation4 + $0x378] sm:$0xff]
    %v2870 = vld [vmem:[#allocation4 + $0x380] sm:$0xff]
    %v2871 = vld [vmem:[#allocation4 + $0x388] sm:$0xff]
    %v2872 = vld [vmem:[#allocation4 + $0x390] sm:$0xff]
    %v2873 = vld [vmem:[#allocation4 + $0x398] sm:$0xff]
    %v2874 = vld [vmem:[#allocation4 + $0x3a0] sm:$0xff]
    %v2875 = vld [vmem:[#allocation4 + $0x3a8] sm:$0xff]
    %v2876 = vld [vmem:[#allocation4 + $0x3b0] sm:$0xff]
    %v2877 = vld [vmem:[#allocation4 + $0x3b8] sm:$0xff]
    %v2878 = vld [vmem:[#allocation4 + $0x3c0] sm:$0xff]
    %v2879 = vld [vmem:[#allocation4 + $0x3c8] sm:$0xff]
    %v2880 = vld [vmem:[#allocation4 + $0x3d0] sm:$0xff]
    %v2881 = vld [vmem:[#allocation4 + $0x3d8] sm:$0xff]
    %v2882 = vld [vmem:[#allocation4 + $0x3e0] sm:$0xff]
    %v2883 = vld [vmem:[#allocation4 + $0x3e8] sm:$0xff]
    %v2884 = vld [vmem:[#allocation4 + $0x3f0] sm:$0xff]
    %v2885 = vld [vmem:[#allocation4 + $0x3f8] sm:$0xff]
    %v2886 = vld [vmem:[%s8] sm:$0x3]
    %v2888 = vlaneseq
    %v2889 = vshrl.u32 %v2888, 7
    %v2890 = vsub.s32 0, %v2889
    %v2891 = vrot.slane %v2886, %v2890
    %v2892 = vlaneseq
    %v2893 = vshrl.u32 %v2892, 7
    %v2894 = vsub.s32 1, %v2893
    %v2895 = vrot.slane %v2886, %v2894
    %v3026 = vunpack.c.l.b16 %v2758
    %v3027 = vunpack.c.h.b16 %v2758
    %v3028 = vunpack.c.l.b16 %v2759
    %v3029 = vunpack.c.h.b16 %v2759
    %v3030 = vunpack.c.l.b16 %v2760
    %v3031 = vunpack.c.h.b16 %v2760
    %v3032 = vunpack.c.l.b16 %v2761
    %v3033 = vunpack.c.h.b16 %v2761
    %v3034 = vunpack.c.l.b16 %v2762
    %v3035 = vunpack.c.h.b16 %v2762
    %v3036 = vunpack.c.l.b16 %v2763
    %v3037 = vunpack.c.h.b16 %v2763
    %v3038 = vunpack.c.l.b16 %v2764
    %v3039 = vunpack.c.h.b16 %v2764
    %v3040 = vunpack.c.l.b16 %v2765
    %v3041 = vunpack.c.h.b16 %v2765
    %v3042 = vunpack.c.l.b16 %v2766
    %v3043 = vunpack.c.h.b16 %v2766
    %v3044 = vunpack.c.l.b16 %v2767
    %v3045 = vunpack.c.h.b16 %v2767
    %v3046 = vunpack.c.l.b16 %v2768
    %v3047 = vunpack.c.h.b16 %v2768
    %v3048 = vunpack.c.l.b16 %v2769
    %v3049 = vunpack.c.h.b16 %v2769
    %v3050 = vunpack.c.l.b16 %v2770
    %v3051 = vunpack.c.h.b16 %v2770
    %v3052 = vunpack.c.l.b16 %v2771
    %v3053 = vunpack.c.h.b16 %v2771
    %v3054 = vunpack.c.l.b16 %v2772
    %v3055 = vunpack.c.h.b16 %v2772
    %v3056 = vunpack.c.l.b16 %v2773
    %v3057 = vunpack.c.h.b16 %v2773
    %v3058 = vunpack.c.l.b16 %v2774
    %v3059 = vunpack.c.h.b16 %v2774
    %v3060 = vunpack.c.l.b16 %v2775
    %v3061 = vunpack.c.h.b16 %v2775
    %v3062 = vunpack.c.l.b16 %v2776
    %v3063 = vunpack.c.h.b16 %v2776
    %v3064 = vunpack.c.l.b16 %v2777
    %v3065 = vunpack.c.h.b16 %v2777
    %v3066 = vunpack.c.l.b16 %v2778
    %v3067 = vunpack.c.h.b16 %v2778
    %v3068 = vunpack.c.l.b16 %v2779
    %v3069 = vunpack.c.h.b16 %v2779
    %v3070 = vunpack.c.l.b16 %v2780
    %v3071 = vunpack.c.h.b16 %v2780
    %v3072 = vunpack.c.l.b16 %v2781
    %v3073 = vunpack.c.h.b16 %v2781
    %v3074 = vunpack.c.l.b16 %v2782
    %v3075 = vunpack.c.h.b16 %v2782
    %v3076 = vunpack.c.l.b16 %v2783
    %v3077 = vunpack.c.h.b16 %v2783
    %v3078 = vunpack.c.l.b16 %v2784
    %v3079 = vunpack.c.h.b16 %v2784
    %v3080 = vunpack.c.l.b16 %v2785
    %v3081 = vunpack.c.h.b16 %v2785
    %v3082 = vunpack.c.l.b16 %v2786
    %v3083 = vunpack.c.h.b16 %v2786
    %v3084 = vunpack.c.l.b16 %v2787
    %v3085 = vunpack.c.h.b16 %v2787
    %v3086 = vunpack.c.l.b16 %v2788
    %v3087 = vunpack.c.h.b16 %v2788
    %v3088 = vunpack.c.l.b16 %v2789
    %v3089 = vunpack.c.h.b16 %v2789
    %v3090 = vunpack.c.l.b16 %v2790
    %v3091 = vunpack.c.h.b16 %v2790
    %v3092 = vunpack.c.l.b16 %v2791
    %v3093 = vunpack.c.h.b16 %v2791
    %v3094 = vunpack.c.l.b16 %v2792
    %v3095 = vunpack.c.h.b16 %v2792
    %v3096 = vunpack.c.l.b16 %v2793
    %v3097 = vunpack.c.h.b16 %v2793
    %v3098 = vunpack.c.l.b16 %v2794
    %v3099 = vunpack.c.h.b16 %v2794
    %v3100 = vunpack.c.l.b16 %v2795
    %v3101 = vunpack.c.h.b16 %v2795
    %v3102 = vunpack.c.l.b16 %v2796
    %v3103 = vunpack.c.h.b16 %v2796
    %v3104 = vunpack.c.l.b16 %v2797
    %v3105 = vunpack.c.h.b16 %v2797
    %v3106 = vunpack.c.l.b16 %v2798
    %v3107 = vunpack.c.h.b16 %v2798
    %v3108 = vunpack.c.l.b16 %v2799
    %v3109 = vunpack.c.h.b16 %v2799
    %v3110 = vunpack.c.l.b16 %v2800
    %v3111 = vunpack.c.h.b16 %v2800
    %v3112 = vunpack.c.l.b16 %v2801
    %v3113 = vunpack.c.h.b16 %v2801
    %v3114 = vunpack.c.l.b16 %v2802
    %v3115 = vunpack.c.h.b16 %v2802
    %v3116 = vunpack.c.l.b16 %v2803
    %v3117 = vunpack.c.h.b16 %v2803
    %v3118 = vunpack.c.l.b16 %v2804
    %v3119 = vunpack.c.h.b16 %v2804
    %v3120 = vunpack.c.l.b16 %v2805
    %v3121 = vunpack.c.h.b16 %v2805
    %v3122 = vunpack.c.l.b16 %v2806
    %v3123 = vunpack.c.h.b16 %v2806
    %v3124 = vunpack.c.l.b16 %v2807
    %v3125 = vunpack.c.h.b16 %v2807
    %v3126 = vunpack.c.l.b16 %v2808
    %v3127 = vunpack.c.h.b16 %v2808
    %v3128 = vunpack.c.l.b16 %v2809
    %v3129 = vunpack.c.h.b16 %v2809
    %v3130 = vunpack.c.l.b16 %v2810
    %v3131 = vunpack.c.h.b16 %v2810
    %v3132 = vunpack.c.l.b16 %v2811
    %v3133 = vunpack.c.h.b16 %v2811
    %v3134 = vunpack.c.l.b16 %v2812
    %v3135 = vunpack.c.h.b16 %v2812
    %v3136 = vunpack.c.l.b16 %v2813
    %v3137 = vunpack.c.h.b16 %v2813
    %v3138 = vunpack.c.l.b16 %v2814
    %v3139 = vunpack.c.h.b16 %v2814
    %v3140 = vunpack.c.l.b16 %v2815
    %v3141 = vunpack.c.h.b16 %v2815
    %v3142 = vunpack.c.l.b16 %v2816
    %v3143 = vunpack.c.h.b16 %v2816
    %v3144 = vunpack.c.l.b16 %v2817
    %v3145 = vunpack.c.h.b16 %v2817
    %v3146 = vunpack.c.l.b16 %v2818
    %v3147 = vunpack.c.h.b16 %v2818
    %v3148 = vunpack.c.l.b16 %v2819
    %v3149 = vunpack.c.h.b16 %v2819
    %v3150 = vunpack.c.l.b16 %v2820
    %v3151 = vunpack.c.h.b16 %v2820
    %v3152 = vunpack.c.l.b16 %v2821
    %v3153 = vunpack.c.h.b16 %v2821
    %v3154 = vunpack.c.l.b16 %v2822
    %v3155 = vunpack.c.h.b16 %v2822
    %v3156 = vunpack.c.l.b16 %v2823
    %v3157 = vunpack.c.h.b16 %v2823
    %v3158 = vunpack.c.l.b16 %v2824
    %v3159 = vunpack.c.h.b16 %v2824
    %v3160 = vunpack.c.l.b16 %v2825
    %v3161 = vunpack.c.h.b16 %v2825
    %v3162 = vunpack.c.l.b16 %v2826
    %v3163 = vunpack.c.h.b16 %v2826
    %v3164 = vunpack.c.l.b16 %v2827
    %v3165 = vunpack.c.h.b16 %v2827
    %v3166 = vunpack.c.l.b16 %v2828
    %v3167 = vunpack.c.h.b16 %v2828
    %v3168 = vunpack.c.l.b16 %v2829
    %v3169 = vunpack.c.h.b16 %v2829
    %v3170 = vunpack.c.l.b16 %v2830
    %v3171 = vunpack.c.h.b16 %v2830
    %v3172 = vunpack.c.l.b16 %v2831
    %v3173 = vunpack.c.h.b16 %v2831
    %v3174 = vunpack.c.l.b16 %v2832
    %v3175 = vunpack.c.h.b16 %v2832
    %v3176 = vunpack.c.l.b16 %v2833
    %v3177 = vunpack.c.h.b16 %v2833
    %v3178 = vunpack.c.l.b16 %v2834
    %v3179 = vunpack.c.h.b16 %v2834
    %v3180 = vunpack.c.l.b16 %v2835
    %v3181 = vunpack.c.h.b16 %v2835
    %v3182 = vunpack.c.l.b16 %v2836
    %v3183 = vunpack.c.h.b16 %v2836
    %v3184 = vunpack.c.l.b16 %v2837
    %v3185 = vunpack.c.h.b16 %v2837
    %v3186 = vunpack.c.l.b16 %v2838
    %v3187 = vunpack.c.h.b16 %v2838
    %v3188 = vunpack.c.l.b16 %v2839
    %v3189 = vunpack.c.h.b16 %v2839
    %v3190 = vunpack.c.l.b16 %v2840
    %v3191 = vunpack.c.h.b16 %v2840
    %v3192 = vunpack.c.l.b16 %v2841
    %v3193 = vunpack.c.h.b16 %v2841
    %v3194 = vunpack.c.l.b16 %v2842
    %v3195 = vunpack.c.h.b16 %v2842
    %v3196 = vunpack.c.l.b16 %v2843
    %v3197 = vunpack.c.h.b16 %v2843
    %v3198 = vunpack.c.l.b16 %v2844
    %v3199 = vunpack.c.h.b16 %v2844
    %v3200 = vunpack.c.l.b16 %v2845
    %v3201 = vunpack.c.h.b16 %v2845
    %v3202 = vunpack.c.l.b16 %v2846
    %v3203 = vunpack.c.h.b16 %v2846
    %v3204 = vunpack.c.l.b16 %v2847
    %v3205 = vunpack.c.h.b16 %v2847
    %v3206 = vunpack.c.l.b16 %v2848
    %v3207 = vunpack.c.h.b16 %v2848
    %v3208 = vunpack.c.l.b16 %v2849
    %v3209 = vunpack.c.h.b16 %v2849
    %v3210 = vunpack.c.l.b16 %v2850
    %v3211 = vunpack.c.h.b16 %v2850
    %v3212 = vunpack.c.l.b16 %v2851
    %v3213 = vunpack.c.h.b16 %v2851
    %v3214 = vunpack.c.l.b16 %v2852
    %v3215 = vunpack.c.h.b16 %v2852
    %v3216 = vunpack.c.l.b16 %v2853
    %v3217 = vunpack.c.h.b16 %v2853
    %v3218 = vunpack.c.l.b16 %v2854
    %v3219 = vunpack.c.h.b16 %v2854
    %v3220 = vunpack.c.l.b16 %v2855
    %v3221 = vunpack.c.h.b16 %v2855
    %v3222 = vunpack.c.l.b16 %v2856
    %v3223 = vunpack.c.h.b16 %v2856
    %v3224 = vunpack.c.l.b16 %v2857
    %v3225 = vunpack.c.h.b16 %v2857
    %v3226 = vunpack.c.l.b16 %v2858
    %v3227 = vunpack.c.h.b16 %v2858
    %v3228 = vunpack.c.l.b16 %v2859
    %v3229 = vunpack.c.h.b16 %v2859
    %v3230 = vunpack.c.l.b16 %v2860
    %v3231 = vunpack.c.h.b16 %v2860
    %v3232 = vunpack.c.l.b16 %v2861
    %v3233 = vunpack.c.h.b16 %v2861
    %v3234 = vunpack.c.l.b16 %v2862
    %v3235 = vunpack.c.h.b16 %v2862
    %v3236 = vunpack.c.l.b16 %v2863
    %v3237 = vunpack.c.h.b16 %v2863
    %v3238 = vunpack.c.l.b16 %v2864
    %v3239 = vunpack.c.h.b16 %v2864
    %v3240 = vunpack.c.l.b16 %v2865
    %v3241 = vunpack.c.h.b16 %v2865
    %v3242 = vunpack.c.l.b16 %v2866
    %v3243 = vunpack.c.h.b16 %v2866
    %v3244 = vunpack.c.l.b16 %v2867
    %v3245 = vunpack.c.h.b16 %v2867
    %v3246 = vunpack.c.l.b16 %v2868
    %v3247 = vunpack.c.h.b16 %v2868
    %v3248 = vunpack.c.l.b16 %v2869
    %v3249 = vunpack.c.h.b16 %v2869
    %v3250 = vunpack.c.l.b16 %v2870
    %v3251 = vunpack.c.h.b16 %v2870
    %v3252 = vunpack.c.l.b16 %v2871
    %v3253 = vunpack.c.h.b16 %v2871
    %v3254 = vunpack.c.l.b16 %v2872
    %v3255 = vunpack.c.h.b16 %v2872
    %v3256 = vunpack.c.l.b16 %v2873
    %v3257 = vunpack.c.h.b16 %v2873
    %v3258 = vunpack.c.l.b16 %v2874
    %v3259 = vunpack.c.h.b16 %v2874
    %v3260 = vunpack.c.l.b16 %v2875
    %v3261 = vunpack.c.h.b16 %v2875
    %v3262 = vunpack.c.l.b16 %v2876
    %v3263 = vunpack.c.h.b16 %v2876
    %v3264 = vunpack.c.l.b16 %v2877
    %v3265 = vunpack.c.h.b16 %v2877
    %v3266 = vunpack.c.l.b16 %v2878
    %v3267 = vunpack.c.h.b16 %v2878
    %v3268 = vunpack.c.l.b16 %v2879
    %v3269 = vunpack.c.h.b16 %v2879
    %v3270 = vunpack.c.l.b16 %v2880
    %v3271 = vunpack.c.h.b16 %v2880
    %v3272 = vunpack.c.l.b16 %v2881
    %v3273 = vunpack.c.h.b16 %v2881
    %v3274 = vunpack.c.l.b16 %v2882
    %v3275 = vunpack.c.h.b16 %v2882
    %v3276 = vunpack.c.l.b16 %v2883
    %v3277 = vunpack.c.h.b16 %v2883
    %v3278 = vunpack.c.l.b16 %v2884
    %v3279 = vunpack.c.h.b16 %v2884
    %v3280 = vunpack.c.l.b16 %v2885
    %v3281 = vunpack.c.h.b16 %v2885
    %v3282 = vpack.c.b16 %v3028, %v3026
    %v3283 = vpack.c.b16 %v3029, %v3027
    %v3284 = vpack.c.b16 %v3032, %v3030
    %v3285 = vpack.c.b16 %v3033, %v3031
    %v3286 = vpack.c.b16 %v3036, %v3034
    %v3287 = vpack.c.b16 %v3037, %v3035
    %v3288 = vpack.c.b16 %v3040, %v3038
    %v3289 = vpack.c.b16 %v3041, %v3039
    %v3290 = vpack.c.b16 %v3044, %v3042
    %v3291 = vpack.c.b16 %v3045, %v3043
    %v3292 = vpack.c.b16 %v3048, %v3046
    %v3293 = vpack.c.b16 %v3049, %v3047
    %v3294 = vpack.c.b16 %v3052, %v3050
    %v3295 = vpack.c.b16 %v3053, %v3051
    %v3296 = vpack.c.b16 %v3056, %v3054
    %v3297 = vpack.c.b16 %v3057, %v3055
    %v3298 = vpack.c.b16 %v3060, %v3058
    %v3299 = vpack.c.b16 %v3061, %v3059
    %v3300 = vpack.c.b16 %v3064, %v3062
    %v3301 = vpack.c.b16 %v3065, %v3063
    %v3302 = vpack.c.b16 %v3068, %v3066
    %v3303 = vpack.c.b16 %v3069, %v3067
    %v3304 = vpack.c.b16 %v3072, %v3070
    %v3305 = vpack.c.b16 %v3073, %v3071
    %v3306 = vpack.c.b16 %v3076, %v3074
    %v3307 = vpack.c.b16 %v3077, %v3075
    %v3308 = vpack.c.b16 %v3080, %v3078
    %v3309 = vpack.c.b16 %v3081, %v3079
    %v3310 = vpack.c.b16 %v3084, %v3082
    %v3311 = vpack.c.b16 %v3085, %v3083
    %v3312 = vpack.c.b16 %v3088, %v3086
    %v3313 = vpack.c.b16 %v3089, %v3087
    %v3314 = vpack.c.b16 %v3092, %v3090
    %v3315 = vpack.c.b16 %v3093, %v3091
    %v3316 = vpack.c.b16 %v3096, %v3094
    %v3317 = vpack.c.b16 %v3097, %v3095
    %v3318 = vpack.c.b16 %v3100, %v3098
    %v3319 = vpack.c.b16 %v3101, %v3099
    %v3320 = vpack.c.b16 %v3104, %v3102
    %v3321 = vpack.c.b16 %v3105, %v3103
    %v3322 = vpack.c.b16 %v3108, %v3106
    %v3323 = vpack.c.b16 %v3109, %v3107
    %v3324 = vpack.c.b16 %v3112, %v3110
    %v3325 = vpack.c.b16 %v3113, %v3111
    %v3326 = vpack.c.b16 %v3116, %v3114
    %v3327 = vpack.c.b16 %v3117, %v3115
    %v3328 = vpack.c.b16 %v3120, %v3118
    %v3329 = vpack.c.b16 %v3121, %v3119
    %v3330 = vpack.c.b16 %v3124, %v3122
    %v3331 = vpack.c.b16 %v3125, %v3123
    %v3332 = vpack.c.b16 %v3128, %v3126
    %v3333 = vpack.c.b16 %v3129, %v3127
    %v3334 = vpack.c.b16 %v3132, %v3130
    %v3335 = vpack.c.b16 %v3133, %v3131
    %v3336 = vpack.c.b16 %v3136, %v3134
    %v3337 = vpack.c.b16 %v3137, %v3135
    %v3338 = vpack.c.b16 %v3140, %v3138
    %v3339 = vpack.c.b16 %v3141, %v3139
    %v3340 = vpack.c.b16 %v3144, %v3142
    %v3341 = vpack.c.b16 %v3145, %v3143
    %v3342 = vpack.c.b16 %v3148, %v3146
    %v3343 = vpack.c.b16 %v3149, %v3147
    %v3344 = vpack.c.b16 %v3152, %v3150
    %v3345 = vpack.c.b16 %v3153, %v3151
    %v3346 = vpack.c.b16 %v3156, %v3154
    %v3347 = vpack.c.b16 %v3157, %v3155
    %v3348 = vpack.c.b16 %v3160, %v3158
    %v3349 = vpack.c.b16 %v3161, %v3159
    %v3350 = vpack.c.b16 %v3164, %v3162
    %v3351 = vpack.c.b16 %v3165, %v3163
    %v3352 = vpack.c.b16 %v3168, %v3166
    %v3353 = vpack.c.b16 %v3169, %v3167
    %v3354 = vpack.c.b16 %v3172, %v3170
    %v3355 = vpack.c.b16 %v3173, %v3171
    %v3356 = vpack.c.b16 %v3176, %v3174
    %v3357 = vpack.c.b16 %v3177, %v3175
    %v3358 = vpack.c.b16 %v3180, %v3178
    %v3359 = vpack.c.b16 %v3181, %v3179
    %v3360 = vpack.c.b16 %v3184, %v3182
    %v3361 = vpack.c.b16 %v3185, %v3183
    %v3362 = vpack.c.b16 %v3188, %v3186
    %v3363 = vpack.c.b16 %v3189, %v3187
    %v3364 = vpack.c.b16 %v3192, %v3190
    %v3365 = vpack.c.b16 %v3193, %v3191
    %v3366 = vpack.c.b16 %v3196, %v3194
    %v3367 = vpack.c.b16 %v3197, %v3195
    %v3368 = vpack.c.b16 %v3200, %v3198
    %v3369 = vpack.c.b16 %v3201, %v3199
    %v3370 = vpack.c.b16 %v3204, %v3202
    %v3371 = vpack.c.b16 %v3205, %v3203
    %v3372 = vpack.c.b16 %v3208, %v3206
    %v3373 = vpack.c.b16 %v3209, %v3207
    %v3374 = vpack.c.b16 %v3212, %v3210
    %v3375 = vpack.c.b16 %v3213, %v3211
    %v3376 = vpack.c.b16 %v3216, %v3214
    %v3377 = vpack.c.b16 %v3217, %v3215
    %v3378 = vpack.c.b16 %v3220, %v3218
    %v3379 = vpack.c.b16 %v3221, %v3219
    %v3380 = vpack.c.b16 %v3224, %v3222
    %v3381 = vpack.c.b16 %v3225, %v3223
    %v3382 = vpack.c.b16 %v3228, %v3226
    %v3383 = vpack.c.b16 %v3229, %v3227
    %v3384 = vpack.c.b16 %v3232, %v3230
    %v3385 = vpack.c.b16 %v3233, %v3231
    %v3386 = vpack.c.b16 %v3236, %v3234
    %v3387 = vpack.c.b16 %v3237, %v3235
    %v3388 = vpack.c.b16 %v3240, %v3238
    %v3389 = vpack.c.b16 %v3241, %v3239
    %v3390 = vpack.c.b16 %v3244, %v3242
    %v3391 = vpack.c.b16 %v3245, %v3243
    %v3392 = vpack.c.b16 %v3248, %v3246
    %v3393 = vpack.c.b16 %v3249, %v3247
    %v3394 = vpack.c.b16 %v3252, %v3250
    %v3395 = vpack.c.b16 %v3253, %v3251
    %v3396 = vpack.c.b16 %v3256, %v3254
    %v3397 = vpack.c.b16 %v3257, %v3255
    %v3398 = vpack.c.b16 %v3260, %v3258
    %v3399 = vpack.c.b16 %v3261, %v3259
    %v3400 = vpack.c.b16 %v3264, %v3262
    %v3401 = vpack.c.b16 %v3265, %v3263
    %v3402 = vpack.c.b16 %v3268, %v3266
    %v3403 = vpack.c.b16 %v3269, %v3267
    %v3404 = vpack.c.b16 %v3272, %v3270
    %v3405 = vpack.c.b16 %v3273, %v3271
    %v3406 = vpack.c.b16 %v3276, %v3274
    %v3407 = vpack.c.b16 %v3277, %v3275
    %v3408 = vpack.c.b16 %v3280, %v3278
    %v3409 = vpack.c.b16 %v3281, %v3279
    %3538 = vmatprep.subr.bf16.mxu0 %v3283
    %3539 = vmatpush1.bf16.msra.mxu0 %v3282
    %3540 = vmatprep.subr.bf16.mxu0 %v3285
    %3541 = vmatpush1.bf16.msra.mxu0 %v3284
    %3542 = vmatprep.subr.bf16.mxu0 %v3287
    %3543 = vmatpush1.bf16.msra.mxu0 %v3286
    %3544 = vmatprep.subr.bf16.mxu0 %v3289
    %3545 = vmatpush1.bf16.msra.mxu0 %v3288
    %3546 = vmatprep.subr.bf16.mxu0 %v3291
    %3547 = vmatpush1.bf16.msra.mxu0 %v3290
    %3548 = vmatprep.subr.bf16.mxu0 %v3293
    %3549 = vmatpush1.bf16.msra.mxu0 %v3292
    %3550 = vmatprep.subr.bf16.mxu0 %v3295
    %3551 = vmatpush1.bf16.msra.mxu0 %v3294
    %3552 = vmatprep.subr.bf16.mxu0 %v3297
    %3553 = vmatpush1.bf16.msra.mxu0 %v3296
    %3554 = vmatprep.subr.bf16.mxu0 %v3299
    %3555 = vmatpush1.bf16.msra.mxu0 %v3298
    %3556 = vmatprep.subr.bf16.mxu0 %v3301
    %3557 = vmatpush1.bf16.msra.mxu0 %v3300
    %3558 = vmatprep.subr.bf16.mxu0 %v3303
    %3559 = vmatpush1.bf16.msra.mxu0 %v3302
    %3560 = vmatprep.subr.bf16.mxu0 %v3305
    %3561 = vmatpush1.bf16.msra.mxu0 %v3304
    %3562 = vmatprep.subr.bf16.mxu0 %v3307
    %3563 = vmatpush1.bf16.msra.mxu0 %v3306
    %3564 = vmatprep.subr.bf16.mxu0 %v3309
    %3565 = vmatpush1.bf16.msra.mxu0 %v3308
    %3566 = vmatprep.subr.bf16.mxu0 %v3311
    %3567 = vmatpush1.bf16.msra.mxu0 %v3310
    %3568 = vmatprep.subr.bf16.mxu0 %v3313
    %3569 = vmatpush1.bf16.msra.mxu0 %v3312
    %3570 = vmatprep.mubr.bf16.mxu0 %v2631
    %3571 = vmatmul.mubr.bf16.gmra.mrb[0].mxu0 %v2630
    %v3572 = vpop.f32.mrb[0].mxu0
    %v3573 = vadd.f32 %v2891, %v3572
    %v3574 = vpop.f32.mrb[0].mxu0
    %v3575 = vadd.f32 %v2895, %v3574
    %v3576 = vpop.f32.mrb[0].mxu0
    %v3577 = vadd.f32 %v2891, %v3576
    %v3578 = vpop.f32.mrb[0].mxu0
    %v3579 = vadd.f32 %v2895, %v3578
    %3580 = vmatprep.mubr.bf16.mxu0 %v2639
    %3581 = vmatmul.mubr.bf16.gmra.mrb[0].mxu0 %v2638
    %v3582 = vpop.f32.mrb[0].mxu0
    %v3583 = vadd.f32 %v2891, %v3582
    %v3584 = vpop.f32.mrb[0].mxu0
    %v3585 = vadd.f32 %v2895, %v3584
    %v3586 = vpop.f32.mrb[0].mxu0
    %v3587 = vadd.f32 %v2891, %v3586
    %v3588 = vpop.f32.mrb[0].mxu0
    %v3589 = vadd.f32 %v2895, %v3588
    %3590 = vmatprep.mubr.bf16.mxu0 %v2647
    %3591 = vmatmul.mubr.bf16.gmra.mrb[0].mxu0 %v2646
    %v3592 = vpop.f32.mrb[0].mxu0
    %v3593 = vadd.f32 %v2891, %v3592
    %v3594 = vpop.f32.mrb[0].mxu0
    %v3595 = vadd.f32 %v2895, %v3594
    %v3596 = vpop.f32.mrb[0].mxu0
    %v3597 = vadd.f32 %v2891, %v3596
    %v3598 = vpop.f32.mrb[0].mxu0
    %v3599 = vadd.f32 %v2895, %v3598
    %3600 = vmatprep.mubr.bf16.mxu0 %v2655
    %3601 = vmatmul.mubr.bf16.gmra.mrb[0].mxu0 %v2654
    %v3602 = vpop.f32.mrb[0].mxu0
    %v3603 = vadd.f32 %v2891, %v3602
    %v3604 = vpop.f32.mrb[0].mxu0
    %v3605 = vadd.f32 %v2895, %v3604
    %v3606 = vpop.f32.mrb[0].mxu0
    %v3607 = vadd.f32 %v2891, %v3606
    %v3608 = vpop.f32.mrb[0].mxu0
    %v3609 = vadd.f32 %v2895, %v3608
    %3610 = vmatprep.mubr.bf16.mxu0 %v2663
    %3611 = vmatmul.mubr.bf16.gmra.mrb[0].mxu0 %v2662
    %v3612 = vpop.f32.mrb[0].mxu0
    %v3613 = vadd.f32 %v2891, %v3612
    %v3614 = vpop.f32.mrb[0].mxu0
    %v3615 = vadd.f32 %v2895, %v3614
    %v3616 = vpop.f32.mrb[0].mxu0
    %v3617 = vadd.f32 %v2891, %v3616
    %v3618 = vpop.f32.mrb[0].mxu0
    %v3619 = vadd.f32 %v2895, %v3618
    %3620 = vmatprep.mubr.bf16.mxu0 %v2671
    %3621 = vmatmul.mubr.bf16.gmra.mrb[0].mxu0 %v2670
    %v3622 = vpop.f32.mrb[0].mxu0
    %v3623 = vadd.f32 %v2891, %v3622
    %v3624 = vpop.f32.mrb[0].mxu0
    %v3625 = vadd.f32 %v2895, %v3624
    %v3626 = vpop.f32.mrb[0].mxu0
    %v3627 = vadd.f32 %v2891, %v3626
    %v3628 = vpop.f32.mrb[0].mxu0
    %v3629 = vadd.f32 %v2895, %v3628
    %3630 = vmatprep.mubr.bf16.mxu0 %v2679
    %3631 = vmatmul.mubr.bf16.gmra.mrb[0].mxu0 %v2678
    %v3632 = vpop.f32.mrb[0].mxu0
    %v3633 = vadd.f32 %v2891, %v3632
    %v3634 = vpop.f32.mrb[0].mxu0
    %v3635 = vadd.f32 %v2895, %v3634
    %v3636 = vpop.f32.mrb[0].mxu0
    %v3637 = vadd.f32 %v2891, %v3636
    %v3638 = vpop.f32.mrb[0].mxu0
    %v3639 = vadd.f32 %v2895, %v3638
    %3640 = vmatprep.mubr.bf16.mxu0 %v2687
    %3641 = vmatmul.mubr.bf16.gmra.mrb[0].mxu0 %v2686
    %v3642 = vpop.f32.mrb[0].mxu0
    %v3643 = vadd.f32 %v2891, %v3642
    %v3644 = vpop.f32.mrb[0].mxu0
    %v3645 = vadd.f32 %v2895, %v3644
    %v3646 = vpop.f32.mrb[0].mxu0
    %v3647 = vadd.f32 %v2891, %v3646
    %v3648 = vpop.f32.mrb[0].mxu0
    %v3649 = vadd.f32 %v2895, %v3648
    %3650 = vmatprep.mubr.bf16.mxu0 %v2695
    %3651 = vmatmul.mubr.bf16.gmra.mrb[0].mxu0 %v2694
    %v3652 = vpop.f32.mrb[0].mxu0
    %v3653 = vadd.f32 %v2891, %v3652
    %v3654 = vpop.f32.mrb[0].mxu0
    %v3655 = vadd.f32 %v2895, %v3654
    %v3656 = vpop.f32.mrb[0].mxu0
    %v3657 = vadd.f32 %v2891, %v3656
    %v3658 = vpop.f32.mrb[0].mxu0
    %v3659 = vadd.f32 %v2895, %v3658
    %3660 = vmatprep.mubr.bf16.mxu0 %v2703
    %3661 = vmatmul.mubr.bf16.gmra.mrb[0].mxu0 %v2702
    %v3662 = vpop.f32.mrb[0].mxu0
    %v3663 = vadd.f32 %v2891, %v3662
    %v3664 = vpop.f32.mrb[0].mxu0
    %v3665 = vadd.f32 %v2895, %v3664
    %v3666 = vpop.f32.mrb[0].mxu0
    %v3667 = vadd.f32 %v2891, %v3666
    %v3668 = vpop.f32.mrb[0].mxu0
    %v3669 = vadd.f32 %v2895, %v3668
    %3670 = vmatprep.mubr.bf16.mxu0 %v2711
    %3671 = vmatmul.mubr.bf16.gmra.mrb[0].mxu0 %v2710
    %v3672 = vpop.f32.mrb[0].mxu0
    %v3673 = vadd.f32 %v2891, %v3672
    %v3674 = vpop.f32.mrb[0].mxu0
    %v3675 = vadd.f32 %v2895, %v3674
    %v3676 = vpop.f32.mrb[0].mxu0
    %v3677 = vadd.f32 %v2891, %v3676
    %v3678 = vpop.f32.mrb[0].mxu0
    %v3679 = vadd.f32 %v2895, %v3678
    %3680 = vmatprep.mubr.bf16.mxu0 %v2719
    %3681 = vmatmul.mubr.bf16.gmra.mrb[0].mxu0 %v2718
    %v3682 = vpop.f32.mrb[0].mxu0
    %v3683 = vadd.f32 %v2891, %v3682
    %v3684 = vpop.f32.mrb[0].mxu0
    %v3685 = vadd.f32 %v2895, %v3684
    %v3686 = vpop.f32.mrb[0].mxu0
    %v3687 = vadd.f32 %v2891, %v3686
    %v3688 = vpop.f32.mrb[0].mxu0
    %v3689 = vadd.f32 %v2895, %v3688
    %3690 = vmatprep.mubr.bf16.mxu0 %v2727
    %3691 = vmatmul.mubr.bf16.gmra.mrb[0].mxu0 %v2726
    %v3692 = vpop.f32.mrb[0].mxu0
    %v3693 = vadd.f32 %v2891, %v3692
    %v3694 = vpop.f32.mrb[0].mxu0
    %v3695 = vadd.f32 %v2895, %v3694
    %v3696 = vpop.f32.mrb[0].mxu0
    %v3697 = vadd.f32 %v2891, %v3696
    %v3698 = vpop.f32.mrb[0].mxu0
    %v3699 = vadd.f32 %v2895, %v3698
    %3700 = vmatprep.mubr.bf16.mxu0 %v2735
    %3701 = vmatmul.mubr.bf16.gmra.mrb[0].mxu0 %v2734
    %v3702 = vpop.f32.mrb[0].mxu0
    %v3703 = vadd.f32 %v2891, %v3702
    %v3704 = vpop.f32.mrb[0].mxu0
    %v3705 = vadd.f32 %v2895, %v3704
    %v3706 = vpop.f32.mrb[0].mxu0
    %v3707 = vadd.f32 %v2891, %v3706
    %v3708 = vpop.f32.mrb[0].mxu0
    %v3709 = vadd.f32 %v2895, %v3708
    %3710 = vmatprep.mubr.bf16.mxu0 %v2743
    %3711 = vmatmul.mubr.bf16.gmra.mrb[0].mxu0 %v2742
    %v3712 = vpop.f32.mrb[0].mxu0
    %v3713 = vadd.f32 %v2891, %v3712
    %v3714 = vpop.f32.mrb[0].mxu0
    %v3715 = vadd.f32 %v2895, %v3714
    %v3716 = vpop.f32.mrb[0].mxu0
    %v3717 = vadd.f32 %v2891, %v3716
    %v3718 = vpop.f32.mrb[0].mxu0
    %v3719 = vadd.f32 %v2895, %v3718
    %3720 = vmatprep.mubr.bf16.mxu0 %v2751
    %3721 = vmatmul.mubr.bf16.gmra.mrb[0].mxu0 %v2750
    %v3722 = vpop.f32.mrb[0].mxu0
    %v3723 = vadd.f32 %v2891, %v3722
    %v3724 = vpop.f32.mrb[0].mxu0
    %v3725 = vadd.f32 %v2895, %v3724
    %v3726 = vpop.f32.mrb[0].mxu0
    %v3727 = vadd.f32 %v2891, %v3726
    %v3728 = vpop.f32.mrb[0].mxu0
    %v3729 = vadd.f32 %v2895, %v3728
    %3730 = vdwg.mxu0
    %3731 = vmatprep.subr.bf16.mxu0 %v3315
    %3732 = vmatpush1.bf16.msra.mxu0 %v3314
    %3733 = vmatprep.subr.bf16.mxu0 %v3317
    %3734 = vmatpush1.bf16.msra.mxu0 %v3316
    %3735 = vmatprep.subr.bf16.mxu0 %v3319
    %3736 = vmatpush1.bf16.msra.mxu0 %v3318
    %3737 = vmatprep.subr.bf16.mxu0 %v3321
    %3738 = vmatpush1.bf16.msra.mxu0 %v3320
    %3739 = vmatprep.subr.bf16.mxu0 %v3323
    %3740 = vmatpush1.bf16.msra.mxu0 %v3322
    %3741 = vmatprep.subr.bf16.mxu0 %v3325
    %3742 = vmatpush1.bf16.msra.mxu0 %v3324
    %3743 = vmatprep.subr.bf16.mxu0 %v3327
    %3744 = vmatpush1.bf16.msra.mxu0 %v3326
    %3745 = vmatprep.subr.bf16.mxu0 %v3329
    %3746 = vmatpush1.bf16.msra.mxu0 %v3328
    %3747 = vmatprep.subr.bf16.mxu0 %v3331
    %3748 = vmatpush1.bf16.msra.mxu0 %v3330
    %3749 = vmatprep.subr.bf16.mxu0 %v3333
    %3750 = vmatpush1.bf16.msra.mxu0 %v3332
    %3751 = vmatprep.subr.bf16.mxu0 %v3335
    %3752 = vmatpush1.bf16.msra.mxu0 %v3334
    %3753 = vmatprep.subr.bf16.mxu0 %v3337
    %3754 = vmatpush1.bf16.msra.mxu0 %v3336
    %3755 = vmatprep.subr.bf16.mxu0 %v3339
    %3756 = vmatpush1.bf16.msra.mxu0 %v3338
    %3757 = vmatprep.subr.bf16.mxu0 %v3341
    %3758 = vmatpush1.bf16.msra.mxu0 %v3340
    %3759 = vmatprep.subr.bf16.mxu0 %v3343
    %3760 = vmatpush1.bf16.msra.mxu0 %v3342
    %3761 = vmatprep.subr.bf16.mxu0 %v3345
    %3762 = vmatpush1.bf16.msra.mxu0 %v3344
    %3763 = vmatprep.mubr.bf16.mxu0 %v2633
    %3764 = vmatmul.mubr.bf16.gmra.mrb[0].mxu0 %v2632
    %v3765 = vpop.f32.mrb[0].mxu0
    %v3766 = vadd.f32 %v3573, %v3765
    %v3767 = vpop.f32.mrb[0].mxu0
    %v3768 = vadd.f32 %v3575, %v3767
    %v3769 = vpop.f32.mrb[0].mxu0
    %v3770 = vadd.f32 %v3577, %v3769
    %v3771 = vpop.f32.mrb[0].mxu0
    %v3772 = vadd.f32 %v3579, %v3771
    %3773 = vmatprep.mubr.bf16.mxu0 %v2641
    %3774 = vmatmul.mubr.bf16.gmra.mrb[0].mxu0 %v2640
    %v3775 = vpop.f32.mrb[0].mxu0
    %v3776 = vadd.f32 %v3583, %v3775
    %v3777 = vpop.f32.mrb[0].mxu0
    %v3778 = vadd.f32 %v3585, %v3777
    %v3779 = vpop.f32.mrb[0].mxu0
    %v3780 = vadd.f32 %v3587, %v3779
    %v3781 = vpop.f32.mrb[0].mxu0
    %v3782 = vadd.f32 %v3589, %v3781
    %3783 = vmatprep.mubr.bf16.mxu0 %v2649
    %3784 = vmatmul.mubr.bf16.gmra.mrb[0].mxu0 %v2648
    %v3785 = vpop.f32.mrb[0].mxu0
    %v3786 = vadd.f32 %v3593, %v3785
    %v3787 = vpop.f32.mrb[0].mxu0
    %v3788 = vadd.f32 %v3595, %v3787
    %v3789 = vpop.f32.mrb[0].mxu0
    %v3790 = vadd.f32 %v3597, %v3789
    %v3791 = vpop.f32.mrb[0].mxu0
    %v3792 = vadd.f32 %v3599, %v3791
    %3793 = vmatprep.mubr.bf16.mxu0 %v2657
    %3794 = vmatmul.mubr.bf16.gmra.mrb[0].mxu0 %v2656
    %v3795 = vpop.f32.mrb[0].mxu0
    %v3796 = vadd.f32 %v3603, %v3795
    %v3797 = vpop.f32.mrb[0].mxu0
    %v3798 = vadd.f32 %v3605, %v3797
    %v3799 = vpop.f32.mrb[0].mxu0
    %v3800 = vadd.f32 %v3607, %v3799
    %v3801 = vpop.f32.mrb[0].mxu0
    %v3802 = vadd.f32 %v3609, %v3801
    %3803 = vmatprep.mubr.bf16.mxu0 %v2665
    %3804 = vmatmul.mubr.bf16.gmra.mrb[0].mxu0 %v2664
    %v3805 = vpop.f32.mrb[0].mxu0
    %v3806 = vadd.f32 %v3613, %v3805
    %v3807 = vpop.f32.mrb[0].mxu0
    %v3808 = vadd.f32 %v3615, %v3807
    %v3809 = vpop.f32.mrb[0].mxu0
    %v3810 = vadd.f32 %v3617, %v3809
    %v3811 = vpop.f32.mrb[0].mxu0
    %v3812 = vadd.f32 %v3619, %v3811
    %3813 = vmatprep.mubr.bf16.mxu0 %v2673
    %3814 = vmatmul.mubr.bf16.gmra.mrb[0].mxu0 %v2672
    %v3815 = vpop.f32.mrb[0].mxu0
    %v3816 = vadd.f32 %v3623, %v3815
    %v3817 = vpop.f32.mrb[0].mxu0
    %v3818 = vadd.f32 %v3625, %v3817
    %v3819 = vpop.f32.mrb[0].mxu0
    %v3820 = vadd.f32 %v3627, %v3819
    %v3821 = vpop.f32.mrb[0].mxu0
    %v3822 = vadd.f32 %v3629, %v3821
    %3823 = vmatprep.mubr.bf16.mxu0 %v2681
    %3824 = vmatmul.mubr.bf16.gmra.mrb[0].mxu0 %v2680
    %v3825 = vpop.f32.mrb[0].mxu0
    %v3826 = vadd.f32 %v3633, %v3825
    %v3827 = vpop.f32.mrb[0].mxu0
    %v3828 = vadd.f32 %v3635, %v3827
    %v3829 = vpop.f32.mrb[0].mxu0
    %v3830 = vadd.f32 %v3637, %v3829
    %v3831 = vpop.f32.mrb[0].mxu0
    %v3832 = vadd.f32 %v3639, %v3831
    %3833 = vmatprep.mubr.bf16.mxu0 %v2689
    %3834 = vmatmul.mubr.bf16.gmra.mrb[0].mxu0 %v2688
    %v3835 = vpop.f32.mrb[0].mxu0
    %v3836 = vadd.f32 %v3643, %v3835
    %v3837 = vpop.f32.mrb[0].mxu0
    %v3838 = vadd.f32 %v3645, %v3837
    %v3839 = vpop.f32.mrb[0].mxu0
    %v3840 = vadd.f32 %v3647, %v3839
    %v3841 = vpop.f32.mrb[0].mxu0
    %v3842 = vadd.f32 %v3649, %v3841
    %3843 = vmatprep.mubr.bf16.mxu0 %v2697
    %3844 = vmatmul.mubr.bf16.gmra.mrb[0].mxu0 %v2696
    %v3845 = vpop.f32.mrb[0].mxu0
    %v3846 = vadd.f32 %v3653, %v3845
    %v3847 = vpop.f32.mrb[0].mxu0
    %v3848 = vadd.f32 %v3655, %v3847
    %v3849 = vpop.f32.mrb[0].mxu0
    %v3850 = vadd.f32 %v3657, %v3849
    %v3851 = vpop.f32.mrb[0].mxu0
    %v3852 = vadd.f32 %v3659, %v3851
    %3853 = vmatprep.mubr.bf16.mxu0 %v2705
    %3854 = vmatmul.mubr.bf16.gmra.mrb[0].mxu0 %v2704
    %v3855 = vpop.f32.mrb[0].mxu0
    %v3856 = vadd.f32 %v3663, %v3855
    %v3857 = vpop.f32.mrb[0].mxu0
    %v3858 = vadd.f32 %v3665, %v3857
    %v3859 = vpop.f32.mrb[0].mxu0
    %v3860 = vadd.f32 %v3667, %v3859
    %v3861 = vpop.f32.mrb[0].mxu0
    %v3862 = vadd.f32 %v3669, %v3861
    %3863 = vmatprep.mubr.bf16.mxu0 %v2713
    %3864 = vmatmul.mubr.bf16.gmra.mrb[0].mxu0 %v2712
    %v3865 = vpop.f32.mrb[0].mxu0
    %v3866 = vadd.f32 %v3673, %v3865
    %v3867 = vpop.f32.mrb[0].mxu0
    %v3868 = vadd.f32 %v3675, %v3867
    %v3869 = vpop.f32.mrb[0].mxu0
    %v3870 = vadd.f32 %v3677, %v3869
    %v3871 = vpop.f32.mrb[0].mxu0
    %v3872 = vadd.f32 %v3679, %v3871
    %3873 = vmatprep.mubr.bf16.mxu0 %v2721
    %3874 = vmatmul.mubr.bf16.gmra.mrb[0].mxu0 %v2720
    %v3875 = vpop.f32.mrb[0].mxu0
    %v3876 = vadd.f32 %v3683, %v3875
    %v3877 = vpop.f32.mrb[0].mxu0
    %v3878 = vadd.f32 %v3685, %v3877
    %v3879 = vpop.f32.mrb[0].mxu0
    %v3880 = vadd.f32 %v3687, %v3879
    %v3881 = vpop.f32.mrb[0].mxu0
    %v3882 = vadd.f32 %v3689, %v3881
    %3883 = vmatprep.mubr.bf16.mxu0 %v2729
    %3884 = vmatmul.mubr.bf16.gmra.mrb[0].mxu0 %v2728
    %v3885 = vpop.f32.mrb[0].mxu0
    %v3886 = vadd.f32 %v3693, %v3885
    %v3887 = vpop.f32.mrb[0].mxu0
    %v3888 = vadd.f32 %v3695, %v3887
    %v3889 = vpop.f32.mrb[0].mxu0
    %v3890 = vadd.f32 %v3697, %v3889
    %v3891 = vpop.f32.mrb[0].mxu0
    %v3892 = vadd.f32 %v3699, %v3891
    %3893 = vmatprep.mubr.bf16.mxu0 %v2737
    %3894 = vmatmul.mubr.bf16.gmra.mrb[0].mxu0 %v2736
    %v3895 = vpop.f32.mrb[0].mxu0
    %v3896 = vadd.f32 %v3703, %v3895
    %v3897 = vpop.f32.mrb[0].mxu0
    %v3898 = vadd.f32 %v3705, %v3897
    %v3899 = vpop.f32.mrb[0].mxu0
    %v3900 = vadd.f32 %v3707, %v3899
    %v3901 = vpop.f32.mrb[0].mxu0
    %v3902 = vadd.f32 %v3709, %v3901
    %3903 = vmatprep.mubr.bf16.mxu0 %v2745
    %3904 = vmatmul.mubr.bf16.gmra.mrb[0].mxu0 %v2744
    %v3905 = vpop.f32.mrb[0].mxu0
    %v3906 = vadd.f32 %v3713, %v3905
    %v3907 = vpop.f32.mrb[0].mxu0
    %v3908 = vadd.f32 %v3715, %v3907
    %v3909 = vpop.f32.mrb[0].mxu0
    %v3910 = vadd.f32 %v3717, %v3909
    %v3911 = vpop.f32.mrb[0].mxu0
    %v3912 = vadd.f32 %v3719, %v3911
    %3913 = vmatprep.mubr.bf16.mxu0 %v2753
    %3914 = vmatmul.mubr.bf16.gmra.mrb[0].mxu0 %v2752
    %v3915 = vpop.f32.mrb[0].mxu0
    %v3916 = vadd.f32 %v3723, %v3915
    %v3917 = vpop.f32.mrb[0].mxu0
    %v3918 = vadd.f32 %v3725, %v3917
    %v3919 = vpop.f32.mrb[0].mxu0
    %v3920 = vadd.f32 %v3727, %v3919
    %v3921 = vpop.f32.mrb[0].mxu0
    %v3922 = vadd.f32 %v3729, %v3921
    %3923 = vdwg.mxu0
    %3924 = vmatprep.subr.bf16.mxu0 %v3347
    %3925 = vmatpush1.bf16.msra.mxu0 %v3346
    %3926 = vmatprep.subr.bf16.mxu0 %v3349
    %3927 = vmatpush1.bf16.msra.mxu0 %v3348
    %3928 = vmatprep.subr.bf16.mxu0 %v3351
    %3929 = vmatpush1.bf16.msra.mxu0 %v3350
    %3930 = vmatprep.subr.bf16.mxu0 %v3353
    %3931 = vmatpush1.bf16.msra.mxu0 %v3352
    %3932 = vmatprep.subr.bf16.mxu0 %v3355
    %3933 = vmatpush1.bf16.msra.mxu0 %v3354
    %3934 = vmatprep.subr.bf16.mxu0 %v3357
    %3935 = vmatpush1.bf16.msra.mxu0 %v3356
    %3936 = vmatprep.subr.bf16.mxu0 %v3359
    %3937 = vmatpush1.bf16.msra.mxu0 %v3358
    %3938 = vmatprep.subr.bf16.mxu0 %v3361
    %3939 = vmatpush1.bf16.msra.mxu0 %v3360
    %3940 = vmatprep.subr.bf16.mxu0 %v3363
    %3941 = vmatpush1.bf16.msra.mxu0 %v3362
    %3942 = vmatprep.subr.bf16.mxu0 %v3365
    %3943 = vmatpush1.bf16.msra.mxu0 %v3364
    %3944 = vmatprep.subr.bf16.mxu0 %v3367
    %3945 = vmatpush1.bf16.msra.mxu0 %v3366
    %3946 = vmatprep.subr.bf16.mxu0 %v3369
    %3947 = vmatpush1.bf16.msra.mxu0 %v3368
    %3948 = vmatprep.subr.bf16.mxu0 %v3371
    %3949 = vmatpush1.bf16.msra.mxu0 %v3370
    %3950 = vmatprep.subr.bf16.mxu0 %v3373
    %3951 = vmatpush1.bf16.msra.mxu0 %v3372
    %3952 = vmatprep.subr.bf16.mxu0 %v3375
    %3953 = vmatpush1.bf16.msra.mxu0 %v3374
    %3954 = vmatprep.subr.bf16.mxu0 %v3377
    %3955 = vmatpush1.bf16.msra.mxu0 %v3376
    %3956 = vmatprep.mubr.bf16.mxu0 %v2635
    %3957 = vmatmul.mubr.bf16.gmra.mrb[0].mxu0 %v2634
    %v3958 = vpop.f32.mrb[0].mxu0
    %v3959 = vadd.f32 %v3766, %v3958
    %v3960 = vpop.f32.mrb[0].mxu0
    %v3961 = vadd.f32 %v3768, %v3960
    %v3962 = vpop.f32.mrb[0].mxu0
    %v3963 = vadd.f32 %v3770, %v3962
    %v3964 = vpop.f32.mrb[0].mxu0
    %v3965 = vadd.f32 %v3772, %v3964
    %3966 = vmatprep.mubr.bf16.mxu0 %v2643
    %3967 = vmatmul.mubr.bf16.gmra.mrb[0].mxu0 %v2642
    %v3968 = vpop.f32.mrb[0].mxu0
    %v3969 = vadd.f32 %v3776, %v3968
    %v3970 = vpop.f32.mrb[0].mxu0
    %v3971 = vadd.f32 %v3778, %v3970
    %v3972 = vpop.f32.mrb[0].mxu0
    %v3973 = vadd.f32 %v3780, %v3972
    %v3974 = vpop.f32.mrb[0].mxu0
    %v3975 = vadd.f32 %v3782, %v3974
    %3976 = vmatprep.mubr.bf16.mxu0 %v2651
    %3977 = vmatmul.mubr.bf16.gmra.mrb[0].mxu0 %v2650
    %v3978 = vpop.f32.mrb[0].mxu0
    %v3979 = vadd.f32 %v3786, %v3978
    %v3980 = vpop.f32.mrb[0].mxu0
    %v3981 = vadd.f32 %v3788, %v3980
    %v3982 = vpop.f32.mrb[0].mxu0
    %v3983 = vadd.f32 %v3790, %v3982
    %v3984 = vpop.f32.mrb[0].mxu0
    %v3985 = vadd.f32 %v3792, %v3984
    %3986 = vmatprep.mubr.bf16.mxu0 %v2659
    %3987 = vmatmul.mubr.bf16.gmra.mrb[0].mxu0 %v2658
    %v3988 = vpop.f32.mrb[0].mxu0
    %v3989 = vadd.f32 %v3796, %v3988
    %v3990 = vpop.f32.mrb[0].mxu0
    %v3991 = vadd.f32 %v3798, %v3990
    %v3992 = vpop.f32.mrb[0].mxu0
    %v3993 = vadd.f32 %v3800, %v3992
    %v3994 = vpop.f32.mrb[0].mxu0
    %v3995 = vadd.f32 %v3802, %v3994
    %3996 = vmatprep.mubr.bf16.mxu0 %v2667
    %3997 = vmatmul.mubr.bf16.gmra.mrb[0].mxu0 %v2666
    %v3998 = vpop.f32.mrb[0].mxu0
    %v3999 = vadd.f32 %v3806, %v3998
    %v4000 = vpop.f32.mrb[0].mxu0
    %v4001 = vadd.f32 %v3808, %v4000
    %v4002 = vpop.f32.mrb[0].mxu0
    %v4003 = vadd.f32 %v3810, %v4002
    %v4004 = vpop.f32.mrb[0].mxu0
    %v4005 = vadd.f32 %v3812, %v4004
    %4006 = vmatprep.mubr.bf16.mxu0 %v2675
    %4007 = vmatmul.mubr.bf16.gmra.mrb[0].mxu0 %v2674
    %v4008 = vpop.f32.mrb[0].mxu0
    %v4009 = vadd.f32 %v3816, %v4008
    %v4010 = vpop.f32.mrb[0].mxu0
    %v4011 = vadd.f32 %v3818, %v4010
    %v4012 = vpop.f32.mrb[0].mxu0
    %v4013 = vadd.f32 %v3820, %v4012
    %v4014 = vpop.f32.mrb[0].mxu0
    %v4015 = vadd.f32 %v3822, %v4014
    %4016 = vmatprep.mubr.bf16.mxu0 %v2683
    %4017 = vmatmul.mubr.bf16.gmra.mrb[0].mxu0 %v2682
    %v4018 = vpop.f32.mrb[0].mxu0
    %v4019 = vadd.f32 %v3826, %v4018
    %v4020 = vpop.f32.mrb[0].mxu0
    %v4021 = vadd.f32 %v3828, %v4020
    %v4022 = vpop.f32.mrb[0].mxu0
    %v4023 = vadd.f32 %v3830, %v4022
    %v4024 = vpop.f32.mrb[0].mxu0
    %v4025 = vadd.f32 %v3832, %v4024
    %4026 = vmatprep.mubr.bf16.mxu0 %v2691
    %4027 = vmatmul.mubr.bf16.gmra.mrb[0].mxu0 %v2690
    %v4028 = vpop.f32.mrb[0].mxu0
    %v4029 = vadd.f32 %v3836, %v4028
    %v4030 = vpop.f32.mrb[0].mxu0
    %v4031 = vadd.f32 %v3838, %v4030
    %v4032 = vpop.f32.mrb[0].mxu0
    %v4033 = vadd.f32 %v3840, %v4032
    %v4034 = vpop.f32.mrb[0].mxu0
    %v4035 = vadd.f32 %v3842, %v4034
    %4036 = vmatprep.mubr.bf16.mxu0 %v2699
    %4037 = vmatmul.mubr.bf16.gmra.mrb[0].mxu0 %v2698
    %v4038 = vpop.f32.mrb[0].mxu0
    %v4039 = vadd.f32 %v3846, %v4038
    %v4040 = vpop.f32.mrb[0].mxu0
    %v4041 = vadd.f32 %v3848, %v4040
    %v4042 = vpop.f32.mrb[0].mxu0
    %v4043 = vadd.f32 %v3850, %v4042
    %v4044 = vpop.f32.mrb[0].mxu0
    %v4045 = vadd.f32 %v3852, %v4044
    %4046 = vmatprep.mubr.bf16.mxu0 %v2707
    %4047 = vmatmul.mubr.bf16.gmra.mrb[0].mxu0 %v2706
    %v4048 = vpop.f32.mrb[0].mxu0
    %v4049 = vadd.f32 %v3856, %v4048
    %v4050 = vpop.f32.mrb[0].mxu0
    %v4051 = vadd.f32 %v3858, %v4050
    %v4052 = vpop.f32.mrb[0].mxu0
    %v4053 = vadd.f32 %v3860, %v4052
    %v4054 = vpop.f32.mrb[0].mxu0
    %v4055 = vadd.f32 %v3862, %v4054
    %4056 = vmatprep.mubr.bf16.mxu0 %v2715
    %4057 = vmatmul.mubr.bf16.gmra.mrb[0].mxu0 %v2714
    %v4058 = vpop.f32.mrb[0].mxu0
    %v4059 = vadd.f32 %v3866, %v4058
    %v4060 = vpop.f32.mrb[0].mxu0
    %v4061 = vadd.f32 %v3868, %v4060
    %v4062 = vpop.f32.mrb[0].mxu0
    %v4063 = vadd.f32 %v3870, %v4062
    %v4064 = vpop.f32.mrb[0].mxu0
    %v4065 = vadd.f32 %v3872, %v4064
    %4066 = vmatprep.mubr.bf16.mxu0 %v2723
    %4067 = vmatmul.mubr.bf16.gmra.mrb[0].mxu0 %v2722
    %v4068 = vpop.f32.mrb[0].mxu0
    %v4069 = vadd.f32 %v3876, %v4068
    %v4070 = vpop.f32.mrb[0].mxu0
    %v4071 = vadd.f32 %v3878, %v4070
    %v4072 = vpop.f32.mrb[0].mxu0
    %v4073 = vadd.f32 %v3880, %v4072
    %v4074 = vpop.f32.mrb[0].mxu0
    %v4075 = vadd.f32 %v3882, %v4074
    %4076 = vmatprep.mubr.bf16.mxu0 %v2731
    %4077 = vmatmul.mubr.bf16.gmra.mrb[0].mxu0 %v2730
    %v4078 = vpop.f32.mrb[0].mxu0
    %v4079 = vadd.f32 %v3886, %v4078
    %v4080 = vpop.f32.mrb[0].mxu0
    %v4081 = vadd.f32 %v3888, %v4080
    %v4082 = vpop.f32.mrb[0].mxu0
    %v4083 = vadd.f32 %v3890, %v4082
    %v4084 = vpop.f32.mrb[0].mxu0
    %v4085 = vadd.f32 %v3892, %v4084
    %4086 = vmatprep.mubr.bf16.mxu0 %v2739
    %4087 = vmatmul.mubr.bf16.gmra.mrb[0].mxu0 %v2738
    %v4088 = vpop.f32.mrb[0].mxu0
    %v4089 = vadd.f32 %v3896, %v4088
    %v4090 = vpop.f32.mrb[0].mxu0
    %v4091 = vadd.f32 %v3898, %v4090
    %v4092 = vpop.f32.mrb[0].mxu0
    %v4093 = vadd.f32 %v3900, %v4092
    %v4094 = vpop.f32.mrb[0].mxu0
    %v4095 = vadd.f32 %v3902, %v4094
    %4096 = vmatprep.mubr.bf16.mxu0 %v2747
    %4097 = vmatmul.mubr.bf16.gmra.mrb[0].mxu0 %v2746
    %v4098 = vpop.f32.mrb[0].mxu0
    %v4099 = vadd.f32 %v3906, %v4098
    %v4100 = vpop.f32.mrb[0].mxu0
    %v4101 = vadd.f32 %v3908, %v4100
    %v4102 = vpop.f32.mrb[0].mxu0
    %v4103 = vadd.f32 %v3910, %v4102
    %v4104 = vpop.f32.mrb[0].mxu0
    %v4105 = vadd.f32 %v3912, %v4104
    %4106 = vmatprep.mubr.bf16.mxu0 %v2755
    %4107 = vmatmul.mubr.bf16.gmra.mrb[0].mxu0 %v2754
    %v4108 = vpop.f32.mrb[0].mxu0
    %v4109 = vadd.f32 %v3916, %v4108
    %v4110 = vpop.f32.mrb[0].mxu0
    %v4111 = vadd.f32 %v3918, %v4110
    %v4112 = vpop.f32.mrb[0].mxu0
    %v4113 = vadd.f32 %v3920, %v4112
    %v4114 = vpop.f32.mrb[0].mxu0
    %v4115 = vadd.f32 %v3922, %v4114
    %4116 = vdwg.mxu0
    %4117 = vmatprep.subr.bf16.mxu0 %v3379
    %4118 = vmatpush1.bf16.msra.mxu0 %v3378
    %4119 = vmatprep.subr.bf16.mxu0 %v3381
    %4120 = vmatpush1.bf16.msra.mxu0 %v3380
    %4121 = vmatprep.subr.bf16.mxu0 %v3383
    %4122 = vmatpush1.bf16.msra.mxu0 %v3382
    %4123 = vmatprep.subr.bf16.mxu0 %v3385
    %4124 = vmatpush1.bf16.msra.mxu0 %v3384
    %4125 = vmatprep.subr.bf16.mxu0 %v3387
    %4126 = vmatpush1.bf16.msra.mxu0 %v3386
    %4127 = vmatprep.subr.bf16.mxu0 %v3389
    %4128 = vmatpush1.bf16.msra.mxu0 %v3388
    %4129 = vmatprep.subr.bf16.mxu0 %v3391
    %4130 = vmatpush1.bf16.msra.mxu0 %v3390
    %4131 = vmatprep.subr.bf16.mxu0 %v3393
    %4132 = vmatpush1.bf16.msra.mxu0 %v3392
    %4133 = vmatprep.subr.bf16.mxu0 %v3395
    %4134 = vmatpush1.bf16.msra.mxu0 %v3394
    %4135 = vmatprep.subr.bf16.mxu0 %v3397
    %4136 = vmatpush1.bf16.msra.mxu0 %v3396
    %4137 = vmatprep.subr.bf16.mxu0 %v3399
    %4138 = vmatpush1.bf16.msra.mxu0 %v3398
    %4139 = vmatprep.subr.bf16.mxu0 %v3401
    %4140 = vmatpush1.bf16.msra.mxu0 %v3400
    %4141 = vmatprep.subr.bf16.mxu0 %v3403
    %4142 = vmatpush1.bf16.msra.mxu0 %v3402
    %4143 = vmatprep.subr.bf16.mxu0 %v3405
    %4144 = vmatpush1.bf16.msra.mxu0 %v3404
    %4145 = vmatprep.subr.bf16.mxu0 %v3407
    %4146 = vmatpush1.bf16.msra.mxu0 %v3406
    %4147 = vmatprep.subr.bf16.mxu0 %v3409
    %4148 = vmatpush1.bf16.msra.mxu0 %v3408
    %4149 = vmatprep.mubr.bf16.mxu0 %v2637
    %4150 = vmatmul.mubr.bf16.gmra.mrb[0].mxu0 %v2636
    %v4151 = vpop.f32.mrb[0].mxu0
    %v4152 = vadd.f32 %v3959, %v4151
    %v4153 = vpop.f32.mrb[0].mxu0
    %v4154 = vadd.f32 %v3961, %v4153
    %v4155 = vpop.f32.mrb[0].mxu0
    %v4156 = vadd.f32 %v3963, %v4155
    %v4157 = vpop.f32.mrb[0].mxu0
    %v4158 = vadd.f32 %v3965, %v4157
    %4159 = vmatprep.mubr.bf16.mxu0 %v2645
    %4160 = vmatmul.mubr.bf16.gmra.mrb[0].mxu0 %v2644
    %v4161 = vpop.f32.mrb[0].mxu0
    %v4162 = vadd.f32 %v3969, %v4161
    %v4163 = vpop.f32.mrb[0].mxu0
    %v4164 = vadd.f32 %v3971, %v4163
    %v4165 = vpop.f32.mrb[0].mxu0
    %v4166 = vadd.f32 %v3973, %v4165
    %v4167 = vpop.f32.mrb[0].mxu0
    %v4168 = vadd.f32 %v3975, %v4167
    %4169 = vmatprep.mubr.bf16.mxu0 %v2653
    %4170 = vmatmul.mubr.bf16.gmra.mrb[0].mxu0 %v2652
    %v4171 = vpop.f32.mrb[0].mxu0
    %v4172 = vadd.f32 %v3979, %v4171
    %v4173 = vpop.f32.mrb[0].mxu0
    %v4174 = vadd.f32 %v3981, %v4173
    %v4175 = vpop.f32.mrb[0].mxu0
    %v4176 = vadd.f32 %v3983, %v4175
    %v4177 = vpop.f32.mrb[0].mxu0
    %v4178 = vadd.f32 %v3985, %v4177
    %4179 = vmatprep.mubr.bf16.mxu0 %v2661
    %4180 = vmatmul.mubr.bf16.gmra.mrb[0].mxu0 %v2660
    %v4181 = vpop.f32.mrb[0].mxu0
    %v4182 = vadd.f32 %v3989, %v4181
    %v4183 = vpop.f32.mrb[0].mxu0
    %v4184 = vadd.f32 %v3991, %v4183
    %v4185 = vpop.f32.mrb[0].mxu0
    %v4186 = vadd.f32 %v3993, %v4185
    %v4187 = vpop.f32.mrb[0].mxu0
    %v4188 = vadd.f32 %v3995, %v4187
    %4189 = vmatprep.mubr.bf16.mxu0 %v2669
    %4190 = vmatmul.mubr.bf16.gmra.mrb[0].mxu0 %v2668
    %v4191 = vpop.f32.mrb[0].mxu0
    %v4192 = vadd.f32 %v3999, %v4191
    %v4193 = vpop.f32.mrb[0].mxu0
    %v4194 = vadd.f32 %v4001, %v4193
    %v4195 = vpop.f32.mrb[0].mxu0
    %v4196 = vadd.f32 %v4003, %v4195
    %v4197 = vpop.f32.mrb[0].mxu0
    %v4198 = vadd.f32 %v4005, %v4197
    %4199 = vmatprep.mubr.bf16.mxu0 %v2677
    %4200 = vmatmul.mubr.bf16.gmra.mrb[0].mxu0 %v2676
    %v4201 = vpop.f32.mrb[0].mxu0
    %v4202 = vadd.f32 %v4009, %v4201
    %v4203 = vpop.f32.mrb[0].mxu0
    %v4204 = vadd.f32 %v4011, %v4203
    %v4205 = vpop.f32.mrb[0].mxu0
    %v4206 = vadd.f32 %v4013, %v4205
    %v4207 = vpop.f32.mrb[0].mxu0
    %v4208 = vadd.f32 %v4015, %v4207
    %4209 = vmatprep.mubr.bf16.mxu0 %v2685
    %4210 = vmatmul.mubr.bf16.gmra.mrb[0].mxu0 %v2684
    %v4211 = vpop.f32.mrb[0].mxu0
    %v4212 = vadd.f32 %v4019, %v4211
    %v4213 = vpop.f32.mrb[0].mxu0
    %v4214 = vadd.f32 %v4021, %v4213
    %v4215 = vpop.f32.mrb[0].mxu0
    %v4216 = vadd.f32 %v4023, %v4215
    %v4217 = vpop.f32.mrb[0].mxu0
    %v4218 = vadd.f32 %v4025, %v4217
    %4219 = vmatprep.mubr.bf16.mxu0 %v2693
    %4220 = vmatmul.mubr.bf16.gmra.mrb[0].mxu0 %v2692
    %v4221 = vpop.f32.mrb[0].mxu0
    %v4222 = vadd.f32 %v4029, %v4221
    %v4223 = vpop.f32.mrb[0].mxu0
    %v4224 = vadd.f32 %v4031, %v4223
    %v4225 = vpop.f32.mrb[0].mxu0
    %v4226 = vadd.f32 %v4033, %v4225
    %v4227 = vpop.f32.mrb[0].mxu0
    %v4228 = vadd.f32 %v4035, %v4227
    %4229 = vmatprep.mubr.bf16.mxu0 %v2701
    %4230 = vmatmul.mubr.bf16.gmra.mrb[0].mxu0 %v2700
    %v4231 = vpop.f32.mrb[0].mxu0
    %v4232 = vadd.f32 %v4039, %v4231
    %v4233 = vpop.f32.mrb[0].mxu0
    %v4234 = vadd.f32 %v4041, %v4233
    %v4235 = vpop.f32.mrb[0].mxu0
    %v4236 = vadd.f32 %v4043, %v4235
    %v4237 = vpop.f32.mrb[0].mxu0
    %v4238 = vadd.f32 %v4045, %v4237
    %4239 = vmatprep.mubr.bf16.mxu0 %v2709
    %4240 = vmatmul.mubr.bf16.gmra.mrb[0].mxu0 %v2708
    %v4241 = vpop.f32.mrb[0].mxu0
    %v4242 = vadd.f32 %v4049, %v4241
    %v4243 = vpop.f32.mrb[0].mxu0
    %v4244 = vadd.f32 %v4051, %v4243
    %v4245 = vpop.f32.mrb[0].mxu0
    %v4246 = vadd.f32 %v4053, %v4245
    %v4247 = vpop.f32.mrb[0].mxu0
    %v4248 = vadd.f32 %v4055, %v4247
    %4249 = vmatprep.mubr.bf16.mxu0 %v2717
    %4250 = vmatmul.mubr.bf16.gmra.mrb[0].mxu0 %v2716
    %v4251 = vpop.f32.mrb[0].mxu0
    %v4252 = vadd.f32 %v4059, %v4251
    %v4253 = vpop.f32.mrb[0].mxu0
    %v4254 = vadd.f32 %v4061, %v4253
    %v4255 = vpop.f32.mrb[0].mxu0
    %v4256 = vadd.f32 %v4063, %v4255
    %v4257 = vpop.f32.mrb[0].mxu0
    %v4258 = vadd.f32 %v4065, %v4257
    %4259 = vmatprep.mubr.bf16.mxu0 %v2725
    %4260 = vmatmul.mubr.bf16.gmra.mrb[0].mxu0 %v2724
    %v4261 = vpop.f32.mrb[0].mxu0
    %v4262 = vadd.f32 %v4069, %v4261
    %v4263 = vpop.f32.mrb[0].mxu0
    %v4264 = vadd.f32 %v4071, %v4263
    %v4265 = vpop.f32.mrb[0].mxu0
    %v4266 = vadd.f32 %v4073, %v4265
    %v4267 = vpop.f32.mrb[0].mxu0
    %v4268 = vadd.f32 %v4075, %v4267
    %4269 = vmatprep.mubr.bf16.mxu0 %v2733
    %4270 = vmatmul.mubr.bf16.gmra.mrb[0].mxu0 %v2732
    %v4271 = vpop.f32.mrb[0].mxu0
    %v4272 = vadd.f32 %v4079, %v4271
    %v4273 = vpop.f32.mrb[0].mxu0
    %v4274 = vadd.f32 %v4081, %v4273
    %v4275 = vpop.f32.mrb[0].mxu0
    %v4276 = vadd.f32 %v4083, %v4275
    %v4277 = vpop.f32.mrb[0].mxu0
    %v4278 = vadd.f32 %v4085, %v4277
    %4279 = vmatprep.mubr.bf16.mxu0 %v2741
    %4280 = vmatmul.mubr.bf16.gmra.mrb[0].mxu0 %v2740
    %v4281 = vpop.f32.mrb[0].mxu0
    %v4282 = vadd.f32 %v4089, %v4281
    %v4283 = vpop.f32.mrb[0].mxu0
    %v4284 = vadd.f32 %v4091, %v4283
    %v4285 = vpop.f32.mrb[0].mxu0
    %v4286 = vadd.f32 %v4093, %v4285
    %v4287 = vpop.f32.mrb[0].mxu0
    %v4288 = vadd.f32 %v4095, %v4287
    %4289 = vmatprep.mubr.bf16.mxu0 %v2749
    %4290 = vmatmul.mubr.bf16.gmra.mrb[0].mxu0 %v2748
    %v4291 = vpop.f32.mrb[0].mxu0
    %v4292 = vadd.f32 %v4099, %v4291
    %v4293 = vpop.f32.mrb[0].mxu0
    %v4294 = vadd.f32 %v4101, %v4293
    %v4295 = vpop.f32.mrb[0].mxu0
    %v4296 = vadd.f32 %v4103, %v4295
    %v4297 = vpop.f32.mrb[0].mxu0
    %v4298 = vadd.f32 %v4105, %v4297
    %4299 = vmatprep.mubr.bf16.mxu0 %v2757
    %4300 = vmatmul.mubr.bf16.gmra.mrb[0].mxu0 %v2756
    %v4301 = vpop.f32.mrb[0].mxu0
    %v4302 = vadd.f32 %v4109, %v4301
    %v4303 = vpop.f32.mrb[0].mxu0
    %v4304 = vadd.f32 %v4111, %v4303
    %v4305 = vpop.f32.mrb[0].mxu0
    %v4306 = vadd.f32 %v4113, %v4305
    %v4307 = vpop.f32.mrb[0].mxu0
    %v4308 = vadd.f32 %v4115, %v4307
    %4309 = vdwg.mxu0
    %v4310 = vmax.f32 %v4152, 0.0
    %v4311 = vmax.f32 %v4154, 0.0
    %v4312 = vmax.f32 %v4156, 0.0
    %v4313 = vmax.f32 %v4158, 0.0
    %v4314 = vmax.f32 %v4162, 0.0
    %v4315 = vmax.f32 %v4164, 0.0
    %v4316 = vmax.f32 %v4166, 0.0
    %v4317 = vmax.f32 %v4168, 0.0
    %v4318 = vmax.f32 %v4172, 0.0
    %v4319 = vmax.f32 %v4174, 0.0
    %v4320 = vmax.f32 %v4176, 0.0
    %v4321 = vmax.f32 %v4178, 0.0
    %v4322 = vmax.f32 %v4182, 0.0
    %v4323 = vmax.f32 %v4184, 0.0
    %v4324 = vmax.f32 %v4186, 0.0
    %v4325 = vmax.f32 %v4188, 0.0
    %v4326 = vmax.f32 %v4192, 0.0
    %v4327 = vmax.f32 %v4194, 0.0
    %v4328 = vmax.f32 %v4196, 0.0
    %v4329 = vmax.f32 %v4198, 0.0
    %v4330 = vmax.f32 %v4202, 0.0
    %v4331 = vmax.f32 %v4204, 0.0
    %v4332 = vmax.f32 %v4206, 0.0
    %v4333 = vmax.f32 %v4208, 0.0
    %v4334 = vmax.f32 %v4212, 0.0
    %v4335 = vmax.f32 %v4214, 0.0
    %v4336 = vmax.f32 %v4216, 0.0
    %v4337 = vmax.f32 %v4218, 0.0
    %v4338 = vmax.f32 %v4222, 0.0
    %v4339 = vmax.f32 %v4224, 0.0
    %v4340 = vmax.f32 %v4226, 0.0
    %v4341 = vmax.f32 %v4228, 0.0
    %v4342 = vmax.f32 %v4232, 0.0
    %v4343 = vmax.f32 %v4234, 0.0
    %v4344 = vmax.f32 %v4236, 0.0
    %v4345 = vmax.f32 %v4238, 0.0
    %v4346 = vmax.f32 %v4242, 0.0
    %v4347 = vmax.f32 %v4244, 0.0
    %v4348 = vmax.f32 %v4246, 0.0
    %v4349 = vmax.f32 %v4248, 0.0
    %v4350 = vmax.f32 %v4252, 0.0
    %v4351 = vmax.f32 %v4254, 0.0
    %v4352 = vmax.f32 %v4256, 0.0
    %v4353 = vmax.f32 %v4258, 0.0
    %v4354 = vmax.f32 %v4262, 0.0
    %v4355 = vmax.f32 %v4264, 0.0
    %v4356 = vmax.f32 %v4266, 0.0
    %v4357 = vmax.f32 %v4268, 0.0
    %v4358 = vmax.f32 %v4272, 0.0
    %v4359 = vmax.f32 %v4274, 0.0
    %v4360 = vmax.f32 %v4276, 0.0
    %v4361 = vmax.f32 %v4278, 0.0
    %v4362 = vmax.f32 %v4282, 0.0
    %v4363 = vmax.f32 %v4284, 0.0
    %v4364 = vmax.f32 %v4286, 0.0
    %v4365 = vmax.f32 %v4288, 0.0
    %v4366 = vmax.f32 %v4292, 0.0
    %v4367 = vmax.f32 %v4294, 0.0
    %v4368 = vmax.f32 %v4296, 0.0
    %v4369 = vmax.f32 %v4298, 0.0
    %v4370 = vmax.f32 %v4302, 0.0
    %v4371 = vmax.f32 %v4304, 0.0
    %v4372 = vmax.f32 %v4306, 0.0
    %v4373 = vmax.f32 %v4308, 0.0
    %v4374 = vpack.c.bf16 %v4312, %v4310
    %v4375 = vpack.c.bf16 %v4313, %v4311
    %v4376 = vpack.c.bf16 %v4316, %v4314
    %v4377 = vpack.c.bf16 %v4317, %v4315
    %v4378 = vpack.c.bf16 %v4320, %v4318
    %v4379 = vpack.c.bf16 %v4321, %v4319
    %v4380 = vpack.c.bf16 %v4324, %v4322
    %v4381 = vpack.c.bf16 %v4325, %v4323
    %v4382 = vpack.c.bf16 %v4328, %v4326
    %v4383 = vpack.c.bf16 %v4329, %v4327
    %v4384 = vpack.c.bf16 %v4332, %v4330
    %v4385 = vpack.c.bf16 %v4333, %v4331
    %v4386 = vpack.c.bf16 %v4336, %v4334
    %v4387 = vpack.c.bf16 %v4337, %v4335
    %v4388 = vpack.c.bf16 %v4340, %v4338
    %v4389 = vpack.c.bf16 %v4341, %v4339
    %v4390 = vpack.c.bf16 %v4344, %v4342
    %v4391 = vpack.c.bf16 %v4345, %v4343
    %v4392 = vpack.c.bf16 %v4348, %v4346
    %v4393 = vpack.c.bf16 %v4349, %v4347
    %v4394 = vpack.c.bf16 %v4352, %v4350
    %v4395 = vpack.c.bf16 %v4353, %v4351
    %v4396 = vpack.c.bf16 %v4356, %v4354
    %v4397 = vpack.c.bf16 %v4357, %v4355
    %v4398 = vpack.c.bf16 %v4360, %v4358
    %v4399 = vpack.c.bf16 %v4361, %v4359
    %v4400 = vpack.c.bf16 %v4364, %v4362
    %v4401 = vpack.c.bf16 %v4365, %v4363
    %v4402 = vpack.c.bf16 %v4368, %v4366
    %v4403 = vpack.c.bf16 %v4369, %v4367
    %v4404 = vpack.c.bf16 %v4372, %v4370
    %v4405 = vpack.c.bf16 %v4373, %v4371
    %v4406 = vld [vmem:[%s9] sm:$0xf]
    %v4407 = vld [vmem:[%s9 + $0x4] sm:$0xf]
    %v4408 = vld [vmem:[%s9 + $0x8] sm:$0xf]
    %v4409 = vld [vmem:[%s9 + $0xc] sm:$0xf]
    %v4410 = vld [vmem:[%s9 + $0x10] sm:$0xf]
    %v4411 = vld [vmem:[%s9 + $0x14] sm:$0xf]
    %v4412 = vld [vmem:[%s9 + $0x18] sm:$0xf]
    %v4413 = vld [vmem:[%s9 + $0x1c] sm:$0xf]
    %v4414 = vld [vmem:[%s9 + $0x20] sm:$0xf]
    %v4415 = vld [vmem:[%s9 + $0x24] sm:$0xf]
    %v4416 = vld [vmem:[%s9 + $0x28] sm:$0xf]
    %v4417 = vld [vmem:[%s9 + $0x2c] sm:$0xf]
    %v4418 = vld [vmem:[%s9 + $0x30] sm:$0xf]
    %v4419 = vld [vmem:[%s9 + $0x34] sm:$0xf]
    %v4420 = vld [vmem:[%s9 + $0x38] sm:$0xf]
    %v4421 = vld [vmem:[%s9 + $0x3c] sm:$0xf]
    %v4422 = vld [vmem:[%s9 + $0x40] sm:$0xf]
    %v4423 = vld [vmem:[%s9 + $0x44] sm:$0xf]
    %v4424 = vld [vmem:[%s9 + $0x48] sm:$0xf]
    %v4425 = vld [vmem:[%s9 + $0x4c] sm:$0xf]
    %v4426 = vld [vmem:[%s9 + $0x50] sm:$0xf]
    %v4427 = vld [vmem:[%s9 + $0x54] sm:$0xf]
    %v4428 = vld [vmem:[%s9 + $0x58] sm:$0xf]
    %v4429 = vld [vmem:[%s9 + $0x5c] sm:$0xf]
    %v4430 = vld [vmem:[%s9 + $0x60] sm:$0xf]
    %v4431 = vld [vmem:[%s9 + $0x64] sm:$0xf]
    %v4432 = vld [vmem:[%s9 + $0x68] sm:$0xf]
    %v4433 = vld [vmem:[%s9 + $0x6c] sm:$0xf]
    %v4434 = vld [vmem:[%s9 + $0x70] sm:$0xf]
    %v4435 = vld [vmem:[%s9 + $0x74] sm:$0xf]
    %v4436 = vld [vmem:[%s9 + $0x78] sm:$0xf]
    %v4437 = vld [vmem:[%s9 + $0x7c] sm:$0xf]
    %v4438 = vld [vmem:[%s10] sm:$0x1]
    %v4440 = vlaneseq
    %v4441 = vshrl.u32 %v4440, 7
    %v4442 = vsub.s32 0, %v4441
    %v4443 = vrot.slane %v4438, %v4442
    %v4477 = vunpack.c.l.b16 %v4406
    %v4478 = vunpack.c.l.b16 %v4407
    %v4479 = vunpack.c.l.b16 %v4408
    %v4480 = vunpack.c.l.b16 %v4409
    %v4481 = vunpack.c.l.b16 %v4410
    %v4482 = vunpack.c.l.b16 %v4411
    %v4483 = vunpack.c.l.b16 %v4412
    %v4484 = vunpack.c.l.b16 %v4413
    %v4485 = vunpack.c.l.b16 %v4414
    %v4486 = vunpack.c.l.b16 %v4415
    %v4487 = vunpack.c.l.b16 %v4416
    %v4488 = vunpack.c.l.b16 %v4417
    %v4489 = vunpack.c.l.b16 %v4418
    %v4490 = vunpack.c.l.b16 %v4419
    %v4491 = vunpack.c.l.b16 %v4420
    %v4492 = vunpack.c.l.b16 %v4421
    %v4493 = vunpack.c.l.b16 %v4422
    %v4494 = vunpack.c.l.b16 %v4423
    %v4495 = vunpack.c.l.b16 %v4424
    %v4496 = vunpack.c.l.b16 %v4425
    %v4497 = vunpack.c.l.b16 %v4426
    %v4498 = vunpack.c.l.b16 %v4427
    %v4499 = vunpack.c.l.b16 %v4428
    %v4500 = vunpack.c.l.b16 %v4429
    %v4501 = vunpack.c.l.b16 %v4430
    %v4502 = vunpack.c.l.b16 %v4431
    %v4503 = vunpack.c.l.b16 %v4432
    %v4504 = vunpack.c.l.b16 %v4433
    %v4505 = vunpack.c.l.b16 %v4434
    %v4506 = vunpack.c.l.b16 %v4435
    %v4507 = vunpack.c.l.b16 %v4436
    %v4508 = vunpack.c.l.b16 %v4437
    %v4509 = vpack.c.b16 %v4478, %v4477
    %v4510 = vpack.c.b16 %v4480, %v4479
    %v4511 = vpack.c.b16 %v4482, %v4481
    %v4512 = vpack.c.b16 %v4484, %v4483
    %v4513 = vpack.c.b16 %v4486, %v4485
    %v4514 = vpack.c.b16 %v4488, %v4487
    %v4515 = vpack.c.b16 %v4490, %v4489
    %v4516 = vpack.c.b16 %v4492, %v4491
    %v4517 = vpack.c.b16 %v4494, %v4493
    %v4518 = vpack.c.b16 %v4496, %v4495
    %v4519 = vpack.c.b16 %v4498, %v4497
    %v4520 = vpack.c.b16 %v4500, %v4499
    %v4521 = vpack.c.b16 %v4502, %v4501
    %v4522 = vpack.c.b16 %v4504, %v4503
    %v4523 = vpack.c.b16 %v4506, %v4505
    %v4524 = vpack.c.b16 %v4508, %v4507
    %4541 = vmatprep.subr.bf16.mxu0 0
    %4542 = vmatpush1.bf16.msra.mxu0 %v4509
    %4543 = vmatprep.subr.bf16.mxu0 0
    %4544 = vmatpush1.bf16.msra.mxu0 %v4510
    %4545 = vmatprep.subr.bf16.mxu0 0
    %4546 = vmatpush1.bf16.msra.mxu0 %v4511
    %4547 = vmatprep.subr.bf16.mxu0 0
    %4548 = vmatpush1.bf16.msra.mxu0 %v4512
    %4549 = vmatprep.subr.bf16.mxu0 0
    %4550 = vmatpush1.bf16.msra.mxu0 %v4513
    %4551 = vmatprep.subr.bf16.mxu0 0
    %4552 = vmatpush1.bf16.msra.mxu0 %v4514
    %4553 = vmatprep.subr.bf16.mxu0 0
    %4554 = vmatpush1.bf16.msra.mxu0 %v4515
    %4555 = vmatprep.subr.bf16.mxu0 0
    %4556 = vmatpush1.bf16.msra.mxu0 %v4516
    %4557 = vmatprep.subr.bf16.mxu0 0
    %4558 = vmatpush1.bf16.msra.mxu0 %v4517
    %4559 = vmatprep.subr.bf16.mxu0 0
    %4560 = vmatpush1.bf16.msra.mxu0 %v4518
    %4561 = vmatprep.subr.bf16.mxu0 0
    %4562 = vmatpush1.bf16.msra.mxu0 %v4519
    %4563 = vmatprep.subr.bf16.mxu0 0
    %4564 = vmatpush1.bf16.msra.mxu0 %v4520
    %4565 = vmatprep.subr.bf16.mxu0 0
    %4566 = vmatpush1.bf16.msra.mxu0 %v4521
    %4567 = vmatprep.subr.bf16.mxu0 0
    %4568 = vmatpush1.bf16.msra.mxu0 %v4522
    %4569 = vmatprep.subr.bf16.mxu0 0
    %4570 = vmatpush1.bf16.msra.mxu0 %v4523
    %4571 = vmatprep.subr.bf16.mxu0 0
    %4572 = vmatpush1.bf16.msra.mxu0 %v4524
    %4573 = vmatprep.mubr.bf16.mxu0 %v4375
    %4574 = vmatmul.mubr.bf16.gmra.mrb[0].mxu0 %v4374
    %v4575 = vpop.f32.mrb[0].mxu0
    %v4576 = vadd.f32 %v4443, %v4575
    %v4577 = vpop.f32.mrb[0].mxu0
    %v4578 = vpop.f32.mrb[0].mxu0
    %v4579 = vadd.f32 %v4443, %v4578
    %v4580 = vpop.f32.mrb[0].mxu0
    %4581 = vmatprep.mubr.bf16.mxu0 %v4377
    %4582 = vmatmul.mubr.bf16.gmra.mrb[0].mxu0 %v4376
    %v4583 = vpop.f32.mrb[0].mxu0
    %v4584 = vadd.f32 %v4443, %v4583
    %v4585 = vpop.f32.mrb[0].mxu0
    %v4586 = vpop.f32.mrb[0].mxu0
    %v4587 = vadd.f32 %v4443, %v4586
    %v4588 = vpop.f32.mrb[0].mxu0
    %4589 = vmatprep.mubr.bf16.mxu0 %v4379
    %4590 = vmatmul.mubr.bf16.gmra.mrb[0].mxu0 %v4378
    %v4591 = vpop.f32.mrb[0].mxu0
    %v4592 = vadd.f32 %v4443, %v4591
    %v4593 = vpop.f32.mrb[0].mxu0
    %v4594 = vpop.f32.mrb[0].mxu0
    %v4595 = vadd.f32 %v4443, %v4594
    %v4596 = vpop.f32.mrb[0].mxu0
    %4597 = vmatprep.mubr.bf16.mxu0 %v4381
    %4598 = vmatmul.mubr.bf16.gmra.mrb[0].mxu0 %v4380
    %v4599 = vpop.f32.mrb[0].mxu0
    %v4600 = vadd.f32 %v4443, %v4599
    %v4601 = vpop.f32.mrb[0].mxu0
    %v4602 = vpop.f32.mrb[0].mxu0
    %v4603 = vadd.f32 %v4443, %v4602
    %v4604 = vpop.f32.mrb[0].mxu0
    %4605 = vmatprep.mubr.bf16.mxu0 %v4383
    %4606 = vmatmul.mubr.bf16.gmra.mrb[0].mxu0 %v4382
    %v4607 = vpop.f32.mrb[0].mxu0
    %v4608 = vadd.f32 %v4443, %v4607
    %v4609 = vpop.f32.mrb[0].mxu0
    %v4610 = vpop.f32.mrb[0].mxu0
    %v4611 = vadd.f32 %v4443, %v4610
    %v4612 = vpop.f32.mrb[0].mxu0
    %4613 = vmatprep.mubr.bf16.mxu0 %v4385
    %4614 = vmatmul.mubr.bf16.gmra.mrb[0].mxu0 %v4384
    %v4615 = vpop.f32.mrb[0].mxu0
    %v4616 = vadd.f32 %v4443, %v4615
    %v4617 = vpop.f32.mrb[0].mxu0
    %v4618 = vpop.f32.mrb[0].mxu0
    %v4619 = vadd.f32 %v4443, %v4618
    %v4620 = vpop.f32.mrb[0].mxu0
    %4621 = vmatprep.mubr.bf16.mxu0 %v4387
    %4622 = vmatmul.mubr.bf16.gmra.mrb[0].mxu0 %v4386
    %v4623 = vpop.f32.mrb[0].mxu0
    %v4624 = vadd.f32 %v4443, %v4623
    %v4625 = vpop.f32.mrb[0].mxu0
    %v4626 = vpop.f32.mrb[0].mxu0
    %v4627 = vadd.f32 %v4443, %v4626
    %v4628 = vpop.f32.mrb[0].mxu0
    %4629 = vmatprep.mubr.bf16.mxu0 %v4389
    %4630 = vmatmul.mubr.bf16.gmra.mrb[0].mxu0 %v4388
    %v4631 = vpop.f32.mrb[0].mxu0
    %v4632 = vadd.f32 %v4443, %v4631
    %v4633 = vpop.f32.mrb[0].mxu0
    %v4634 = vpop.f32.mrb[0].mxu0
    %v4635 = vadd.f32 %v4443, %v4634
    %v4636 = vpop.f32.mrb[0].mxu0
    %4637 = vmatprep.mubr.bf16.mxu0 %v4391
    %4638 = vmatmul.mubr.bf16.gmra.mrb[0].mxu0 %v4390
    %v4639 = vpop.f32.mrb[0].mxu0
    %v4640 = vadd.f32 %v4443, %v4639
    %v4641 = vpop.f32.mrb[0].mxu0
    %v4642 = vpop.f32.mrb[0].mxu0
    %v4643 = vadd.f32 %v4443, %v4642
    %v4644 = vpop.f32.mrb[0].mxu0
    %4645 = vmatprep.mubr.bf16.mxu0 %v4393
    %4646 = vmatmul.mubr.bf16.gmra.mrb[0].mxu0 %v4392
    %v4647 = vpop.f32.mrb[0].mxu0
    %v4648 = vadd.f32 %v4443, %v4647
    %v4649 = vpop.f32.mrb[0].mxu0
    %v4650 = vpop.f32.mrb[0].mxu0
    %v4651 = vadd.f32 %v4443, %v4650
    %v4652 = vpop.f32.mrb[0].mxu0
    %4653 = vmatprep.mubr.bf16.mxu0 %v4395
    %4654 = vmatmul.mubr.bf16.gmra.mrb[0].mxu0 %v4394
    %v4655 = vpop.f32.mrb[0].mxu0
    %v4656 = vadd.f32 %v4443, %v4655
    %v4657 = vpop.f32.mrb[0].mxu0
    %v4658 = vpop.f32.mrb[0].mxu0
    %v4659 = vadd.f32 %v4443, %v4658
    %v4660 = vpop.f32.mrb[0].mxu0
    %4661 = vmatprep.mubr.bf16.mxu0 %v4397
    %4662 = vmatmul.mubr.bf16.gmra.mrb[0].mxu0 %v4396
    %v4663 = vpop.f32.mrb[0].mxu0
    %v4664 = vadd.f32 %v4443, %v4663
    %v4665 = vpop.f32.mrb[0].mxu0
    %v4666 = vpop.f32.mrb[0].mxu0
    %v4667 = vadd.f32 %v4443, %v4666
    %v4668 = vpop.f32.mrb[0].mxu0
    %4669 = vmatprep.mubr.bf16.mxu0 %v4399
    %4670 = vmatmul.mubr.bf16.gmra.mrb[0].mxu0 %v4398
    %v4671 = vpop.f32.mrb[0].mxu0
    %v4672 = vadd.f32 %v4443, %v4671
    %v4673 = vpop.f32.mrb[0].mxu0
    %v4674 = vpop.f32.mrb[0].mxu0
    %v4675 = vadd.f32 %v4443, %v4674
    %v4676 = vpop.f32.mrb[0].mxu0
    %4677 = vmatprep.mubr.bf16.mxu0 %v4401
    %4678 = vmatmul.mubr.bf16.gmra.mrb[0].mxu0 %v4400
    %v4679 = vpop.f32.mrb[0].mxu0
    %v4680 = vadd.f32 %v4443, %v4679
    %v4681 = vpop.f32.mrb[0].mxu0
    %v4682 = vpop.f32.mrb[0].mxu0
    %v4683 = vadd.f32 %v4443, %v4682
    %v4684 = vpop.f32.mrb[0].mxu0
    %4685 = vmatprep.mubr.bf16.mxu0 %v4403
    %4686 = vmatmul.mubr.bf16.gmra.mrb[0].mxu0 %v4402
    %v4687 = vpop.f32.mrb[0].mxu0
    %v4688 = vadd.f32 %v4443, %v4687
    %v4689 = vpop.f32.mrb[0].mxu0
    %v4690 = vpop.f32.mrb[0].mxu0
    %v4691 = vadd.f32 %v4443, %v4690
    %v4692 = vpop.f32.mrb[0].mxu0
    %4693 = vmatprep.mubr.bf16.mxu0 %v4405
    %4694 = vmatmul.mubr.bf16.gmra.mrb[0].mxu0 %v4404
    %v4695 = vpop.f32.mrb[0].mxu0
    %v4696 = vadd.f32 %v4443, %v4695
    %v4697 = vpop.f32.mrb[0].mxu0
    %v4698 = vpop.f32.mrb[0].mxu0
    %v4699 = vadd.f32 %v4443, %v4698
    %v4700 = vpop.f32.mrb[0].mxu0
    %4701 = vdwg.mxu0
    %v4702 = vmax.f32 %v4576, 0.0
    %v4703 = vmax.f32 %v4579, 0.0
    %v4704 = vmax.f32 %v4584, 0.0
    %v4705 = vmax.f32 %v4587, 0.0
    %v4706 = vmax.f32 %v4592, 0.0
    %v4707 = vmax.f32 %v4595, 0.0
    %v4708 = vmax.f32 %v4600, 0.0
    %v4709 = vmax.f32 %v4603, 0.0
    %v4710 = vmax.f32 %v4608, 0.0
    %v4711 = vmax.f32 %v4611, 0.0
    %v4712 = vmax.f32 %v4616, 0.0
    %v4713 = vmax.f32 %v4619, 0.0
    %v4714 = vmax.f32 %v4624, 0.0
    %v4715 = vmax.f32 %v4627, 0.0
    %v4716 = vmax.f32 %v4632, 0.0
    %v4717 = vmax.f32 %v4635, 0.0
    %v4718 = vmax.f32 %v4640, 0.0
    %v4719 = vmax.f32 %v4643, 0.0
    %v4720 = vmax.f32 %v4648, 0.0
    %v4721 = vmax.f32 %v4651, 0.0
    %v4722 = vmax.f32 %v4656, 0.0
    %v4723 = vmax.f32 %v4659, 0.0
    %v4724 = vmax.f32 %v4664, 0.0
    %v4725 = vmax.f32 %v4667, 0.0
    %v4726 = vmax.f32 %v4672, 0.0
    %v4727 = vmax.f32 %v4675, 0.0
    %v4728 = vmax.f32 %v4680, 0.0
    %v4729 = vmax.f32 %v4683, 0.0
    %v4730 = vmax.f32 %v4688, 0.0
    %v4731 = vmax.f32 %v4691, 0.0
    %v4732 = vmax.f32 %v4696, 0.0
    %v4733 = vmax.f32 %v4699, 0.0
    %v4734 = vpack.c.bf16 %v4703, %v4702
    %v4735 = vpack.c.bf16 %v4705, %v4704
    %v4736 = vpack.c.bf16 %v4707, %v4706
    %v4737 = vpack.c.bf16 %v4709, %v4708
    %v4738 = vpack.c.bf16 %v4711, %v4710
    %v4739 = vpack.c.bf16 %v4713, %v4712
    %v4740 = vpack.c.bf16 %v4715, %v4714
    %v4741 = vpack.c.bf16 %v4717, %v4716
    %v4742 = vpack.c.bf16 %v4719, %v4718
    %v4743 = vpack.c.bf16 %v4721, %v4720
    %v4744 = vpack.c.bf16 %v4723, %v4722
    %v4745 = vpack.c.bf16 %v4725, %v4724
    %v4746 = vpack.c.bf16 %v4727, %v4726
    %v4747 = vpack.c.bf16 %v4729, %v4728
    %v4748 = vpack.c.bf16 %v4731, %v4730
    %v4749 = vpack.c.bf16 %v4733, %v4732
    %v4750 = vld [vmem:[%s11] sm:$0xf]
    %v4751 = vld [vmem:[%s11 + $0x4] sm:$0xf]
    %v4752 = vld [vmem:[%s11 + $0x8] sm:$0xf]
    %v4753 = vld [vmem:[%s11 + $0xc] sm:$0xf]
    %v4754 = vld [vmem:[%s11 + $0x10] sm:$0xf]
    %v4755 = vld [vmem:[%s11 + $0x14] sm:$0xf]
    %v4756 = vld [vmem:[%s11 + $0x18] sm:$0xf]
    %v4757 = vld [vmem:[%s11 + $0x1c] sm:$0xf]
    %v4758 = vld [vmem:[%s12] sm:$0x1]
    %v4760 = vlaneseq
    %v4761 = vshrl.u32 %v4760, 7
    %v4762 = vsub.s32 0, %v4761
    %v4763 = vrot.slane %v4758, %v4762
    %v4773 = vunpack.c.l.b16 %v4750
    %v4774 = vunpack.c.l.b16 %v4751
    %v4775 = vunpack.c.l.b16 %v4752
    %v4776 = vunpack.c.l.b16 %v4753
    %v4777 = vunpack.c.l.b16 %v4754
    %v4778 = vunpack.c.l.b16 %v4755
    %v4779 = vunpack.c.l.b16 %v4756
    %v4780 = vunpack.c.l.b16 %v4757
    %v4781 = vpack.c.b16 %v4774, %v4773
    %v4782 = vpack.c.b16 %v4776, %v4775
    %v4783 = vpack.c.b16 %v4778, %v4777
    %v4784 = vpack.c.b16 %v4780, %v4779
    %v4790 = vsel %vm454, %v4734, 0
    %v4793 = vsel %vm454, %v4735, 0
    %v4796 = vsel %vm454, %v4736, 0
    %v4799 = vsel %vm454, %v4737, 0
    %v4802 = vsel %vm454, %v4738, 0
    %v4805 = vsel %vm454, %v4739, 0
    %v4808 = vsel %vm454, %v4740, 0
    %v4811 = vsel %vm454, %v4741, 0
    %v4814 = vsel %vm454, %v4742, 0
    %v4817 = vsel %vm454, %v4743, 0
    %v4820 = vsel %vm454, %v4744, 0
    %v4823 = vsel %vm454, %v4745, 0
    %v4826 = vsel %vm454, %v4746, 0
    %v4829 = vsel %vm454, %v4747, 0
    %v4832 = vsel %vm454, %v4748, 0
    %v4835 = vsel %vm454, %v4749, 0
    %4837 = vmatprep.subr.bf16.mxu0 0
    %4838 = vmatpush1.bf16.msra.mxu0 %v4781
    %4839 = vmatprep.subr.bf16.mxu0 0
    %4840 = vmatpush1.bf16.msra.mxu0 %v4782
    %4841 = vmatprep.subr.bf16.mxu0 0
    %4842 = vmatpush1.bf16.msra.mxu0 %v4783
    %4843 = vmatprep.subr.bf16.mxu0 0
    %4844 = vmatpush1.bf16.msra.mxu0 %v4784
    %4845 = vmatprep.subr.bf16.mxu0 0
    %4846 = vmatpush1.bf16.msra.mxu0 0
    %4847 = vmatprep.subr.bf16.mxu0 0
    %4848 = vmatpush1.bf16.msra.mxu0 0
    %4849 = vmatprep.subr.bf16.mxu0 0
    %4850 = vmatpush1.bf16.msra.mxu0 0
    %4851 = vmatprep.subr.bf16.mxu0 0
    %4852 = vmatpush1.bf16.msra.mxu0 0
    %4853 = vmatprep.subr.bf16.mxu0 0
    %4854 = vmatpush1.bf16.msra.mxu0 0
    %4855 = vmatprep.subr.bf16.mxu0 0
    %4856 = vmatpush1.bf16.msra.mxu0 0
    %4857 = vmatprep.subr.bf16.mxu0 0
    %4858 = vmatpush1.bf16.msra.mxu0 0
    %4859 = vmatprep.subr.bf16.mxu0 0
    %4860 = vmatpush1.bf16.msra.mxu0 0
    %4861 = vmatprep.subr.bf16.mxu0 0
    %4862 = vmatpush1.bf16.msra.mxu0 0
    %4863 = vmatprep.subr.bf16.mxu0 0
    %4864 = vmatpush1.bf16.msra.mxu0 0
    %4865 = vmatprep.subr.bf16.mxu0 0
    %4866 = vmatpush1.bf16.msra.mxu0 0
    %4867 = vmatprep.subr.bf16.mxu0 0
    %4868 = vmatpush1.bf16.msra.mxu0 0
    %4869 = vmatprep.mubr.bf16.mxu0 0
    %4870 = vmatmul.mubr.bf16.gmra.mrb[0].mxu0 %v4790
    %v4871 = vpop.f32.mrb[0].mxu0
    %v4872 = vadd.f32 %v4763, %v4871
    %v4873 = vpop.f32.mrb[0].mxu0
    %v4874 = vpop.f32.mrb[0].mxu0
    %v4875 = vadd.f32 %v4763, %v4874
    %v4876 = vpop.f32.mrb[0].mxu0
    %4877 = vmatprep.mubr.bf16.mxu0 0
    %4878 = vmatmul.mubr.bf16.gmra.mrb[0].mxu0 %v4793
    %v4879 = vpop.f32.mrb[0].mxu0
    %v4880 = vadd.f32 %v4763, %v4879
    %v4881 = vpop.f32.mrb[0].mxu0
    %v4882 = vpop.f32.mrb[0].mxu0
    %v4883 = vadd.f32 %v4763, %v4882
    %v4884 = vpop.f32.mrb[0].mxu0
    %4885 = vmatprep.mubr.bf16.mxu0 0
    %4886 = vmatmul.mubr.bf16.gmra.mrb[0].mxu0 %v4796
    %v4887 = vpop.f32.mrb[0].mxu0
    %v4888 = vadd.f32 %v4763, %v4887
    %v4889 = vpop.f32.mrb[0].mxu0
    %v4890 = vpop.f32.mrb[0].mxu0
    %v4891 = vadd.f32 %v4763, %v4890
    %v4892 = vpop.f32.mrb[0].mxu0
    %4893 = vmatprep.mubr.bf16.mxu0 0
    %4894 = vmatmul.mubr.bf16.gmra.mrb[0].mxu0 %v4799
    %v4895 = vpop.f32.mrb[0].mxu0
    %v4896 = vadd.f32 %v4763, %v4895
    %v4897 = vpop.f32.mrb[0].mxu0
    %v4898 = vpop.f32.mrb[0].mxu0
    %v4899 = vadd.f32 %v4763, %v4898
    %v4900 = vpop.f32.mrb[0].mxu0
    %4901 = vmatprep.mubr.bf16.mxu0 0
    %4902 = vmatmul.mubr.bf16.gmra.mrb[0].mxu0 %v4802
    %v4903 = vpop.f32.mrb[0].mxu0
    %v4904 = vadd.f32 %v4763, %v4903
    %v4905 = vpop.f32.mrb[0].mxu0
    %v4906 = vpop.f32.mrb[0].mxu0
    %v4907 = vadd.f32 %v4763, %v4906
    %v4908 = vpop.f32.mrb[0].mxu0
    %4909 = vmatprep.mubr.bf16.mxu0 0
    %4910 = vmatmul.mubr.bf16.gmra.mrb[0].mxu0 %v4805
    %v4911 = vpop.f32.mrb[0].mxu0
    %v4912 = vadd.f32 %v4763, %v4911
    %v4913 = vpop.f32.mrb[0].mxu0
    %v4914 = vpop.f32.mrb[0].mxu0
    %v4915 = vadd.f32 %v4763, %v4914
    %v4916 = vpop.f32.mrb[0].mxu0
    %4917 = vmatprep.mubr.bf16.mxu0 0
    %4918 = vmatmul.mubr.bf16.gmra.mrb[0].mxu0 %v4808
    %v4919 = vpop.f32.mrb[0].mxu0
    %v4920 = vadd.f32 %v4763, %v4919
    %v4921 = vpop.f32.mrb[0].mxu0
    %v4922 = vpop.f32.mrb[0].mxu0
    %v4923 = vadd.f32 %v4763, %v4922
    %v4924 = vpop.f32.mrb[0].mxu0
    %4925 = vmatprep.mubr.bf16.mxu0 0
    %4926 = vmatmul.mubr.bf16.gmra.mrb[0].mxu0 %v4811
    %v4927 = vpop.f32.mrb[0].mxu0
    %v4928 = vadd.f32 %v4763, %v4927
    %v4929 = vpop.f32.mrb[0].mxu0
    %v4930 = vpop.f32.mrb[0].mxu0
    %v4931 = vadd.f32 %v4763, %v4930
    %v4932 = vpop.f32.mrb[0].mxu0
    %4933 = vmatprep.mubr.bf16.mxu0 0
    %4934 = vmatmul.mubr.bf16.gmra.mrb[0].mxu0 %v4814
    %v4935 = vpop.f32.mrb[0].mxu0
    %v4936 = vadd.f32 %v4763, %v4935
    %v4937 = vpop.f32.mrb[0].mxu0
    %v4938 = vpop.f32.mrb[0].mxu0
    %v4939 = vadd.f32 %v4763, %v4938
    %v4940 = vpop.f32.mrb[0].mxu0
    %4941 = vmatprep.mubr.bf16.mxu0 0
    %4942 = vmatmul.mubr.bf16.gmra.mrb[0].mxu0 %v4817
    %v4943 = vpop.f32.mrb[0].mxu0
    %v4944 = vadd.f32 %v4763, %v4943
    %v4945 = vpop.f32.mrb[0].mxu0
    %v4946 = vpop.f32.mrb[0].mxu0
    %v4947 = vadd.f32 %v4763, %v4946
    %v4948 = vpop.f32.mrb[0].mxu0
    %4949 = vmatprep.mubr.bf16.mxu0 0
    %4950 = vmatmul.mubr.bf16.gmra.mrb[0].mxu0 %v4820
    %v4951 = vpop.f32.mrb[0].mxu0
    %v4952 = vadd.f32 %v4763, %v4951
    %v4953 = vpop.f32.mrb[0].mxu0
    %v4954 = vpop.f32.mrb[0].mxu0
    %v4955 = vadd.f32 %v4763, %v4954
    %v4956 = vpop.f32.mrb[0].mxu0
    %4957 = vmatprep.mubr.bf16.mxu0 0
    %4958 = vmatmul.mubr.bf16.gmra.mrb[0].mxu0 %v4823
    %v4959 = vpop.f32.mrb[0].mxu0
    %v4960 = vadd.f32 %v4763, %v4959
    %v4961 = vpop.f32.mrb[0].mxu0
    %v4962 = vpop.f32.mrb[0].mxu0
    %v4963 = vadd.f32 %v4763, %v4962
    %v4964 = vpop.f32.mrb[0].mxu0
    %4965 = vmatprep.mubr.bf16.mxu0 0
    %4966 = vmatmul.mubr.bf16.gmra.mrb[0].mxu0 %v4826
    %v4967 = vpop.f32.mrb[0].mxu0
    %v4968 = vadd.f32 %v4763, %v4967
    %v4969 = vpop.f32.mrb[0].mxu0
    %v4970 = vpop.f32.mrb[0].mxu0
    %v4971 = vadd.f32 %v4763, %v4970
    %v4972 = vpop.f32.mrb[0].mxu0
    %4973 = vmatprep.mubr.bf16.mxu0 0
    %4974 = vmatmul.mubr.bf16.gmra.mrb[0].mxu0 %v4829
    %v4975 = vpop.f32.mrb[0].mxu0
    %v4976 = vadd.f32 %v4763, %v4975
    %v4977 = vpop.f32.mrb[0].mxu0
    %v4978 = vpop.f32.mrb[0].mxu0
    %v4979 = vadd.f32 %v4763, %v4978
    %v4980 = vpop.f32.mrb[0].mxu0
    %4981 = vmatprep.mubr.bf16.mxu0 0
    %4982 = vmatmul.mubr.bf16.gmra.mrb[0].mxu0 %v4832
    %v4983 = vpop.f32.mrb[0].mxu0
    %v4984 = vadd.f32 %v4763, %v4983
    %v4985 = vpop.f32.mrb[0].mxu0
    %v4986 = vpop.f32.mrb[0].mxu0
    %v4987 = vadd.f32 %v4763, %v4986
    %v4988 = vpop.f32.mrb[0].mxu0
    %4989 = vmatprep.mubr.bf16.mxu0 0
    %4990 = vmatmul.mubr.bf16.gmra.mrb[0].mxu0 %v4835
    %v4991 = vpop.f32.mrb[0].mxu0
    %v4992 = vadd.f32 %v4763, %v4991
    %v4993 = vpop.f32.mrb[0].mxu0
    %v4994 = vpop.f32.mrb[0].mxu0
    %v4995 = vadd.f32 %v4763, %v4994
    %v4996 = vpop.f32.mrb[0].mxu0
    %4997 = vdwg.mxu0
    %v4998 = vsub.f32 0.0, %v4872
    %v4999 = vsub.f32 0.0, %v4875
    %v5000 = vsub.f32 0.0, %v4880
    %v5001 = vsub.f32 0.0, %v4883
    %v5002 = vsub.f32 0.0, %v4888
    %v5003 = vsub.f32 0.0, %v4891
    %v5004 = vsub.f32 0.0, %v4896
    %v5005 = vsub.f32 0.0, %v4899
    %v5006 = vsub.f32 0.0, %v4904
    %v5007 = vsub.f32 0.0, %v4907
    %v5008 = vsub.f32 0.0, %v4912
    %v5009 = vsub.f32 0.0, %v4915
    %v5010 = vsub.f32 0.0, %v4920
    %v5011 = vsub.f32 0.0, %v4923
    %v5012 = vsub.f32 0.0, %v4928
    %v5013 = vsub.f32 0.0, %v4931
    %v5014 = vsub.f32 0.0, %v4936
    %v5015 = vsub.f32 0.0, %v4939
    %v5016 = vsub.f32 0.0, %v4944
    %v5017 = vsub.f32 0.0, %v4947
    %v5018 = vsub.f32 0.0, %v4952
    %v5019 = vsub.f32 0.0, %v4955
    %v5020 = vsub.f32 0.0, %v4960
    %v5021 = vsub.f32 0.0, %v4963
    %v5022 = vsub.f32 0.0, %v4968
    %v5023 = vsub.f32 0.0, %v4971
    %v5024 = vsub.f32 0.0, %v4976
    %v5025 = vsub.f32 0.0, %v4979
    %v5026 = vsub.f32 0.0, %v4984
    %v5027 = vsub.f32 0.0, %v4987
    %v5028 = vsub.f32 0.0, %v4992
    %v5029 = vsub.f32 0.0, %v4995
    %v5030 = vmul.f32 %v4998, 1.442695
    %v5031 = vpow.pop %v5030
    %v5032 = vmul.f32 %v4999, 1.442695
    %v5033 = vpow.pop %v5032
    %v5034 = vmul.f32 %v5000, 1.442695
    %v5035 = vpow.pop %v5034
    %v5036 = vmul.f32 %v5001, 1.442695
    %v5037 = vpow.pop %v5036
    %v5038 = vmul.f32 %v5002, 1.442695
    %v5039 = vpow.pop %v5038
    %v5040 = vmul.f32 %v5003, 1.442695
    %v5041 = vpow.pop %v5040
    %v5042 = vmul.f32 %v5004, 1.442695
    %v5043 = vpow.pop %v5042
    %v5044 = vmul.f32 %v5005, 1.442695
    %v5045 = vpow.pop %v5044
    %v5046 = vmul.f32 %v5006, 1.442695
    %v5047 = vpow.pop %v5046
    %v5048 = vmul.f32 %v5007, 1.442695
    %v5049 = vpow.pop %v5048
    %v5050 = vmul.f32 %v5008, 1.442695
    %v5051 = vpow.pop %v5050
    %v5052 = vmul.f32 %v5009, 1.442695
    %v5053 = vpow.pop %v5052
    %v5054 = vmul.f32 %v5010, 1.442695
    %v5055 = vpow.pop %v5054
    %v5056 = vmul.f32 %v5011, 1.442695
    %v5057 = vpow.pop %v5056
    %v5058 = vmul.f32 %v5012, 1.442695
    %v5059 = vpow.pop %v5058
    %v5060 = vmul.f32 %v5013, 1.442695
    %v5061 = vpow.pop %v5060
    %v5062 = vmul.f32 %v5014, 1.442695
    %v5063 = vpow.pop %v5062
    %v5064 = vmul.f32 %v5015, 1.442695
    %v5065 = vpow.pop %v5064
    %v5066 = vmul.f32 %v5016, 1.442695
    %v5067 = vpow.pop %v5066
    %v5068 = vmul.f32 %v5017, 1.442695
    %v5069 = vpow.pop %v5068
    %v5070 = vmul.f32 %v5018, 1.442695
    %v5071 = vpow.pop %v5070
    %v5072 = vmul.f32 %v5019, 1.442695
    %v5073 = vpow.pop %v5072
    %v5074 = vmul.f32 %v5020, 1.442695
    %v5075 = vpow.pop %v5074
    %v5076 = vmul.f32 %v5021, 1.442695
    %v5077 = vpow.pop %v5076
    %v5078 = vmul.f32 %v5022, 1.442695
    %v5079 = vpow.pop %v5078
    %v5080 = vmul.f32 %v5023, 1.442695
    %v5081 = vpow.pop %v5080
    %v5082 = vmul.f32 %v5024, 1.442695
    %v5083 = vpow.pop %v5082
    %v5084 = vmul.f32 %v5025, 1.442695
    %v5085 = vpow.pop %v5084
    %v5086 = vmul.f32 %v5026, 1.442695
    %v5087 = vpow.pop %v5086
    %v5088 = vmul.f32 %v5027, 1.442695
    %v5089 = vpow.pop %v5088
    %v5090 = vmul.f32 %v5028, 1.442695
    %v5091 = vpow.pop %v5090
    %v5092 = vmul.f32 %v5029, 1.442695
    %v5093 = vpow.pop %v5092
    %v5094 = vadd.f32 %v5031, 1.0
    %v5095 = vadd.f32 %v5033, 1.0
    %v5096 = vadd.f32 %v5035, 1.0
    %v5097 = vadd.f32 %v5037, 1.0
    %v5098 = vadd.f32 %v5039, 1.0
    %v5099 = vadd.f32 %v5041, 1.0
    %v5100 = vadd.f32 %v5043, 1.0
    %v5101 = vadd.f32 %v5045, 1.0
    %v5102 = vadd.f32 %v5047, 1.0
    %v5103 = vadd.f32 %v5049, 1.0
    %v5104 = vadd.f32 %v5051, 1.0
    %v5105 = vadd.f32 %v5053, 1.0
    %v5106 = vadd.f32 %v5055, 1.0
    %v5107 = vadd.f32 %v5057, 1.0
    %v5108 = vadd.f32 %v5059, 1.0
    %v5109 = vadd.f32 %v5061, 1.0
    %v5110 = vadd.f32 %v5063, 1.0
    %v5111 = vadd.f32 %v5065, 1.0
    %v5112 = vadd.f32 %v5067, 1.0
    %v5113 = vadd.f32 %v5069, 1.0
    %v5114 = vadd.f32 %v5071, 1.0
    %v5115 = vadd.f32 %v5073, 1.0
    %v5116 = vadd.f32 %v5075, 1.0
    %v5117 = vadd.f32 %v5077, 1.0
    %v5118 = vadd.f32 %v5079, 1.0
    %v5119 = vadd.f32 %v5081, 1.0
    %v5120 = vadd.f32 %v5083, 1.0
    %v5121 = vadd.f32 %v5085, 1.0
    %v5122 = vadd.f32 %v5087, 1.0
    %v5123 = vadd.f32 %v5089, 1.0
    %v5124 = vadd.f32 %v5091, 1.0
    %v5125 = vadd.f32 %v5093, 1.0
    %v5126 = vrcp.pop %v5094
    %v5127 = vrcp.pop %v5095
    %v5128 = vrcp.pop %v5096
    %v5129 = vrcp.pop %v5097
    %v5130 = vrcp.pop %v5098
    %v5131 = vrcp.pop %v5099
    %v5132 = vrcp.pop %v5100
    %v5133 = vrcp.pop %v5101
    %v5134 = vrcp.pop %v5102
    %v5135 = vrcp.pop %v5103
    %v5136 = vrcp.pop %v5104
    %v5137 = vrcp.pop %v5105
    %v5138 = vrcp.pop %v5106
    %v5139 = vrcp.pop %v5107
    %v5140 = vrcp.pop %v5108
    %v5141 = vrcp.pop %v5109
    %v5142 = vrcp.pop %v5110
    %v5143 = vrcp.pop %v5111
    %v5144 = vrcp.pop %v5112
    %v5145 = vrcp.pop %v5113
    %v5146 = vrcp.pop %v5114
    %v5147 = vrcp.pop %v5115
    %v5148 = vrcp.pop %v5116
    %v5149 = vrcp.pop %v5117
    %v5150 = vrcp.pop %v5118
    %v5151 = vrcp.pop %v5119
    %v5152 = vrcp.pop %v5120
    %v5153 = vrcp.pop %v5121
    %v5154 = vrcp.pop %v5122
    %v5155 = vrcp.pop %v5123
    %v5156 = vrcp.pop %v5124
    %v5157 = vrcp.pop %v5125
    %5158 = vst [vmem:[%s13] sm:$0xff] %v5126
    %5159 = vst [vmem:[%s13 + $0x8] sm:$0xff] %v5127
    %5160 = vst [vmem:[%s13 + $0x10] sm:$0xff] %v5128
    %5161 = vst [vmem:[%s13 + $0x18] sm:$0xff] %v5129
    %5162 = vst [vmem:[%s13 + $0x20] sm:$0xff] %v5130
    %5163 = vst [vmem:[%s13 + $0x28] sm:$0xff] %v5131
    %5164 = vst [vmem:[%s13 + $0x30] sm:$0xff] %v5132
    %5165 = vst [vmem:[%s13 + $0x38] sm:$0xff] %v5133
    %5166 = vst [vmem:[%s13 + $0x40] sm:$0xff] %v5134
    %5167 = vst [vmem:[%s13 + $0x48] sm:$0xff] %v5135
    %5168 = vst [vmem:[%s13 + $0x50] sm:$0xff] %v5136
    %5169 = vst [vmem:[%s13 + $0x58] sm:$0xff] %v5137
    %5170 = vst [vmem:[%s13 + $0x60] sm:$0xff] %v5138
    %5171 = vst [vmem:[%s13 + $0x68] sm:$0xff] %v5139
    %5172 = vst [vmem:[%s13 + $0x70] sm:$0xff] %v5140
    %5173 = vst [vmem:[%s13 + $0x78] sm:$0xff] %v5141
    %5174 = vst [vmem:[%s13 + $0x80] sm:$0xff] %v5142
    %5175 = vst [vmem:[%s13 + $0x88] sm:$0xff] %v5143
    %5176 = vst [vmem:[%s13 + $0x90] sm:$0xff] %v5144
    %5177 = vst [vmem:[%s13 + $0x98] sm:$0xff] %v5145
    %5178 = vst [vmem:[%s13 + $0xa0] sm:$0xff] %v5146
    %5179 = vst [vmem:[%s13 + $0xa8] sm:$0xff] %v5147
    %5180 = vst [vmem:[%s13 + $0xb0] sm:$0xff] %v5148
    %5181 = vst [vmem:[%s13 + $0xb8] sm:$0xff] %v5149
    %5182 = vst [vmem:[%s13 + $0xc0] sm:$0xff] %v5150
    %5183 = vst [vmem:[%s13 + $0xc8] sm:$0xff] %v5151
    %5184 = vst [vmem:[%s13 + $0xd0] sm:$0xff] %v5152
    %5185 = vst [vmem:[%s13 + $0xd8] sm:$0xff] %v5153
    %5186 = vst [vmem:[%s13 + $0xe0] sm:$0xff] %v5154
    %5187 = vst [vmem:[%s13 + $0xe8] sm:$0xff] %v5155
    %5188 = vst [vmem:[%s13 + $0xf0] sm:$0xff] %v5156
    %5189 = vst [vmem:[%s13 + $0xf8] sm:$0xff] %v5157
    // Predicated region
    $region62: #{_mnn_forward_impl.1} parent=1 // pred_check
      _
    $region63: #{_mnn_forward_impl.1} parent=1 // pred_check_branch
      %5191 = sbr.rel (0) target = $region65
    $region64: #{_mnn_forward_impl.1} parent=1 // pred_region
      _
    $region65: #{_mnn_forward_impl.1} parent=1 // pred_fallthru
      _
    // Predicated region
    $region66: #{_mnn_forward_impl.1} parent=1 // pred_check
      _
    $region67: #{_mnn_forward_impl.1} parent=1 // pred_check_branch
      %5193 = sbr.rel (0) target = $region69
    $region68: #{_mnn_forward_impl.1} parent=1 // pred_region
      _
    $region69: #{_mnn_forward_impl.1} parent=1 // pred_fallthru
      _
    %5194 = vsyncpa [#allocation3], 1
    %5195 = vsyncpa [#allocation5], 1

</llo_original>
